<compile_context>
chip_gen: v5e
topology: v5e:2x2
jax: 0.10.0
libtpu: 0.0.40
codegen_flags: <defaults>
</compile_context>

<pallas_src>
import jax
import jax.numpy as jnp
from jax import lax
from jax.experimental import pallas as pl
from jax.experimental.pallas import tpu as pltpu

NUM_LAYERS = 5
H = 64              # hidden size
G2 = 4 * H          # 256 packed gate lanes: [r(0:64) | z(64:128) | n(128:192) | pad]
OUT = 5             # fc output features
OUT_P = 128         # lane-padded fc output width


def gru_fc_kernel(x_ref, wih0_ref, wih_ref, whh_ref, bi_ref, bhn_ref,
                  wfc_ref, bfc_ref, out_ref):
    # x_ref   : (T, Bp, 1)      raw input, time-major, batch padded to 8
    # wih0_ref: (1, G2)         layer-0 input->gate weights (input_size == 1)
    # wih_ref : (L-1, H, G2)    input->gate weights, layers 1..L-1
    # whh_ref : (L,   H, G2)    hidden->gate weights
    # bi_ref  : (L, 1, G2)      folded bias: b_ih(all gates) + b_hh(r,z only)
    # bhn_ref : (L, 1, H)       b_hn (n-gate hidden bias, kept inside r*(...))
    # wfc_ref : (H, OUT_P), bfc_ref: (1, OUT_P), out_ref: (Bp, OUT_P)
    T, B, _ = x_ref.shape
    L = NUM_LAYERS
    S = T + L - 1                                    # wavefront steps

    wih0 = wih0_ref[...]                             # (1, G2), loop-invariant

    def gru_cell(gi, gh, bhn_n, h):
        # gi already carries b_ih(all) + b_hh(r,z); gh is the raw h @ W_hh.
        rz = jax.nn.sigmoid(gi[:, :2 * H] + gh[:, :2 * H])      # one 128-lane sigmoid
        r = rz[:, :H]
        z = pltpu.roll(rz, shift=H, axis=1)[:, :H]               # realign z to lanes 0:H
        ghn = gh[:, 2 * H:3 * H] + bhn_n                         # + b_hn (PyTorch: inside r*(...))
        n = jnp.tanh(gi[:, 2 * H:3 * H] + r * ghn)
        return n + z * (h - n)                                   # (1-z)*n + z*h

    def wavefront_step(s, hs):
        new_hs = []
        # ---- layer 0: input projection is a VPU broadcast (no matmul) ----
        t0 = jnp.minimum(s, T - 1)                   # clamp; inactive steps are masked
        x_s = x_ref[t0]                              # (Bp, 1)
        gi0 = x_s * wih0 + bi_ref[0]                 # (Bp, G2)
        gh0 = jnp.dot(hs[0], whh_ref[0], preferred_element_type=jnp.float32)
        h0_new = gru_cell(gi0, gh0, bhn_ref[0], hs[0])
        new_hs.append(jnp.where(s < T, h0_new, hs[0]))
        # ---- layers 1..L-1: independent within the wavefront step ----
        for l in range(1, L):
            gi = (jnp.dot(hs[l - 1], wih_ref[l - 1],
                          preferred_element_type=jnp.float32) + bi_ref[l])
            gh = jnp.dot(hs[l], whh_ref[l], preferred_element_type=jnp.float32)
            h_new = gru_cell(gi, gh, bhn_ref[l], hs[l])
            active = jnp.logical_and(s >= l, s < T + l)
            new_hs.append(jnp.where(active, h_new, hs[l]))
        return tuple(new_hs)

    # h0 = 0 per layer (PyTorch default hx=None); all hidden states live in vregs.
    h_init = tuple(jnp.zeros((B, H), jnp.float32) for _ in range(L))
    unroll = True if S <= 32 else 8                  # bounded unroll for long sequences
    hs = lax.fori_loop(0, S, wavefront_step, h_init, unroll=unroll)

    # hs[-1] == output[:, -1, :] of the top layer.
    h_relu = jnp.maximum(hs[L - 1], 0.0)             # F.relu
    out_ref[...] = (jnp.dot(h_relu, wfc_ref[...],
                            preferred_element_type=jnp.float32) + bfc_ref[...])


def my_rnn_forward(x, packed):
    """x: (B, T, 1) float32 -> (B, 5) float32 (matches MyRNN eval forward)."""
    wih0, wih, whh, bi, bhn, wfc, bfc = packed
    B, T, f_in = x.shape
    assert f_in == 1

    Bp = ((max(B, 8) + 7) // 8) * 8                  # pad batch to f32 sublane tile
    x_tm = jnp.transpose(x, (1, 0, 2))               # (T, B, 1), time-major
    x_tm = jnp.pad(x_tm, ((0, 0), (0, Bp - B), (0, 0)))

    vmem = pl.BlockSpec(memory_space=pltpu.MemorySpace.VMEM)
    out = pl.pallas_call(
        gru_fc_kernel,
        out_shape=jax.ShapeDtypeStruct((Bp, OUT_P), jnp.float32),
        in_specs=[vmem] * 8,
        out_specs=vmem,
        # VMEM footprint: ~0.7 MiB of weights + 4 KiB per timestep of x; fits
        # comfortably in the default scoped VMEM on v5e/v6e/v7x (no slabs, no scratch).
    )(x_tm, wih0, wih, whh, bi, bhn, wfc, bfc)
    return out[:B, :OUT]


# ---------------------------------------------------------------------------
# Parameter handling: raw PyTorch-layout params + packing for the kernel.
# ---------------------------------------------------------------------------

def init_raw_params(key):
    """PyTorch-style GRU/Linear params, U(-1/sqrt(H), 1/sqrt(H))."""
    bound = 1.0 / jnp.sqrt(jnp.float32(H))
    keys = jax.random.split(key, 4 * NUM_LAYERS + 2)
    layers = []
    for l in range(NUM_LAYERS):
        in_size = 1 if l == 0 else H
        k0, k1, k2, k3 = keys[4 * l:4 * l + 4]
        w_ih = jax.random.uniform(k0, (3 * H, in_size), jnp.float32, -bound, bound)
        w_hh = jax.random.uniform(k1, (3 * H, H), jnp.float32, -bound, bound)
        b_ih = jax.random.uniform(k2, (3 * H,), jnp.float32, -bound, bound)
        b_hh = jax.random.uniform(k3, (3 * H,), jnp.float32, -bound, bound)
        layers.append((w_ih, w_hh, b_ih, b_hh))
    wfc = jax.random.uniform(keys[-2], (OUT, H), jnp.float32, -bound, bound)
    bfc = jax.random.uniform(keys[-1], (OUT,), jnp.float32, -bound, bound)
    return layers, wfc, bfc


def _pad_gates(w):
    """(..., 3H) [r|z|n] -> (..., G2) [r|z|n|0]: append H zero lanes."""
    pad = [(0, 0)] * (w.ndim - 1) + [(0, G2 - 3 * H)]
    return jnp.pad(w, pad)


def pack_params(layers, wfc, bfc):
    wih_l, whh_l, bi_l, bhn_l = [], [], [], []
    for (w_ih, w_hh, b_ih, b_hh) in layers:
        wih_l.append(_pad_gates(jnp.transpose(w_ih)))            # (in, G2)
        whh_l.append(_pad_gates(jnp.transpose(w_hh)))            # (H, G2)
        # Fold b_ih (all gates) + b_hh (r,z only) into the input-side bias.
        b_hh_rz = b_hh.at[2 * H:].set(0.0)
        bi_l.append(_pad_gates(b_ih + b_hh_rz).reshape(1, G2))
        bhn_l.append(b_hh[2 * H:3 * H].reshape(1, H))            # b_hn kept separate
    wih0 = wih_l[0]                                              # (1, G2)
    wih = jnp.stack(wih_l[1:])                                   # (L-1, H, G2)
    whh = jnp.stack(whh_l)                                       # (L, H, G2)
    bi = jnp.stack(bi_l)                                         # (L, 1, G2)
    bhn = jnp.stack(bhn_l)                                       # (L, 1, H)
    wfc_p = jnp.pad(jnp.transpose(wfc), ((0, 0), (0, OUT_P - OUT)))  # (H, OUT_P)
    bfc_p = jnp.pad(bfc, ((0, OUT_P - OUT),)).reshape(1, OUT_P)
    return wih0, wih, whh, bi, bhn, wfc_p, bfc_p


def reference_forward(x, layers, wfc, bfc):
    """Pure-JAX reference with PyTorch GRU eval semantics, raw (unpacked) params."""
    B, T, _ = x.shape
    hp = lax.Precision.HIGHEST
    inp = x                                                      # (B, T, in)
    for (w_ih, w_hh, b_ih, b_hh) in layers:
        h = jnp.zeros((B, H), jnp.float32)
        outs = []
        for t in range(T):
            gi = jnp.dot(inp[:, t, :], jnp.transpose(w_ih), precision=hp) + b_ih
            gh = jnp.dot(h, jnp.transpose(w_hh), precision=hp) + b_hh
            r = jax.nn.sigmoid(gi[:, :H] + gh[:, :H])
            z = jax.nn.sigmoid(gi[:, H:2 * H] + gh[:, H:2 * H])
            n = jnp.tanh(gi[:, 2 * H:] + r * gh[:, 2 * H:])
            h = (1.0 - z) * n + z * h
            outs.append(h)
        inp = jnp.stack(outs, axis=1)                            # (B, T, H)
    h_relu = jnp.maximum(inp[:, -1, :], 0.0)
    return jnp.dot(h_relu, jnp.transpose(wfc), precision=hp) + bfc


if __name__ == "__main__":
    key = jax.random.PRNGKey(0)
    k_params, k_x = jax.random.split(key)

    B, T = 2, 8
    layers, wfc, bfc = init_raw_params(k_params)
    packed = pack_params(layers, wfc, bfc)
    x = jax.random.normal(k_x, (B, T, 1), jnp.float32)

    out = my_rnn_forward(x, packed)
    out = jax.block_until_ready(out)
    assert out.shape == (B, OUT)

    ref = reference_forward(x, layers, wfc, bfc)
    assert jnp.allclose(out, ref, atol=5e-5, rtol=5e-5), (
        f"max|diff|={float(jnp.max(jnp.abs(out - ref)))}")
    print("KERNEL_OK")
</pallas_src>

<mosaic_0001>
module attributes {stable_mosaic.version = 11 : i64} {
  func.func @gru_fc_kernel(%arg0: memref<8x8x1xf32, #tpu.memory_space<vmem>>, %arg1: memref<1x256xf32, #tpu.memory_space<vmem>>, %arg2: memref<4x64x256xf32, #tpu.memory_space<vmem>>, %arg3: memref<5x64x256xf32, #tpu.memory_space<vmem>>, %arg4: memref<5x1x256xf32, #tpu.memory_space<vmem>>, %arg5: memref<5x1x64xf32, #tpu.memory_space<vmem>>, %arg6: memref<64x128xf32, #tpu.memory_space<vmem>>, %arg7: memref<1x128xf32, #tpu.memory_space<vmem>>, %arg8: memref<8x128xf32, #tpu.memory_space<vmem>>) attributes {dimension_semantics = [], scalar_prefetch = 0 : i64, scratch_operands = 0 : i64, tpu.core_type = #tpu.core_type<tc>} {
    %c0 = arith.constant 0 : index
    %c0_0 = arith.constant 0 : index
    %0 = vector.load %arg1[%c0, %c0_0] : memref<1x256xf32, #tpu.memory_space<vmem>>, vector<1x256xf32>
    %cst = arith.constant 0.000000e+00 : f32
    %1 = vector.broadcast %cst : f32 to vector<8x64xf32>
    %cst_1 = arith.constant 0.000000e+00 : f32
    %2 = vector.broadcast %cst_1 : f32 to vector<8x64xf32>
    %cst_2 = arith.constant 0.000000e+00 : f32
    %3 = vector.broadcast %cst_2 : f32 to vector<8x64xf32>
    %cst_3 = arith.constant 0.000000e+00 : f32
    %4 = vector.broadcast %cst_3 : f32 to vector<8x64xf32>
    %cst_4 = arith.constant 0.000000e+00 : f32
    %5 = vector.broadcast %cst_4 : f32 to vector<8x64xf32>
    %c0_i32 = arith.constant 0 : i32
    %c7_i32 = arith.constant 7 : i32
    %6 = arith.minsi %c0_i32, %c7_i32 : i32
    %7 = arith.index_cast %6 : i32 to index
    %c0_5 = arith.constant 0 : index
    %c0_6 = arith.constant 0 : index
    %8 = vector.load %arg0[%7, %c0_5, %c0_6] : memref<8x8x1xf32, #tpu.memory_space<vmem>>, vector<1x8x1xf32>
    %9 = vector.shape_cast %8 : vector<1x8x1xf32> to vector<8x1xf32>
    %10 = vector.broadcast %9 : vector<8x1xf32> to vector<8x256xf32>
    %11 = vector.broadcast %0 : vector<1x256xf32> to vector<8x256xf32>
    %12 = arith.mulf %10, %11 : vector<8x256xf32>
    %c0_7 = arith.constant 0 : index
    %c0_8 = arith.constant 0 : index
    %c0_9 = arith.constant 0 : index
    %13 = vector.load %arg4[%c0_7, %c0_8, %c0_9] : memref<5x1x256xf32, #tpu.memory_space<vmem>>, vector<1x1x256xf32>
    %14 = vector.shape_cast %13 : vector<1x1x256xf32> to vector<1x256xf32>
    %15 = vector.broadcast %14 : vector<1x256xf32> to vector<8x256xf32>
    %16 = arith.addf %12, %15 : vector<8x256xf32>
    %c0_10 = arith.constant 0 : index
    %c0_11 = arith.constant 0 : index
    %c0_12 = arith.constant 0 : index
    %17 = vector.load %arg3[%c0_10, %c0_11, %c0_12] : memref<5x64x256xf32, #tpu.memory_space<vmem>>, vector<1x64x256xf32>
    %18 = vector.shape_cast %17 : vector<1x64x256xf32> to vector<64x256xf32>
    %cst_13 = arith.constant dense<0.000000e+00> : vector<8x256xf32>
    %19 = tpu.matmul %1, %18, %cst_13 {dimension_numbers = #tpu.dot_dimension_numbers<[1], [0], [0], [1], [0, 0, 1, 1], [], []>} : vector<8x64xf32>, vector<64x256xf32>, vector<8x256xf32> -> vector<8x256xf32>
    %c0_14 = arith.constant 0 : index
    %c0_15 = arith.constant 0 : index
    %c0_16 = arith.constant 0 : index
    %20 = vector.load %arg5[%c0_14, %c0_15, %c0_16] : memref<5x1x64xf32, #tpu.memory_space<vmem>>, vector<1x1x64xf32>
    %21 = vector.shape_cast %20 : vector<1x1x64xf32> to vector<1x64xf32>
    %22 = vector.extract_strided_slice %16 {offsets = [0, 0], sizes = [8, 128], strides = [1, 1]} : vector<8x256xf32> to vector<8x128xf32>
    %23 = vector.extract_strided_slice %19 {offsets = [0, 0], sizes = [8, 128], strides = [1, 1]} : vector<8x256xf32> to vector<8x128xf32>
    %24 = arith.addf %22, %23 : vector<8x128xf32>
    %25 = arith.negf %24 : vector<8x128xf32>
    %26 = math.exp %25 : vector<8x128xf32>
    %cst_17 = arith.constant 1.000000e+00 : f32
    %27 = vector.broadcast %cst_17 : f32 to vector<8x128xf32>
    %28 = arith.addf %27, %26 : vector<8x128xf32>
    %29 = arith.divf %27, %28 : vector<8x128xf32>
    %30 = vector.extract_strided_slice %29 {offsets = [0, 0], sizes = [8, 64], strides = [1, 1]} : vector<8x128xf32> to vector<8x64xf32>
    %c64_i32 = arith.constant 64 : i32
    %31 = tpu.dynamic_rotate %29 by %c64_i32 dim 1 : vector<8x128xf32>, i32 -> vector<8x128xf32>
    %32 = vector.extract_strided_slice %31 {offsets = [0, 0], sizes = [8, 64], strides = [1, 1]} : vector<8x128xf32> to vector<8x64xf32>
    %33 = vector.extract_strided_slice %19 {offsets = [0, 128], sizes = [8, 64], strides = [1, 1]} : vector<8x256xf32> to vector<8x64xf32>
    %34 = vector.broadcast %21 : vector<1x64xf32> to vector<8x64xf32>
    %35 = arith.addf %33, %34 : vector<8x64xf32>
    %36 = vector.extract_strided_slice %16 {offsets = [0, 128], sizes = [8, 64], strides = [1, 1]} : vector<8x256xf32> to vector<8x64xf32>
    %37 = arith.mulf %30, %35 : vector<8x64xf32>
    %38 = arith.addf %36, %37 : vector<8x64xf32>
    %39 = math.tanh %38 : vector<8x64xf32>
    %40 = arith.subf %1, %39 : vector<8x64xf32>
    %41 = arith.mulf %32, %40 : vector<8x64xf32>
    %42 = arith.addf %39, %41 : vector<8x64xf32>
    %c8_i32 = arith.constant 8 : i32
    %43 = arith.cmpi slt, %c0_i32, %c8_i32 : i32
    %44 = arith.select %43, %42, %1 : vector<8x64xf32>
    %c0_18 = arith.constant 0 : index
    %c0_19 = arith.constant 0 : index
    %c0_20 = arith.constant 0 : index
    %45 = vector.load %arg2[%c0_18, %c0_19, %c0_20] : memref<4x64x256xf32, #tpu.memory_space<vmem>>, vector<1x64x256xf32>
    %46 = vector.shape_cast %45 : vector<1x64x256xf32> to vector<64x256xf32>
    %cst_21 = arith.constant dense<0.000000e+00> : vector<8x256xf32>
    %47 = tpu.matmul %1, %46, %cst_21 {dimension_numbers = #tpu.dot_dimension_numbers<[1], [0], [0], [1], [0, 0, 1, 1], [], []>} : vector<8x64xf32>, vector<64x256xf32>, vector<8x256xf32> -> vector<8x256xf32>
    %c1 = arith.constant 1 : index
    %c0_22 = arith.constant 0 : index
    %c0_23 = arith.constant 0 : index
    %48 = vector.load %arg4[%c1, %c0_22, %c0_23] : memref<5x1x256xf32, #tpu.memory_space<vmem>>, vector<1x1x256xf32>
    %49 = vector.shape_cast %48 : vector<1x1x256xf32> to vector<1x256xf32>
    %50 = vector.broadcast %49 : vector<1x256xf32> to vector<8x256xf32>
    %51 = arith.addf %47, %50 : vector<8x256xf32>
    %c1_24 = arith.constant 1 : index
    %c0_25 = arith.constant 0 : index
    %c0_26 = arith.constant 0 : index
    %52 = vector.load %arg3[%c1_24, %c0_25, %c0_26] : memref<5x64x256xf32, #tpu.memory_space<vmem>>, vector<1x64x256xf32>
    %53 = vector.shape_cast %52 : vector<1x64x256xf32> to vector<64x256xf32>
    %cst_27 = arith.constant dense<0.000000e+00> : vector<8x256xf32>
    %54 = tpu.matmul %2, %53, %cst_27 {dimension_numbers = #tpu.dot_dimension_numbers<[1], [0], [0], [1], [0, 0, 1, 1], [], []>} : vector<8x64xf32>, vector<64x256xf32>, vector<8x256xf32> -> vector<8x256xf32>
    %c1_28 = arith.constant 1 : index
    %c0_29 = arith.constant 0 : index
    %c0_30 = arith.constant 0 : index
    %55 = vector.load %arg5[%c1_28, %c0_29, %c0_30] : memref<5x1x64xf32, #tpu.memory_space<vmem>>, vector<1x1x64xf32>
    %56 = vector.shape_cast %55 : vector<1x1x64xf32> to vector<1x64xf32>
    %57 = vector.extract_strided_slice %51 {offsets = [0, 0], sizes = [8, 128], strides = [1, 1]} : vector<8x256xf32> to vector<8x128xf32>
    %58 = vector.extract_strided_slice %54 {offsets = [0, 0], sizes = [8, 128], strides = [1, 1]} : vector<8x256xf32> to vector<8x128xf32>
    %59 = arith.addf %57, %58 : vector<8x128xf32>
    %60 = arith.negf %59 : vector<8x128xf32>
    %61 = math.exp %60 : vector<8x128xf32>
    %cst_31 = arith.constant 1.000000e+00 : f32
    %62 = vector.broadcast %cst_31 : f32 to vector<8x128xf32>
    %63 = arith.addf %62, %61 : vector<8x128xf32>
    %64 = arith.divf %62, %63 : vector<8x128xf32>
    %65 = vector.extract_strided_slice %64 {offsets = [0, 0], sizes = [8, 64], strides = [1, 1]} : vector<8x128xf32> to vector<8x64xf32>
    %c64_i32_32 = arith.constant 64 : i32
    %66 = tpu.dynamic_rotate %64 by %c64_i32_32 dim 1 : vector<8x128xf32>, i32 -> vector<8x128xf32>
    %67 = vector.extract_strided_slice %66 {offsets = [0, 0], sizes = [8, 64], strides = [1, 1]} : vector<8x128xf32> to vector<8x64xf32>
    %68 = vector.extract_strided_slice %54 {offsets = [0, 128], sizes = [8, 64], strides = [1, 1]} : vector<8x256xf32> to vector<8x64xf32>
    %69 = vector.broadcast %56 : vector<1x64xf32> to vector<8x64xf32>
    %70 = arith.addf %68, %69 : vector<8x64xf32>
    %71 = vector.extract_strided_slice %51 {offsets = [0, 128], sizes = [8, 64], strides = [1, 1]} : vector<8x256xf32> to vector<8x64xf32>
    %72 = arith.mulf %65, %70 : vector<8x64xf32>
    %73 = arith.addf %71, %72 : vector<8x64xf32>
    %74 = math.tanh %73 : vector<8x64xf32>
    %75 = arith.subf %2, %74 : vector<8x64xf32>
    %76 = arith.mulf %67, %75 : vector<8x64xf32>
    %77 = arith.addf %74, %76 : vector<8x64xf32>
    %c1_i32 = arith.constant 1 : i32
    %78 = arith.cmpi sge, %c0_i32, %c1_i32 : i32
    %c9_i32 = arith.constant 9 : i32
    %79 = arith.cmpi slt, %c0_i32, %c9_i32 : i32
    %80 = arith.andi %78, %79 : i1
    %81 = arith.select %80, %77, %2 : vector<8x64xf32>
    %c1_33 = arith.constant 1 : index
    %c0_34 = arith.constant 0 : index
    %c0_35 = arith.constant 0 : index
    %82 = vector.load %arg2[%c1_33, %c0_34, %c0_35] : memref<4x64x256xf32, #tpu.memory_space<vmem>>, vector<1x64x256xf32>
    %83 = vector.shape_cast %82 : vector<1x64x256xf32> to vector<64x256xf32>
    %cst_36 = arith.constant dense<0.000000e+00> : vector<8x256xf32>
    %84 = tpu.matmul %2, %83, %cst_36 {dimension_numbers = #tpu.dot_dimension_numbers<[1], [0], [0], [1], [0, 0, 1, 1], [], []>} : vector<8x64xf32>, vector<64x256xf32>, vector<8x256xf32> -> vector<8x256xf32>
    %c2 = arith.constant 2 : index
    %c0_37 = arith.constant 0 : index
    %c0_38 = arith.constant 0 : index
    %85 = vector.load %arg4[%c2, %c0_37, %c0_38] : memref<5x1x256xf32, #tpu.memory_space<vmem>>, vector<1x1x256xf32>
    %86 = vector.shape_cast %85 : vector<1x1x256xf32> to vector<1x256xf32>
    %87 = vector.broadcast %86 : vector<1x256xf32> to vector<8x256xf32>
    %88 = arith.addf %84, %87 : vector<8x256xf32>
    %c2_39 = arith.constant 2 : index
    %c0_40 = arith.constant 0 : index
    %c0_41 = arith.constant 0 : index
    %89 = vector.load %arg3[%c2_39, %c0_40, %c0_41] : memref<5x64x256xf32, #tpu.memory_space<vmem>>, vector<1x64x256xf32>
    %90 = vector.shape_cast %89 : vector<1x64x256xf32> to vector<64x256xf32>
    %cst_42 = arith.constant dense<0.000000e+00> : vector<8x256xf32>
    %91 = tpu.matmul %3, %90, %cst_42 {dimension_numbers = #tpu.dot_dimension_numbers<[1], [0], [0], [1], [0, 0, 1, 1], [], []>} : vector<8x64xf32>, vector<64x256xf32>, vector<8x256xf32> -> vector<8x256xf32>
    %c2_43 = arith.constant 2 : index
    %c0_44 = arith.constant 0 : index
    %c0_45 = arith.constant 0 : index
    %92 = vector.load %arg5[%c2_43, %c0_44, %c0_45] : memref<5x1x64xf32, #tpu.memory_space<vmem>>, vector<1x1x64xf32>
    %93 = vector.shape_cast %92 : vector<1x1x64xf32> to vector<1x64xf32>
    %94 = vector.extract_strided_slice %88 {offsets = [0, 0], sizes = [8, 128], strides = [1, 1]} : vector<8x256xf32> to vector<8x128xf32>
    %95 = vector.extract_strided_slice %91 {offsets = [0, 0], sizes = [8, 128], strides = [1, 1]} : vector<8x256xf32> to vector<8x128xf32>
    %96 = arith.addf %94, %95 : vector<8x128xf32>
    %97 = arith.negf %96 : vector<8x128xf32>
    %98 = math.exp %97 : vector<8x128xf32>
    %cst_46 = arith.constant 1.000000e+00 : f32
    %99 = vector.broadcast %cst_46 : f32 to vector<8x128xf32>
    %100 = arith.addf %99, %98 : vector<8x128xf32>
    %101 = arith.divf %99, %100 : vector<8x128xf32>
    %102 = vector.extract_strided_slice %101 {offsets = [0, 0], sizes = [8, 64], strides = [1, 1]} : vector<8x128xf32> to vector<8x64xf32>
    %c64_i32_47 = arith.constant 64 : i32
    %103 = tpu.dynamic_rotate %101 by %c64_i32_47 dim 1 : vector<8x128xf32>, i32 -> vector<8x128xf32>
    %104 = vector.extract_strided_slice %103 {offsets = [0, 0], sizes = [8, 64], strides = [1, 1]} : vector<8x128xf32> to vector<8x64xf32>
    %105 = vector.extract_strided_slice %91 {offsets = [0, 128], sizes = [8, 64], strides = [1, 1]} : vector<8x256xf32> to vector<8x64xf32>
    %106 = vector.broadcast %93 : vector<1x64xf32> to vector<8x64xf32>
    %107 = arith.addf %105, %106 : vector<8x64xf32>
    %108 = vector.extract_strided_slice %88 {offsets = [0, 128], sizes = [8, 64], strides = [1, 1]} : vector<8x256xf32> to vector<8x64xf32>
    %109 = arith.mulf %102, %107 : vector<8x64xf32>
    %110 = arith.addf %108, %109 : vector<8x64xf32>
    %111 = math.tanh %110 : vector<8x64xf32>
    %112 = arith.subf %3, %111 : vector<8x64xf32>
    %113 = arith.mulf %104, %112 : vector<8x64xf32>
    %114 = arith.addf %111, %113 : vector<8x64xf32>
    %c2_i32 = arith.constant 2 : i32
    %115 = arith.cmpi sge, %c0_i32, %c2_i32 : i32
    %c10_i32 = arith.constant 10 : i32
    %116 = arith.cmpi slt, %c0_i32, %c10_i32 : i32
    %117 = arith.andi %115, %116 : i1
    %118 = arith.select %117, %114, %3 : vector<8x64xf32>
    %c2_48 = arith.constant 2 : index
    %c0_49 = arith.constant 0 : index
    %c0_50 = arith.constant 0 : index
    %119 = vector.load %arg2[%c2_48, %c0_49, %c0_50] : memref<4x64x256xf32, #tpu.memory_space<vmem>>, vector<1x64x256xf32>
    %120 = vector.shape_cast %119 : vector<1x64x256xf32> to vector<64x256xf32>
    %cst_51 = arith.constant dense<0.000000e+00> : vector<8x256xf32>
    %121 = tpu.matmul %3, %120, %cst_51 {dimension_numbers = #tpu.dot_dimension_numbers<[1], [0], [0], [1], [0, 0, 1, 1], [], []>} : vector<8x64xf32>, vector<64x256xf32>, vector<8x256xf32> -> vector<8x256xf32>
    %c3 = arith.constant 3 : index
    %c0_52 = arith.constant 0 : index
    %c0_53 = arith.constant 0 : index
    %122 = vector.load %arg4[%c3, %c0_52, %c0_53] : memref<5x1x256xf32, #tpu.memory_space<vmem>>, vector<1x1x256xf32>
    %123 = vector.shape_cast %122 : vector<1x1x256xf32> to vector<1x256xf32>
    %124 = vector.broadcast %123 : vector<1x256xf32> to vector<8x256xf32>
    %125 = arith.addf %121, %124 : vector<8x256xf32>
    %c3_54 = arith.constant 3 : index
    %c0_55 = arith.constant 0 : index
    %c0_56 = arith.constant 0 : index
    %126 = vector.load %arg3[%c3_54, %c0_55, %c0_56] : memref<5x64x256xf32, #tpu.memory_space<vmem>>, vector<1x64x256xf32>
    %127 = vector.shape_cast %126 : vector<1x64x256xf32> to vector<64x256xf32>
    %cst_57 = arith.constant dense<0.000000e+00> : vector<8x256xf32>
    %128 = tpu.matmul %4, %127, %cst_57 {dimension_numbers = #tpu.dot_dimension_numbers<[1], [0], [0], [1], [0, 0, 1, 1], [], []>} : vector<8x64xf32>, vector<64x256xf32>, vector<8x256xf32> -> vector<8x256xf32>
    %c3_58 = arith.constant 3 : index
    %c0_59 = arith.constant 0 : index
    %c0_60 = arith.constant 0 : index
    %129 = vector.load %arg5[%c3_58, %c0_59, %c0_60] : memref<5x1x64xf32, #tpu.memory_space<vmem>>, vector<1x1x64xf32>
    %130 = vector.shape_cast %129 : vector<1x1x64xf32> to vector<1x64xf32>
    %131 = vector.extract_strided_slice %125 {offsets = [0, 0], sizes = [8, 128], strides = [1, 1]} : vector<8x256xf32> to vector<8x128xf32>
    %132 = vector.extract_strided_slice %128 {offsets = [0, 0], sizes = [8, 128], strides = [1, 1]} : vector<8x256xf32> to vector<8x128xf32>
    %133 = arith.addf %131, %132 : vector<8x128xf32>
    %134 = arith.negf %133 : vector<8x128xf32>
    %135 = math.exp %134 : vector<8x128xf32>
    %cst_61 = arith.constant 1.000000e+00 : f32
    %136 = vector.broadcast %cst_61 : f32 to vector<8x128xf32>
    %137 = arith.addf %136, %135 : vector<8x128xf32>
    %138 = arith.divf %136, %137 : vector<8x128xf32>
    %139 = vector.extract_strided_slice %138 {offsets = [0, 0], sizes = [8, 64], strides = [1, 1]} : vector<8x128xf32> to vector<8x64xf32>
    %c64_i32_62 = arith.constant 64 : i32
    %140 = tpu.dynamic_rotate %138 by %c64_i32_62 dim 1 : vector<8x128xf32>, i32 -> vector<8x128xf32>
    %141 = vector.extract_strided_slice %140 {offsets = [0, 0], sizes = [8, 64], strides = [1, 1]} : vector<8x128xf32> to vector<8x64xf32>
    %142 = vector.extract_strided_slice %128 {offsets = [0, 128], sizes = [8, 64], strides = [1, 1]} : vector<8x256xf32> to vector<8x64xf32>
    %143 = vector.broadcast %130 : vector<1x64xf32> to vector<8x64xf32>
    %144 = arith.addf %142, %143 : vector<8x64xf32>
    %145 = vector.extract_strided_slice %125 {offsets = [0, 128], sizes = [8, 64], strides = [1, 1]} : vector<8x256xf32> to vector<8x64xf32>
    %146 = arith.mulf %139, %144 : vector<8x64xf32>
    %147 = arith.addf %145, %146 : vector<8x64xf32>
    %148 = math.tanh %147 : vector<8x64xf32>
    %149 = arith.subf %4, %148 : vector<8x64xf32>
    %150 = arith.mulf %141, %149 : vector<8x64xf32>
    %151 = arith.addf %148, %150 : vector<8x64xf32>
    %c3_i32 = arith.constant 3 : i32
    %152 = arith.cmpi sge, %c0_i32, %c3_i32 : i32
    %c11_i32 = arith.constant 11 : i32
    %153 = arith.cmpi slt, %c0_i32, %c11_i32 : i32
    %154 = arith.andi %152, %153 : i1
    %155 = arith.select %154, %151, %4 : vector<8x64xf32>
    %c3_63 = arith.constant 3 : index
    %c0_64 = arith.constant 0 : index
    %c0_65 = arith.constant 0 : index
    %156 = vector.load %arg2[%c3_63, %c0_64, %c0_65] : memref<4x64x256xf32, #tpu.memory_space<vmem>>, vector<1x64x256xf32>
    %157 = vector.shape_cast %156 : vector<1x64x256xf32> to vector<64x256xf32>
    %cst_66 = arith.constant dense<0.000000e+00> : vector<8x256xf32>
    %158 = tpu.matmul %4, %157, %cst_66 {dimension_numbers = #tpu.dot_dimension_numbers<[1], [0], [0], [1], [0, 0, 1, 1], [], []>} : vector<8x64xf32>, vector<64x256xf32>, vector<8x256xf32> -> vector<8x256xf32>
    %c4 = arith.constant 4 : index
    %c0_67 = arith.constant 0 : index
    %c0_68 = arith.constant 0 : index
    %159 = vector.load %arg4[%c4, %c0_67, %c0_68] : memref<5x1x256xf32, #tpu.memory_space<vmem>>, vector<1x1x256xf32>
    %160 = vector.shape_cast %159 : vector<1x1x256xf32> to vector<1x256xf32>
    %161 = vector.broadcast %160 : vector<1x256xf32> to vector<8x256xf32>
    %162 = arith.addf %158, %161 : vector<8x256xf32>
    %c4_69 = arith.constant 4 : index
    %c0_70 = arith.constant 0 : index
    %c0_71 = arith.constant 0 : index
    %163 = vector.load %arg3[%c4_69, %c0_70, %c0_71] : memref<5x64x256xf32, #tpu.memory_space<vmem>>, vector<1x64x256xf32>
    %164 = vector.shape_cast %163 : vector<1x64x256xf32> to vector<64x256xf32>
    %cst_72 = arith.constant dense<0.000000e+00> : vector<8x256xf32>
    %165 = tpu.matmul %5, %164, %cst_72 {dimension_numbers = #tpu.dot_dimension_numbers<[1], [0], [0], [1], [0, 0, 1, 1], [], []>} : vector<8x64xf32>, vector<64x256xf32>, vector<8x256xf32> -> vector<8x256xf32>
    %c4_73 = arith.constant 4 : index
    %c0_74 = arith.constant 0 : index
    %c0_75 = arith.constant 0 : index
    %166 = vector.load %arg5[%c4_73, %c0_74, %c0_75] : memref<5x1x64xf32, #tpu.memory_space<vmem>>, vector<1x1x64xf32>
    %167 = vector.shape_cast %166 : vector<1x1x64xf32> to vector<1x64xf32>
    %168 = vector.extract_strided_slice %162 {offsets = [0, 0], sizes = [8, 128], strides = [1, 1]} : vector<8x256xf32> to vector<8x128xf32>
    %169 = vector.extract_strided_slice %165 {offsets = [0, 0], sizes = [8, 128], strides = [1, 1]} : vector<8x256xf32> to vector<8x128xf32>
    %170 = arith.addf %168, %169 : vector<8x128xf32>
    %171 = arith.negf %170 : vector<8x128xf32>
    %172 = math.exp %171 : vector<8x128xf32>
    %cst_76 = arith.constant 1.000000e+00 : f32
    %173 = vector.broadcast %cst_76 : f32 to vector<8x128xf32>
    %174 = arith.addf %173, %172 : vector<8x128xf32>
    %175 = arith.divf %173, %174 : vector<8x128xf32>
    %176 = vector.extract_strided_slice %175 {offsets = [0, 0], sizes = [8, 64], strides = [1, 1]} : vector<8x128xf32> to vector<8x64xf32>
    %c64_i32_77 = arith.constant 64 : i32
    %177 = tpu.dynamic_rotate %175 by %c64_i32_77 dim 1 : vector<8x128xf32>, i32 -> vector<8x128xf32>
    %178 = vector.extract_strided_slice %177 {offsets = [0, 0], sizes = [8, 64], strides = [1, 1]} : vector<8x128xf32> to vector<8x64xf32>
    %179 = vector.extract_strided_slice %165 {offsets = [0, 128], sizes = [8, 64], strides = [1, 1]} : vector<8x256xf32> to vector<8x64xf32>
    %180 = vector.broadcast %167 : vector<1x64xf32> to vector<8x64xf32>
    %181 = arith.addf %179, %180 : vector<8x64xf32>
    %182 = vector.extract_strided_slice %162 {offsets = [0, 128], sizes = [8, 64], strides = [1, 1]} : vector<8x256xf32> to vector<8x64xf32>
    %183 = arith.mulf %176, %181 : vector<8x64xf32>
    %184 = arith.addf %182, %183 : vector<8x64xf32>
    %185 = math.tanh %184 : vector<8x64xf32>
    %186 = arith.subf %5, %185 : vector<8x64xf32>
    %187 = arith.mulf %178, %186 : vector<8x64xf32>
    %188 = arith.addf %185, %187 : vector<8x64xf32>
    %c4_i32 = arith.constant 4 : i32
    %189 = arith.cmpi sge, %c0_i32, %c4_i32 : i32
    %c12_i32 = arith.constant 12 : i32
    %190 = arith.cmpi slt, %c0_i32, %c12_i32 : i32
    %191 = arith.andi %189, %190 : i1
    %192 = arith.select %191, %188, %5 : vector<8x64xf32>
    %c1_i32_78 = arith.constant 1 : i32
    %c7_i32_79 = arith.constant 7 : i32
    %193 = arith.minsi %c1_i32_78, %c7_i32_79 : i32
    %194 = arith.index_cast %193 : i32 to index
    %c0_80 = arith.constant 0 : index
    %c0_81 = arith.constant 0 : index
    %195 = vector.load %arg0[%194, %c0_80, %c0_81] : memref<8x8x1xf32, #tpu.memory_space<vmem>>, vector<1x8x1xf32>
    %196 = vector.shape_cast %195 : vector<1x8x1xf32> to vector<8x1xf32>
    %197 = vector.broadcast %196 : vector<8x1xf32> to vector<8x256xf32>
    %198 = vector.broadcast %0 : vector<1x256xf32> to vector<8x256xf32>
    %199 = arith.mulf %197, %198 : vector<8x256xf32>
    %c0_82 = arith.constant 0 : index
    %c0_83 = arith.constant 0 : index
    %c0_84 = arith.constant 0 : index
    %200 = vector.load %arg4[%c0_82, %c0_83, %c0_84] : memref<5x1x256xf32, #tpu.memory_space<vmem>>, vector<1x1x256xf32>
    %201 = vector.shape_cast %200 : vector<1x1x256xf32> to vector<1x256xf32>
    %202 = vector.broadcast %201 : vector<1x256xf32> to vector<8x256xf32>
    %203 = arith.addf %199, %202 : vector<8x256xf32>
    %c0_85 = arith.constant 0 : index
    %c0_86 = arith.constant 0 : index
    %c0_87 = arith.constant 0 : index
    %204 = vector.load %arg3[%c0_85, %c0_86, %c0_87] : memref<5x64x256xf32, #tpu.memory_space<vmem>>, vector<1x64x256xf32>
    %205 = vector.shape_cast %204 : vector<1x64x256xf32> to vector<64x256xf32>
    %cst_88 = arith.constant dense<0.000000e+00> : vector<8x256xf32>
    %206 = tpu.matmul %44, %205, %cst_88 {dimension_numbers = #tpu.dot_dimension_numbers<[1], [0], [0], [1], [0, 0, 1, 1], [], []>} : vector<8x64xf32>, vector<64x256xf32>, vector<8x256xf32> -> vector<8x256xf32>
    %c0_89 = arith.constant 0 : index
    %c0_90 = arith.constant 0 : index
    %c0_91 = arith.constant 0 : index
    %207 = vector.load %arg5[%c0_89, %c0_90, %c0_91] : memref<5x1x64xf32, #tpu.memory_space<vmem>>, vector<1x1x64xf32>
    %208 = vector.shape_cast %207 : vector<1x1x64xf32> to vector<1x64xf32>
    %209 = vector.extract_strided_slice %203 {offsets = [0, 0], sizes = [8, 128], strides = [1, 1]} : vector<8x256xf32> to vector<8x128xf32>
    %210 = vector.extract_strided_slice %206 {offsets = [0, 0], sizes = [8, 128], strides = [1, 1]} : vector<8x256xf32> to vector<8x128xf32>
    %211 = arith.addf %209, %210 : vector<8x128xf32>
    %212 = arith.negf %211 : vector<8x128xf32>
    %213 = math.exp %212 : vector<8x128xf32>
    %cst_92 = arith.constant 1.000000e+00 : f32
    %214 = vector.broadcast %cst_92 : f32 to vector<8x128xf32>
    %215 = arith.addf %214, %213 : vector<8x128xf32>
    %216 = arith.divf %214, %215 : vector<8x128xf32>
    %217 = vector.extract_strided_slice %216 {offsets = [0, 0], sizes = [8, 64], strides = [1, 1]} : vector<8x128xf32> to vector<8x64xf32>
    %c64_i32_93 = arith.constant 64 : i32
    %218 = tpu.dynamic_rotate %216 by %c64_i32_93 dim 1 : vector<8x128xf32>, i32 -> vector<8x128xf32>
    %219 = vector.extract_strided_slice %218 {offsets = [0, 0], sizes = [8, 64], strides = [1, 1]} : vector<8x128xf32> to vector<8x64xf32>
    %220 = vector.extract_strided_slice %206 {offsets = [0, 128], sizes = [8, 64], strides = [1, 1]} : vector<8x256xf32> to vector<8x64xf32>
    %221 = vector.broadcast %208 : vector<1x64xf32> to vector<8x64xf32>
    %222 = arith.addf %220, %221 : vector<8x64xf32>
    %223 = vector.extract_strided_slice %203 {offsets = [0, 128], sizes = [8, 64], strides = [1, 1]} : vector<8x256xf32> to vector<8x64xf32>
    %224 = arith.mulf %217, %222 : vector<8x64xf32>
    %225 = arith.addf %223, %224 : vector<8x64xf32>
    %226 = math.tanh %225 : vector<8x64xf32>
    %227 = arith.subf %44, %226 : vector<8x64xf32>
    %228 = arith.mulf %219, %227 : vector<8x64xf32>
    %229 = arith.addf %226, %228 : vector<8x64xf32>
    %c8_i32_94 = arith.constant 8 : i32
    %230 = arith.cmpi slt, %c1_i32_78, %c8_i32_94 : i32
    %231 = arith.select %230, %229, %44 : vector<8x64xf32>
    %c0_95 = arith.constant 0 : index
    %c0_96 = arith.constant 0 : index
    %c0_97 = arith.constant 0 : index
    %232 = vector.load %arg2[%c0_95, %c0_96, %c0_97] : memref<4x64x256xf32, #tpu.memory_space<vmem>>, vector<1x64x256xf32>
    %233 = vector.shape_cast %232 : vector<1x64x256xf32> to vector<64x256xf32>
    %cst_98 = arith.constant dense<0.000000e+00> : vector<8x256xf32>
    %234 = tpu.matmul %44, %233, %cst_98 {dimension_numbers = #tpu.dot_dimension_numbers<[1], [0], [0], [1], [0, 0, 1, 1], [], []>} : vector<8x64xf32>, vector<64x256xf32>, vector<8x256xf32> -> vector<8x256xf32>
    %c1_99 = arith.constant 1 : index
    %c0_100 = arith.constant 0 : index
    %c0_101 = arith.constant 0 : index
    %235 = vector.load %arg4[%c1_99, %c0_100, %c0_101] : memref<5x1x256xf32, #tpu.memory_space<vmem>>, vector<1x1x256xf32>
    %236 = vector.shape_cast %235 : vector<1x1x256xf32> to vector<1x256xf32>
    %237 = vector.broadcast %236 : vector<1x256xf32> to vector<8x256xf32>
    %238 = arith.addf %234, %237 : vector<8x256xf32>
    %c1_102 = arith.constant 1 : index
    %c0_103 = arith.constant 0 : index
    %c0_104 = arith.constant 0 : index
    %239 = vector.load %arg3[%c1_102, %c0_103, %c0_104] : memref<5x64x256xf32, #tpu.memory_space<vmem>>, vector<1x64x256xf32>
    %240 = vector.shape_cast %239 : vector<1x64x256xf32> to vector<64x256xf32>
    %cst_105 = arith.constant dense<0.000000e+00> : vector<8x256xf32>
    %241 = tpu.matmul %81, %240, %cst_105 {dimension_numbers = #tpu.dot_dimension_numbers<[1], [0], [0], [1], [0, 0, 1, 1], [], []>} : vector<8x64xf32>, vector<64x256xf32>, vector<8x256xf32> -> vector<8x256xf32>
    %c1_106 = arith.constant 1 : index
    %c0_107 = arith.constant 0 : index
    %c0_108 = arith.constant 0 : index
    %242 = vector.load %arg5[%c1_106, %c0_107, %c0_108] : memref<5x1x64xf32, #tpu.memory_space<vmem>>, vector<1x1x64xf32>
    %243 = vector.shape_cast %242 : vector<1x1x64xf32> to vector<1x64xf32>
    %244 = vector.extract_strided_slice %238 {offsets = [0, 0], sizes = [8, 128], strides = [1, 1]} : vector<8x256xf32> to vector<8x128xf32>
    %245 = vector.extract_strided_slice %241 {offsets = [0, 0], sizes = [8, 128], strides = [1, 1]} : vector<8x256xf32> to vector<8x128xf32>
    %246 = arith.addf %244, %245 : vector<8x128xf32>
    %247 = arith.negf %246 : vector<8x128xf32>
    %248 = math.exp %247 : vector<8x128xf32>
    %cst_109 = arith.constant 1.000000e+00 : f32
    %249 = vector.broadcast %cst_109 : f32 to vector<8x128xf32>
    %250 = arith.addf %249, %248 : vector<8x128xf32>
    %251 = arith.divf %249, %250 : vector<8x128xf32>
    %252 = vector.extract_strided_slice %251 {offsets = [0, 0], sizes = [8, 64], strides = [1, 1]} : vector<8x128xf32> to vector<8x64xf32>
    %c64_i32_110 = arith.constant 64 : i32
    %253 = tpu.dynamic_rotate %251 by %c64_i32_110 dim 1 : vector<8x128xf32>, i32 -> vector<8x128xf32>
    %254 = vector.extract_strided_slice %253 {offsets = [0, 0], sizes = [8, 64], strides = [1, 1]} : vector<8x128xf32> to vector<8x64xf32>
    %255 = vector.extract_strided_slice %241 {offsets = [0, 128], sizes = [8, 64], strides = [1, 1]} : vector<8x256xf32> to vector<8x64xf32>
    %256 = vector.broadcast %243 : vector<1x64xf32> to vector<8x64xf32>
    %257 = arith.addf %255, %256 : vector<8x64xf32>
    %258 = vector.extract_strided_slice %238 {offsets = [0, 128], sizes = [8, 64], strides = [1, 1]} : vector<8x256xf32> to vector<8x64xf32>
    %259 = arith.mulf %252, %257 : vector<8x64xf32>
    %260 = arith.addf %258, %259 : vector<8x64xf32>
    %261 = math.tanh %260 : vector<8x64xf32>
    %262 = arith.subf %81, %261 : vector<8x64xf32>
    %263 = arith.mulf %254, %262 : vector<8x64xf32>
    %264 = arith.addf %261, %263 : vector<8x64xf32>
    %c1_i32_111 = arith.constant 1 : i32
    %265 = arith.cmpi sge, %c1_i32_78, %c1_i32_111 : i32
    %c9_i32_112 = arith.constant 9 : i32
    %266 = arith.cmpi slt, %c1_i32_78, %c9_i32_112 : i32
    %267 = arith.andi %265, %266 : i1
    %268 = arith.select %267, %264, %81 : vector<8x64xf32>
    %c1_113 = arith.constant 1 : index
    %c0_114 = arith.constant 0 : index
    %c0_115 = arith.constant 0 : index
    %269 = vector.load %arg2[%c1_113, %c0_114, %c0_115] : memref<4x64x256xf32, #tpu.memory_space<vmem>>, vector<1x64x256xf32>
    %270 = vector.shape_cast %269 : vector<1x64x256xf32> to vector<64x256xf32>
    %cst_116 = arith.constant dense<0.000000e+00> : vector<8x256xf32>
    %271 = tpu.matmul %81, %270, %cst_116 {dimension_numbers = #tpu.dot_dimension_numbers<[1], [0], [0], [1], [0, 0, 1, 1], [], []>} : vector<8x64xf32>, vector<64x256xf32>, vector<8x256xf32> -> vector<8x256xf32>
    %c2_117 = arith.constant 2 : index
    %c0_118 = arith.constant 0 : index
    %c0_119 = arith.constant 0 : index
    %272 = vector.load %arg4[%c2_117, %c0_118, %c0_119] : memref<5x1x256xf32, #tpu.memory_space<vmem>>, vector<1x1x256xf32>
    %273 = vector.shape_cast %272 : vector<1x1x256xf32> to vector<1x256xf32>
    %274 = vector.broadcast %273 : vector<1x256xf32> to vector<8x256xf32>
    %275 = arith.addf %271, %274 : vector<8x256xf32>
    %c2_120 = arith.constant 2 : index
    %c0_121 = arith.constant 0 : index
    %c0_122 = arith.constant 0 : index
    %276 = vector.load %arg3[%c2_120, %c0_121, %c0_122] : memref<5x64x256xf32, #tpu.memory_space<vmem>>, vector<1x64x256xf32>
    %277 = vector.shape_cast %276 : vector<1x64x256xf32> to vector<64x256xf32>
    %cst_123 = arith.constant dense<0.000000e+00> : vector<8x256xf32>
    %278 = tpu.matmul %118, %277, %cst_123 {dimension_numbers = #tpu.dot_dimension_numbers<[1], [0], [0], [1], [0, 0, 1, 1], [], []>} : vector<8x64xf32>, vector<64x256xf32>, vector<8x256xf32> -> vector<8x256xf32>
    %c2_124 = arith.constant 2 : index
    %c0_125 = arith.constant 0 : index
    %c0_126 = arith.constant 0 : index
    %279 = vector.load %arg5[%c2_124, %c0_125, %c0_126] : memref<5x1x64xf32, #tpu.memory_space<vmem>>, vector<1x1x64xf32>
    %280 = vector.shape_cast %279 : vector<1x1x64xf32> to vector<1x64xf32>
    %281 = vector.extract_strided_slice %275 {offsets = [0, 0], sizes = [8, 128], strides = [1, 1]} : vector<8x256xf32> to vector<8x128xf32>
    %282 = vector.extract_strided_slice %278 {offsets = [0, 0], sizes = [8, 128], strides = [1, 1]} : vector<8x256xf32> to vector<8x128xf32>
    %283 = arith.addf %281, %282 : vector<8x128xf32>
    %284 = arith.negf %283 : vector<8x128xf32>
    %285 = math.exp %284 : vector<8x128xf32>
    %cst_127 = arith.constant 1.000000e+00 : f32
    %286 = vector.broadcast %cst_127 : f32 to vector<8x128xf32>
    %287 = arith.addf %286, %285 : vector<8x128xf32>
    %288 = arith.divf %286, %287 : vector<8x128xf32>
    %289 = vector.extract_strided_slice %288 {offsets = [0, 0], sizes = [8, 64], strides = [1, 1]} : vector<8x128xf32> to vector<8x64xf32>
    %c64_i32_128 = arith.constant 64 : i32
    %290 = tpu.dynamic_rotate %288 by %c64_i32_128 dim 1 : vector<8x128xf32>, i32 -> vector<8x128xf32>
    %291 = vector.extract_strided_slice %290 {offsets = [0, 0], sizes = [8, 64], strides = [1, 1]} : vector<8x128xf32> to vector<8x64xf32>
    %292 = vector.extract_strided_slice %278 {offsets = [0, 128], sizes = [8, 64], strides = [1, 1]} : vector<8x256xf32> to vector<8x64xf32>
    %293 = vector.broadcast %280 : vector<1x64xf32> to vector<8x64xf32>
    %294 = arith.addf %292, %293 : vector<8x64xf32>
    %295 = vector.extract_strided_slice %275 {offsets = [0, 128], sizes = [8, 64], strides = [1, 1]} : vector<8x256xf32> to vector<8x64xf32>
    %296 = arith.mulf %289, %294 : vector<8x64xf32>
    %297 = arith.addf %295, %296 : vector<8x64xf32>
    %298 = math.tanh %297 : vector<8x64xf32>
    %299 = arith.subf %118, %298 : vector<8x64xf32>
    %300 = arith.mulf %291, %299 : vector<8x64xf32>
    %301 = arith.addf %298, %300 : vector<8x64xf32>
    %c2_i32_129 = arith.constant 2 : i32
    %302 = arith.cmpi sge, %c1_i32_78, %c2_i32_129 : i32
    %c10_i32_130 = arith.constant 10 : i32
    %303 = arith.cmpi slt, %c1_i32_78, %c10_i32_130 : i32
    %304 = arith.andi %302, %303 : i1
    %305 = arith.select %304, %301, %118 : vector<8x64xf32>
    %c2_131 = arith.constant 2 : index
    %c0_132 = arith.constant 0 : index
    %c0_133 = arith.constant 0 : index
    %306 = vector.load %arg2[%c2_131, %c0_132, %c0_133] : memref<4x64x256xf32, #tpu.memory_space<vmem>>, vector<1x64x256xf32>
    %307 = vector.shape_cast %306 : vector<1x64x256xf32> to vector<64x256xf32>
    %cst_134 = arith.constant dense<0.000000e+00> : vector<8x256xf32>
    %308 = tpu.matmul %118, %307, %cst_134 {dimension_numbers = #tpu.dot_dimension_numbers<[1], [0], [0], [1], [0, 0, 1, 1], [], []>} : vector<8x64xf32>, vector<64x256xf32>, vector<8x256xf32> -> vector<8x256xf32>
    %c3_135 = arith.constant 3 : index
    %c0_136 = arith.constant 0 : index
    %c0_137 = arith.constant 0 : index
    %309 = vector.load %arg4[%c3_135, %c0_136, %c0_137] : memref<5x1x256xf32, #tpu.memory_space<vmem>>, vector<1x1x256xf32>
    %310 = vector.shape_cast %309 : vector<1x1x256xf32> to vector<1x256xf32>
    %311 = vector.broadcast %310 : vector<1x256xf32> to vector<8x256xf32>
    %312 = arith.addf %308, %311 : vector<8x256xf32>
    %c3_138 = arith.constant 3 : index
    %c0_139 = arith.constant 0 : index
    %c0_140 = arith.constant 0 : index
    %313 = vector.load %arg3[%c3_138, %c0_139, %c0_140] : memref<5x64x256xf32, #tpu.memory_space<vmem>>, vector<1x64x256xf32>
    %314 = vector.shape_cast %313 : vector<1x64x256xf32> to vector<64x256xf32>
    %cst_141 = arith.constant dense<0.000000e+00> : vector<8x256xf32>
    %315 = tpu.matmul %155, %314, %cst_141 {dimension_numbers = #tpu.dot_dimension_numbers<[1], [0], [0], [1], [0, 0, 1, 1], [], []>} : vector<8x64xf32>, vector<64x256xf32>, vector<8x256xf32> -> vector<8x256xf32>
    %c3_142 = arith.constant 3 : index
    %c0_143 = arith.constant 0 : index
    %c0_144 = arith.constant 0 : index
    %316 = vector.load %arg5[%c3_142, %c0_143, %c0_144] : memref<5x1x64xf32, #tpu.memory_space<vmem>>, vector<1x1x64xf32>
    %317 = vector.shape_cast %316 : vector<1x1x64xf32> to vector<1x64xf32>
    %318 = vector.extract_strided_slice %312 {offsets = [0, 0], sizes = [8, 128], strides = [1, 1]} : vector<8x256xf32> to vector<8x128xf32>
    %319 = vector.extract_strided_slice %315 {offsets = [0, 0], sizes = [8, 128], strides = [1, 1]} : vector<8x256xf32> to vector<8x128xf32>
    %320 = arith.addf %318, %319 : vector<8x128xf32>
    %321 = arith.negf %320 : vector<8x128xf32>
    %322 = math.exp %321 : vector<8x128xf32>
    %cst_145 = arith.constant 1.000000e+00 : f32
    %323 = vector.broadcast %cst_145 : f32 to vector<8x128xf32>
    %324 = arith.addf %323, %322 : vector<8x128xf32>
    %325 = arith.divf %323, %324 : vector<8x128xf32>
    %326 = vector.extract_strided_slice %325 {offsets = [0, 0], sizes = [8, 64], strides = [1, 1]} : vector<8x128xf32> to vector<8x64xf32>
    %c64_i32_146 = arith.constant 64 : i32
    %327 = tpu.dynamic_rotate %325 by %c64_i32_146 dim 1 : vector<8x128xf32>, i32 -> vector<8x128xf32>
    %328 = vector.extract_strided_slice %327 {offsets = [0, 0], sizes = [8, 64], strides = [1, 1]} : vector<8x128xf32> to vector<8x64xf32>
    %329 = vector.extract_strided_slice %315 {offsets = [0, 128], sizes = [8, 64], strides = [1, 1]} : vector<8x256xf32> to vector<8x64xf32>
    %330 = vector.broadcast %317 : vector<1x64xf32> to vector<8x64xf32>
    %331 = arith.addf %329, %330 : vector<8x64xf32>
    %332 = vector.extract_strided_slice %312 {offsets = [0, 128], sizes = [8, 64], strides = [1, 1]} : vector<8x256xf32> to vector<8x64xf32>
    %333 = arith.mulf %326, %331 : vector<8x64xf32>
    %334 = arith.addf %332, %333 : vector<8x64xf32>
    %335 = math.tanh %334 : vector<8x64xf32>
    %336 = arith.subf %155, %335 : vector<8x64xf32>
    %337 = arith.mulf %328, %336 : vector<8x64xf32>
    %338 = arith.addf %335, %337 : vector<8x64xf32>
    %c3_i32_147 = arith.constant 3 : i32
    %339 = arith.cmpi sge, %c1_i32_78, %c3_i32_147 : i32
    %c11_i32_148 = arith.constant 11 : i32
    %340 = arith.cmpi slt, %c1_i32_78, %c11_i32_148 : i32
    %341 = arith.andi %339, %340 : i1
    %342 = arith.select %341, %338, %155 : vector<8x64xf32>
    %c3_149 = arith.constant 3 : index
    %c0_150 = arith.constant 0 : index
    %c0_151 = arith.constant 0 : index
    %343 = vector.load %arg2[%c3_149, %c0_150, %c0_151] : memref<4x64x256xf32, #tpu.memory_space<vmem>>, vector<1x64x256xf32>
    %344 = vector.shape_cast %343 : vector<1x64x256xf32> to vector<64x256xf32>
    %cst_152 = arith.constant dense<0.000000e+00> : vector<8x256xf32>
    %345 = tpu.matmul %155, %344, %cst_152 {dimension_numbers = #tpu.dot_dimension_numbers<[1], [0], [0], [1], [0, 0, 1, 1], [], []>} : vector<8x64xf32>, vector<64x256xf32>, vector<8x256xf32> -> vector<8x256xf32>
    %c4_153 = arith.constant 4 : index
    %c0_154 = arith.constant 0 : index
    %c0_155 = arith.constant 0 : index
    %346 = vector.load %arg4[%c4_153, %c0_154, %c0_155] : memref<5x1x256xf32, #tpu.memory_space<vmem>>, vector<1x1x256xf32>
    %347 = vector.shape_cast %346 : vector<1x1x256xf32> to vector<1x256xf32>
    %348 = vector.broadcast %347 : vector<1x256xf32> to vector<8x256xf32>
    %349 = arith.addf %345, %348 : vector<8x256xf32>
    %c4_156 = arith.constant 4 : index
    %c0_157 = arith.constant 0 : index
    %c0_158 = arith.constant 0 : index
    %350 = vector.load %arg3[%c4_156, %c0_157, %c0_158] : memref<5x64x256xf32, #tpu.memory_space<vmem>>, vector<1x64x256xf32>
    %351 = vector.shape_cast %350 : vector<1x64x256xf32> to vector<64x256xf32>
    %cst_159 = arith.constant dense<0.000000e+00> : vector<8x256xf32>
    %352 = tpu.matmul %192, %351, %cst_159 {dimension_numbers = #tpu.dot_dimension_numbers<[1], [0], [0], [1], [0, 0, 1, 1], [], []>} : vector<8x64xf32>, vector<64x256xf32>, vector<8x256xf32> -> vector<8x256xf32>
    %c4_160 = arith.constant 4 : index
    %c0_161 = arith.constant 0 : index
    %c0_162 = arith.constant 0 : index
    %353 = vector.load %arg5[%c4_160, %c0_161, %c0_162] : memref<5x1x64xf32, #tpu.memory_space<vmem>>, vector<1x1x64xf32>
    %354 = vector.shape_cast %353 : vector<1x1x64xf32> to vector<1x64xf32>
    %355 = vector.extract_strided_slice %349 {offsets = [0, 0], sizes = [8, 128], strides = [1, 1]} : vector<8x256xf32> to vector<8x128xf32>
    %356 = vector.extract_strided_slice %352 {offsets = [0, 0], sizes = [8, 128], strides = [1, 1]} : vector<8x256xf32> to vector<8x128xf32>
    %357 = arith.addf %355, %356 : vector<8x128xf32>
    %358 = arith.negf %357 : vector<8x128xf32>
    %359 = math.exp %358 : vector<8x128xf32>
    %cst_163 = arith.constant 1.000000e+00 : f32
    %360 = vector.broadcast %cst_163 : f32 to vector<8x128xf32>
    %361 = arith.addf %360, %359 : vector<8x128xf32>
    %362 = arith.divf %360, %361 : vector<8x128xf32>
    %363 = vector.extract_strided_slice %362 {offsets = [0, 0], sizes = [8, 64], strides = [1, 1]} : vector<8x128xf32> to vector<8x64xf32>
    %c64_i32_164 = arith.constant 64 : i32
    %364 = tpu.dynamic_rotate %362 by %c64_i32_164 dim 1 : vector<8x128xf32>, i32 -> vector<8x128xf32>
    %365 = vector.extract_strided_slice %364 {offsets = [0, 0], sizes = [8, 64], strides = [1, 1]} : vector<8x128xf32> to vector<8x64xf32>
    %366 = vector.extract_strided_slice %352 {offsets = [0, 128], sizes = [8, 64], strides = [1, 1]} : vector<8x256xf32> to vector<8x64xf32>
    %367 = vector.broadcast %354 : vector<1x64xf32> to vector<8x64xf32>
    %368 = arith.addf %366, %367 : vector<8x64xf32>
    %369 = vector.extract_strided_slice %349 {offsets = [0, 128], sizes = [8, 64], strides = [1, 1]} : vector<8x256xf32> to vector<8x64xf32>
    %370 = arith.mulf %363, %368 : vector<8x64xf32>
    %371 = arith.addf %369, %370 : vector<8x64xf32>
    %372 = math.tanh %371 : vector<8x64xf32>
    %373 = arith.subf %192, %372 : vector<8x64xf32>
    %374 = arith.mulf %365, %373 : vector<8x64xf32>
    %375 = arith.addf %372, %374 : vector<8x64xf32>
    %c4_i32_165 = arith.constant 4 : i32
    %376 = arith.cmpi sge, %c1_i32_78, %c4_i32_165 : i32
    %c12_i32_166 = arith.constant 12 : i32
    %377 = arith.cmpi slt, %c1_i32_78, %c12_i32_166 : i32
    %378 = arith.andi %376, %377 : i1
    %379 = arith.select %378, %375, %192 : vector<8x64xf32>
    %c2_i32_167 = arith.constant 2 : i32
    %c7_i32_168 = arith.constant 7 : i32
    %380 = arith.minsi %c2_i32_167, %c7_i32_168 : i32
    %381 = arith.index_cast %380 : i32 to index
    %c0_169 = arith.constant 0 : index
    %c0_170 = arith.constant 0 : index
    %382 = vector.load %arg0[%381, %c0_169, %c0_170] : memref<8x8x1xf32, #tpu.memory_space<vmem>>, vector<1x8x1xf32>
    %383 = vector.shape_cast %382 : vector<1x8x1xf32> to vector<8x1xf32>
    %384 = vector.broadcast %383 : vector<8x1xf32> to vector<8x256xf32>
    %385 = vector.broadcast %0 : vector<1x256xf32> to vector<8x256xf32>
    %386 = arith.mulf %384, %385 : vector<8x256xf32>
    %c0_171 = arith.constant 0 : index
    %c0_172 = arith.constant 0 : index
    %c0_173 = arith.constant 0 : index
    %387 = vector.load %arg4[%c0_171, %c0_172, %c0_173] : memref<5x1x256xf32, #tpu.memory_space<vmem>>, vector<1x1x256xf32>
    %388 = vector.shape_cast %387 : vector<1x1x256xf32> to vector<1x256xf32>
    %389 = vector.broadcast %388 : vector<1x256xf32> to vector<8x256xf32>
    %390 = arith.addf %386, %389 : vector<8x256xf32>
    %c0_174 = arith.constant 0 : index
    %c0_175 = arith.constant 0 : index
    %c0_176 = arith.constant 0 : index
    %391 = vector.load %arg3[%c0_174, %c0_175, %c0_176] : memref<5x64x256xf32, #tpu.memory_space<vmem>>, vector<1x64x256xf32>
    %392 = vector.shape_cast %391 : vector<1x64x256xf32> to vector<64x256xf32>
    %cst_177 = arith.constant dense<0.000000e+00> : vector<8x256xf32>
    %393 = tpu.matmul %231, %392, %cst_177 {dimension_numbers = #tpu.dot_dimension_numbers<[1], [0], [0], [1], [0, 0, 1, 1], [], []>} : vector<8x64xf32>, vector<64x256xf32>, vector<8x256xf32> -> vector<8x256xf32>
    %c0_178 = arith.constant 0 : index
    %c0_179 = arith.constant 0 : index
    %c0_180 = arith.constant 0 : index
    %394 = vector.load %arg5[%c0_178, %c0_179, %c0_180] : memref<5x1x64xf32, #tpu.memory_space<vmem>>, vector<1x1x64xf32>
    %395 = vector.shape_cast %394 : vector<1x1x64xf32> to vector<1x64xf32>
    %396 = vector.extract_strided_slice %390 {offsets = [0, 0], sizes = [8, 128], strides = [1, 1]} : vector<8x256xf32> to vector<8x128xf32>
    %397 = vector.extract_strided_slice %393 {offsets = [0, 0], sizes = [8, 128], strides = [1, 1]} : vector<8x256xf32> to vector<8x128xf32>
    %398 = arith.addf %396, %397 : vector<8x128xf32>
    %399 = arith.negf %398 : vector<8x128xf32>
    %400 = math.exp %399 : vector<8x128xf32>
    %cst_181 = arith.constant 1.000000e+00 : f32
    %401 = vector.broadcast %cst_181 : f32 to vector<8x128xf32>
    %402 = arith.addf %401, %400 : vector<8x128xf32>
    %403 = arith.divf %401, %402 : vector<8x128xf32>
    %404 = vector.extract_strided_slice %403 {offsets = [0, 0], sizes = [8, 64], strides = [1, 1]} : vector<8x128xf32> to vector<8x64xf32>
    %c64_i32_182 = arith.constant 64 : i32
    %405 = tpu.dynamic_rotate %403 by %c64_i32_182 dim 1 : vector<8x128xf32>, i32 -> vector<8x128xf32>
    %406 = vector.extract_strided_slice %405 {offsets = [0, 0], sizes = [8, 64], strides = [1, 1]} : vector<8x128xf32> to vector<8x64xf32>
    %407 = vector.extract_strided_slice %393 {offsets = [0, 128], sizes = [8, 64], strides = [1, 1]} : vector<8x256xf32> to vector<8x64xf32>
    %408 = vector.broadcast %395 : vector<1x64xf32> to vector<8x64xf32>
    %409 = arith.addf %407, %408 : vector<8x64xf32>
    %410 = vector.extract_strided_slice %390 {offsets = [0, 128], sizes = [8, 64], strides = [1, 1]} : vector<8x256xf32> to vector<8x64xf32>
    %411 = arith.mulf %404, %409 : vector<8x64xf32>
    %412 = arith.addf %410, %411 : vector<8x64xf32>
    %413 = math.tanh %412 : vector<8x64xf32>
    %414 = arith.subf %231, %413 : vector<8x64xf32>
    %415 = arith.mulf %406, %414 : vector<8x64xf32>
    %416 = arith.addf %413, %415 : vector<8x64xf32>
    %c8_i32_183 = arith.constant 8 : i32
    %417 = arith.cmpi slt, %c2_i32_167, %c8_i32_183 : i32
    %418 = arith.select %417, %416, %231 : vector<8x64xf32>
    %c0_184 = arith.constant 0 : index
    %c0_185 = arith.constant 0 : index
    %c0_186 = arith.constant 0 : index
    %419 = vector.load %arg2[%c0_184, %c0_185, %c0_186] : memref<4x64x256xf32, #tpu.memory_space<vmem>>, vector<1x64x256xf32>
    %420 = vector.shape_cast %419 : vector<1x64x256xf32> to vector<64x256xf32>
    %cst_187 = arith.constant dense<0.000000e+00> : vector<8x256xf32>
    %421 = tpu.matmul %231, %420, %cst_187 {dimension_numbers = #tpu.dot_dimension_numbers<[1], [0], [0], [1], [0, 0, 1, 1], [], []>} : vector<8x64xf32>, vector<64x256xf32>, vector<8x256xf32> -> vector<8x256xf32>
    %c1_188 = arith.constant 1 : index
    %c0_189 = arith.constant 0 : index
    %c0_190 = arith.constant 0 : index
    %422 = vector.load %arg4[%c1_188, %c0_189, %c0_190] : memref<5x1x256xf32, #tpu.memory_space<vmem>>, vector<1x1x256xf32>
    %423 = vector.shape_cast %422 : vector<1x1x256xf32> to vector<1x256xf32>
    %424 = vector.broadcast %423 : vector<1x256xf32> to vector<8x256xf32>
    %425 = arith.addf %421, %424 : vector<8x256xf32>
    %c1_191 = arith.constant 1 : index
    %c0_192 = arith.constant 0 : index
    %c0_193 = arith.constant 0 : index
    %426 = vector.load %arg3[%c1_191, %c0_192, %c0_193] : memref<5x64x256xf32, #tpu.memory_space<vmem>>, vector<1x64x256xf32>
    %427 = vector.shape_cast %426 : vector<1x64x256xf32> to vector<64x256xf32>
    %cst_194 = arith.constant dense<0.000000e+00> : vector<8x256xf32>
    %428 = tpu.matmul %268, %427, %cst_194 {dimension_numbers = #tpu.dot_dimension_numbers<[1], [0], [0], [1], [0, 0, 1, 1], [], []>} : vector<8x64xf32>, vector<64x256xf32>, vector<8x256xf32> -> vector<8x256xf32>
    %c1_195 = arith.constant 1 : index
    %c0_196 = arith.constant 0 : index
    %c0_197 = arith.constant 0 : index
    %429 = vector.load %arg5[%c1_195, %c0_196, %c0_197] : memref<5x1x64xf32, #tpu.memory_space<vmem>>, vector<1x1x64xf32>
    %430 = vector.shape_cast %429 : vector<1x1x64xf32> to vector<1x64xf32>
    %431 = vector.extract_strided_slice %425 {offsets = [0, 0], sizes = [8, 128], strides = [1, 1]} : vector<8x256xf32> to vector<8x128xf32>
    %432 = vector.extract_strided_slice %428 {offsets = [0, 0], sizes = [8, 128], strides = [1, 1]} : vector<8x256xf32> to vector<8x128xf32>
    %433 = arith.addf %431, %432 : vector<8x128xf32>
    %434 = arith.negf %433 : vector<8x128xf32>
    %435 = math.exp %434 : vector<8x128xf32>
    %cst_198 = arith.constant 1.000000e+00 : f32
    %436 = vector.broadcast %cst_198 : f32 to vector<8x128xf32>
    %437 = arith.addf %436, %435 : vector<8x128xf32>
    %438 = arith.divf %436, %437 : vector<8x128xf32>
    %439 = vector.extract_strided_slice %438 {offsets = [0, 0], sizes = [8, 64], strides = [1, 1]} : vector<8x128xf32> to vector<8x64xf32>
    %c64_i32_199 = arith.constant 64 : i32
    %440 = tpu.dynamic_rotate %438 by %c64_i32_199 dim 1 : vector<8x128xf32>, i32 -> vector<8x128xf32>
    %441 = vector.extract_strided_slice %440 {offsets = [0, 0], sizes = [8, 64], strides = [1, 1]} : vector<8x128xf32> to vector<8x64xf32>
    %442 = vector.extract_strided_slice %428 {offsets = [0, 128], sizes = [8, 64], strides = [1, 1]} : vector<8x256xf32> to vector<8x64xf32>
    %443 = vector.broadcast %430 : vector<1x64xf32> to vector<8x64xf32>
    %444 = arith.addf %442, %443 : vector<8x64xf32>
    %445 = vector.extract_strided_slice %425 {offsets = [0, 128], sizes = [8, 64], strides = [1, 1]} : vector<8x256xf32> to vector<8x64xf32>
    %446 = arith.mulf %439, %444 : vector<8x64xf32>
    %447 = arith.addf %445, %446 : vector<8x64xf32>
    %448 = math.tanh %447 : vector<8x64xf32>
    %449 = arith.subf %268, %448 : vector<8x64xf32>
    %450 = arith.mulf %441, %449 : vector<8x64xf32>
    %451 = arith.addf %448, %450 : vector<8x64xf32>
    %c1_i32_200 = arith.constant 1 : i32
    %452 = arith.cmpi sge, %c2_i32_167, %c1_i32_200 : i32
    %c9_i32_201 = arith.constant 9 : i32
    %453 = arith.cmpi slt, %c2_i32_167, %c9_i32_201 : i32
    %454 = arith.andi %452, %453 : i1
    %455 = arith.select %454, %451, %268 : vector<8x64xf32>
    %c1_202 = arith.constant 1 : index
    %c0_203 = arith.constant 0 : index
    %c0_204 = arith.constant 0 : index
    %456 = vector.load %arg2[%c1_202, %c0_203, %c0_204] : memref<4x64x256xf32, #tpu.memory_space<vmem>>, vector<1x64x256xf32>
    %457 = vector.shape_cast %456 : vector<1x64x256xf32> to vector<64x256xf32>
    %cst_205 = arith.constant dense<0.000000e+00> : vector<8x256xf32>
    %458 = tpu.matmul %268, %457, %cst_205 {dimension_numbers = #tpu.dot_dimension_numbers<[1], [0], [0], [1], [0, 0, 1, 1], [], []>} : vector<8x64xf32>, vector<64x256xf32>, vector<8x256xf32> -> vector<8x256xf32>
    %c2_206 = arith.constant 2 : index
    %c0_207 = arith.constant 0 : index
    %c0_208 = arith.constant 0 : index
    %459 = vector.load %arg4[%c2_206, %c0_207, %c0_208] : memref<5x1x256xf32, #tpu.memory_space<vmem>>, vector<1x1x256xf32>
    %460 = vector.shape_cast %459 : vector<1x1x256xf32> to vector<1x256xf32>
    %461 = vector.broadcast %460 : vector<1x256xf32> to vector<8x256xf32>
    %462 = arith.addf %458, %461 : vector<8x256xf32>
    %c2_209 = arith.constant 2 : index
    %c0_210 = arith.constant 0 : index
    %c0_211 = arith.constant 0 : index
    %463 = vector.load %arg3[%c2_209, %c0_210, %c0_211] : memref<5x64x256xf32, #tpu.memory_space<vmem>>, vector<1x64x256xf32>
    %464 = vector.shape_cast %463 : vector<1x64x256xf32> to vector<64x256xf32>
    %cst_212 = arith.constant dense<0.000000e+00> : vector<8x256xf32>
    %465 = tpu.matmul %305, %464, %cst_212 {dimension_numbers = #tpu.dot_dimension_numbers<[1], [0], [0], [1], [0, 0, 1, 1], [], []>} : vector<8x64xf32>, vector<64x256xf32>, vector<8x256xf32> -> vector<8x256xf32>
    %c2_213 = arith.constant 2 : index
    %c0_214 = arith.constant 0 : index
    %c0_215 = arith.constant 0 : index
    %466 = vector.load %arg5[%c2_213, %c0_214, %c0_215] : memref<5x1x64xf32, #tpu.memory_space<vmem>>, vector<1x1x64xf32>
    %467 = vector.shape_cast %466 : vector<1x1x64xf32> to vector<1x64xf32>
    %468 = vector.extract_strided_slice %462 {offsets = [0, 0], sizes = [8, 128], strides = [1, 1]} : vector<8x256xf32> to vector<8x128xf32>
    %469 = vector.extract_strided_slice %465 {offsets = [0, 0], sizes = [8, 128], strides = [1, 1]} : vector<8x256xf32> to vector<8x128xf32>
    %470 = arith.addf %468, %469 : vector<8x128xf32>
    %471 = arith.negf %470 : vector<8x128xf32>
    %472 = math.exp %471 : vector<8x128xf32>
    %cst_216 = arith.constant 1.000000e+00 : f32
    %473 = vector.broadcast %cst_216 : f32 to vector<8x128xf32>
    %474 = arith.addf %473, %472 : vector<8x128xf32>
    %475 = arith.divf %473, %474 : vector<8x128xf32>
    %476 = vector.extract_strided_slice %475 {offsets = [0, 0], sizes = [8, 64], strides = [1, 1]} : vector<8x128xf32> to vector<8x64xf32>
    %c64_i32_217 = arith.constant 64 : i32
    %477 = tpu.dynamic_rotate %475 by %c64_i32_217 dim 1 : vector<8x128xf32>, i32 -> vector<8x128xf32>
    %478 = vector.extract_strided_slice %477 {offsets = [0, 0], sizes = [8, 64], strides = [1, 1]} : vector<8x128xf32> to vector<8x64xf32>
    %479 = vector.extract_strided_slice %465 {offsets = [0, 128], sizes = [8, 64], strides = [1, 1]} : vector<8x256xf32> to vector<8x64xf32>
    %480 = vector.broadcast %467 : vector<1x64xf32> to vector<8x64xf32>
    %481 = arith.addf %479, %480 : vector<8x64xf32>
    %482 = vector.extract_strided_slice %462 {offsets = [0, 128], sizes = [8, 64], strides = [1, 1]} : vector<8x256xf32> to vector<8x64xf32>
    %483 = arith.mulf %476, %481 : vector<8x64xf32>
    %484 = arith.addf %482, %483 : vector<8x64xf32>
    %485 = math.tanh %484 : vector<8x64xf32>
    %486 = arith.subf %305, %485 : vector<8x64xf32>
    %487 = arith.mulf %478, %486 : vector<8x64xf32>
    %488 = arith.addf %485, %487 : vector<8x64xf32>
    %c2_i32_218 = arith.constant 2 : i32
    %489 = arith.cmpi sge, %c2_i32_167, %c2_i32_218 : i32
    %c10_i32_219 = arith.constant 10 : i32
    %490 = arith.cmpi slt, %c2_i32_167, %c10_i32_219 : i32
    %491 = arith.andi %489, %490 : i1
    %492 = arith.select %491, %488, %305 : vector<8x64xf32>
    %c2_220 = arith.constant 2 : index
    %c0_221 = arith.constant 0 : index
    %c0_222 = arith.constant 0 : index
    %493 = vector.load %arg2[%c2_220, %c0_221, %c0_222] : memref<4x64x256xf32, #tpu.memory_space<vmem>>, vector<1x64x256xf32>
    %494 = vector.shape_cast %493 : vector<1x64x256xf32> to vector<64x256xf32>
    %cst_223 = arith.constant dense<0.000000e+00> : vector<8x256xf32>
    %495 = tpu.matmul %305, %494, %cst_223 {dimension_numbers = #tpu.dot_dimension_numbers<[1], [0], [0], [1], [0, 0, 1, 1], [], []>} : vector<8x64xf32>, vector<64x256xf32>, vector<8x256xf32> -> vector<8x256xf32>
    %c3_224 = arith.constant 3 : index
    %c0_225 = arith.constant 0 : index
    %c0_226 = arith.constant 0 : index
    %496 = vector.load %arg4[%c3_224, %c0_225, %c0_226] : memref<5x1x256xf32, #tpu.memory_space<vmem>>, vector<1x1x256xf32>
    %497 = vector.shape_cast %496 : vector<1x1x256xf32> to vector<1x256xf32>
    %498 = vector.broadcast %497 : vector<1x256xf32> to vector<8x256xf32>
    %499 = arith.addf %495, %498 : vector<8x256xf32>
    %c3_227 = arith.constant 3 : index
    %c0_228 = arith.constant 0 : index
    %c0_229 = arith.constant 0 : index
    %500 = vector.load %arg3[%c3_227, %c0_228, %c0_229] : memref<5x64x256xf32, #tpu.memory_space<vmem>>, vector<1x64x256xf32>
    %501 = vector.shape_cast %500 : vector<1x64x256xf32> to vector<64x256xf32>
    %cst_230 = arith.constant dense<0.000000e+00> : vector<8x256xf32>
    %502 = tpu.matmul %342, %501, %cst_230 {dimension_numbers = #tpu.dot_dimension_numbers<[1], [0], [0], [1], [0, 0, 1, 1], [], []>} : vector<8x64xf32>, vector<64x256xf32>, vector<8x256xf32> -> vector<8x256xf32>
    %c3_231 = arith.constant 3 : index
    %c0_232 = arith.constant 0 : index
    %c0_233 = arith.constant 0 : index
    %503 = vector.load %arg5[%c3_231, %c0_232, %c0_233] : memref<5x1x64xf32, #tpu.memory_space<vmem>>, vector<1x1x64xf32>
    %504 = vector.shape_cast %503 : vector<1x1x64xf32> to vector<1x64xf32>
    %505 = vector.extract_strided_slice %499 {offsets = [0, 0], sizes = [8, 128], strides = [1, 1]} : vector<8x256xf32> to vector<8x128xf32>
    %506 = vector.extract_strided_slice %502 {offsets = [0, 0], sizes = [8, 128], strides = [1, 1]} : vector<8x256xf32> to vector<8x128xf32>
    %507 = arith.addf %505, %506 : vector<8x128xf32>
    %508 = arith.negf %507 : vector<8x128xf32>
    %509 = math.exp %508 : vector<8x128xf32>
    %cst_234 = arith.constant 1.000000e+00 : f32
    %510 = vector.broadcast %cst_234 : f32 to vector<8x128xf32>
    %511 = arith.addf %510, %509 : vector<8x128xf32>
    %512 = arith.divf %510, %511 : vector<8x128xf32>
    %513 = vector.extract_strided_slice %512 {offsets = [0, 0], sizes = [8, 64], strides = [1, 1]} : vector<8x128xf32> to vector<8x64xf32>
    %c64_i32_235 = arith.constant 64 : i32
    %514 = tpu.dynamic_rotate %512 by %c64_i32_235 dim 1 : vector<8x128xf32>, i32 -> vector<8x128xf32>
    %515 = vector.extract_strided_slice %514 {offsets = [0, 0], sizes = [8, 64], strides = [1, 1]} : vector<8x128xf32> to vector<8x64xf32>
    %516 = vector.extract_strided_slice %502 {offsets = [0, 128], sizes = [8, 64], strides = [1, 1]} : vector<8x256xf32> to vector<8x64xf32>
    %517 = vector.broadcast %504 : vector<1x64xf32> to vector<8x64xf32>
    %518 = arith.addf %516, %517 : vector<8x64xf32>
    %519 = vector.extract_strided_slice %499 {offsets = [0, 128], sizes = [8, 64], strides = [1, 1]} : vector<8x256xf32> to vector<8x64xf32>
    %520 = arith.mulf %513, %518 : vector<8x64xf32>
    %521 = arith.addf %519, %520 : vector<8x64xf32>
    %522 = math.tanh %521 : vector<8x64xf32>
    %523 = arith.subf %342, %522 : vector<8x64xf32>
    %524 = arith.mulf %515, %523 : vector<8x64xf32>
    %525 = arith.addf %522, %524 : vector<8x64xf32>
    %c3_i32_236 = arith.constant 3 : i32
    %526 = arith.cmpi sge, %c2_i32_167, %c3_i32_236 : i32
    %c11_i32_237 = arith.constant 11 : i32
    %527 = arith.cmpi slt, %c2_i32_167, %c11_i32_237 : i32
    %528 = arith.andi %526, %527 : i1
    %529 = arith.select %528, %525, %342 : vector<8x64xf32>
    %c3_238 = arith.constant 3 : index
    %c0_239 = arith.constant 0 : index
    %c0_240 = arith.constant 0 : index
    %530 = vector.load %arg2[%c3_238, %c0_239, %c0_240] : memref<4x64x256xf32, #tpu.memory_space<vmem>>, vector<1x64x256xf32>
    %531 = vector.shape_cast %530 : vector<1x64x256xf32> to vector<64x256xf32>
    %cst_241 = arith.constant dense<0.000000e+00> : vector<8x256xf32>
    %532 = tpu.matmul %342, %531, %cst_241 {dimension_numbers = #tpu.dot_dimension_numbers<[1], [0], [0], [1], [0, 0, 1, 1], [], []>} : vector<8x64xf32>, vector<64x256xf32>, vector<8x256xf32> -> vector<8x256xf32>
    %c4_242 = arith.constant 4 : index
    %c0_243 = arith.constant 0 : index
    %c0_244 = arith.constant 0 : index
    %533 = vector.load %arg4[%c4_242, %c0_243, %c0_244] : memref<5x1x256xf32, #tpu.memory_space<vmem>>, vector<1x1x256xf32>
    %534 = vector.shape_cast %533 : vector<1x1x256xf32> to vector<1x256xf32>
    %535 = vector.broadcast %534 : vector<1x256xf32> to vector<8x256xf32>
    %536 = arith.addf %532, %535 : vector<8x256xf32>
    %c4_245 = arith.constant 4 : index
    %c0_246 = arith.constant 0 : index
    %c0_247 = arith.constant 0 : index
    %537 = vector.load %arg3[%c4_245, %c0_246, %c0_247] : memref<5x64x256xf32, #tpu.memory_space<vmem>>, vector<1x64x256xf32>
    %538 = vector.shape_cast %537 : vector<1x64x256xf32> to vector<64x256xf32>
    %cst_248 = arith.constant dense<0.000000e+00> : vector<8x256xf32>
    %539 = tpu.matmul %379, %538, %cst_248 {dimension_numbers = #tpu.dot_dimension_numbers<[1], [0], [0], [1], [0, 0, 1, 1], [], []>} : vector<8x64xf32>, vector<64x256xf32>, vector<8x256xf32> -> vector<8x256xf32>
    %c4_249 = arith.constant 4 : index
    %c0_250 = arith.constant 0 : index
    %c0_251 = arith.constant 0 : index
    %540 = vector.load %arg5[%c4_249, %c0_250, %c0_251] : memref<5x1x64xf32, #tpu.memory_space<vmem>>, vector<1x1x64xf32>
    %541 = vector.shape_cast %540 : vector<1x1x64xf32> to vector<1x64xf32>
    %542 = vector.extract_strided_slice %536 {offsets = [0, 0], sizes = [8, 128], strides = [1, 1]} : vector<8x256xf32> to vector<8x128xf32>
    %543 = vector.extract_strided_slice %539 {offsets = [0, 0], sizes = [8, 128], strides = [1, 1]} : vector<8x256xf32> to vector<8x128xf32>
    %544 = arith.addf %542, %543 : vector<8x128xf32>
    %545 = arith.negf %544 : vector<8x128xf32>
    %546 = math.exp %545 : vector<8x128xf32>
    %cst_252 = arith.constant 1.000000e+00 : f32
    %547 = vector.broadcast %cst_252 : f32 to vector<8x128xf32>
    %548 = arith.addf %547, %546 : vector<8x128xf32>
    %549 = arith.divf %547, %548 : vector<8x128xf32>
    %550 = vector.extract_strided_slice %549 {offsets = [0, 0], sizes = [8, 64], strides = [1, 1]} : vector<8x128xf32> to vector<8x64xf32>
    %c64_i32_253 = arith.constant 64 : i32
    %551 = tpu.dynamic_rotate %549 by %c64_i32_253 dim 1 : vector<8x128xf32>, i32 -> vector<8x128xf32>
    %552 = vector.extract_strided_slice %551 {offsets = [0, 0], sizes = [8, 64], strides = [1, 1]} : vector<8x128xf32> to vector<8x64xf32>
    %553 = vector.extract_strided_slice %539 {offsets = [0, 128], sizes = [8, 64], strides = [1, 1]} : vector<8x256xf32> to vector<8x64xf32>
    %554 = vector.broadcast %541 : vector<1x64xf32> to vector<8x64xf32>
    %555 = arith.addf %553, %554 : vector<8x64xf32>
    %556 = vector.extract_strided_slice %536 {offsets = [0, 128], sizes = [8, 64], strides = [1, 1]} : vector<8x256xf32> to vector<8x64xf32>
    %557 = arith.mulf %550, %555 : vector<8x64xf32>
    %558 = arith.addf %556, %557 : vector<8x64xf32>
    %559 = math.tanh %558 : vector<8x64xf32>
    %560 = arith.subf %379, %559 : vector<8x64xf32>
    %561 = arith.mulf %552, %560 : vector<8x64xf32>
    %562 = arith.addf %559, %561 : vector<8x64xf32>
    %c4_i32_254 = arith.constant 4 : i32
    %563 = arith.cmpi sge, %c2_i32_167, %c4_i32_254 : i32
    %c12_i32_255 = arith.constant 12 : i32
    %564 = arith.cmpi slt, %c2_i32_167, %c12_i32_255 : i32
    %565 = arith.andi %563, %564 : i1
    %566 = arith.select %565, %562, %379 : vector<8x64xf32>
    %c3_i32_256 = arith.constant 3 : i32
    %c7_i32_257 = arith.constant 7 : i32
    %567 = arith.minsi %c3_i32_256, %c7_i32_257 : i32
    %568 = arith.index_cast %567 : i32 to index
    %c0_258 = arith.constant 0 : index
    %c0_259 = arith.constant 0 : index
    %569 = vector.load %arg0[%568, %c0_258, %c0_259] : memref<8x8x1xf32, #tpu.memory_space<vmem>>, vector<1x8x1xf32>
    %570 = vector.shape_cast %569 : vector<1x8x1xf32> to vector<8x1xf32>
    %571 = vector.broadcast %570 : vector<8x1xf32> to vector<8x256xf32>
    %572 = vector.broadcast %0 : vector<1x256xf32> to vector<8x256xf32>
    %573 = arith.mulf %571, %572 : vector<8x256xf32>
    %c0_260 = arith.constant 0 : index
    %c0_261 = arith.constant 0 : index
    %c0_262 = arith.constant 0 : index
    %574 = vector.load %arg4[%c0_260, %c0_261, %c0_262] : memref<5x1x256xf32, #tpu.memory_space<vmem>>, vector<1x1x256xf32>
    %575 = vector.shape_cast %574 : vector<1x1x256xf32> to vector<1x256xf32>
    %576 = vector.broadcast %575 : vector<1x256xf32> to vector<8x256xf32>
    %577 = arith.addf %573, %576 : vector<8x256xf32>
    %c0_263 = arith.constant 0 : index
    %c0_264 = arith.constant 0 : index
    %c0_265 = arith.constant 0 : index
    %578 = vector.load %arg3[%c0_263, %c0_264, %c0_265] : memref<5x64x256xf32, #tpu.memory_space<vmem>>, vector<1x64x256xf32>
    %579 = vector.shape_cast %578 : vector<1x64x256xf32> to vector<64x256xf32>
    %cst_266 = arith.constant dense<0.000000e+00> : vector<8x256xf32>
    %580 = tpu.matmul %418, %579, %cst_266 {dimension_numbers = #tpu.dot_dimension_numbers<[1], [0], [0], [1], [0, 0, 1, 1], [], []>} : vector<8x64xf32>, vector<64x256xf32>, vector<8x256xf32> -> vector<8x256xf32>
    %c0_267 = arith.constant 0 : index
    %c0_268 = arith.constant 0 : index
    %c0_269 = arith.constant 0 : index
    %581 = vector.load %arg5[%c0_267, %c0_268, %c0_269] : memref<5x1x64xf32, #tpu.memory_space<vmem>>, vector<1x1x64xf32>
    %582 = vector.shape_cast %581 : vector<1x1x64xf32> to vector<1x64xf32>
    %583 = vector.extract_strided_slice %577 {offsets = [0, 0], sizes = [8, 128], strides = [1, 1]} : vector<8x256xf32> to vector<8x128xf32>
    %584 = vector.extract_strided_slice %580 {offsets = [0, 0], sizes = [8, 128], strides = [1, 1]} : vector<8x256xf32> to vector<8x128xf32>
    %585 = arith.addf %583, %584 : vector<8x128xf32>
    %586 = arith.negf %585 : vector<8x128xf32>
    %587 = math.exp %586 : vector<8x128xf32>
    %cst_270 = arith.constant 1.000000e+00 : f32
    %588 = vector.broadcast %cst_270 : f32 to vector<8x128xf32>
    %589 = arith.addf %588, %587 : vector<8x128xf32>
    %590 = arith.divf %588, %589 : vector<8x128xf32>
    %591 = vector.extract_strided_slice %590 {offsets = [0, 0], sizes = [8, 64], strides = [1, 1]} : vector<8x128xf32> to vector<8x64xf32>
    %c64_i32_271 = arith.constant 64 : i32
    %592 = tpu.dynamic_rotate %590 by %c64_i32_271 dim 1 : vector<8x128xf32>, i32 -> vector<8x128xf32>
    %593 = vector.extract_strided_slice %592 {offsets = [0, 0], sizes = [8, 64], strides = [1, 1]} : vector<8x128xf32> to vector<8x64xf32>
    %594 = vector.extract_strided_slice %580 {offsets = [0, 128], sizes = [8, 64], strides = [1, 1]} : vector<8x256xf32> to vector<8x64xf32>
    %595 = vector.broadcast %582 : vector<1x64xf32> to vector<8x64xf32>
    %596 = arith.addf %594, %595 : vector<8x64xf32>
    %597 = vector.extract_strided_slice %577 {offsets = [0, 128], sizes = [8, 64], strides = [1, 1]} : vector<8x256xf32> to vector<8x64xf32>
    %598 = arith.mulf %591, %596 : vector<8x64xf32>
    %599 = arith.addf %597, %598 : vector<8x64xf32>
    %600 = math.tanh %599 : vector<8x64xf32>
    %601 = arith.subf %418, %600 : vector<8x64xf32>
    %602 = arith.mulf %593, %601 : vector<8x64xf32>
    %603 = arith.addf %600, %602 : vector<8x64xf32>
    %c8_i32_272 = arith.constant 8 : i32
    %604 = arith.cmpi slt, %c3_i32_256, %c8_i32_272 : i32
    %605 = arith.select %604, %603, %418 : vector<8x64xf32>
    %c0_273 = arith.constant 0 : index
    %c0_274 = arith.constant 0 : index
    %c0_275 = arith.constant 0 : index
    %606 = vector.load %arg2[%c0_273, %c0_274, %c0_275] : memref<4x64x256xf32, #tpu.memory_space<vmem>>, vector<1x64x256xf32>
    %607 = vector.shape_cast %606 : vector<1x64x256xf32> to vector<64x256xf32>
    %cst_276 = arith.constant dense<0.000000e+00> : vector<8x256xf32>
    %608 = tpu.matmul %418, %607, %cst_276 {dimension_numbers = #tpu.dot_dimension_numbers<[1], [0], [0], [1], [0, 0, 1, 1], [], []>} : vector<8x64xf32>, vector<64x256xf32>, vector<8x256xf32> -> vector<8x256xf32>
    %c1_277 = arith.constant 1 : index
    %c0_278 = arith.constant 0 : index
    %c0_279 = arith.constant 0 : index
    %609 = vector.load %arg4[%c1_277, %c0_278, %c0_279] : memref<5x1x256xf32, #tpu.memory_space<vmem>>, vector<1x1x256xf32>
    %610 = vector.shape_cast %609 : vector<1x1x256xf32> to vector<1x256xf32>
    %611 = vector.broadcast %610 : vector<1x256xf32> to vector<8x256xf32>
    %612 = arith.addf %608, %611 : vector<8x256xf32>
    %c1_280 = arith.constant 1 : index
    %c0_281 = arith.constant 0 : index
    %c0_282 = arith.constant 0 : index
    %613 = vector.load %arg3[%c1_280, %c0_281, %c0_282] : memref<5x64x256xf32, #tpu.memory_space<vmem>>, vector<1x64x256xf32>
    %614 = vector.shape_cast %613 : vector<1x64x256xf32> to vector<64x256xf32>
    %cst_283 = arith.constant dense<0.000000e+00> : vector<8x256xf32>
    %615 = tpu.matmul %455, %614, %cst_283 {dimension_numbers = #tpu.dot_dimension_numbers<[1], [0], [0], [1], [0, 0, 1, 1], [], []>} : vector<8x64xf32>, vector<64x256xf32>, vector<8x256xf32> -> vector<8x256xf32>
    %c1_284 = arith.constant 1 : index
    %c0_285 = arith.constant 0 : index
    %c0_286 = arith.constant 0 : index
    %616 = vector.load %arg5[%c1_284, %c0_285, %c0_286] : memref<5x1x64xf32, #tpu.memory_space<vmem>>, vector<1x1x64xf32>
    %617 = vector.shape_cast %616 : vector<1x1x64xf32> to vector<1x64xf32>
    %618 = vector.extract_strided_slice %612 {offsets = [0, 0], sizes = [8, 128], strides = [1, 1]} : vector<8x256xf32> to vector<8x128xf32>
    %619 = vector.extract_strided_slice %615 {offsets = [0, 0], sizes = [8, 128], strides = [1, 1]} : vector<8x256xf32> to vector<8x128xf32>
    %620 = arith.addf %618, %619 : vector<8x128xf32>
    %621 = arith.negf %620 : vector<8x128xf32>
    %622 = math.exp %621 : vector<8x128xf32>
    %cst_287 = arith.constant 1.000000e+00 : f32
    %623 = vector.broadcast %cst_287 : f32 to vector<8x128xf32>
    %624 = arith.addf %623, %622 : vector<8x128xf32>
    %625 = arith.divf %623, %624 : vector<8x128xf32>
    %626 = vector.extract_strided_slice %625 {offsets = [0, 0], sizes = [8, 64], strides = [1, 1]} : vector<8x128xf32> to vector<8x64xf32>
    %c64_i32_288 = arith.constant 64 : i32
    %627 = tpu.dynamic_rotate %625 by %c64_i32_288 dim 1 : vector<8x128xf32>, i32 -> vector<8x128xf32>
    %628 = vector.extract_strided_slice %627 {offsets = [0, 0], sizes = [8, 64], strides = [1, 1]} : vector<8x128xf32> to vector<8x64xf32>
    %629 = vector.extract_strided_slice %615 {offsets = [0, 128], sizes = [8, 64], strides = [1, 1]} : vector<8x256xf32> to vector<8x64xf32>
    %630 = vector.broadcast %617 : vector<1x64xf32> to vector<8x64xf32>
    %631 = arith.addf %629, %630 : vector<8x64xf32>
    %632 = vector.extract_strided_slice %612 {offsets = [0, 128], sizes = [8, 64], strides = [1, 1]} : vector<8x256xf32> to vector<8x64xf32>
    %633 = arith.mulf %626, %631 : vector<8x64xf32>
    %634 = arith.addf %632, %633 : vector<8x64xf32>
    %635 = math.tanh %634 : vector<8x64xf32>
    %636 = arith.subf %455, %635 : vector<8x64xf32>
    %637 = arith.mulf %628, %636 : vector<8x64xf32>
    %638 = arith.addf %635, %637 : vector<8x64xf32>
    %c1_i32_289 = arith.constant 1 : i32
    %639 = arith.cmpi sge, %c3_i32_256, %c1_i32_289 : i32
    %c9_i32_290 = arith.constant 9 : i32
    %640 = arith.cmpi slt, %c3_i32_256, %c9_i32_290 : i32
    %641 = arith.andi %639, %640 : i1
    %642 = arith.select %641, %638, %455 : vector<8x64xf32>
    %c1_291 = arith.constant 1 : index
    %c0_292 = arith.constant 0 : index
    %c0_293 = arith.constant 0 : index
    %643 = vector.load %arg2[%c1_291, %c0_292, %c0_293] : memref<4x64x256xf32, #tpu.memory_space<vmem>>, vector<1x64x256xf32>
    %644 = vector.shape_cast %643 : vector<1x64x256xf32> to vector<64x256xf32>
    %cst_294 = arith.constant dense<0.000000e+00> : vector<8x256xf32>
    %645 = tpu.matmul %455, %644, %cst_294 {dimension_numbers = #tpu.dot_dimension_numbers<[1], [0], [0], [1], [0, 0, 1, 1], [], []>} : vector<8x64xf32>, vector<64x256xf32>, vector<8x256xf32> -> vector<8x256xf32>
    %c2_295 = arith.constant 2 : index
    %c0_296 = arith.constant 0 : index
    %c0_297 = arith.constant 0 : index
    %646 = vector.load %arg4[%c2_295, %c0_296, %c0_297] : memref<5x1x256xf32, #tpu.memory_space<vmem>>, vector<1x1x256xf32>
    %647 = vector.shape_cast %646 : vector<1x1x256xf32> to vector<1x256xf32>
    %648 = vector.broadcast %647 : vector<1x256xf32> to vector<8x256xf32>
    %649 = arith.addf %645, %648 : vector<8x256xf32>
    %c2_298 = arith.constant 2 : index
    %c0_299 = arith.constant 0 : index
    %c0_300 = arith.constant 0 : index
    %650 = vector.load %arg3[%c2_298, %c0_299, %c0_300] : memref<5x64x256xf32, #tpu.memory_space<vmem>>, vector<1x64x256xf32>
    %651 = vector.shape_cast %650 : vector<1x64x256xf32> to vector<64x256xf32>
    %cst_301 = arith.constant dense<0.000000e+00> : vector<8x256xf32>
    %652 = tpu.matmul %492, %651, %cst_301 {dimension_numbers = #tpu.dot_dimension_numbers<[1], [0], [0], [1], [0, 0, 1, 1], [], []>} : vector<8x64xf32>, vector<64x256xf32>, vector<8x256xf32> -> vector<8x256xf32>
    %c2_302 = arith.constant 2 : index
    %c0_303 = arith.constant 0 : index
    %c0_304 = arith.constant 0 : index
    %653 = vector.load %arg5[%c2_302, %c0_303, %c0_304] : memref<5x1x64xf32, #tpu.memory_space<vmem>>, vector<1x1x64xf32>
    %654 = vector.shape_cast %653 : vector<1x1x64xf32> to vector<1x64xf32>
    %655 = vector.extract_strided_slice %649 {offsets = [0, 0], sizes = [8, 128], strides = [1, 1]} : vector<8x256xf32> to vector<8x128xf32>
    %656 = vector.extract_strided_slice %652 {offsets = [0, 0], sizes = [8, 128], strides = [1, 1]} : vector<8x256xf32> to vector<8x128xf32>
    %657 = arith.addf %655, %656 : vector<8x128xf32>
    %658 = arith.negf %657 : vector<8x128xf32>
    %659 = math.exp %658 : vector<8x128xf32>
    %cst_305 = arith.constant 1.000000e+00 : f32
    %660 = vector.broadcast %cst_305 : f32 to vector<8x128xf32>
    %661 = arith.addf %660, %659 : vector<8x128xf32>
    %662 = arith.divf %660, %661 : vector<8x128xf32>
    %663 = vector.extract_strided_slice %662 {offsets = [0, 0], sizes = [8, 64], strides = [1, 1]} : vector<8x128xf32> to vector<8x64xf32>
    %c64_i32_306 = arith.constant 64 : i32
    %664 = tpu.dynamic_rotate %662 by %c64_i32_306 dim 1 : vector<8x128xf32>, i32 -> vector<8x128xf32>
    %665 = vector.extract_strided_slice %664 {offsets = [0, 0], sizes = [8, 64], strides = [1, 1]} : vector<8x128xf32> to vector<8x64xf32>
    %666 = vector.extract_strided_slice %652 {offsets = [0, 128], sizes = [8, 64], strides = [1, 1]} : vector<8x256xf32> to vector<8x64xf32>
    %667 = vector.broadcast %654 : vector<1x64xf32> to vector<8x64xf32>
    %668 = arith.addf %666, %667 : vector<8x64xf32>
    %669 = vector.extract_strided_slice %649 {offsets = [0, 128], sizes = [8, 64], strides = [1, 1]} : vector<8x256xf32> to vector<8x64xf32>
    %670 = arith.mulf %663, %668 : vector<8x64xf32>
    %671 = arith.addf %669, %670 : vector<8x64xf32>
    %672 = math.tanh %671 : vector<8x64xf32>
    %673 = arith.subf %492, %672 : vector<8x64xf32>
    %674 = arith.mulf %665, %673 : vector<8x64xf32>
    %675 = arith.addf %672, %674 : vector<8x64xf32>
    %c2_i32_307 = arith.constant 2 : i32
    %676 = arith.cmpi sge, %c3_i32_256, %c2_i32_307 : i32
    %c10_i32_308 = arith.constant 10 : i32
    %677 = arith.cmpi slt, %c3_i32_256, %c10_i32_308 : i32
    %678 = arith.andi %676, %677 : i1
    %679 = arith.select %678, %675, %492 : vector<8x64xf32>
    %c2_309 = arith.constant 2 : index
    %c0_310 = arith.constant 0 : index
    %c0_311 = arith.constant 0 : index
    %680 = vector.load %arg2[%c2_309, %c0_310, %c0_311] : memref<4x64x256xf32, #tpu.memory_space<vmem>>, vector<1x64x256xf32>
    %681 = vector.shape_cast %680 : vector<1x64x256xf32> to vector<64x256xf32>
    %cst_312 = arith.constant dense<0.000000e+00> : vector<8x256xf32>
    %682 = tpu.matmul %492, %681, %cst_312 {dimension_numbers = #tpu.dot_dimension_numbers<[1], [0], [0], [1], [0, 0, 1, 1], [], []>} : vector<8x64xf32>, vector<64x256xf32>, vector<8x256xf32> -> vector<8x256xf32>
    %c3_313 = arith.constant 3 : index
    %c0_314 = arith.constant 0 : index
    %c0_315 = arith.constant 0 : index
    %683 = vector.load %arg4[%c3_313, %c0_314, %c0_315] : memref<5x1x256xf32, #tpu.memory_space<vmem>>, vector<1x1x256xf32>
    %684 = vector.shape_cast %683 : vector<1x1x256xf32> to vector<1x256xf32>
    %685 = vector.broadcast %684 : vector<1x256xf32> to vector<8x256xf32>
    %686 = arith.addf %682, %685 : vector<8x256xf32>
    %c3_316 = arith.constant 3 : index
    %c0_317 = arith.constant 0 : index
    %c0_318 = arith.constant 0 : index
    %687 = vector.load %arg3[%c3_316, %c0_317, %c0_318] : memref<5x64x256xf32, #tpu.memory_space<vmem>>, vector<1x64x256xf32>
    %688 = vector.shape_cast %687 : vector<1x64x256xf32> to vector<64x256xf32>
    %cst_319 = arith.constant dense<0.000000e+00> : vector<8x256xf32>
    %689 = tpu.matmul %529, %688, %cst_319 {dimension_numbers = #tpu.dot_dimension_numbers<[1], [0], [0], [1], [0, 0, 1, 1], [], []>} : vector<8x64xf32>, vector<64x256xf32>, vector<8x256xf32> -> vector<8x256xf32>
    %c3_320 = arith.constant 3 : index
    %c0_321 = arith.constant 0 : index
    %c0_322 = arith.constant 0 : index
    %690 = vector.load %arg5[%c3_320, %c0_321, %c0_322] : memref<5x1x64xf32, #tpu.memory_space<vmem>>, vector<1x1x64xf32>
    %691 = vector.shape_cast %690 : vector<1x1x64xf32> to vector<1x64xf32>
    %692 = vector.extract_strided_slice %686 {offsets = [0, 0], sizes = [8, 128], strides = [1, 1]} : vector<8x256xf32> to vector<8x128xf32>
    %693 = vector.extract_strided_slice %689 {offsets = [0, 0], sizes = [8, 128], strides = [1, 1]} : vector<8x256xf32> to vector<8x128xf32>
    %694 = arith.addf %692, %693 : vector<8x128xf32>
    %695 = arith.negf %694 : vector<8x128xf32>
    %696 = math.exp %695 : vector<8x128xf32>
    %cst_323 = arith.constant 1.000000e+00 : f32
    %697 = vector.broadcast %cst_323 : f32 to vector<8x128xf32>
    %698 = arith.addf %697, %696 : vector<8x128xf32>
    %699 = arith.divf %697, %698 : vector<8x128xf32>
    %700 = vector.extract_strided_slice %699 {offsets = [0, 0], sizes = [8, 64], strides = [1, 1]} : vector<8x128xf32> to vector<8x64xf32>
    %c64_i32_324 = arith.constant 64 : i32
    %701 = tpu.dynamic_rotate %699 by %c64_i32_324 dim 1 : vector<8x128xf32>, i32 -> vector<8x128xf32>
    %702 = vector.extract_strided_slice %701 {offsets = [0, 0], sizes = [8, 64], strides = [1, 1]} : vector<8x128xf32> to vector<8x64xf32>
    %703 = vector.extract_strided_slice %689 {offsets = [0, 128], sizes = [8, 64], strides = [1, 1]} : vector<8x256xf32> to vector<8x64xf32>
    %704 = vector.broadcast %691 : vector<1x64xf32> to vector<8x64xf32>
    %705 = arith.addf %703, %704 : vector<8x64xf32>
    %706 = vector.extract_strided_slice %686 {offsets = [0, 128], sizes = [8, 64], strides = [1, 1]} : vector<8x256xf32> to vector<8x64xf32>
    %707 = arith.mulf %700, %705 : vector<8x64xf32>
    %708 = arith.addf %706, %707 : vector<8x64xf32>
    %709 = math.tanh %708 : vector<8x64xf32>
    %710 = arith.subf %529, %709 : vector<8x64xf32>
    %711 = arith.mulf %702, %710 : vector<8x64xf32>
    %712 = arith.addf %709, %711 : vector<8x64xf32>
    %c3_i32_325 = arith.constant 3 : i32
    %713 = arith.cmpi sge, %c3_i32_256, %c3_i32_325 : i32
    %c11_i32_326 = arith.constant 11 : i32
    %714 = arith.cmpi slt, %c3_i32_256, %c11_i32_326 : i32
    %715 = arith.andi %713, %714 : i1
    %716 = arith.select %715, %712, %529 : vector<8x64xf32>
    %c3_327 = arith.constant 3 : index
    %c0_328 = arith.constant 0 : index
    %c0_329 = arith.constant 0 : index
    %717 = vector.load %arg2[%c3_327, %c0_328, %c0_329] : memref<4x64x256xf32, #tpu.memory_space<vmem>>, vector<1x64x256xf32>
    %718 = vector.shape_cast %717 : vector<1x64x256xf32> to vector<64x256xf32>
    %cst_330 = arith.constant dense<0.000000e+00> : vector<8x256xf32>
    %719 = tpu.matmul %529, %718, %cst_330 {dimension_numbers = #tpu.dot_dimension_numbers<[1], [0], [0], [1], [0, 0, 1, 1], [], []>} : vector<8x64xf32>, vector<64x256xf32>, vector<8x256xf32> -> vector<8x256xf32>
    %c4_331 = arith.constant 4 : index
    %c0_332 = arith.constant 0 : index
    %c0_333 = arith.constant 0 : index
    %720 = vector.load %arg4[%c4_331, %c0_332, %c0_333] : memref<5x1x256xf32, #tpu.memory_space<vmem>>, vector<1x1x256xf32>
    %721 = vector.shape_cast %720 : vector<1x1x256xf32> to vector<1x256xf32>
    %722 = vector.broadcast %721 : vector<1x256xf32> to vector<8x256xf32>
    %723 = arith.addf %719, %722 : vector<8x256xf32>
    %c4_334 = arith.constant 4 : index
    %c0_335 = arith.constant 0 : index
    %c0_336 = arith.constant 0 : index
    %724 = vector.load %arg3[%c4_334, %c0_335, %c0_336] : memref<5x64x256xf32, #tpu.memory_space<vmem>>, vector<1x64x256xf32>
    %725 = vector.shape_cast %724 : vector<1x64x256xf32> to vector<64x256xf32>
    %cst_337 = arith.constant dense<0.000000e+00> : vector<8x256xf32>
    %726 = tpu.matmul %566, %725, %cst_337 {dimension_numbers = #tpu.dot_dimension_numbers<[1], [0], [0], [1], [0, 0, 1, 1], [], []>} : vector<8x64xf32>, vector<64x256xf32>, vector<8x256xf32> -> vector<8x256xf32>
    %c4_338 = arith.constant 4 : index
    %c0_339 = arith.constant 0 : index
    %c0_340 = arith.constant 0 : index
    %727 = vector.load %arg5[%c4_338, %c0_339, %c0_340] : memref<5x1x64xf32, #tpu.memory_space<vmem>>, vector<1x1x64xf32>
    %728 = vector.shape_cast %727 : vector<1x1x64xf32> to vector<1x64xf32>
    %729 = vector.extract_strided_slice %723 {offsets = [0, 0], sizes = [8, 128], strides = [1, 1]} : vector<8x256xf32> to vector<8x128xf32>
    %730 = vector.extract_strided_slice %726 {offsets = [0, 0], sizes = [8, 128], strides = [1, 1]} : vector<8x256xf32> to vector<8x128xf32>
    %731 = arith.addf %729, %730 : vector<8x128xf32>
    %732 = arith.negf %731 : vector<8x128xf32>
    %733 = math.exp %732 : vector<8x128xf32>
    %cst_341 = arith.constant 1.000000e+00 : f32
    %734 = vector.broadcast %cst_341 : f32 to vector<8x128xf32>
    %735 = arith.addf %734, %733 : vector<8x128xf32>
    %736 = arith.divf %734, %735 : vector<8x128xf32>
    %737 = vector.extract_strided_slice %736 {offsets = [0, 0], sizes = [8, 64], strides = [1, 1]} : vector<8x128xf32> to vector<8x64xf32>
    %c64_i32_342 = arith.constant 64 : i32
    %738 = tpu.dynamic_rotate %736 by %c64_i32_342 dim 1 : vector<8x128xf32>, i32 -> vector<8x128xf32>
    %739 = vector.extract_strided_slice %738 {offsets = [0, 0], sizes = [8, 64], strides = [1, 1]} : vector<8x128xf32> to vector<8x64xf32>
    %740 = vector.extract_strided_slice %726 {offsets = [0, 128], sizes = [8, 64], strides = [1, 1]} : vector<8x256xf32> to vector<8x64xf32>
    %741 = vector.broadcast %728 : vector<1x64xf32> to vector<8x64xf32>
    %742 = arith.addf %740, %741 : vector<8x64xf32>
    %743 = vector.extract_strided_slice %723 {offsets = [0, 128], sizes = [8, 64], strides = [1, 1]} : vector<8x256xf32> to vector<8x64xf32>
    %744 = arith.mulf %737, %742 : vector<8x64xf32>
    %745 = arith.addf %743, %744 : vector<8x64xf32>
    %746 = math.tanh %745 : vector<8x64xf32>
    %747 = arith.subf %566, %746 : vector<8x64xf32>
    %748 = arith.mulf %739, %747 : vector<8x64xf32>
    %749 = arith.addf %746, %748 : vector<8x64xf32>
    %c4_i32_343 = arith.constant 4 : i32
    %750 = arith.cmpi sge, %c3_i32_256, %c4_i32_343 : i32
    %c12_i32_344 = arith.constant 12 : i32
    %751 = arith.cmpi slt, %c3_i32_256, %c12_i32_344 : i32
    %752 = arith.andi %750, %751 : i1
    %753 = arith.select %752, %749, %566 : vector<8x64xf32>
    %c4_i32_345 = arith.constant 4 : i32
    %c7_i32_346 = arith.constant 7 : i32
    %754 = arith.minsi %c4_i32_345, %c7_i32_346 : i32
    %755 = arith.index_cast %754 : i32 to index
    %c0_347 = arith.constant 0 : index
    %c0_348 = arith.constant 0 : index
    %756 = vector.load %arg0[%755, %c0_347, %c0_348] : memref<8x8x1xf32, #tpu.memory_space<vmem>>, vector<1x8x1xf32>
    %757 = vector.shape_cast %756 : vector<1x8x1xf32> to vector<8x1xf32>
    %758 = vector.broadcast %757 : vector<8x1xf32> to vector<8x256xf32>
    %759 = vector.broadcast %0 : vector<1x256xf32> to vector<8x256xf32>
    %760 = arith.mulf %758, %759 : vector<8x256xf32>
    %c0_349 = arith.constant 0 : index
    %c0_350 = arith.constant 0 : index
    %c0_351 = arith.constant 0 : index
    %761 = vector.load %arg4[%c0_349, %c0_350, %c0_351] : memref<5x1x256xf32, #tpu.memory_space<vmem>>, vector<1x1x256xf32>
    %762 = vector.shape_cast %761 : vector<1x1x256xf32> to vector<1x256xf32>
    %763 = vector.broadcast %762 : vector<1x256xf32> to vector<8x256xf32>
    %764 = arith.addf %760, %763 : vector<8x256xf32>
    %c0_352 = arith.constant 0 : index
    %c0_353 = arith.constant 0 : index
    %c0_354 = arith.constant 0 : index
    %765 = vector.load %arg3[%c0_352, %c0_353, %c0_354] : memref<5x64x256xf32, #tpu.memory_space<vmem>>, vector<1x64x256xf32>
    %766 = vector.shape_cast %765 : vector<1x64x256xf32> to vector<64x256xf32>
    %cst_355 = arith.constant dense<0.000000e+00> : vector<8x256xf32>
    %767 = tpu.matmul %605, %766, %cst_355 {dimension_numbers = #tpu.dot_dimension_numbers<[1], [0], [0], [1], [0, 0, 1, 1], [], []>} : vector<8x64xf32>, vector<64x256xf32>, vector<8x256xf32> -> vector<8x256xf32>
    %c0_356 = arith.constant 0 : index
    %c0_357 = arith.constant 0 : index
    %c0_358 = arith.constant 0 : index
    %768 = vector.load %arg5[%c0_356, %c0_357, %c0_358] : memref<5x1x64xf32, #tpu.memory_space<vmem>>, vector<1x1x64xf32>
    %769 = vector.shape_cast %768 : vector<1x1x64xf32> to vector<1x64xf32>
    %770 = vector.extract_strided_slice %764 {offsets = [0, 0], sizes = [8, 128], strides = [1, 1]} : vector<8x256xf32> to vector<8x128xf32>
    %771 = vector.extract_strided_slice %767 {offsets = [0, 0], sizes = [8, 128], strides = [1, 1]} : vector<8x256xf32> to vector<8x128xf32>
    %772 = arith.addf %770, %771 : vector<8x128xf32>
    %773 = arith.negf %772 : vector<8x128xf32>
    %774 = math.exp %773 : vector<8x128xf32>
    %cst_359 = arith.constant 1.000000e+00 : f32
    %775 = vector.broadcast %cst_359 : f32 to vector<8x128xf32>
    %776 = arith.addf %775, %774 : vector<8x128xf32>
    %777 = arith.divf %775, %776 : vector<8x128xf32>
    %778 = vector.extract_strided_slice %777 {offsets = [0, 0], sizes = [8, 64], strides = [1, 1]} : vector<8x128xf32> to vector<8x64xf32>
    %c64_i32_360 = arith.constant 64 : i32
    %779 = tpu.dynamic_rotate %777 by %c64_i32_360 dim 1 : vector<8x128xf32>, i32 -> vector<8x128xf32>
    %780 = vector.extract_strided_slice %779 {offsets = [0, 0], sizes = [8, 64], strides = [1, 1]} : vector<8x128xf32> to vector<8x64xf32>
    %781 = vector.extract_strided_slice %767 {offsets = [0, 128], sizes = [8, 64], strides = [1, 1]} : vector<8x256xf32> to vector<8x64xf32>
    %782 = vector.broadcast %769 : vector<1x64xf32> to vector<8x64xf32>
    %783 = arith.addf %781, %782 : vector<8x64xf32>
    %784 = vector.extract_strided_slice %764 {offsets = [0, 128], sizes = [8, 64], strides = [1, 1]} : vector<8x256xf32> to vector<8x64xf32>
    %785 = arith.mulf %778, %783 : vector<8x64xf32>
    %786 = arith.addf %784, %785 : vector<8x64xf32>
    %787 = math.tanh %786 : vector<8x64xf32>
    %788 = arith.subf %605, %787 : vector<8x64xf32>
    %789 = arith.mulf %780, %788 : vector<8x64xf32>
    %790 = arith.addf %787, %789 : vector<8x64xf32>
    %c8_i32_361 = arith.constant 8 : i32
    %791 = arith.cmpi slt, %c4_i32_345, %c8_i32_361 : i32
    %792 = arith.select %791, %790, %605 : vector<8x64xf32>
    %c0_362 = arith.constant 0 : index
    %c0_363 = arith.constant 0 : index
    %c0_364 = arith.constant 0 : index
    %793 = vector.load %arg2[%c0_362, %c0_363, %c0_364] : memref<4x64x256xf32, #tpu.memory_space<vmem>>, vector<1x64x256xf32>
    %794 = vector.shape_cast %793 : vector<1x64x256xf32> to vector<64x256xf32>
    %cst_365 = arith.constant dense<0.000000e+00> : vector<8x256xf32>
    %795 = tpu.matmul %605, %794, %cst_365 {dimension_numbers = #tpu.dot_dimension_numbers<[1], [0], [0], [1], [0, 0, 1, 1], [], []>} : vector<8x64xf32>, vector<64x256xf32>, vector<8x256xf32> -> vector<8x256xf32>
    %c1_366 = arith.constant 1 : index
    %c0_367 = arith.constant 0 : index
    %c0_368 = arith.constant 0 : index
    %796 = vector.load %arg4[%c1_366, %c0_367, %c0_368] : memref<5x1x256xf32, #tpu.memory_space<vmem>>, vector<1x1x256xf32>
    %797 = vector.shape_cast %796 : vector<1x1x256xf32> to vector<1x256xf32>
    %798 = vector.broadcast %797 : vector<1x256xf32> to vector<8x256xf32>
    %799 = arith.addf %795, %798 : vector<8x256xf32>
    %c1_369 = arith.constant 1 : index
    %c0_370 = arith.constant 0 : index
    %c0_371 = arith.constant 0 : index
    %800 = vector.load %arg3[%c1_369, %c0_370, %c0_371] : memref<5x64x256xf32, #tpu.memory_space<vmem>>, vector<1x64x256xf32>
    %801 = vector.shape_cast %800 : vector<1x64x256xf32> to vector<64x256xf32>
    %cst_372 = arith.constant dense<0.000000e+00> : vector<8x256xf32>
    %802 = tpu.matmul %642, %801, %cst_372 {dimension_numbers = #tpu.dot_dimension_numbers<[1], [0], [0], [1], [0, 0, 1, 1], [], []>} : vector<8x64xf32>, vector<64x256xf32>, vector<8x256xf32> -> vector<8x256xf32>
    %c1_373 = arith.constant 1 : index
    %c0_374 = arith.constant 0 : index
    %c0_375 = arith.constant 0 : index
    %803 = vector.load %arg5[%c1_373, %c0_374, %c0_375] : memref<5x1x64xf32, #tpu.memory_space<vmem>>, vector<1x1x64xf32>
    %804 = vector.shape_cast %803 : vector<1x1x64xf32> to vector<1x64xf32>
    %805 = vector.extract_strided_slice %799 {offsets = [0, 0], sizes = [8, 128], strides = [1, 1]} : vector<8x256xf32> to vector<8x128xf32>
    %806 = vector.extract_strided_slice %802 {offsets = [0, 0], sizes = [8, 128], strides = [1, 1]} : vector<8x256xf32> to vector<8x128xf32>
    %807 = arith.addf %805, %806 : vector<8x128xf32>
    %808 = arith.negf %807 : vector<8x128xf32>
    %809 = math.exp %808 : vector<8x128xf32>
    %cst_376 = arith.constant 1.000000e+00 : f32
    %810 = vector.broadcast %cst_376 : f32 to vector<8x128xf32>
    %811 = arith.addf %810, %809 : vector<8x128xf32>
    %812 = arith.divf %810, %811 : vector<8x128xf32>
    %813 = vector.extract_strided_slice %812 {offsets = [0, 0], sizes = [8, 64], strides = [1, 1]} : vector<8x128xf32> to vector<8x64xf32>
    %c64_i32_377 = arith.constant 64 : i32
    %814 = tpu.dynamic_rotate %812 by %c64_i32_377 dim 1 : vector<8x128xf32>, i32 -> vector<8x128xf32>
    %815 = vector.extract_strided_slice %814 {offsets = [0, 0], sizes = [8, 64], strides = [1, 1]} : vector<8x128xf32> to vector<8x64xf32>
    %816 = vector.extract_strided_slice %802 {offsets = [0, 128], sizes = [8, 64], strides = [1, 1]} : vector<8x256xf32> to vector<8x64xf32>
    %817 = vector.broadcast %804 : vector<1x64xf32> to vector<8x64xf32>
    %818 = arith.addf %816, %817 : vector<8x64xf32>
    %819 = vector.extract_strided_slice %799 {offsets = [0, 128], sizes = [8, 64], strides = [1, 1]} : vector<8x256xf32> to vector<8x64xf32>
    %820 = arith.mulf %813, %818 : vector<8x64xf32>
    %821 = arith.addf %819, %820 : vector<8x64xf32>
    %822 = math.tanh %821 : vector<8x64xf32>
    %823 = arith.subf %642, %822 : vector<8x64xf32>
    %824 = arith.mulf %815, %823 : vector<8x64xf32>
    %825 = arith.addf %822, %824 : vector<8x64xf32>
    %c1_i32_378 = arith.constant 1 : i32
    %826 = arith.cmpi sge, %c4_i32_345, %c1_i32_378 : i32
    %c9_i32_379 = arith.constant 9 : i32
    %827 = arith.cmpi slt, %c4_i32_345, %c9_i32_379 : i32
    %828 = arith.andi %826, %827 : i1
    %829 = arith.select %828, %825, %642 : vector<8x64xf32>
    %c1_380 = arith.constant 1 : index
    %c0_381 = arith.constant 0 : index
    %c0_382 = arith.constant 0 : index
    %830 = vector.load %arg2[%c1_380, %c0_381, %c0_382] : memref<4x64x256xf32, #tpu.memory_space<vmem>>, vector<1x64x256xf32>
    %831 = vector.shape_cast %830 : vector<1x64x256xf32> to vector<64x256xf32>
    %cst_383 = arith.constant dense<0.000000e+00> : vector<8x256xf32>
    %832 = tpu.matmul %642, %831, %cst_383 {dimension_numbers = #tpu.dot_dimension_numbers<[1], [0], [0], [1], [0, 0, 1, 1], [], []>} : vector<8x64xf32>, vector<64x256xf32>, vector<8x256xf32> -> vector<8x256xf32>
    %c2_384 = arith.constant 2 : index
    %c0_385 = arith.constant 0 : index
    %c0_386 = arith.constant 0 : index
    %833 = vector.load %arg4[%c2_384, %c0_385, %c0_386] : memref<5x1x256xf32, #tpu.memory_space<vmem>>, vector<1x1x256xf32>
    %834 = vector.shape_cast %833 : vector<1x1x256xf32> to vector<1x256xf32>
    %835 = vector.broadcast %834 : vector<1x256xf32> to vector<8x256xf32>
    %836 = arith.addf %832, %835 : vector<8x256xf32>
    %c2_387 = arith.constant 2 : index
    %c0_388 = arith.constant 0 : index
    %c0_389 = arith.constant 0 : index
    %837 = vector.load %arg3[%c2_387, %c0_388, %c0_389] : memref<5x64x256xf32, #tpu.memory_space<vmem>>, vector<1x64x256xf32>
    %838 = vector.shape_cast %837 : vector<1x64x256xf32> to vector<64x256xf32>
    %cst_390 = arith.constant dense<0.000000e+00> : vector<8x256xf32>
    %839 = tpu.matmul %679, %838, %cst_390 {dimension_numbers = #tpu.dot_dimension_numbers<[1], [0], [0], [1], [0, 0, 1, 1], [], []>} : vector<8x64xf32>, vector<64x256xf32>, vector<8x256xf32> -> vector<8x256xf32>
    %c2_391 = arith.constant 2 : index
    %c0_392 = arith.constant 0 : index
    %c0_393 = arith.constant 0 : index
    %840 = vector.load %arg5[%c2_391, %c0_392, %c0_393] : memref<5x1x64xf32, #tpu.memory_space<vmem>>, vector<1x1x64xf32>
    %841 = vector.shape_cast %840 : vector<1x1x64xf32> to vector<1x64xf32>
    %842 = vector.extract_strided_slice %836 {offsets = [0, 0], sizes = [8, 128], strides = [1, 1]} : vector<8x256xf32> to vector<8x128xf32>
    %843 = vector.extract_strided_slice %839 {offsets = [0, 0], sizes = [8, 128], strides = [1, 1]} : vector<8x256xf32> to vector<8x128xf32>
    %844 = arith.addf %842, %843 : vector<8x128xf32>
    %845 = arith.negf %844 : vector<8x128xf32>
    %846 = math.exp %845 : vector<8x128xf32>
    %cst_394 = arith.constant 1.000000e+00 : f32
    %847 = vector.broadcast %cst_394 : f32 to vector<8x128xf32>
    %848 = arith.addf %847, %846 : vector<8x128xf32>
    %849 = arith.divf %847, %848 : vector<8x128xf32>
    %850 = vector.extract_strided_slice %849 {offsets = [0, 0], sizes = [8, 64], strides = [1, 1]} : vector<8x128xf32> to vector<8x64xf32>
    %c64_i32_395 = arith.constant 64 : i32
    %851 = tpu.dynamic_rotate %849 by %c64_i32_395 dim 1 : vector<8x128xf32>, i32 -> vector<8x128xf32>
    %852 = vector.extract_strided_slice %851 {offsets = [0, 0], sizes = [8, 64], strides = [1, 1]} : vector<8x128xf32> to vector<8x64xf32>
    %853 = vector.extract_strided_slice %839 {offsets = [0, 128], sizes = [8, 64], strides = [1, 1]} : vector<8x256xf32> to vector<8x64xf32>
    %854 = vector.broadcast %841 : vector<1x64xf32> to vector<8x64xf32>
    %855 = arith.addf %853, %854 : vector<8x64xf32>
    %856 = vector.extract_strided_slice %836 {offsets = [0, 128], sizes = [8, 64], strides = [1, 1]} : vector<8x256xf32> to vector<8x64xf32>
    %857 = arith.mulf %850, %855 : vector<8x64xf32>
    %858 = arith.addf %856, %857 : vector<8x64xf32>
    %859 = math.tanh %858 : vector<8x64xf32>
    %860 = arith.subf %679, %859 : vector<8x64xf32>
    %861 = arith.mulf %852, %860 : vector<8x64xf32>
    %862 = arith.addf %859, %861 : vector<8x64xf32>
    %c2_i32_396 = arith.constant 2 : i32
    %863 = arith.cmpi sge, %c4_i32_345, %c2_i32_396 : i32
    %c10_i32_397 = arith.constant 10 : i32
    %864 = arith.cmpi slt, %c4_i32_345, %c10_i32_397 : i32
    %865 = arith.andi %863, %864 : i1
    %866 = arith.select %865, %862, %679 : vector<8x64xf32>
    %c2_398 = arith.constant 2 : index
    %c0_399 = arith.constant 0 : index
    %c0_400 = arith.constant 0 : index
    %867 = vector.load %arg2[%c2_398, %c0_399, %c0_400] : memref<4x64x256xf32, #tpu.memory_space<vmem>>, vector<1x64x256xf32>
    %868 = vector.shape_cast %867 : vector<1x64x256xf32> to vector<64x256xf32>
    %cst_401 = arith.constant dense<0.000000e+00> : vector<8x256xf32>
    %869 = tpu.matmul %679, %868, %cst_401 {dimension_numbers = #tpu.dot_dimension_numbers<[1], [0], [0], [1], [0, 0, 1, 1], [], []>} : vector<8x64xf32>, vector<64x256xf32>, vector<8x256xf32> -> vector<8x256xf32>
    %c3_402 = arith.constant 3 : index
    %c0_403 = arith.constant 0 : index
    %c0_404 = arith.constant 0 : index
    %870 = vector.load %arg4[%c3_402, %c0_403, %c0_404] : memref<5x1x256xf32, #tpu.memory_space<vmem>>, vector<1x1x256xf32>
    %871 = vector.shape_cast %870 : vector<1x1x256xf32> to vector<1x256xf32>
    %872 = vector.broadcast %871 : vector<1x256xf32> to vector<8x256xf32>
    %873 = arith.addf %869, %872 : vector<8x256xf32>
    %c3_405 = arith.constant 3 : index
    %c0_406 = arith.constant 0 : index
    %c0_407 = arith.constant 0 : index
    %874 = vector.load %arg3[%c3_405, %c0_406, %c0_407] : memref<5x64x256xf32, #tpu.memory_space<vmem>>, vector<1x64x256xf32>
    %875 = vector.shape_cast %874 : vector<1x64x256xf32> to vector<64x256xf32>
    %cst_408 = arith.constant dense<0.000000e+00> : vector<8x256xf32>
    %876 = tpu.matmul %716, %875, %cst_408 {dimension_numbers = #tpu.dot_dimension_numbers<[1], [0], [0], [1], [0, 0, 1, 1], [], []>} : vector<8x64xf32>, vector<64x256xf32>, vector<8x256xf32> -> vector<8x256xf32>
    %c3_409 = arith.constant 3 : index
    %c0_410 = arith.constant 0 : index
    %c0_411 = arith.constant 0 : index
    %877 = vector.load %arg5[%c3_409, %c0_410, %c0_411] : memref<5x1x64xf32, #tpu.memory_space<vmem>>, vector<1x1x64xf32>
    %878 = vector.shape_cast %877 : vector<1x1x64xf32> to vector<1x64xf32>
    %879 = vector.extract_strided_slice %873 {offsets = [0, 0], sizes = [8, 128], strides = [1, 1]} : vector<8x256xf32> to vector<8x128xf32>
    %880 = vector.extract_strided_slice %876 {offsets = [0, 0], sizes = [8, 128], strides = [1, 1]} : vector<8x256xf32> to vector<8x128xf32>
    %881 = arith.addf %879, %880 : vector<8x128xf32>
    %882 = arith.negf %881 : vector<8x128xf32>
    %883 = math.exp %882 : vector<8x128xf32>
    %cst_412 = arith.constant 1.000000e+00 : f32
    %884 = vector.broadcast %cst_412 : f32 to vector<8x128xf32>
    %885 = arith.addf %884, %883 : vector<8x128xf32>
    %886 = arith.divf %884, %885 : vector<8x128xf32>
    %887 = vector.extract_strided_slice %886 {offsets = [0, 0], sizes = [8, 64], strides = [1, 1]} : vector<8x128xf32> to vector<8x64xf32>
    %c64_i32_413 = arith.constant 64 : i32
    %888 = tpu.dynamic_rotate %886 by %c64_i32_413 dim 1 : vector<8x128xf32>, i32 -> vector<8x128xf32>
    %889 = vector.extract_strided_slice %888 {offsets = [0, 0], sizes = [8, 64], strides = [1, 1]} : vector<8x128xf32> to vector<8x64xf32>
    %890 = vector.extract_strided_slice %876 {offsets = [0, 128], sizes = [8, 64], strides = [1, 1]} : vector<8x256xf32> to vector<8x64xf32>
    %891 = vector.broadcast %878 : vector<1x64xf32> to vector<8x64xf32>
    %892 = arith.addf %890, %891 : vector<8x64xf32>
    %893 = vector.extract_strided_slice %873 {offsets = [0, 128], sizes = [8, 64], strides = [1, 1]} : vector<8x256xf32> to vector<8x64xf32>
    %894 = arith.mulf %887, %892 : vector<8x64xf32>
    %895 = arith.addf %893, %894 : vector<8x64xf32>
    %896 = math.tanh %895 : vector<8x64xf32>
    %897 = arith.subf %716, %896 : vector<8x64xf32>
    %898 = arith.mulf %889, %897 : vector<8x64xf32>
    %899 = arith.addf %896, %898 : vector<8x64xf32>
    %c3_i32_414 = arith.constant 3 : i32
    %900 = arith.cmpi sge, %c4_i32_345, %c3_i32_414 : i32
    %c11_i32_415 = arith.constant 11 : i32
    %901 = arith.cmpi slt, %c4_i32_345, %c11_i32_415 : i32
    %902 = arith.andi %900, %901 : i1
    %903 = arith.select %902, %899, %716 : vector<8x64xf32>
    %c3_416 = arith.constant 3 : index
    %c0_417 = arith.constant 0 : index
    %c0_418 = arith.constant 0 : index
    %904 = vector.load %arg2[%c3_416, %c0_417, %c0_418] : memref<4x64x256xf32, #tpu.memory_space<vmem>>, vector<1x64x256xf32>
    %905 = vector.shape_cast %904 : vector<1x64x256xf32> to vector<64x256xf32>
    %cst_419 = arith.constant dense<0.000000e+00> : vector<8x256xf32>
    %906 = tpu.matmul %716, %905, %cst_419 {dimension_numbers = #tpu.dot_dimension_numbers<[1], [0], [0], [1], [0, 0, 1, 1], [], []>} : vector<8x64xf32>, vector<64x256xf32>, vector<8x256xf32> -> vector<8x256xf32>
    %c4_420 = arith.constant 4 : index
    %c0_421 = arith.constant 0 : index
    %c0_422 = arith.constant 0 : index
    %907 = vector.load %arg4[%c4_420, %c0_421, %c0_422] : memref<5x1x256xf32, #tpu.memory_space<vmem>>, vector<1x1x256xf32>
    %908 = vector.shape_cast %907 : vector<1x1x256xf32> to vector<1x256xf32>
    %909 = vector.broadcast %908 : vector<1x256xf32> to vector<8x256xf32>
    %910 = arith.addf %906, %909 : vector<8x256xf32>
    %c4_423 = arith.constant 4 : index
    %c0_424 = arith.constant 0 : index
    %c0_425 = arith.constant 0 : index
    %911 = vector.load %arg3[%c4_423, %c0_424, %c0_425] : memref<5x64x256xf32, #tpu.memory_space<vmem>>, vector<1x64x256xf32>
    %912 = vector.shape_cast %911 : vector<1x64x256xf32> to vector<64x256xf32>
    %cst_426 = arith.constant dense<0.000000e+00> : vector<8x256xf32>
    %913 = tpu.matmul %753, %912, %cst_426 {dimension_numbers = #tpu.dot_dimension_numbers<[1], [0], [0], [1], [0, 0, 1, 1], [], []>} : vector<8x64xf32>, vector<64x256xf32>, vector<8x256xf32> -> vector<8x256xf32>
    %c4_427 = arith.constant 4 : index
    %c0_428 = arith.constant 0 : index
    %c0_429 = arith.constant 0 : index
    %914 = vector.load %arg5[%c4_427, %c0_428, %c0_429] : memref<5x1x64xf32, #tpu.memory_space<vmem>>, vector<1x1x64xf32>
    %915 = vector.shape_cast %914 : vector<1x1x64xf32> to vector<1x64xf32>
    %916 = vector.extract_strided_slice %910 {offsets = [0, 0], sizes = [8, 128], strides = [1, 1]} : vector<8x256xf32> to vector<8x128xf32>
    %917 = vector.extract_strided_slice %913 {offsets = [0, 0], sizes = [8, 128], strides = [1, 1]} : vector<8x256xf32> to vector<8x128xf32>
    %918 = arith.addf %916, %917 : vector<8x128xf32>
    %919 = arith.negf %918 : vector<8x128xf32>
    %920 = math.exp %919 : vector<8x128xf32>
    %cst_430 = arith.constant 1.000000e+00 : f32
    %921 = vector.broadcast %cst_430 : f32 to vector<8x128xf32>
    %922 = arith.addf %921, %920 : vector<8x128xf32>
    %923 = arith.divf %921, %922 : vector<8x128xf32>
    %924 = vector.extract_strided_slice %923 {offsets = [0, 0], sizes = [8, 64], strides = [1, 1]} : vector<8x128xf32> to vector<8x64xf32>
    %c64_i32_431 = arith.constant 64 : i32
    %925 = tpu.dynamic_rotate %923 by %c64_i32_431 dim 1 : vector<8x128xf32>, i32 -> vector<8x128xf32>
    %926 = vector.extract_strided_slice %925 {offsets = [0, 0], sizes = [8, 64], strides = [1, 1]} : vector<8x128xf32> to vector<8x64xf32>
    %927 = vector.extract_strided_slice %913 {offsets = [0, 128], sizes = [8, 64], strides = [1, 1]} : vector<8x256xf32> to vector<8x64xf32>
    %928 = vector.broadcast %915 : vector<1x64xf32> to vector<8x64xf32>
    %929 = arith.addf %927, %928 : vector<8x64xf32>
    %930 = vector.extract_strided_slice %910 {offsets = [0, 128], sizes = [8, 64], strides = [1, 1]} : vector<8x256xf32> to vector<8x64xf32>
    %931 = arith.mulf %924, %929 : vector<8x64xf32>
    %932 = arith.addf %930, %931 : vector<8x64xf32>
    %933 = math.tanh %932 : vector<8x64xf32>
    %934 = arith.subf %753, %933 : vector<8x64xf32>
    %935 = arith.mulf %926, %934 : vector<8x64xf32>
    %936 = arith.addf %933, %935 : vector<8x64xf32>
    %c4_i32_432 = arith.constant 4 : i32
    %937 = arith.cmpi sge, %c4_i32_345, %c4_i32_432 : i32
    %c12_i32_433 = arith.constant 12 : i32
    %938 = arith.cmpi slt, %c4_i32_345, %c12_i32_433 : i32
    %939 = arith.andi %937, %938 : i1
    %940 = arith.select %939, %936, %753 : vector<8x64xf32>
    %c5_i32 = arith.constant 5 : i32
    %c7_i32_434 = arith.constant 7 : i32
    %941 = arith.minsi %c5_i32, %c7_i32_434 : i32
    %942 = arith.index_cast %941 : i32 to index
    %c0_435 = arith.constant 0 : index
    %c0_436 = arith.constant 0 : index
    %943 = vector.load %arg0[%942, %c0_435, %c0_436] : memref<8x8x1xf32, #tpu.memory_space<vmem>>, vector<1x8x1xf32>
    %944 = vector.shape_cast %943 : vector<1x8x1xf32> to vector<8x1xf32>
    %945 = vector.broadcast %944 : vector<8x1xf32> to vector<8x256xf32>
    %946 = vector.broadcast %0 : vector<1x256xf32> to vector<8x256xf32>
    %947 = arith.mulf %945, %946 : vector<8x256xf32>
    %c0_437 = arith.constant 0 : index
    %c0_438 = arith.constant 0 : index
    %c0_439 = arith.constant 0 : index
    %948 = vector.load %arg4[%c0_437, %c0_438, %c0_439] : memref<5x1x256xf32, #tpu.memory_space<vmem>>, vector<1x1x256xf32>
    %949 = vector.shape_cast %948 : vector<1x1x256xf32> to vector<1x256xf32>
    %950 = vector.broadcast %949 : vector<1x256xf32> to vector<8x256xf32>
    %951 = arith.addf %947, %950 : vector<8x256xf32>
    %c0_440 = arith.constant 0 : index
    %c0_441 = arith.constant 0 : index
    %c0_442 = arith.constant 0 : index
    %952 = vector.load %arg3[%c0_440, %c0_441, %c0_442] : memref<5x64x256xf32, #tpu.memory_space<vmem>>, vector<1x64x256xf32>
    %953 = vector.shape_cast %952 : vector<1x64x256xf32> to vector<64x256xf32>
    %cst_443 = arith.constant dense<0.000000e+00> : vector<8x256xf32>
    %954 = tpu.matmul %792, %953, %cst_443 {dimension_numbers = #tpu.dot_dimension_numbers<[1], [0], [0], [1], [0, 0, 1, 1], [], []>} : vector<8x64xf32>, vector<64x256xf32>, vector<8x256xf32> -> vector<8x256xf32>
    %c0_444 = arith.constant 0 : index
    %c0_445 = arith.constant 0 : index
    %c0_446 = arith.constant 0 : index
    %955 = vector.load %arg5[%c0_444, %c0_445, %c0_446] : memref<5x1x64xf32, #tpu.memory_space<vmem>>, vector<1x1x64xf32>
    %956 = vector.shape_cast %955 : vector<1x1x64xf32> to vector<1x64xf32>
    %957 = vector.extract_strided_slice %951 {offsets = [0, 0], sizes = [8, 128], strides = [1, 1]} : vector<8x256xf32> to vector<8x128xf32>
    %958 = vector.extract_strided_slice %954 {offsets = [0, 0], sizes = [8, 128], strides = [1, 1]} : vector<8x256xf32> to vector<8x128xf32>
    %959 = arith.addf %957, %958 : vector<8x128xf32>
    %960 = arith.negf %959 : vector<8x128xf32>
    %961 = math.exp %960 : vector<8x128xf32>
    %cst_447 = arith.constant 1.000000e+00 : f32
    %962 = vector.broadcast %cst_447 : f32 to vector<8x128xf32>
    %963 = arith.addf %962, %961 : vector<8x128xf32>
    %964 = arith.divf %962, %963 : vector<8x128xf32>
    %965 = vector.extract_strided_slice %964 {offsets = [0, 0], sizes = [8, 64], strides = [1, 1]} : vector<8x128xf32> to vector<8x64xf32>
    %c64_i32_448 = arith.constant 64 : i32
    %966 = tpu.dynamic_rotate %964 by %c64_i32_448 dim 1 : vector<8x128xf32>, i32 -> vector<8x128xf32>
    %967 = vector.extract_strided_slice %966 {offsets = [0, 0], sizes = [8, 64], strides = [1, 1]} : vector<8x128xf32> to vector<8x64xf32>
    %968 = vector.extract_strided_slice %954 {offsets = [0, 128], sizes = [8, 64], strides = [1, 1]} : vector<8x256xf32> to vector<8x64xf32>
    %969 = vector.broadcast %956 : vector<1x64xf32> to vector<8x64xf32>
    %970 = arith.addf %968, %969 : vector<8x64xf32>
    %971 = vector.extract_strided_slice %951 {offsets = [0, 128], sizes = [8, 64], strides = [1, 1]} : vector<8x256xf32> to vector<8x64xf32>
    %972 = arith.mulf %965, %970 : vector<8x64xf32>
    %973 = arith.addf %971, %972 : vector<8x64xf32>
    %974 = math.tanh %973 : vector<8x64xf32>
    %975 = arith.subf %792, %974 : vector<8x64xf32>
    %976 = arith.mulf %967, %975 : vector<8x64xf32>
    %977 = arith.addf %974, %976 : vector<8x64xf32>
    %c8_i32_449 = arith.constant 8 : i32
    %978 = arith.cmpi slt, %c5_i32, %c8_i32_449 : i32
    %979 = arith.select %978, %977, %792 : vector<8x64xf32>
    %c0_450 = arith.constant 0 : index
    %c0_451 = arith.constant 0 : index
    %c0_452 = arith.constant 0 : index
    %980 = vector.load %arg2[%c0_450, %c0_451, %c0_452] : memref<4x64x256xf32, #tpu.memory_space<vmem>>, vector<1x64x256xf32>
    %981 = vector.shape_cast %980 : vector<1x64x256xf32> to vector<64x256xf32>
    %cst_453 = arith.constant dense<0.000000e+00> : vector<8x256xf32>
    %982 = tpu.matmul %792, %981, %cst_453 {dimension_numbers = #tpu.dot_dimension_numbers<[1], [0], [0], [1], [0, 0, 1, 1], [], []>} : vector<8x64xf32>, vector<64x256xf32>, vector<8x256xf32> -> vector<8x256xf32>
    %c1_454 = arith.constant 1 : index
    %c0_455 = arith.constant 0 : index
    %c0_456 = arith.constant 0 : index
    %983 = vector.load %arg4[%c1_454, %c0_455, %c0_456] : memref<5x1x256xf32, #tpu.memory_space<vmem>>, vector<1x1x256xf32>
    %984 = vector.shape_cast %983 : vector<1x1x256xf32> to vector<1x256xf32>
    %985 = vector.broadcast %984 : vector<1x256xf32> to vector<8x256xf32>
    %986 = arith.addf %982, %985 : vector<8x256xf32>
    %c1_457 = arith.constant 1 : index
    %c0_458 = arith.constant 0 : index
    %c0_459 = arith.constant 0 : index
    %987 = vector.load %arg3[%c1_457, %c0_458, %c0_459] : memref<5x64x256xf32, #tpu.memory_space<vmem>>, vector<1x64x256xf32>
    %988 = vector.shape_cast %987 : vector<1x64x256xf32> to vector<64x256xf32>
    %cst_460 = arith.constant dense<0.000000e+00> : vector<8x256xf32>
    %989 = tpu.matmul %829, %988, %cst_460 {dimension_numbers = #tpu.dot_dimension_numbers<[1], [0], [0], [1], [0, 0, 1, 1], [], []>} : vector<8x64xf32>, vector<64x256xf32>, vector<8x256xf32> -> vector<8x256xf32>
    %c1_461 = arith.constant 1 : index
    %c0_462 = arith.constant 0 : index
    %c0_463 = arith.constant 0 : index
    %990 = vector.load %arg5[%c1_461, %c0_462, %c0_463] : memref<5x1x64xf32, #tpu.memory_space<vmem>>, vector<1x1x64xf32>
    %991 = vector.shape_cast %990 : vector<1x1x64xf32> to vector<1x64xf32>
    %992 = vector.extract_strided_slice %986 {offsets = [0, 0], sizes = [8, 128], strides = [1, 1]} : vector<8x256xf32> to vector<8x128xf32>
    %993 = vector.extract_strided_slice %989 {offsets = [0, 0], sizes = [8, 128], strides = [1, 1]} : vector<8x256xf32> to vector<8x128xf32>
    %994 = arith.addf %992, %993 : vector<8x128xf32>
    %995 = arith.negf %994 : vector<8x128xf32>
    %996 = math.exp %995 : vector<8x128xf32>
    %cst_464 = arith.constant 1.000000e+00 : f32
    %997 = vector.broadcast %cst_464 : f32 to vector<8x128xf32>
    %998 = arith.addf %997, %996 : vector<8x128xf32>
    %999 = arith.divf %997, %998 : vector<8x128xf32>
    %1000 = vector.extract_strided_slice %999 {offsets = [0, 0], sizes = [8, 64], strides = [1, 1]} : vector<8x128xf32> to vector<8x64xf32>
    %c64_i32_465 = arith.constant 64 : i32
    %1001 = tpu.dynamic_rotate %999 by %c64_i32_465 dim 1 : vector<8x128xf32>, i32 -> vector<8x128xf32>
    %1002 = vector.extract_strided_slice %1001 {offsets = [0, 0], sizes = [8, 64], strides = [1, 1]} : vector<8x128xf32> to vector<8x64xf32>
    %1003 = vector.extract_strided_slice %989 {offsets = [0, 128], sizes = [8, 64], strides = [1, 1]} : vector<8x256xf32> to vector<8x64xf32>
    %1004 = vector.broadcast %991 : vector<1x64xf32> to vector<8x64xf32>
    %1005 = arith.addf %1003, %1004 : vector<8x64xf32>
    %1006 = vector.extract_strided_slice %986 {offsets = [0, 128], sizes = [8, 64], strides = [1, 1]} : vector<8x256xf32> to vector<8x64xf32>
    %1007 = arith.mulf %1000, %1005 : vector<8x64xf32>
    %1008 = arith.addf %1006, %1007 : vector<8x64xf32>
    %1009 = math.tanh %1008 : vector<8x64xf32>
    %1010 = arith.subf %829, %1009 : vector<8x64xf32>
    %1011 = arith.mulf %1002, %1010 : vector<8x64xf32>
    %1012 = arith.addf %1009, %1011 : vector<8x64xf32>
    %c1_i32_466 = arith.constant 1 : i32
    %1013 = arith.cmpi sge, %c5_i32, %c1_i32_466 : i32
    %c9_i32_467 = arith.constant 9 : i32
    %1014 = arith.cmpi slt, %c5_i32, %c9_i32_467 : i32
    %1015 = arith.andi %1013, %1014 : i1
    %1016 = arith.select %1015, %1012, %829 : vector<8x64xf32>
    %c1_468 = arith.constant 1 : index
    %c0_469 = arith.constant 0 : index
    %c0_470 = arith.constant 0 : index
    %1017 = vector.load %arg2[%c1_468, %c0_469, %c0_470] : memref<4x64x256xf32, #tpu.memory_space<vmem>>, vector<1x64x256xf32>
    %1018 = vector.shape_cast %1017 : vector<1x64x256xf32> to vector<64x256xf32>
    %cst_471 = arith.constant dense<0.000000e+00> : vector<8x256xf32>
    %1019 = tpu.matmul %829, %1018, %cst_471 {dimension_numbers = #tpu.dot_dimension_numbers<[1], [0], [0], [1], [0, 0, 1, 1], [], []>} : vector<8x64xf32>, vector<64x256xf32>, vector<8x256xf32> -> vector<8x256xf32>
    %c2_472 = arith.constant 2 : index
    %c0_473 = arith.constant 0 : index
    %c0_474 = arith.constant 0 : index
    %1020 = vector.load %arg4[%c2_472, %c0_473, %c0_474] : memref<5x1x256xf32, #tpu.memory_space<vmem>>, vector<1x1x256xf32>
    %1021 = vector.shape_cast %1020 : vector<1x1x256xf32> to vector<1x256xf32>
    %1022 = vector.broadcast %1021 : vector<1x256xf32> to vector<8x256xf32>
    %1023 = arith.addf %1019, %1022 : vector<8x256xf32>
    %c2_475 = arith.constant 2 : index
    %c0_476 = arith.constant 0 : index
    %c0_477 = arith.constant 0 : index
    %1024 = vector.load %arg3[%c2_475, %c0_476, %c0_477] : memref<5x64x256xf32, #tpu.memory_space<vmem>>, vector<1x64x256xf32>
    %1025 = vector.shape_cast %1024 : vector<1x64x256xf32> to vector<64x256xf32>
    %cst_478 = arith.constant dense<0.000000e+00> : vector<8x256xf32>
    %1026 = tpu.matmul %866, %1025, %cst_478 {dimension_numbers = #tpu.dot_dimension_numbers<[1], [0], [0], [1], [0, 0, 1, 1], [], []>} : vector<8x64xf32>, vector<64x256xf32>, vector<8x256xf32> -> vector<8x256xf32>
    %c2_479 = arith.constant 2 : index
    %c0_480 = arith.constant 0 : index
    %c0_481 = arith.constant 0 : index
    %1027 = vector.load %arg5[%c2_479, %c0_480, %c0_481] : memref<5x1x64xf32, #tpu.memory_space<vmem>>, vector<1x1x64xf32>
    %1028 = vector.shape_cast %1027 : vector<1x1x64xf32> to vector<1x64xf32>
    %1029 = vector.extract_strided_slice %1023 {offsets = [0, 0], sizes = [8, 128], strides = [1, 1]} : vector<8x256xf32> to vector<8x128xf32>
    %1030 = vector.extract_strided_slice %1026 {offsets = [0, 0], sizes = [8, 128], strides = [1, 1]} : vector<8x256xf32> to vector<8x128xf32>
    %1031 = arith.addf %1029, %1030 : vector<8x128xf32>
    %1032 = arith.negf %1031 : vector<8x128xf32>
    %1033 = math.exp %1032 : vector<8x128xf32>
    %cst_482 = arith.constant 1.000000e+00 : f32
    %1034 = vector.broadcast %cst_482 : f32 to vector<8x128xf32>
    %1035 = arith.addf %1034, %1033 : vector<8x128xf32>
    %1036 = arith.divf %1034, %1035 : vector<8x128xf32>
    %1037 = vector.extract_strided_slice %1036 {offsets = [0, 0], sizes = [8, 64], strides = [1, 1]} : vector<8x128xf32> to vector<8x64xf32>
    %c64_i32_483 = arith.constant 64 : i32
    %1038 = tpu.dynamic_rotate %1036 by %c64_i32_483 dim 1 : vector<8x128xf32>, i32 -> vector<8x128xf32>
    %1039 = vector.extract_strided_slice %1038 {offsets = [0, 0], sizes = [8, 64], strides = [1, 1]} : vector<8x128xf32> to vector<8x64xf32>
    %1040 = vector.extract_strided_slice %1026 {offsets = [0, 128], sizes = [8, 64], strides = [1, 1]} : vector<8x256xf32> to vector<8x64xf32>
    %1041 = vector.broadcast %1028 : vector<1x64xf32> to vector<8x64xf32>
    %1042 = arith.addf %1040, %1041 : vector<8x64xf32>
    %1043 = vector.extract_strided_slice %1023 {offsets = [0, 128], sizes = [8, 64], strides = [1, 1]} : vector<8x256xf32> to vector<8x64xf32>
    %1044 = arith.mulf %1037, %1042 : vector<8x64xf32>
    %1045 = arith.addf %1043, %1044 : vector<8x64xf32>
    %1046 = math.tanh %1045 : vector<8x64xf32>
    %1047 = arith.subf %866, %1046 : vector<8x64xf32>
    %1048 = arith.mulf %1039, %1047 : vector<8x64xf32>
    %1049 = arith.addf %1046, %1048 : vector<8x64xf32>
    %c2_i32_484 = arith.constant 2 : i32
    %1050 = arith.cmpi sge, %c5_i32, %c2_i32_484 : i32
    %c10_i32_485 = arith.constant 10 : i32
    %1051 = arith.cmpi slt, %c5_i32, %c10_i32_485 : i32
    %1052 = arith.andi %1050, %1051 : i1
    %1053 = arith.select %1052, %1049, %866 : vector<8x64xf32>
    %c2_486 = arith.constant 2 : index
    %c0_487 = arith.constant 0 : index
    %c0_488 = arith.constant 0 : index
    %1054 = vector.load %arg2[%c2_486, %c0_487, %c0_488] : memref<4x64x256xf32, #tpu.memory_space<vmem>>, vector<1x64x256xf32>
    %1055 = vector.shape_cast %1054 : vector<1x64x256xf32> to vector<64x256xf32>
    %cst_489 = arith.constant dense<0.000000e+00> : vector<8x256xf32>
    %1056 = tpu.matmul %866, %1055, %cst_489 {dimension_numbers = #tpu.dot_dimension_numbers<[1], [0], [0], [1], [0, 0, 1, 1], [], []>} : vector<8x64xf32>, vector<64x256xf32>, vector<8x256xf32> -> vector<8x256xf32>
    %c3_490 = arith.constant 3 : index
    %c0_491 = arith.constant 0 : index
    %c0_492 = arith.constant 0 : index
    %1057 = vector.load %arg4[%c3_490, %c0_491, %c0_492] : memref<5x1x256xf32, #tpu.memory_space<vmem>>, vector<1x1x256xf32>
    %1058 = vector.shape_cast %1057 : vector<1x1x256xf32> to vector<1x256xf32>
    %1059 = vector.broadcast %1058 : vector<1x256xf32> to vector<8x256xf32>
    %1060 = arith.addf %1056, %1059 : vector<8x256xf32>
    %c3_493 = arith.constant 3 : index
    %c0_494 = arith.constant 0 : index
    %c0_495 = arith.constant 0 : index
    %1061 = vector.load %arg3[%c3_493, %c0_494, %c0_495] : memref<5x64x256xf32, #tpu.memory_space<vmem>>, vector<1x64x256xf32>
    %1062 = vector.shape_cast %1061 : vector<1x64x256xf32> to vector<64x256xf32>
    %cst_496 = arith.constant dense<0.000000e+00> : vector<8x256xf32>
    %1063 = tpu.matmul %903, %1062, %cst_496 {dimension_numbers = #tpu.dot_dimension_numbers<[1], [0], [0], [1], [0, 0, 1, 1], [], []>} : vector<8x64xf32>, vector<64x256xf32>, vector<8x256xf32> -> vector<8x256xf32>
    %c3_497 = arith.constant 3 : index
    %c0_498 = arith.constant 0 : index
    %c0_499 = arith.constant 0 : index
    %1064 = vector.load %arg5[%c3_497, %c0_498, %c0_499] : memref<5x1x64xf32, #tpu.memory_space<vmem>>, vector<1x1x64xf32>
    %1065 = vector.shape_cast %1064 : vector<1x1x64xf32> to vector<1x64xf32>
    %1066 = vector.extract_strided_slice %1060 {offsets = [0, 0], sizes = [8, 128], strides = [1, 1]} : vector<8x256xf32> to vector<8x128xf32>
    %1067 = vector.extract_strided_slice %1063 {offsets = [0, 0], sizes = [8, 128], strides = [1, 1]} : vector<8x256xf32> to vector<8x128xf32>
    %1068 = arith.addf %1066, %1067 : vector<8x128xf32>
    %1069 = arith.negf %1068 : vector<8x128xf32>
    %1070 = math.exp %1069 : vector<8x128xf32>
    %cst_500 = arith.constant 1.000000e+00 : f32
    %1071 = vector.broadcast %cst_500 : f32 to vector<8x128xf32>
    %1072 = arith.addf %1071, %1070 : vector<8x128xf32>
    %1073 = arith.divf %1071, %1072 : vector<8x128xf32>
    %1074 = vector.extract_strided_slice %1073 {offsets = [0, 0], sizes = [8, 64], strides = [1, 1]} : vector<8x128xf32> to vector<8x64xf32>
    %c64_i32_501 = arith.constant 64 : i32
    %1075 = tpu.dynamic_rotate %1073 by %c64_i32_501 dim 1 : vector<8x128xf32>, i32 -> vector<8x128xf32>
    %1076 = vector.extract_strided_slice %1075 {offsets = [0, 0], sizes = [8, 64], strides = [1, 1]} : vector<8x128xf32> to vector<8x64xf32>
    %1077 = vector.extract_strided_slice %1063 {offsets = [0, 128], sizes = [8, 64], strides = [1, 1]} : vector<8x256xf32> to vector<8x64xf32>
    %1078 = vector.broadcast %1065 : vector<1x64xf32> to vector<8x64xf32>
    %1079 = arith.addf %1077, %1078 : vector<8x64xf32>
    %1080 = vector.extract_strided_slice %1060 {offsets = [0, 128], sizes = [8, 64], strides = [1, 1]} : vector<8x256xf32> to vector<8x64xf32>
    %1081 = arith.mulf %1074, %1079 : vector<8x64xf32>
    %1082 = arith.addf %1080, %1081 : vector<8x64xf32>
    %1083 = math.tanh %1082 : vector<8x64xf32>
    %1084 = arith.subf %903, %1083 : vector<8x64xf32>
    %1085 = arith.mulf %1076, %1084 : vector<8x64xf32>
    %1086 = arith.addf %1083, %1085 : vector<8x64xf32>
    %c3_i32_502 = arith.constant 3 : i32
    %1087 = arith.cmpi sge, %c5_i32, %c3_i32_502 : i32
    %c11_i32_503 = arith.constant 11 : i32
    %1088 = arith.cmpi slt, %c5_i32, %c11_i32_503 : i32
    %1089 = arith.andi %1087, %1088 : i1
    %1090 = arith.select %1089, %1086, %903 : vector<8x64xf32>
    %c3_504 = arith.constant 3 : index
    %c0_505 = arith.constant 0 : index
    %c0_506 = arith.constant 0 : index
    %1091 = vector.load %arg2[%c3_504, %c0_505, %c0_506] : memref<4x64x256xf32, #tpu.memory_space<vmem>>, vector<1x64x256xf32>
    %1092 = vector.shape_cast %1091 : vector<1x64x256xf32> to vector<64x256xf32>
    %cst_507 = arith.constant dense<0.000000e+00> : vector<8x256xf32>
    %1093 = tpu.matmul %903, %1092, %cst_507 {dimension_numbers = #tpu.dot_dimension_numbers<[1], [0], [0], [1], [0, 0, 1, 1], [], []>} : vector<8x64xf32>, vector<64x256xf32>, vector<8x256xf32> -> vector<8x256xf32>
    %c4_508 = arith.constant 4 : index
    %c0_509 = arith.constant 0 : index
    %c0_510 = arith.constant 0 : index
    %1094 = vector.load %arg4[%c4_508, %c0_509, %c0_510] : memref<5x1x256xf32, #tpu.memory_space<vmem>>, vector<1x1x256xf32>
    %1095 = vector.shape_cast %1094 : vector<1x1x256xf32> to vector<1x256xf32>
    %1096 = vector.broadcast %1095 : vector<1x256xf32> to vector<8x256xf32>
    %1097 = arith.addf %1093, %1096 : vector<8x256xf32>
    %c4_511 = arith.constant 4 : index
    %c0_512 = arith.constant 0 : index
    %c0_513 = arith.constant 0 : index
    %1098 = vector.load %arg3[%c4_511, %c0_512, %c0_513] : memref<5x64x256xf32, #tpu.memory_space<vmem>>, vector<1x64x256xf32>
    %1099 = vector.shape_cast %1098 : vector<1x64x256xf32> to vector<64x256xf32>
    %cst_514 = arith.constant dense<0.000000e+00> : vector<8x256xf32>
    %1100 = tpu.matmul %940, %1099, %cst_514 {dimension_numbers = #tpu.dot_dimension_numbers<[1], [0], [0], [1], [0, 0, 1, 1], [], []>} : vector<8x64xf32>, vector<64x256xf32>, vector<8x256xf32> -> vector<8x256xf32>
    %c4_515 = arith.constant 4 : index
    %c0_516 = arith.constant 0 : index
    %c0_517 = arith.constant 0 : index
    %1101 = vector.load %arg5[%c4_515, %c0_516, %c0_517] : memref<5x1x64xf32, #tpu.memory_space<vmem>>, vector<1x1x64xf32>
    %1102 = vector.shape_cast %1101 : vector<1x1x64xf32> to vector<1x64xf32>
    %1103 = vector.extract_strided_slice %1097 {offsets = [0, 0], sizes = [8, 128], strides = [1, 1]} : vector<8x256xf32> to vector<8x128xf32>
    %1104 = vector.extract_strided_slice %1100 {offsets = [0, 0], sizes = [8, 128], strides = [1, 1]} : vector<8x256xf32> to vector<8x128xf32>
    %1105 = arith.addf %1103, %1104 : vector<8x128xf32>
    %1106 = arith.negf %1105 : vector<8x128xf32>
    %1107 = math.exp %1106 : vector<8x128xf32>
    %cst_518 = arith.constant 1.000000e+00 : f32
    %1108 = vector.broadcast %cst_518 : f32 to vector<8x128xf32>
    %1109 = arith.addf %1108, %1107 : vector<8x128xf32>
    %1110 = arith.divf %1108, %1109 : vector<8x128xf32>
    %1111 = vector.extract_strided_slice %1110 {offsets = [0, 0], sizes = [8, 64], strides = [1, 1]} : vector<8x128xf32> to vector<8x64xf32>
    %c64_i32_519 = arith.constant 64 : i32
    %1112 = tpu.dynamic_rotate %1110 by %c64_i32_519 dim 1 : vector<8x128xf32>, i32 -> vector<8x128xf32>
    %1113 = vector.extract_strided_slice %1112 {offsets = [0, 0], sizes = [8, 64], strides = [1, 1]} : vector<8x128xf32> to vector<8x64xf32>
    %1114 = vector.extract_strided_slice %1100 {offsets = [0, 128], sizes = [8, 64], strides = [1, 1]} : vector<8x256xf32> to vector<8x64xf32>
    %1115 = vector.broadcast %1102 : vector<1x64xf32> to vector<8x64xf32>
    %1116 = arith.addf %1114, %1115 : vector<8x64xf32>
    %1117 = vector.extract_strided_slice %1097 {offsets = [0, 128], sizes = [8, 64], strides = [1, 1]} : vector<8x256xf32> to vector<8x64xf32>
    %1118 = arith.mulf %1111, %1116 : vector<8x64xf32>
    %1119 = arith.addf %1117, %1118 : vector<8x64xf32>
    %1120 = math.tanh %1119 : vector<8x64xf32>
    %1121 = arith.subf %940, %1120 : vector<8x64xf32>
    %1122 = arith.mulf %1113, %1121 : vector<8x64xf32>
    %1123 = arith.addf %1120, %1122 : vector<8x64xf32>
    %c4_i32_520 = arith.constant 4 : i32
    %1124 = arith.cmpi sge, %c5_i32, %c4_i32_520 : i32
    %c12_i32_521 = arith.constant 12 : i32
    %1125 = arith.cmpi slt, %c5_i32, %c12_i32_521 : i32
    %1126 = arith.andi %1124, %1125 : i1
    %1127 = arith.select %1126, %1123, %940 : vector<8x64xf32>
    %c6_i32 = arith.constant 6 : i32
    %c7_i32_522 = arith.constant 7 : i32
    %1128 = arith.minsi %c6_i32, %c7_i32_522 : i32
    %1129 = arith.index_cast %1128 : i32 to index
    %c0_523 = arith.constant 0 : index
    %c0_524 = arith.constant 0 : index
    %1130 = vector.load %arg0[%1129, %c0_523, %c0_524] : memref<8x8x1xf32, #tpu.memory_space<vmem>>, vector<1x8x1xf32>
    %1131 = vector.shape_cast %1130 : vector<1x8x1xf32> to vector<8x1xf32>
    %1132 = vector.broadcast %1131 : vector<8x1xf32> to vector<8x256xf32>
    %1133 = vector.broadcast %0 : vector<1x256xf32> to vector<8x256xf32>
    %1134 = arith.mulf %1132, %1133 : vector<8x256xf32>
    %c0_525 = arith.constant 0 : index
    %c0_526 = arith.constant 0 : index
    %c0_527 = arith.constant 0 : index
    %1135 = vector.load %arg4[%c0_525, %c0_526, %c0_527] : memref<5x1x256xf32, #tpu.memory_space<vmem>>, vector<1x1x256xf32>
    %1136 = vector.shape_cast %1135 : vector<1x1x256xf32> to vector<1x256xf32>
    %1137 = vector.broadcast %1136 : vector<1x256xf32> to vector<8x256xf32>
    %1138 = arith.addf %1134, %1137 : vector<8x256xf32>
    %c0_528 = arith.constant 0 : index
    %c0_529 = arith.constant 0 : index
    %c0_530 = arith.constant 0 : index
    %1139 = vector.load %arg3[%c0_528, %c0_529, %c0_530] : memref<5x64x256xf32, #tpu.memory_space<vmem>>, vector<1x64x256xf32>
    %1140 = vector.shape_cast %1139 : vector<1x64x256xf32> to vector<64x256xf32>
    %cst_531 = arith.constant dense<0.000000e+00> : vector<8x256xf32>
    %1141 = tpu.matmul %979, %1140, %cst_531 {dimension_numbers = #tpu.dot_dimension_numbers<[1], [0], [0], [1], [0, 0, 1, 1], [], []>} : vector<8x64xf32>, vector<64x256xf32>, vector<8x256xf32> -> vector<8x256xf32>
    %c0_532 = arith.constant 0 : index
    %c0_533 = arith.constant 0 : index
    %c0_534 = arith.constant 0 : index
    %1142 = vector.load %arg5[%c0_532, %c0_533, %c0_534] : memref<5x1x64xf32, #tpu.memory_space<vmem>>, vector<1x1x64xf32>
    %1143 = vector.shape_cast %1142 : vector<1x1x64xf32> to vector<1x64xf32>
    %1144 = vector.extract_strided_slice %1138 {offsets = [0, 0], sizes = [8, 128], strides = [1, 1]} : vector<8x256xf32> to vector<8x128xf32>
    %1145 = vector.extract_strided_slice %1141 {offsets = [0, 0], sizes = [8, 128], strides = [1, 1]} : vector<8x256xf32> to vector<8x128xf32>
    %1146 = arith.addf %1144, %1145 : vector<8x128xf32>
    %1147 = arith.negf %1146 : vector<8x128xf32>
    %1148 = math.exp %1147 : vector<8x128xf32>
    %cst_535 = arith.constant 1.000000e+00 : f32
    %1149 = vector.broadcast %cst_535 : f32 to vector<8x128xf32>
    %1150 = arith.addf %1149, %1148 : vector<8x128xf32>
    %1151 = arith.divf %1149, %1150 : vector<8x128xf32>
    %1152 = vector.extract_strided_slice %1151 {offsets = [0, 0], sizes = [8, 64], strides = [1, 1]} : vector<8x128xf32> to vector<8x64xf32>
    %c64_i32_536 = arith.constant 64 : i32
    %1153 = tpu.dynamic_rotate %1151 by %c64_i32_536 dim 1 : vector<8x128xf32>, i32 -> vector<8x128xf32>
    %1154 = vector.extract_strided_slice %1153 {offsets = [0, 0], sizes = [8, 64], strides = [1, 1]} : vector<8x128xf32> to vector<8x64xf32>
    %1155 = vector.extract_strided_slice %1141 {offsets = [0, 128], sizes = [8, 64], strides = [1, 1]} : vector<8x256xf32> to vector<8x64xf32>
    %1156 = vector.broadcast %1143 : vector<1x64xf32> to vector<8x64xf32>
    %1157 = arith.addf %1155, %1156 : vector<8x64xf32>
    %1158 = vector.extract_strided_slice %1138 {offsets = [0, 128], sizes = [8, 64], strides = [1, 1]} : vector<8x256xf32> to vector<8x64xf32>
    %1159 = arith.mulf %1152, %1157 : vector<8x64xf32>
    %1160 = arith.addf %1158, %1159 : vector<8x64xf32>
    %1161 = math.tanh %1160 : vector<8x64xf32>
    %1162 = arith.subf %979, %1161 : vector<8x64xf32>
    %1163 = arith.mulf %1154, %1162 : vector<8x64xf32>
    %1164 = arith.addf %1161, %1163 : vector<8x64xf32>
    %c8_i32_537 = arith.constant 8 : i32
    %1165 = arith.cmpi slt, %c6_i32, %c8_i32_537 : i32
    %1166 = arith.select %1165, %1164, %979 : vector<8x64xf32>
    %c0_538 = arith.constant 0 : index
    %c0_539 = arith.constant 0 : index
    %c0_540 = arith.constant 0 : index
    %1167 = vector.load %arg2[%c0_538, %c0_539, %c0_540] : memref<4x64x256xf32, #tpu.memory_space<vmem>>, vector<1x64x256xf32>
    %1168 = vector.shape_cast %1167 : vector<1x64x256xf32> to vector<64x256xf32>
    %cst_541 = arith.constant dense<0.000000e+00> : vector<8x256xf32>
    %1169 = tpu.matmul %979, %1168, %cst_541 {dimension_numbers = #tpu.dot_dimension_numbers<[1], [0], [0], [1], [0, 0, 1, 1], [], []>} : vector<8x64xf32>, vector<64x256xf32>, vector<8x256xf32> -> vector<8x256xf32>
    %c1_542 = arith.constant 1 : index
    %c0_543 = arith.constant 0 : index
    %c0_544 = arith.constant 0 : index
    %1170 = vector.load %arg4[%c1_542, %c0_543, %c0_544] : memref<5x1x256xf32, #tpu.memory_space<vmem>>, vector<1x1x256xf32>
    %1171 = vector.shape_cast %1170 : vector<1x1x256xf32> to vector<1x256xf32>
    %1172 = vector.broadcast %1171 : vector<1x256xf32> to vector<8x256xf32>
    %1173 = arith.addf %1169, %1172 : vector<8x256xf32>
    %c1_545 = arith.constant 1 : index
    %c0_546 = arith.constant 0 : index
    %c0_547 = arith.constant 0 : index
    %1174 = vector.load %arg3[%c1_545, %c0_546, %c0_547] : memref<5x64x256xf32, #tpu.memory_space<vmem>>, vector<1x64x256xf32>
    %1175 = vector.shape_cast %1174 : vector<1x64x256xf32> to vector<64x256xf32>
    %cst_548 = arith.constant dense<0.000000e+00> : vector<8x256xf32>
    %1176 = tpu.matmul %1016, %1175, %cst_548 {dimension_numbers = #tpu.dot_dimension_numbers<[1], [0], [0], [1], [0, 0, 1, 1], [], []>} : vector<8x64xf32>, vector<64x256xf32>, vector<8x256xf32> -> vector<8x256xf32>
    %c1_549 = arith.constant 1 : index
    %c0_550 = arith.constant 0 : index
    %c0_551 = arith.constant 0 : index
    %1177 = vector.load %arg5[%c1_549, %c0_550, %c0_551] : memref<5x1x64xf32, #tpu.memory_space<vmem>>, vector<1x1x64xf32>
    %1178 = vector.shape_cast %1177 : vector<1x1x64xf32> to vector<1x64xf32>
    %1179 = vector.extract_strided_slice %1173 {offsets = [0, 0], sizes = [8, 128], strides = [1, 1]} : vector<8x256xf32> to vector<8x128xf32>
    %1180 = vector.extract_strided_slice %1176 {offsets = [0, 0], sizes = [8, 128], strides = [1, 1]} : vector<8x256xf32> to vector<8x128xf32>
    %1181 = arith.addf %1179, %1180 : vector<8x128xf32>
    %1182 = arith.negf %1181 : vector<8x128xf32>
    %1183 = math.exp %1182 : vector<8x128xf32>
    %cst_552 = arith.constant 1.000000e+00 : f32
    %1184 = vector.broadcast %cst_552 : f32 to vector<8x128xf32>
    %1185 = arith.addf %1184, %1183 : vector<8x128xf32>
    %1186 = arith.divf %1184, %1185 : vector<8x128xf32>
    %1187 = vector.extract_strided_slice %1186 {offsets = [0, 0], sizes = [8, 64], strides = [1, 1]} : vector<8x128xf32> to vector<8x64xf32>
    %c64_i32_553 = arith.constant 64 : i32
    %1188 = tpu.dynamic_rotate %1186 by %c64_i32_553 dim 1 : vector<8x128xf32>, i32 -> vector<8x128xf32>
    %1189 = vector.extract_strided_slice %1188 {offsets = [0, 0], sizes = [8, 64], strides = [1, 1]} : vector<8x128xf32> to vector<8x64xf32>
    %1190 = vector.extract_strided_slice %1176 {offsets = [0, 128], sizes = [8, 64], strides = [1, 1]} : vector<8x256xf32> to vector<8x64xf32>
    %1191 = vector.broadcast %1178 : vector<1x64xf32> to vector<8x64xf32>
    %1192 = arith.addf %1190, %1191 : vector<8x64xf32>
    %1193 = vector.extract_strided_slice %1173 {offsets = [0, 128], sizes = [8, 64], strides = [1, 1]} : vector<8x256xf32> to vector<8x64xf32>
    %1194 = arith.mulf %1187, %1192 : vector<8x64xf32>
    %1195 = arith.addf %1193, %1194 : vector<8x64xf32>
    %1196 = math.tanh %1195 : vector<8x64xf32>
    %1197 = arith.subf %1016, %1196 : vector<8x64xf32>
    %1198 = arith.mulf %1189, %1197 : vector<8x64xf32>
    %1199 = arith.addf %1196, %1198 : vector<8x64xf32>
    %c1_i32_554 = arith.constant 1 : i32
    %1200 = arith.cmpi sge, %c6_i32, %c1_i32_554 : i32
    %c9_i32_555 = arith.constant 9 : i32
    %1201 = arith.cmpi slt, %c6_i32, %c9_i32_555 : i32
    %1202 = arith.andi %1200, %1201 : i1
    %1203 = arith.select %1202, %1199, %1016 : vector<8x64xf32>
    %c1_556 = arith.constant 1 : index
    %c0_557 = arith.constant 0 : index
    %c0_558 = arith.constant 0 : index
    %1204 = vector.load %arg2[%c1_556, %c0_557, %c0_558] : memref<4x64x256xf32, #tpu.memory_space<vmem>>, vector<1x64x256xf32>
    %1205 = vector.shape_cast %1204 : vector<1x64x256xf32> to vector<64x256xf32>
    %cst_559 = arith.constant dense<0.000000e+00> : vector<8x256xf32>
    %1206 = tpu.matmul %1016, %1205, %cst_559 {dimension_numbers = #tpu.dot_dimension_numbers<[1], [0], [0], [1], [0, 0, 1, 1], [], []>} : vector<8x64xf32>, vector<64x256xf32>, vector<8x256xf32> -> vector<8x256xf32>
    %c2_560 = arith.constant 2 : index
    %c0_561 = arith.constant 0 : index
    %c0_562 = arith.constant 0 : index
    %1207 = vector.load %arg4[%c2_560, %c0_561, %c0_562] : memref<5x1x256xf32, #tpu.memory_space<vmem>>, vector<1x1x256xf32>
    %1208 = vector.shape_cast %1207 : vector<1x1x256xf32> to vector<1x256xf32>
    %1209 = vector.broadcast %1208 : vector<1x256xf32> to vector<8x256xf32>
    %1210 = arith.addf %1206, %1209 : vector<8x256xf32>
    %c2_563 = arith.constant 2 : index
    %c0_564 = arith.constant 0 : index
    %c0_565 = arith.constant 0 : index
    %1211 = vector.load %arg3[%c2_563, %c0_564, %c0_565] : memref<5x64x256xf32, #tpu.memory_space<vmem>>, vector<1x64x256xf32>
    %1212 = vector.shape_cast %1211 : vector<1x64x256xf32> to vector<64x256xf32>
    %cst_566 = arith.constant dense<0.000000e+00> : vector<8x256xf32>
    %1213 = tpu.matmul %1053, %1212, %cst_566 {dimension_numbers = #tpu.dot_dimension_numbers<[1], [0], [0], [1], [0, 0, 1, 1], [], []>} : vector<8x64xf32>, vector<64x256xf32>, vector<8x256xf32> -> vector<8x256xf32>
    %c2_567 = arith.constant 2 : index
    %c0_568 = arith.constant 0 : index
    %c0_569 = arith.constant 0 : index
    %1214 = vector.load %arg5[%c2_567, %c0_568, %c0_569] : memref<5x1x64xf32, #tpu.memory_space<vmem>>, vector<1x1x64xf32>
    %1215 = vector.shape_cast %1214 : vector<1x1x64xf32> to vector<1x64xf32>
    %1216 = vector.extract_strided_slice %1210 {offsets = [0, 0], sizes = [8, 128], strides = [1, 1]} : vector<8x256xf32> to vector<8x128xf32>
    %1217 = vector.extract_strided_slice %1213 {offsets = [0, 0], sizes = [8, 128], strides = [1, 1]} : vector<8x256xf32> to vector<8x128xf32>
    %1218 = arith.addf %1216, %1217 : vector<8x128xf32>
    %1219 = arith.negf %1218 : vector<8x128xf32>
    %1220 = math.exp %1219 : vector<8x128xf32>
    %cst_570 = arith.constant 1.000000e+00 : f32
    %1221 = vector.broadcast %cst_570 : f32 to vector<8x128xf32>
    %1222 = arith.addf %1221, %1220 : vector<8x128xf32>
    %1223 = arith.divf %1221, %1222 : vector<8x128xf32>
    %1224 = vector.extract_strided_slice %1223 {offsets = [0, 0], sizes = [8, 64], strides = [1, 1]} : vector<8x128xf32> to vector<8x64xf32>
    %c64_i32_571 = arith.constant 64 : i32
    %1225 = tpu.dynamic_rotate %1223 by %c64_i32_571 dim 1 : vector<8x128xf32>, i32 -> vector<8x128xf32>
    %1226 = vector.extract_strided_slice %1225 {offsets = [0, 0], sizes = [8, 64], strides = [1, 1]} : vector<8x128xf32> to vector<8x64xf32>
    %1227 = vector.extract_strided_slice %1213 {offsets = [0, 128], sizes = [8, 64], strides = [1, 1]} : vector<8x256xf32> to vector<8x64xf32>
    %1228 = vector.broadcast %1215 : vector<1x64xf32> to vector<8x64xf32>
    %1229 = arith.addf %1227, %1228 : vector<8x64xf32>
    %1230 = vector.extract_strided_slice %1210 {offsets = [0, 128], sizes = [8, 64], strides = [1, 1]} : vector<8x256xf32> to vector<8x64xf32>
    %1231 = arith.mulf %1224, %1229 : vector<8x64xf32>
    %1232 = arith.addf %1230, %1231 : vector<8x64xf32>
    %1233 = math.tanh %1232 : vector<8x64xf32>
    %1234 = arith.subf %1053, %1233 : vector<8x64xf32>
    %1235 = arith.mulf %1226, %1234 : vector<8x64xf32>
    %1236 = arith.addf %1233, %1235 : vector<8x64xf32>
    %c2_i32_572 = arith.constant 2 : i32
    %1237 = arith.cmpi sge, %c6_i32, %c2_i32_572 : i32
    %c10_i32_573 = arith.constant 10 : i32
    %1238 = arith.cmpi slt, %c6_i32, %c10_i32_573 : i32
    %1239 = arith.andi %1237, %1238 : i1
    %1240 = arith.select %1239, %1236, %1053 : vector<8x64xf32>
    %c2_574 = arith.constant 2 : index
    %c0_575 = arith.constant 0 : index
    %c0_576 = arith.constant 0 : index
    %1241 = vector.load %arg2[%c2_574, %c0_575, %c0_576] : memref<4x64x256xf32, #tpu.memory_space<vmem>>, vector<1x64x256xf32>
    %1242 = vector.shape_cast %1241 : vector<1x64x256xf32> to vector<64x256xf32>
    %cst_577 = arith.constant dense<0.000000e+00> : vector<8x256xf32>
    %1243 = tpu.matmul %1053, %1242, %cst_577 {dimension_numbers = #tpu.dot_dimension_numbers<[1], [0], [0], [1], [0, 0, 1, 1], [], []>} : vector<8x64xf32>, vector<64x256xf32>, vector<8x256xf32> -> vector<8x256xf32>
    %c3_578 = arith.constant 3 : index
    %c0_579 = arith.constant 0 : index
    %c0_580 = arith.constant 0 : index
    %1244 = vector.load %arg4[%c3_578, %c0_579, %c0_580] : memref<5x1x256xf32, #tpu.memory_space<vmem>>, vector<1x1x256xf32>
    %1245 = vector.shape_cast %1244 : vector<1x1x256xf32> to vector<1x256xf32>
    %1246 = vector.broadcast %1245 : vector<1x256xf32> to vector<8x256xf32>
    %1247 = arith.addf %1243, %1246 : vector<8x256xf32>
    %c3_581 = arith.constant 3 : index
    %c0_582 = arith.constant 0 : index
    %c0_583 = arith.constant 0 : index
    %1248 = vector.load %arg3[%c3_581, %c0_582, %c0_583] : memref<5x64x256xf32, #tpu.memory_space<vmem>>, vector<1x64x256xf32>
    %1249 = vector.shape_cast %1248 : vector<1x64x256xf32> to vector<64x256xf32>
    %cst_584 = arith.constant dense<0.000000e+00> : vector<8x256xf32>
    %1250 = tpu.matmul %1090, %1249, %cst_584 {dimension_numbers = #tpu.dot_dimension_numbers<[1], [0], [0], [1], [0, 0, 1, 1], [], []>} : vector<8x64xf32>, vector<64x256xf32>, vector<8x256xf32> -> vector<8x256xf32>
    %c3_585 = arith.constant 3 : index
    %c0_586 = arith.constant 0 : index
    %c0_587 = arith.constant 0 : index
    %1251 = vector.load %arg5[%c3_585, %c0_586, %c0_587] : memref<5x1x64xf32, #tpu.memory_space<vmem>>, vector<1x1x64xf32>
    %1252 = vector.shape_cast %1251 : vector<1x1x64xf32> to vector<1x64xf32>
    %1253 = vector.extract_strided_slice %1247 {offsets = [0, 0], sizes = [8, 128], strides = [1, 1]} : vector<8x256xf32> to vector<8x128xf32>
    %1254 = vector.extract_strided_slice %1250 {offsets = [0, 0], sizes = [8, 128], strides = [1, 1]} : vector<8x256xf32> to vector<8x128xf32>
    %1255 = arith.addf %1253, %1254 : vector<8x128xf32>
    %1256 = arith.negf %1255 : vector<8x128xf32>
    %1257 = math.exp %1256 : vector<8x128xf32>
    %cst_588 = arith.constant 1.000000e+00 : f32
    %1258 = vector.broadcast %cst_588 : f32 to vector<8x128xf32>
    %1259 = arith.addf %1258, %1257 : vector<8x128xf32>
    %1260 = arith.divf %1258, %1259 : vector<8x128xf32>
    %1261 = vector.extract_strided_slice %1260 {offsets = [0, 0], sizes = [8, 64], strides = [1, 1]} : vector<8x128xf32> to vector<8x64xf32>
    %c64_i32_589 = arith.constant 64 : i32
    %1262 = tpu.dynamic_rotate %1260 by %c64_i32_589 dim 1 : vector<8x128xf32>, i32 -> vector<8x128xf32>
    %1263 = vector.extract_strided_slice %1262 {offsets = [0, 0], sizes = [8, 64], strides = [1, 1]} : vector<8x128xf32> to vector<8x64xf32>
    %1264 = vector.extract_strided_slice %1250 {offsets = [0, 128], sizes = [8, 64], strides = [1, 1]} : vector<8x256xf32> to vector<8x64xf32>
    %1265 = vector.broadcast %1252 : vector<1x64xf32> to vector<8x64xf32>
    %1266 = arith.addf %1264, %1265 : vector<8x64xf32>
    %1267 = vector.extract_strided_slice %1247 {offsets = [0, 128], sizes = [8, 64], strides = [1, 1]} : vector<8x256xf32> to vector<8x64xf32>
    %1268 = arith.mulf %1261, %1266 : vector<8x64xf32>
    %1269 = arith.addf %1267, %1268 : vector<8x64xf32>
    %1270 = math.tanh %1269 : vector<8x64xf32>
    %1271 = arith.subf %1090, %1270 : vector<8x64xf32>
    %1272 = arith.mulf %1263, %1271 : vector<8x64xf32>
    %1273 = arith.addf %1270, %1272 : vector<8x64xf32>
    %c3_i32_590 = arith.constant 3 : i32
    %1274 = arith.cmpi sge, %c6_i32, %c3_i32_590 : i32
    %c11_i32_591 = arith.constant 11 : i32
    %1275 = arith.cmpi slt, %c6_i32, %c11_i32_591 : i32
    %1276 = arith.andi %1274, %1275 : i1
    %1277 = arith.select %1276, %1273, %1090 : vector<8x64xf32>
    %c3_592 = arith.constant 3 : index
    %c0_593 = arith.constant 0 : index
    %c0_594 = arith.constant 0 : index
    %1278 = vector.load %arg2[%c3_592, %c0_593, %c0_594] : memref<4x64x256xf32, #tpu.memory_space<vmem>>, vector<1x64x256xf32>
    %1279 = vector.shape_cast %1278 : vector<1x64x256xf32> to vector<64x256xf32>
    %cst_595 = arith.constant dense<0.000000e+00> : vector<8x256xf32>
    %1280 = tpu.matmul %1090, %1279, %cst_595 {dimension_numbers = #tpu.dot_dimension_numbers<[1], [0], [0], [1], [0, 0, 1, 1], [], []>} : vector<8x64xf32>, vector<64x256xf32>, vector<8x256xf32> -> vector<8x256xf32>
    %c4_596 = arith.constant 4 : index
    %c0_597 = arith.constant 0 : index
    %c0_598 = arith.constant 0 : index
    %1281 = vector.load %arg4[%c4_596, %c0_597, %c0_598] : memref<5x1x256xf32, #tpu.memory_space<vmem>>, vector<1x1x256xf32>
    %1282 = vector.shape_cast %1281 : vector<1x1x256xf32> to vector<1x256xf32>
    %1283 = vector.broadcast %1282 : vector<1x256xf32> to vector<8x256xf32>
    %1284 = arith.addf %1280, %1283 : vector<8x256xf32>
    %c4_599 = arith.constant 4 : index
    %c0_600 = arith.constant 0 : index
    %c0_601 = arith.constant 0 : index
    %1285 = vector.load %arg3[%c4_599, %c0_600, %c0_601] : memref<5x64x256xf32, #tpu.memory_space<vmem>>, vector<1x64x256xf32>
    %1286 = vector.shape_cast %1285 : vector<1x64x256xf32> to vector<64x256xf32>
    %cst_602 = arith.constant dense<0.000000e+00> : vector<8x256xf32>
    %1287 = tpu.matmul %1127, %1286, %cst_602 {dimension_numbers = #tpu.dot_dimension_numbers<[1], [0], [0], [1], [0, 0, 1, 1], [], []>} : vector<8x64xf32>, vector<64x256xf32>, vector<8x256xf32> -> vector<8x256xf32>
    %c4_603 = arith.constant 4 : index
    %c0_604 = arith.constant 0 : index
    %c0_605 = arith.constant 0 : index
    %1288 = vector.load %arg5[%c4_603, %c0_604, %c0_605] : memref<5x1x64xf32, #tpu.memory_space<vmem>>, vector<1x1x64xf32>
    %1289 = vector.shape_cast %1288 : vector<1x1x64xf32> to vector<1x64xf32>
    %1290 = vector.extract_strided_slice %1284 {offsets = [0, 0], sizes = [8, 128], strides = [1, 1]} : vector<8x256xf32> to vector<8x128xf32>
    %1291 = vector.extract_strided_slice %1287 {offsets = [0, 0], sizes = [8, 128], strides = [1, 1]} : vector<8x256xf32> to vector<8x128xf32>
    %1292 = arith.addf %1290, %1291 : vector<8x128xf32>
    %1293 = arith.negf %1292 : vector<8x128xf32>
    %1294 = math.exp %1293 : vector<8x128xf32>
    %cst_606 = arith.constant 1.000000e+00 : f32
    %1295 = vector.broadcast %cst_606 : f32 to vector<8x128xf32>
    %1296 = arith.addf %1295, %1294 : vector<8x128xf32>
    %1297 = arith.divf %1295, %1296 : vector<8x128xf32>
    %1298 = vector.extract_strided_slice %1297 {offsets = [0, 0], sizes = [8, 64], strides = [1, 1]} : vector<8x128xf32> to vector<8x64xf32>
    %c64_i32_607 = arith.constant 64 : i32
    %1299 = tpu.dynamic_rotate %1297 by %c64_i32_607 dim 1 : vector<8x128xf32>, i32 -> vector<8x128xf32>
    %1300 = vector.extract_strided_slice %1299 {offsets = [0, 0], sizes = [8, 64], strides = [1, 1]} : vector<8x128xf32> to vector<8x64xf32>
    %1301 = vector.extract_strided_slice %1287 {offsets = [0, 128], sizes = [8, 64], strides = [1, 1]} : vector<8x256xf32> to vector<8x64xf32>
    %1302 = vector.broadcast %1289 : vector<1x64xf32> to vector<8x64xf32>
    %1303 = arith.addf %1301, %1302 : vector<8x64xf32>
    %1304 = vector.extract_strided_slice %1284 {offsets = [0, 128], sizes = [8, 64], strides = [1, 1]} : vector<8x256xf32> to vector<8x64xf32>
    %1305 = arith.mulf %1298, %1303 : vector<8x64xf32>
    %1306 = arith.addf %1304, %1305 : vector<8x64xf32>
    %1307 = math.tanh %1306 : vector<8x64xf32>
    %1308 = arith.subf %1127, %1307 : vector<8x64xf32>
    %1309 = arith.mulf %1300, %1308 : vector<8x64xf32>
    %1310 = arith.addf %1307, %1309 : vector<8x64xf32>
    %c4_i32_608 = arith.constant 4 : i32
    %1311 = arith.cmpi sge, %c6_i32, %c4_i32_608 : i32
    %c12_i32_609 = arith.constant 12 : i32
    %1312 = arith.cmpi slt, %c6_i32, %c12_i32_609 : i32
    %1313 = arith.andi %1311, %1312 : i1
    %1314 = arith.select %1313, %1310, %1127 : vector<8x64xf32>
    %c7_i32_610 = arith.constant 7 : i32
    %c7_i32_611 = arith.constant 7 : i32
    %1315 = arith.minsi %c7_i32_610, %c7_i32_611 : i32
    %1316 = arith.index_cast %1315 : i32 to index
    %c0_612 = arith.constant 0 : index
    %c0_613 = arith.constant 0 : index
    %1317 = vector.load %arg0[%1316, %c0_612, %c0_613] : memref<8x8x1xf32, #tpu.memory_space<vmem>>, vector<1x8x1xf32>
    %1318 = vector.shape_cast %1317 : vector<1x8x1xf32> to vector<8x1xf32>
    %1319 = vector.broadcast %1318 : vector<8x1xf32> to vector<8x256xf32>
    %1320 = vector.broadcast %0 : vector<1x256xf32> to vector<8x256xf32>
    %1321 = arith.mulf %1319, %1320 : vector<8x256xf32>
    %c0_614 = arith.constant 0 : index
    %c0_615 = arith.constant 0 : index
    %c0_616 = arith.constant 0 : index
    %1322 = vector.load %arg4[%c0_614, %c0_615, %c0_616] : memref<5x1x256xf32, #tpu.memory_space<vmem>>, vector<1x1x256xf32>
    %1323 = vector.shape_cast %1322 : vector<1x1x256xf32> to vector<1x256xf32>
    %1324 = vector.broadcast %1323 : vector<1x256xf32> to vector<8x256xf32>
    %1325 = arith.addf %1321, %1324 : vector<8x256xf32>
    %c0_617 = arith.constant 0 : index
    %c0_618 = arith.constant 0 : index
    %c0_619 = arith.constant 0 : index
    %1326 = vector.load %arg3[%c0_617, %c0_618, %c0_619] : memref<5x64x256xf32, #tpu.memory_space<vmem>>, vector<1x64x256xf32>
    %1327 = vector.shape_cast %1326 : vector<1x64x256xf32> to vector<64x256xf32>
    %cst_620 = arith.constant dense<0.000000e+00> : vector<8x256xf32>
    %1328 = tpu.matmul %1166, %1327, %cst_620 {dimension_numbers = #tpu.dot_dimension_numbers<[1], [0], [0], [1], [0, 0, 1, 1], [], []>} : vector<8x64xf32>, vector<64x256xf32>, vector<8x256xf32> -> vector<8x256xf32>
    %c0_621 = arith.constant 0 : index
    %c0_622 = arith.constant 0 : index
    %c0_623 = arith.constant 0 : index
    %1329 = vector.load %arg5[%c0_621, %c0_622, %c0_623] : memref<5x1x64xf32, #tpu.memory_space<vmem>>, vector<1x1x64xf32>
    %1330 = vector.shape_cast %1329 : vector<1x1x64xf32> to vector<1x64xf32>
    %1331 = vector.extract_strided_slice %1325 {offsets = [0, 0], sizes = [8, 128], strides = [1, 1]} : vector<8x256xf32> to vector<8x128xf32>
    %1332 = vector.extract_strided_slice %1328 {offsets = [0, 0], sizes = [8, 128], strides = [1, 1]} : vector<8x256xf32> to vector<8x128xf32>
    %1333 = arith.addf %1331, %1332 : vector<8x128xf32>
    %1334 = arith.negf %1333 : vector<8x128xf32>
    %1335 = math.exp %1334 : vector<8x128xf32>
    %cst_624 = arith.constant 1.000000e+00 : f32
    %1336 = vector.broadcast %cst_624 : f32 to vector<8x128xf32>
    %1337 = arith.addf %1336, %1335 : vector<8x128xf32>
    %1338 = arith.divf %1336, %1337 : vector<8x128xf32>
    %1339 = vector.extract_strided_slice %1338 {offsets = [0, 0], sizes = [8, 64], strides = [1, 1]} : vector<8x128xf32> to vector<8x64xf32>
    %c64_i32_625 = arith.constant 64 : i32
    %1340 = tpu.dynamic_rotate %1338 by %c64_i32_625 dim 1 : vector<8x128xf32>, i32 -> vector<8x128xf32>
    %1341 = vector.extract_strided_slice %1340 {offsets = [0, 0], sizes = [8, 64], strides = [1, 1]} : vector<8x128xf32> to vector<8x64xf32>
    %1342 = vector.extract_strided_slice %1328 {offsets = [0, 128], sizes = [8, 64], strides = [1, 1]} : vector<8x256xf32> to vector<8x64xf32>
    %1343 = vector.broadcast %1330 : vector<1x64xf32> to vector<8x64xf32>
    %1344 = arith.addf %1342, %1343 : vector<8x64xf32>
    %1345 = vector.extract_strided_slice %1325 {offsets = [0, 128], sizes = [8, 64], strides = [1, 1]} : vector<8x256xf32> to vector<8x64xf32>
    %1346 = arith.mulf %1339, %1344 : vector<8x64xf32>
    %1347 = arith.addf %1345, %1346 : vector<8x64xf32>
    %1348 = math.tanh %1347 : vector<8x64xf32>
    %1349 = arith.subf %1166, %1348 : vector<8x64xf32>
    %1350 = arith.mulf %1341, %1349 : vector<8x64xf32>
    %1351 = arith.addf %1348, %1350 : vector<8x64xf32>
    %c8_i32_626 = arith.constant 8 : i32
    %1352 = arith.cmpi slt, %c7_i32_610, %c8_i32_626 : i32
    %1353 = arith.select %1352, %1351, %1166 : vector<8x64xf32>
    %c0_627 = arith.constant 0 : index
    %c0_628 = arith.constant 0 : index
    %c0_629 = arith.constant 0 : index
    %1354 = vector.load %arg2[%c0_627, %c0_628, %c0_629] : memref<4x64x256xf32, #tpu.memory_space<vmem>>, vector<1x64x256xf32>
    %1355 = vector.shape_cast %1354 : vector<1x64x256xf32> to vector<64x256xf32>
    %cst_630 = arith.constant dense<0.000000e+00> : vector<8x256xf32>
    %1356 = tpu.matmul %1166, %1355, %cst_630 {dimension_numbers = #tpu.dot_dimension_numbers<[1], [0], [0], [1], [0, 0, 1, 1], [], []>} : vector<8x64xf32>, vector<64x256xf32>, vector<8x256xf32> -> vector<8x256xf32>
    %c1_631 = arith.constant 1 : index
    %c0_632 = arith.constant 0 : index
    %c0_633 = arith.constant 0 : index
    %1357 = vector.load %arg4[%c1_631, %c0_632, %c0_633] : memref<5x1x256xf32, #tpu.memory_space<vmem>>, vector<1x1x256xf32>
    %1358 = vector.shape_cast %1357 : vector<1x1x256xf32> to vector<1x256xf32>
    %1359 = vector.broadcast %1358 : vector<1x256xf32> to vector<8x256xf32>
    %1360 = arith.addf %1356, %1359 : vector<8x256xf32>
    %c1_634 = arith.constant 1 : index
    %c0_635 = arith.constant 0 : index
    %c0_636 = arith.constant 0 : index
    %1361 = vector.load %arg3[%c1_634, %c0_635, %c0_636] : memref<5x64x256xf32, #tpu.memory_space<vmem>>, vector<1x64x256xf32>
    %1362 = vector.shape_cast %1361 : vector<1x64x256xf32> to vector<64x256xf32>
    %cst_637 = arith.constant dense<0.000000e+00> : vector<8x256xf32>
    %1363 = tpu.matmul %1203, %1362, %cst_637 {dimension_numbers = #tpu.dot_dimension_numbers<[1], [0], [0], [1], [0, 0, 1, 1], [], []>} : vector<8x64xf32>, vector<64x256xf32>, vector<8x256xf32> -> vector<8x256xf32>
    %c1_638 = arith.constant 1 : index
    %c0_639 = arith.constant 0 : index
    %c0_640 = arith.constant 0 : index
    %1364 = vector.load %arg5[%c1_638, %c0_639, %c0_640] : memref<5x1x64xf32, #tpu.memory_space<vmem>>, vector<1x1x64xf32>
    %1365 = vector.shape_cast %1364 : vector<1x1x64xf32> to vector<1x64xf32>
    %1366 = vector.extract_strided_slice %1360 {offsets = [0, 0], sizes = [8, 128], strides = [1, 1]} : vector<8x256xf32> to vector<8x128xf32>
    %1367 = vector.extract_strided_slice %1363 {offsets = [0, 0], sizes = [8, 128], strides = [1, 1]} : vector<8x256xf32> to vector<8x128xf32>
    %1368 = arith.addf %1366, %1367 : vector<8x128xf32>
    %1369 = arith.negf %1368 : vector<8x128xf32>
    %1370 = math.exp %1369 : vector<8x128xf32>
    %cst_641 = arith.constant 1.000000e+00 : f32
    %1371 = vector.broadcast %cst_641 : f32 to vector<8x128xf32>
    %1372 = arith.addf %1371, %1370 : vector<8x128xf32>
    %1373 = arith.divf %1371, %1372 : vector<8x128xf32>
    %1374 = vector.extract_strided_slice %1373 {offsets = [0, 0], sizes = [8, 64], strides = [1, 1]} : vector<8x128xf32> to vector<8x64xf32>
    %c64_i32_642 = arith.constant 64 : i32
    %1375 = tpu.dynamic_rotate %1373 by %c64_i32_642 dim 1 : vector<8x128xf32>, i32 -> vector<8x128xf32>
    %1376 = vector.extract_strided_slice %1375 {offsets = [0, 0], sizes = [8, 64], strides = [1, 1]} : vector<8x128xf32> to vector<8x64xf32>
    %1377 = vector.extract_strided_slice %1363 {offsets = [0, 128], sizes = [8, 64], strides = [1, 1]} : vector<8x256xf32> to vector<8x64xf32>
    %1378 = vector.broadcast %1365 : vector<1x64xf32> to vector<8x64xf32>
    %1379 = arith.addf %1377, %1378 : vector<8x64xf32>
    %1380 = vector.extract_strided_slice %1360 {offsets = [0, 128], sizes = [8, 64], strides = [1, 1]} : vector<8x256xf32> to vector<8x64xf32>
    %1381 = arith.mulf %1374, %1379 : vector<8x64xf32>
    %1382 = arith.addf %1380, %1381 : vector<8x64xf32>
    %1383 = math.tanh %1382 : vector<8x64xf32>
    %1384 = arith.subf %1203, %1383 : vector<8x64xf32>
    %1385 = arith.mulf %1376, %1384 : vector<8x64xf32>
    %1386 = arith.addf %1383, %1385 : vector<8x64xf32>
    %c1_i32_643 = arith.constant 1 : i32
    %1387 = arith.cmpi sge, %c7_i32_610, %c1_i32_643 : i32
    %c9_i32_644 = arith.constant 9 : i32
    %1388 = arith.cmpi slt, %c7_i32_610, %c9_i32_644 : i32
    %1389 = arith.andi %1387, %1388 : i1
    %1390 = arith.select %1389, %1386, %1203 : vector<8x64xf32>
    %c1_645 = arith.constant 1 : index
    %c0_646 = arith.constant 0 : index
    %c0_647 = arith.constant 0 : index
    %1391 = vector.load %arg2[%c1_645, %c0_646, %c0_647] : memref<4x64x256xf32, #tpu.memory_space<vmem>>, vector<1x64x256xf32>
    %1392 = vector.shape_cast %1391 : vector<1x64x256xf32> to vector<64x256xf32>
    %cst_648 = arith.constant dense<0.000000e+00> : vector<8x256xf32>
    %1393 = tpu.matmul %1203, %1392, %cst_648 {dimension_numbers = #tpu.dot_dimension_numbers<[1], [0], [0], [1], [0, 0, 1, 1], [], []>} : vector<8x64xf32>, vector<64x256xf32>, vector<8x256xf32> -> vector<8x256xf32>
    %c2_649 = arith.constant 2 : index
    %c0_650 = arith.constant 0 : index
    %c0_651 = arith.constant 0 : index
    %1394 = vector.load %arg4[%c2_649, %c0_650, %c0_651] : memref<5x1x256xf32, #tpu.memory_space<vmem>>, vector<1x1x256xf32>
    %1395 = vector.shape_cast %1394 : vector<1x1x256xf32> to vector<1x256xf32>
    %1396 = vector.broadcast %1395 : vector<1x256xf32> to vector<8x256xf32>
    %1397 = arith.addf %1393, %1396 : vector<8x256xf32>
    %c2_652 = arith.constant 2 : index
    %c0_653 = arith.constant 0 : index
    %c0_654 = arith.constant 0 : index
    %1398 = vector.load %arg3[%c2_652, %c0_653, %c0_654] : memref<5x64x256xf32, #tpu.memory_space<vmem>>, vector<1x64x256xf32>
    %1399 = vector.shape_cast %1398 : vector<1x64x256xf32> to vector<64x256xf32>
    %cst_655 = arith.constant dense<0.000000e+00> : vector<8x256xf32>
    %1400 = tpu.matmul %1240, %1399, %cst_655 {dimension_numbers = #tpu.dot_dimension_numbers<[1], [0], [0], [1], [0, 0, 1, 1], [], []>} : vector<8x64xf32>, vector<64x256xf32>, vector<8x256xf32> -> vector<8x256xf32>
    %c2_656 = arith.constant 2 : index
    %c0_657 = arith.constant 0 : index
    %c0_658 = arith.constant 0 : index
    %1401 = vector.load %arg5[%c2_656, %c0_657, %c0_658] : memref<5x1x64xf32, #tpu.memory_space<vmem>>, vector<1x1x64xf32>
    %1402 = vector.shape_cast %1401 : vector<1x1x64xf32> to vector<1x64xf32>
    %1403 = vector.extract_strided_slice %1397 {offsets = [0, 0], sizes = [8, 128], strides = [1, 1]} : vector<8x256xf32> to vector<8x128xf32>
    %1404 = vector.extract_strided_slice %1400 {offsets = [0, 0], sizes = [8, 128], strides = [1, 1]} : vector<8x256xf32> to vector<8x128xf32>
    %1405 = arith.addf %1403, %1404 : vector<8x128xf32>
    %1406 = arith.negf %1405 : vector<8x128xf32>
    %1407 = math.exp %1406 : vector<8x128xf32>
    %cst_659 = arith.constant 1.000000e+00 : f32
    %1408 = vector.broadcast %cst_659 : f32 to vector<8x128xf32>
    %1409 = arith.addf %1408, %1407 : vector<8x128xf32>
    %1410 = arith.divf %1408, %1409 : vector<8x128xf32>
    %1411 = vector.extract_strided_slice %1410 {offsets = [0, 0], sizes = [8, 64], strides = [1, 1]} : vector<8x128xf32> to vector<8x64xf32>
    %c64_i32_660 = arith.constant 64 : i32
    %1412 = tpu.dynamic_rotate %1410 by %c64_i32_660 dim 1 : vector<8x128xf32>, i32 -> vector<8x128xf32>
    %1413 = vector.extract_strided_slice %1412 {offsets = [0, 0], sizes = [8, 64], strides = [1, 1]} : vector<8x128xf32> to vector<8x64xf32>
    %1414 = vector.extract_strided_slice %1400 {offsets = [0, 128], sizes = [8, 64], strides = [1, 1]} : vector<8x256xf32> to vector<8x64xf32>
    %1415 = vector.broadcast %1402 : vector<1x64xf32> to vector<8x64xf32>
    %1416 = arith.addf %1414, %1415 : vector<8x64xf32>
    %1417 = vector.extract_strided_slice %1397 {offsets = [0, 128], sizes = [8, 64], strides = [1, 1]} : vector<8x256xf32> to vector<8x64xf32>
    %1418 = arith.mulf %1411, %1416 : vector<8x64xf32>
    %1419 = arith.addf %1417, %1418 : vector<8x64xf32>
    %1420 = math.tanh %1419 : vector<8x64xf32>
    %1421 = arith.subf %1240, %1420 : vector<8x64xf32>
    %1422 = arith.mulf %1413, %1421 : vector<8x64xf32>
    %1423 = arith.addf %1420, %1422 : vector<8x64xf32>
    %c2_i32_661 = arith.constant 2 : i32
    %1424 = arith.cmpi sge, %c7_i32_610, %c2_i32_661 : i32
    %c10_i32_662 = arith.constant 10 : i32
    %1425 = arith.cmpi slt, %c7_i32_610, %c10_i32_662 : i32
    %1426 = arith.andi %1424, %1425 : i1
    %1427 = arith.select %1426, %1423, %1240 : vector<8x64xf32>
    %c2_663 = arith.constant 2 : index
    %c0_664 = arith.constant 0 : index
    %c0_665 = arith.constant 0 : index
    %1428 = vector.load %arg2[%c2_663, %c0_664, %c0_665] : memref<4x64x256xf32, #tpu.memory_space<vmem>>, vector<1x64x256xf32>
    %1429 = vector.shape_cast %1428 : vector<1x64x256xf32> to vector<64x256xf32>
    %cst_666 = arith.constant dense<0.000000e+00> : vector<8x256xf32>
    %1430 = tpu.matmul %1240, %1429, %cst_666 {dimension_numbers = #tpu.dot_dimension_numbers<[1], [0], [0], [1], [0, 0, 1, 1], [], []>} : vector<8x64xf32>, vector<64x256xf32>, vector<8x256xf32> -> vector<8x256xf32>
    %c3_667 = arith.constant 3 : index
    %c0_668 = arith.constant 0 : index
    %c0_669 = arith.constant 0 : index
    %1431 = vector.load %arg4[%c3_667, %c0_668, %c0_669] : memref<5x1x256xf32, #tpu.memory_space<vmem>>, vector<1x1x256xf32>
    %1432 = vector.shape_cast %1431 : vector<1x1x256xf32> to vector<1x256xf32>
    %1433 = vector.broadcast %1432 : vector<1x256xf32> to vector<8x256xf32>
    %1434 = arith.addf %1430, %1433 : vector<8x256xf32>
    %c3_670 = arith.constant 3 : index
    %c0_671 = arith.constant 0 : index
    %c0_672 = arith.constant 0 : index
    %1435 = vector.load %arg3[%c3_670, %c0_671, %c0_672] : memref<5x64x256xf32, #tpu.memory_space<vmem>>, vector<1x64x256xf32>
    %1436 = vector.shape_cast %1435 : vector<1x64x256xf32> to vector<64x256xf32>
    %cst_673 = arith.constant dense<0.000000e+00> : vector<8x256xf32>
    %1437 = tpu.matmul %1277, %1436, %cst_673 {dimension_numbers = #tpu.dot_dimension_numbers<[1], [0], [0], [1], [0, 0, 1, 1], [], []>} : vector<8x64xf32>, vector<64x256xf32>, vector<8x256xf32> -> vector<8x256xf32>
    %c3_674 = arith.constant 3 : index
    %c0_675 = arith.constant 0 : index
    %c0_676 = arith.constant 0 : index
    %1438 = vector.load %arg5[%c3_674, %c0_675, %c0_676] : memref<5x1x64xf32, #tpu.memory_space<vmem>>, vector<1x1x64xf32>
    %1439 = vector.shape_cast %1438 : vector<1x1x64xf32> to vector<1x64xf32>
    %1440 = vector.extract_strided_slice %1434 {offsets = [0, 0], sizes = [8, 128], strides = [1, 1]} : vector<8x256xf32> to vector<8x128xf32>
    %1441 = vector.extract_strided_slice %1437 {offsets = [0, 0], sizes = [8, 128], strides = [1, 1]} : vector<8x256xf32> to vector<8x128xf32>
    %1442 = arith.addf %1440, %1441 : vector<8x128xf32>
    %1443 = arith.negf %1442 : vector<8x128xf32>
    %1444 = math.exp %1443 : vector<8x128xf32>
    %cst_677 = arith.constant 1.000000e+00 : f32
    %1445 = vector.broadcast %cst_677 : f32 to vector<8x128xf32>
    %1446 = arith.addf %1445, %1444 : vector<8x128xf32>
    %1447 = arith.divf %1445, %1446 : vector<8x128xf32>
    %1448 = vector.extract_strided_slice %1447 {offsets = [0, 0], sizes = [8, 64], strides = [1, 1]} : vector<8x128xf32> to vector<8x64xf32>
    %c64_i32_678 = arith.constant 64 : i32
    %1449 = tpu.dynamic_rotate %1447 by %c64_i32_678 dim 1 : vector<8x128xf32>, i32 -> vector<8x128xf32>
    %1450 = vector.extract_strided_slice %1449 {offsets = [0, 0], sizes = [8, 64], strides = [1, 1]} : vector<8x128xf32> to vector<8x64xf32>
    %1451 = vector.extract_strided_slice %1437 {offsets = [0, 128], sizes = [8, 64], strides = [1, 1]} : vector<8x256xf32> to vector<8x64xf32>
    %1452 = vector.broadcast %1439 : vector<1x64xf32> to vector<8x64xf32>
    %1453 = arith.addf %1451, %1452 : vector<8x64xf32>
    %1454 = vector.extract_strided_slice %1434 {offsets = [0, 128], sizes = [8, 64], strides = [1, 1]} : vector<8x256xf32> to vector<8x64xf32>
    %1455 = arith.mulf %1448, %1453 : vector<8x64xf32>
    %1456 = arith.addf %1454, %1455 : vector<8x64xf32>
    %1457 = math.tanh %1456 : vector<8x64xf32>
    %1458 = arith.subf %1277, %1457 : vector<8x64xf32>
    %1459 = arith.mulf %1450, %1458 : vector<8x64xf32>
    %1460 = arith.addf %1457, %1459 : vector<8x64xf32>
    %c3_i32_679 = arith.constant 3 : i32
    %1461 = arith.cmpi sge, %c7_i32_610, %c3_i32_679 : i32
    %c11_i32_680 = arith.constant 11 : i32
    %1462 = arith.cmpi slt, %c7_i32_610, %c11_i32_680 : i32
    %1463 = arith.andi %1461, %1462 : i1
    %1464 = arith.select %1463, %1460, %1277 : vector<8x64xf32>
    %c3_681 = arith.constant 3 : index
    %c0_682 = arith.constant 0 : index
    %c0_683 = arith.constant 0 : index
    %1465 = vector.load %arg2[%c3_681, %c0_682, %c0_683] : memref<4x64x256xf32, #tpu.memory_space<vmem>>, vector<1x64x256xf32>
    %1466 = vector.shape_cast %1465 : vector<1x64x256xf32> to vector<64x256xf32>
    %cst_684 = arith.constant dense<0.000000e+00> : vector<8x256xf32>
    %1467 = tpu.matmul %1277, %1466, %cst_684 {dimension_numbers = #tpu.dot_dimension_numbers<[1], [0], [0], [1], [0, 0, 1, 1], [], []>} : vector<8x64xf32>, vector<64x256xf32>, vector<8x256xf32> -> vector<8x256xf32>
    %c4_685 = arith.constant 4 : index
    %c0_686 = arith.constant 0 : index
    %c0_687 = arith.constant 0 : index
    %1468 = vector.load %arg4[%c4_685, %c0_686, %c0_687] : memref<5x1x256xf32, #tpu.memory_space<vmem>>, vector<1x1x256xf32>
    %1469 = vector.shape_cast %1468 : vector<1x1x256xf32> to vector<1x256xf32>
    %1470 = vector.broadcast %1469 : vector<1x256xf32> to vector<8x256xf32>
    %1471 = arith.addf %1467, %1470 : vector<8x256xf32>
    %c4_688 = arith.constant 4 : index
    %c0_689 = arith.constant 0 : index
    %c0_690 = arith.constant 0 : index
    %1472 = vector.load %arg3[%c4_688, %c0_689, %c0_690] : memref<5x64x256xf32, #tpu.memory_space<vmem>>, vector<1x64x256xf32>
    %1473 = vector.shape_cast %1472 : vector<1x64x256xf32> to vector<64x256xf32>
    %cst_691 = arith.constant dense<0.000000e+00> : vector<8x256xf32>
    %1474 = tpu.matmul %1314, %1473, %cst_691 {dimension_numbers = #tpu.dot_dimension_numbers<[1], [0], [0], [1], [0, 0, 1, 1], [], []>} : vector<8x64xf32>, vector<64x256xf32>, vector<8x256xf32> -> vector<8x256xf32>
    %c4_692 = arith.constant 4 : index
    %c0_693 = arith.constant 0 : index
    %c0_694 = arith.constant 0 : index
    %1475 = vector.load %arg5[%c4_692, %c0_693, %c0_694] : memref<5x1x64xf32, #tpu.memory_space<vmem>>, vector<1x1x64xf32>
    %1476 = vector.shape_cast %1475 : vector<1x1x64xf32> to vector<1x64xf32>
    %1477 = vector.extract_strided_slice %1471 {offsets = [0, 0], sizes = [8, 128], strides = [1, 1]} : vector<8x256xf32> to vector<8x128xf32>
    %1478 = vector.extract_strided_slice %1474 {offsets = [0, 0], sizes = [8, 128], strides = [1, 1]} : vector<8x256xf32> to vector<8x128xf32>
    %1479 = arith.addf %1477, %1478 : vector<8x128xf32>
    %1480 = arith.negf %1479 : vector<8x128xf32>
    %1481 = math.exp %1480 : vector<8x128xf32>
    %cst_695 = arith.constant 1.000000e+00 : f32
    %1482 = vector.broadcast %cst_695 : f32 to vector<8x128xf32>
    %1483 = arith.addf %1482, %1481 : vector<8x128xf32>
    %1484 = arith.divf %1482, %1483 : vector<8x128xf32>
    %1485 = vector.extract_strided_slice %1484 {offsets = [0, 0], sizes = [8, 64], strides = [1, 1]} : vector<8x128xf32> to vector<8x64xf32>
    %c64_i32_696 = arith.constant 64 : i32
    %1486 = tpu.dynamic_rotate %1484 by %c64_i32_696 dim 1 : vector<8x128xf32>, i32 -> vector<8x128xf32>
    %1487 = vector.extract_strided_slice %1486 {offsets = [0, 0], sizes = [8, 64], strides = [1, 1]} : vector<8x128xf32> to vector<8x64xf32>
    %1488 = vector.extract_strided_slice %1474 {offsets = [0, 128], sizes = [8, 64], strides = [1, 1]} : vector<8x256xf32> to vector<8x64xf32>
    %1489 = vector.broadcast %1476 : vector<1x64xf32> to vector<8x64xf32>
    %1490 = arith.addf %1488, %1489 : vector<8x64xf32>
    %1491 = vector.extract_strided_slice %1471 {offsets = [0, 128], sizes = [8, 64], strides = [1, 1]} : vector<8x256xf32> to vector<8x64xf32>
    %1492 = arith.mulf %1485, %1490 : vector<8x64xf32>
    %1493 = arith.addf %1491, %1492 : vector<8x64xf32>
    %1494 = math.tanh %1493 : vector<8x64xf32>
    %1495 = arith.subf %1314, %1494 : vector<8x64xf32>
    %1496 = arith.mulf %1487, %1495 : vector<8x64xf32>
    %1497 = arith.addf %1494, %1496 : vector<8x64xf32>
    %c4_i32_697 = arith.constant 4 : i32
    %1498 = arith.cmpi sge, %c7_i32_610, %c4_i32_697 : i32
    %c12_i32_698 = arith.constant 12 : i32
    %1499 = arith.cmpi slt, %c7_i32_610, %c12_i32_698 : i32
    %1500 = arith.andi %1498, %1499 : i1
    %1501 = arith.select %1500, %1497, %1314 : vector<8x64xf32>
    %c8_i32_699 = arith.constant 8 : i32
    %c7_i32_700 = arith.constant 7 : i32
    %1502 = arith.minsi %c8_i32_699, %c7_i32_700 : i32
    %1503 = arith.index_cast %1502 : i32 to index
    %c0_701 = arith.constant 0 : index
    %c0_702 = arith.constant 0 : index
    %1504 = vector.load %arg0[%1503, %c0_701, %c0_702] : memref<8x8x1xf32, #tpu.memory_space<vmem>>, vector<1x8x1xf32>
    %1505 = vector.shape_cast %1504 : vector<1x8x1xf32> to vector<8x1xf32>
    %1506 = vector.broadcast %1505 : vector<8x1xf32> to vector<8x256xf32>
    %1507 = vector.broadcast %0 : vector<1x256xf32> to vector<8x256xf32>
    %1508 = arith.mulf %1506, %1507 : vector<8x256xf32>
    %c0_703 = arith.constant 0 : index
    %c0_704 = arith.constant 0 : index
    %c0_705 = arith.constant 0 : index
    %1509 = vector.load %arg4[%c0_703, %c0_704, %c0_705] : memref<5x1x256xf32, #tpu.memory_space<vmem>>, vector<1x1x256xf32>
    %1510 = vector.shape_cast %1509 : vector<1x1x256xf32> to vector<1x256xf32>
    %1511 = vector.broadcast %1510 : vector<1x256xf32> to vector<8x256xf32>
    %1512 = arith.addf %1508, %1511 : vector<8x256xf32>
    %c0_706 = arith.constant 0 : index
    %c0_707 = arith.constant 0 : index
    %c0_708 = arith.constant 0 : index
    %1513 = vector.load %arg3[%c0_706, %c0_707, %c0_708] : memref<5x64x256xf32, #tpu.memory_space<vmem>>, vector<1x64x256xf32>
    %1514 = vector.shape_cast %1513 : vector<1x64x256xf32> to vector<64x256xf32>
    %cst_709 = arith.constant dense<0.000000e+00> : vector<8x256xf32>
    %1515 = tpu.matmul %1353, %1514, %cst_709 {dimension_numbers = #tpu.dot_dimension_numbers<[1], [0], [0], [1], [0, 0, 1, 1], [], []>} : vector<8x64xf32>, vector<64x256xf32>, vector<8x256xf32> -> vector<8x256xf32>
    %c0_710 = arith.constant 0 : index
    %c0_711 = arith.constant 0 : index
    %c0_712 = arith.constant 0 : index
    %1516 = vector.load %arg5[%c0_710, %c0_711, %c0_712] : memref<5x1x64xf32, #tpu.memory_space<vmem>>, vector<1x1x64xf32>
    %1517 = vector.shape_cast %1516 : vector<1x1x64xf32> to vector<1x64xf32>
    %1518 = vector.extract_strided_slice %1512 {offsets = [0, 0], sizes = [8, 128], strides = [1, 1]} : vector<8x256xf32> to vector<8x128xf32>
    %1519 = vector.extract_strided_slice %1515 {offsets = [0, 0], sizes = [8, 128], strides = [1, 1]} : vector<8x256xf32> to vector<8x128xf32>
    %1520 = arith.addf %1518, %1519 : vector<8x128xf32>
    %1521 = arith.negf %1520 : vector<8x128xf32>
    %1522 = math.exp %1521 : vector<8x128xf32>
    %cst_713 = arith.constant 1.000000e+00 : f32
    %1523 = vector.broadcast %cst_713 : f32 to vector<8x128xf32>
    %1524 = arith.addf %1523, %1522 : vector<8x128xf32>
    %1525 = arith.divf %1523, %1524 : vector<8x128xf32>
    %1526 = vector.extract_strided_slice %1525 {offsets = [0, 0], sizes = [8, 64], strides = [1, 1]} : vector<8x128xf32> to vector<8x64xf32>
    %c64_i32_714 = arith.constant 64 : i32
    %1527 = tpu.dynamic_rotate %1525 by %c64_i32_714 dim 1 : vector<8x128xf32>, i32 -> vector<8x128xf32>
    %1528 = vector.extract_strided_slice %1527 {offsets = [0, 0], sizes = [8, 64], strides = [1, 1]} : vector<8x128xf32> to vector<8x64xf32>
    %1529 = vector.extract_strided_slice %1515 {offsets = [0, 128], sizes = [8, 64], strides = [1, 1]} : vector<8x256xf32> to vector<8x64xf32>
    %1530 = vector.broadcast %1517 : vector<1x64xf32> to vector<8x64xf32>
    %1531 = arith.addf %1529, %1530 : vector<8x64xf32>
    %1532 = vector.extract_strided_slice %1512 {offsets = [0, 128], sizes = [8, 64], strides = [1, 1]} : vector<8x256xf32> to vector<8x64xf32>
    %1533 = arith.mulf %1526, %1531 : vector<8x64xf32>
    %1534 = arith.addf %1532, %1533 : vector<8x64xf32>
    %1535 = math.tanh %1534 : vector<8x64xf32>
    %1536 = arith.subf %1353, %1535 : vector<8x64xf32>
    %1537 = arith.mulf %1528, %1536 : vector<8x64xf32>
    %1538 = arith.addf %1535, %1537 : vector<8x64xf32>
    %c8_i32_715 = arith.constant 8 : i32
    %1539 = arith.cmpi slt, %c8_i32_699, %c8_i32_715 : i32
    %1540 = arith.select %1539, %1538, %1353 : vector<8x64xf32>
    %c0_716 = arith.constant 0 : index
    %c0_717 = arith.constant 0 : index
    %c0_718 = arith.constant 0 : index
    %1541 = vector.load %arg2[%c0_716, %c0_717, %c0_718] : memref<4x64x256xf32, #tpu.memory_space<vmem>>, vector<1x64x256xf32>
    %1542 = vector.shape_cast %1541 : vector<1x64x256xf32> to vector<64x256xf32>
    %cst_719 = arith.constant dense<0.000000e+00> : vector<8x256xf32>
    %1543 = tpu.matmul %1353, %1542, %cst_719 {dimension_numbers = #tpu.dot_dimension_numbers<[1], [0], [0], [1], [0, 0, 1, 1], [], []>} : vector<8x64xf32>, vector<64x256xf32>, vector<8x256xf32> -> vector<8x256xf32>
    %c1_720 = arith.constant 1 : index
    %c0_721 = arith.constant 0 : index
    %c0_722 = arith.constant 0 : index
    %1544 = vector.load %arg4[%c1_720, %c0_721, %c0_722] : memref<5x1x256xf32, #tpu.memory_space<vmem>>, vector<1x1x256xf32>
    %1545 = vector.shape_cast %1544 : vector<1x1x256xf32> to vector<1x256xf32>
    %1546 = vector.broadcast %1545 : vector<1x256xf32> to vector<8x256xf32>
    %1547 = arith.addf %1543, %1546 : vector<8x256xf32>
    %c1_723 = arith.constant 1 : index
    %c0_724 = arith.constant 0 : index
    %c0_725 = arith.constant 0 : index
    %1548 = vector.load %arg3[%c1_723, %c0_724, %c0_725] : memref<5x64x256xf32, #tpu.memory_space<vmem>>, vector<1x64x256xf32>
    %1549 = vector.shape_cast %1548 : vector<1x64x256xf32> to vector<64x256xf32>
    %cst_726 = arith.constant dense<0.000000e+00> : vector<8x256xf32>
    %1550 = tpu.matmul %1390, %1549, %cst_726 {dimension_numbers = #tpu.dot_dimension_numbers<[1], [0], [0], [1], [0, 0, 1, 1], [], []>} : vector<8x64xf32>, vector<64x256xf32>, vector<8x256xf32> -> vector<8x256xf32>
    %c1_727 = arith.constant 1 : index
    %c0_728 = arith.constant 0 : index
    %c0_729 = arith.constant 0 : index
    %1551 = vector.load %arg5[%c1_727, %c0_728, %c0_729] : memref<5x1x64xf32, #tpu.memory_space<vmem>>, vector<1x1x64xf32>
    %1552 = vector.shape_cast %1551 : vector<1x1x64xf32> to vector<1x64xf32>
    %1553 = vector.extract_strided_slice %1547 {offsets = [0, 0], sizes = [8, 128], strides = [1, 1]} : vector<8x256xf32> to vector<8x128xf32>
    %1554 = vector.extract_strided_slice %1550 {offsets = [0, 0], sizes = [8, 128], strides = [1, 1]} : vector<8x256xf32> to vector<8x128xf32>
    %1555 = arith.addf %1553, %1554 : vector<8x128xf32>
    %1556 = arith.negf %1555 : vector<8x128xf32>
    %1557 = math.exp %1556 : vector<8x128xf32>
    %cst_730 = arith.constant 1.000000e+00 : f32
    %1558 = vector.broadcast %cst_730 : f32 to vector<8x128xf32>
    %1559 = arith.addf %1558, %1557 : vector<8x128xf32>
    %1560 = arith.divf %1558, %1559 : vector<8x128xf32>
    %1561 = vector.extract_strided_slice %1560 {offsets = [0, 0], sizes = [8, 64], strides = [1, 1]} : vector<8x128xf32> to vector<8x64xf32>
    %c64_i32_731 = arith.constant 64 : i32
    %1562 = tpu.dynamic_rotate %1560 by %c64_i32_731 dim 1 : vector<8x128xf32>, i32 -> vector<8x128xf32>
    %1563 = vector.extract_strided_slice %1562 {offsets = [0, 0], sizes = [8, 64], strides = [1, 1]} : vector<8x128xf32> to vector<8x64xf32>
    %1564 = vector.extract_strided_slice %1550 {offsets = [0, 128], sizes = [8, 64], strides = [1, 1]} : vector<8x256xf32> to vector<8x64xf32>
    %1565 = vector.broadcast %1552 : vector<1x64xf32> to vector<8x64xf32>
    %1566 = arith.addf %1564, %1565 : vector<8x64xf32>
    %1567 = vector.extract_strided_slice %1547 {offsets = [0, 128], sizes = [8, 64], strides = [1, 1]} : vector<8x256xf32> to vector<8x64xf32>
    %1568 = arith.mulf %1561, %1566 : vector<8x64xf32>
    %1569 = arith.addf %1567, %1568 : vector<8x64xf32>
    %1570 = math.tanh %1569 : vector<8x64xf32>
    %1571 = arith.subf %1390, %1570 : vector<8x64xf32>
    %1572 = arith.mulf %1563, %1571 : vector<8x64xf32>
    %1573 = arith.addf %1570, %1572 : vector<8x64xf32>
    %c1_i32_732 = arith.constant 1 : i32
    %1574 = arith.cmpi sge, %c8_i32_699, %c1_i32_732 : i32
    %c9_i32_733 = arith.constant 9 : i32
    %1575 = arith.cmpi slt, %c8_i32_699, %c9_i32_733 : i32
    %1576 = arith.andi %1574, %1575 : i1
    %1577 = arith.select %1576, %1573, %1390 : vector<8x64xf32>
    %c1_734 = arith.constant 1 : index
    %c0_735 = arith.constant 0 : index
    %c0_736 = arith.constant 0 : index
    %1578 = vector.load %arg2[%c1_734, %c0_735, %c0_736] : memref<4x64x256xf32, #tpu.memory_space<vmem>>, vector<1x64x256xf32>
    %1579 = vector.shape_cast %1578 : vector<1x64x256xf32> to vector<64x256xf32>
    %cst_737 = arith.constant dense<0.000000e+00> : vector<8x256xf32>
    %1580 = tpu.matmul %1390, %1579, %cst_737 {dimension_numbers = #tpu.dot_dimension_numbers<[1], [0], [0], [1], [0, 0, 1, 1], [], []>} : vector<8x64xf32>, vector<64x256xf32>, vector<8x256xf32> -> vector<8x256xf32>
    %c2_738 = arith.constant 2 : index
    %c0_739 = arith.constant 0 : index
    %c0_740 = arith.constant 0 : index
    %1581 = vector.load %arg4[%c2_738, %c0_739, %c0_740] : memref<5x1x256xf32, #tpu.memory_space<vmem>>, vector<1x1x256xf32>
    %1582 = vector.shape_cast %1581 : vector<1x1x256xf32> to vector<1x256xf32>
    %1583 = vector.broadcast %1582 : vector<1x256xf32> to vector<8x256xf32>
    %1584 = arith.addf %1580, %1583 : vector<8x256xf32>
    %c2_741 = arith.constant 2 : index
    %c0_742 = arith.constant 0 : index
    %c0_743 = arith.constant 0 : index
    %1585 = vector.load %arg3[%c2_741, %c0_742, %c0_743] : memref<5x64x256xf32, #tpu.memory_space<vmem>>, vector<1x64x256xf32>
    %1586 = vector.shape_cast %1585 : vector<1x64x256xf32> to vector<64x256xf32>
    %cst_744 = arith.constant dense<0.000000e+00> : vector<8x256xf32>
    %1587 = tpu.matmul %1427, %1586, %cst_744 {dimension_numbers = #tpu.dot_dimension_numbers<[1], [0], [0], [1], [0, 0, 1, 1], [], []>} : vector<8x64xf32>, vector<64x256xf32>, vector<8x256xf32> -> vector<8x256xf32>
    %c2_745 = arith.constant 2 : index
    %c0_746 = arith.constant 0 : index
    %c0_747 = arith.constant 0 : index
    %1588 = vector.load %arg5[%c2_745, %c0_746, %c0_747] : memref<5x1x64xf32, #tpu.memory_space<vmem>>, vector<1x1x64xf32>
    %1589 = vector.shape_cast %1588 : vector<1x1x64xf32> to vector<1x64xf32>
    %1590 = vector.extract_strided_slice %1584 {offsets = [0, 0], sizes = [8, 128], strides = [1, 1]} : vector<8x256xf32> to vector<8x128xf32>
    %1591 = vector.extract_strided_slice %1587 {offsets = [0, 0], sizes = [8, 128], strides = [1, 1]} : vector<8x256xf32> to vector<8x128xf32>
    %1592 = arith.addf %1590, %1591 : vector<8x128xf32>
    %1593 = arith.negf %1592 : vector<8x128xf32>
    %1594 = math.exp %1593 : vector<8x128xf32>
    %cst_748 = arith.constant 1.000000e+00 : f32
    %1595 = vector.broadcast %cst_748 : f32 to vector<8x128xf32>
    %1596 = arith.addf %1595, %1594 : vector<8x128xf32>
    %1597 = arith.divf %1595, %1596 : vector<8x128xf32>
    %1598 = vector.extract_strided_slice %1597 {offsets = [0, 0], sizes = [8, 64], strides = [1, 1]} : vector<8x128xf32> to vector<8x64xf32>
    %c64_i32_749 = arith.constant 64 : i32
    %1599 = tpu.dynamic_rotate %1597 by %c64_i32_749 dim 1 : vector<8x128xf32>, i32 -> vector<8x128xf32>
    %1600 = vector.extract_strided_slice %1599 {offsets = [0, 0], sizes = [8, 64], strides = [1, 1]} : vector<8x128xf32> to vector<8x64xf32>
    %1601 = vector.extract_strided_slice %1587 {offsets = [0, 128], sizes = [8, 64], strides = [1, 1]} : vector<8x256xf32> to vector<8x64xf32>
    %1602 = vector.broadcast %1589 : vector<1x64xf32> to vector<8x64xf32>
    %1603 = arith.addf %1601, %1602 : vector<8x64xf32>
    %1604 = vector.extract_strided_slice %1584 {offsets = [0, 128], sizes = [8, 64], strides = [1, 1]} : vector<8x256xf32> to vector<8x64xf32>
    %1605 = arith.mulf %1598, %1603 : vector<8x64xf32>
    %1606 = arith.addf %1604, %1605 : vector<8x64xf32>
    %1607 = math.tanh %1606 : vector<8x64xf32>
    %1608 = arith.subf %1427, %1607 : vector<8x64xf32>
    %1609 = arith.mulf %1600, %1608 : vector<8x64xf32>
    %1610 = arith.addf %1607, %1609 : vector<8x64xf32>
    %c2_i32_750 = arith.constant 2 : i32
    %1611 = arith.cmpi sge, %c8_i32_699, %c2_i32_750 : i32
    %c10_i32_751 = arith.constant 10 : i32
    %1612 = arith.cmpi slt, %c8_i32_699, %c10_i32_751 : i32
    %1613 = arith.andi %1611, %1612 : i1
    %1614 = arith.select %1613, %1610, %1427 : vector<8x64xf32>
    %c2_752 = arith.constant 2 : index
    %c0_753 = arith.constant 0 : index
    %c0_754 = arith.constant 0 : index
    %1615 = vector.load %arg2[%c2_752, %c0_753, %c0_754] : memref<4x64x256xf32, #tpu.memory_space<vmem>>, vector<1x64x256xf32>
    %1616 = vector.shape_cast %1615 : vector<1x64x256xf32> to vector<64x256xf32>
    %cst_755 = arith.constant dense<0.000000e+00> : vector<8x256xf32>
    %1617 = tpu.matmul %1427, %1616, %cst_755 {dimension_numbers = #tpu.dot_dimension_numbers<[1], [0], [0], [1], [0, 0, 1, 1], [], []>} : vector<8x64xf32>, vector<64x256xf32>, vector<8x256xf32> -> vector<8x256xf32>
    %c3_756 = arith.constant 3 : index
    %c0_757 = arith.constant 0 : index
    %c0_758 = arith.constant 0 : index
    %1618 = vector.load %arg4[%c3_756, %c0_757, %c0_758] : memref<5x1x256xf32, #tpu.memory_space<vmem>>, vector<1x1x256xf32>
    %1619 = vector.shape_cast %1618 : vector<1x1x256xf32> to vector<1x256xf32>
    %1620 = vector.broadcast %1619 : vector<1x256xf32> to vector<8x256xf32>
    %1621 = arith.addf %1617, %1620 : vector<8x256xf32>
    %c3_759 = arith.constant 3 : index
    %c0_760 = arith.constant 0 : index
    %c0_761 = arith.constant 0 : index
    %1622 = vector.load %arg3[%c3_759, %c0_760, %c0_761] : memref<5x64x256xf32, #tpu.memory_space<vmem>>, vector<1x64x256xf32>
    %1623 = vector.shape_cast %1622 : vector<1x64x256xf32> to vector<64x256xf32>
    %cst_762 = arith.constant dense<0.000000e+00> : vector<8x256xf32>
    %1624 = tpu.matmul %1464, %1623, %cst_762 {dimension_numbers = #tpu.dot_dimension_numbers<[1], [0], [0], [1], [0, 0, 1, 1], [], []>} : vector<8x64xf32>, vector<64x256xf32>, vector<8x256xf32> -> vector<8x256xf32>
    %c3_763 = arith.constant 3 : index
    %c0_764 = arith.constant 0 : index
    %c0_765 = arith.constant 0 : index
    %1625 = vector.load %arg5[%c3_763, %c0_764, %c0_765] : memref<5x1x64xf32, #tpu.memory_space<vmem>>, vector<1x1x64xf32>
    %1626 = vector.shape_cast %1625 : vector<1x1x64xf32> to vector<1x64xf32>
    %1627 = vector.extract_strided_slice %1621 {offsets = [0, 0], sizes = [8, 128], strides = [1, 1]} : vector<8x256xf32> to vector<8x128xf32>
    %1628 = vector.extract_strided_slice %1624 {offsets = [0, 0], sizes = [8, 128], strides = [1, 1]} : vector<8x256xf32> to vector<8x128xf32>
    %1629 = arith.addf %1627, %1628 : vector<8x128xf32>
    %1630 = arith.negf %1629 : vector<8x128xf32>
    %1631 = math.exp %1630 : vector<8x128xf32>
    %cst_766 = arith.constant 1.000000e+00 : f32
    %1632 = vector.broadcast %cst_766 : f32 to vector<8x128xf32>
    %1633 = arith.addf %1632, %1631 : vector<8x128xf32>
    %1634 = arith.divf %1632, %1633 : vector<8x128xf32>
    %1635 = vector.extract_strided_slice %1634 {offsets = [0, 0], sizes = [8, 64], strides = [1, 1]} : vector<8x128xf32> to vector<8x64xf32>
    %c64_i32_767 = arith.constant 64 : i32
    %1636 = tpu.dynamic_rotate %1634 by %c64_i32_767 dim 1 : vector<8x128xf32>, i32 -> vector<8x128xf32>
    %1637 = vector.extract_strided_slice %1636 {offsets = [0, 0], sizes = [8, 64], strides = [1, 1]} : vector<8x128xf32> to vector<8x64xf32>
    %1638 = vector.extract_strided_slice %1624 {offsets = [0, 128], sizes = [8, 64], strides = [1, 1]} : vector<8x256xf32> to vector<8x64xf32>
    %1639 = vector.broadcast %1626 : vector<1x64xf32> to vector<8x64xf32>
    %1640 = arith.addf %1638, %1639 : vector<8x64xf32>
    %1641 = vector.extract_strided_slice %1621 {offsets = [0, 128], sizes = [8, 64], strides = [1, 1]} : vector<8x256xf32> to vector<8x64xf32>
    %1642 = arith.mulf %1635, %1640 : vector<8x64xf32>
    %1643 = arith.addf %1641, %1642 : vector<8x64xf32>
    %1644 = math.tanh %1643 : vector<8x64xf32>
    %1645 = arith.subf %1464, %1644 : vector<8x64xf32>
    %1646 = arith.mulf %1637, %1645 : vector<8x64xf32>
    %1647 = arith.addf %1644, %1646 : vector<8x64xf32>
    %c3_i32_768 = arith.constant 3 : i32
    %1648 = arith.cmpi sge, %c8_i32_699, %c3_i32_768 : i32
    %c11_i32_769 = arith.constant 11 : i32
    %1649 = arith.cmpi slt, %c8_i32_699, %c11_i32_769 : i32
    %1650 = arith.andi %1648, %1649 : i1
    %1651 = arith.select %1650, %1647, %1464 : vector<8x64xf32>
    %c3_770 = arith.constant 3 : index
    %c0_771 = arith.constant 0 : index
    %c0_772 = arith.constant 0 : index
    %1652 = vector.load %arg2[%c3_770, %c0_771, %c0_772] : memref<4x64x256xf32, #tpu.memory_space<vmem>>, vector<1x64x256xf32>
    %1653 = vector.shape_cast %1652 : vector<1x64x256xf32> to vector<64x256xf32>
    %cst_773 = arith.constant dense<0.000000e+00> : vector<8x256xf32>
    %1654 = tpu.matmul %1464, %1653, %cst_773 {dimension_numbers = #tpu.dot_dimension_numbers<[1], [0], [0], [1], [0, 0, 1, 1], [], []>} : vector<8x64xf32>, vector<64x256xf32>, vector<8x256xf32> -> vector<8x256xf32>
    %c4_774 = arith.constant 4 : index
    %c0_775 = arith.constant 0 : index
    %c0_776 = arith.constant 0 : index
    %1655 = vector.load %arg4[%c4_774, %c0_775, %c0_776] : memref<5x1x256xf32, #tpu.memory_space<vmem>>, vector<1x1x256xf32>
    %1656 = vector.shape_cast %1655 : vector<1x1x256xf32> to vector<1x256xf32>
    %1657 = vector.broadcast %1656 : vector<1x256xf32> to vector<8x256xf32>
    %1658 = arith.addf %1654, %1657 : vector<8x256xf32>
    %c4_777 = arith.constant 4 : index
    %c0_778 = arith.constant 0 : index
    %c0_779 = arith.constant 0 : index
    %1659 = vector.load %arg3[%c4_777, %c0_778, %c0_779] : memref<5x64x256xf32, #tpu.memory_space<vmem>>, vector<1x64x256xf32>
    %1660 = vector.shape_cast %1659 : vector<1x64x256xf32> to vector<64x256xf32>
    %cst_780 = arith.constant dense<0.000000e+00> : vector<8x256xf32>
    %1661 = tpu.matmul %1501, %1660, %cst_780 {dimension_numbers = #tpu.dot_dimension_numbers<[1], [0], [0], [1], [0, 0, 1, 1], [], []>} : vector<8x64xf32>, vector<64x256xf32>, vector<8x256xf32> -> vector<8x256xf32>
    %c4_781 = arith.constant 4 : index
    %c0_782 = arith.constant 0 : index
    %c0_783 = arith.constant 0 : index
    %1662 = vector.load %arg5[%c4_781, %c0_782, %c0_783] : memref<5x1x64xf32, #tpu.memory_space<vmem>>, vector<1x1x64xf32>
    %1663 = vector.shape_cast %1662 : vector<1x1x64xf32> to vector<1x64xf32>
    %1664 = vector.extract_strided_slice %1658 {offsets = [0, 0], sizes = [8, 128], strides = [1, 1]} : vector<8x256xf32> to vector<8x128xf32>
    %1665 = vector.extract_strided_slice %1661 {offsets = [0, 0], sizes = [8, 128], strides = [1, 1]} : vector<8x256xf32> to vector<8x128xf32>
    %1666 = arith.addf %1664, %1665 : vector<8x128xf32>
    %1667 = arith.negf %1666 : vector<8x128xf32>
    %1668 = math.exp %1667 : vector<8x128xf32>
    %cst_784 = arith.constant 1.000000e+00 : f32
    %1669 = vector.broadcast %cst_784 : f32 to vector<8x128xf32>
    %1670 = arith.addf %1669, %1668 : vector<8x128xf32>
    %1671 = arith.divf %1669, %1670 : vector<8x128xf32>
    %1672 = vector.extract_strided_slice %1671 {offsets = [0, 0], sizes = [8, 64], strides = [1, 1]} : vector<8x128xf32> to vector<8x64xf32>
    %c64_i32_785 = arith.constant 64 : i32
    %1673 = tpu.dynamic_rotate %1671 by %c64_i32_785 dim 1 : vector<8x128xf32>, i32 -> vector<8x128xf32>
    %1674 = vector.extract_strided_slice %1673 {offsets = [0, 0], sizes = [8, 64], strides = [1, 1]} : vector<8x128xf32> to vector<8x64xf32>
    %1675 = vector.extract_strided_slice %1661 {offsets = [0, 128], sizes = [8, 64], strides = [1, 1]} : vector<8x256xf32> to vector<8x64xf32>
    %1676 = vector.broadcast %1663 : vector<1x64xf32> to vector<8x64xf32>
    %1677 = arith.addf %1675, %1676 : vector<8x64xf32>
    %1678 = vector.extract_strided_slice %1658 {offsets = [0, 128], sizes = [8, 64], strides = [1, 1]} : vector<8x256xf32> to vector<8x64xf32>
    %1679 = arith.mulf %1672, %1677 : vector<8x64xf32>
    %1680 = arith.addf %1678, %1679 : vector<8x64xf32>
    %1681 = math.tanh %1680 : vector<8x64xf32>
    %1682 = arith.subf %1501, %1681 : vector<8x64xf32>
    %1683 = arith.mulf %1674, %1682 : vector<8x64xf32>
    %1684 = arith.addf %1681, %1683 : vector<8x64xf32>
    %c4_i32_786 = arith.constant 4 : i32
    %1685 = arith.cmpi sge, %c8_i32_699, %c4_i32_786 : i32
    %c12_i32_787 = arith.constant 12 : i32
    %1686 = arith.cmpi slt, %c8_i32_699, %c12_i32_787 : i32
    %1687 = arith.andi %1685, %1686 : i1
    %1688 = arith.select %1687, %1684, %1501 : vector<8x64xf32>
    %c9_i32_788 = arith.constant 9 : i32
    %c7_i32_789 = arith.constant 7 : i32
    %1689 = arith.minsi %c9_i32_788, %c7_i32_789 : i32
    %1690 = arith.index_cast %1689 : i32 to index
    %c0_790 = arith.constant 0 : index
    %c0_791 = arith.constant 0 : index
    %1691 = vector.load %arg0[%1690, %c0_790, %c0_791] : memref<8x8x1xf32, #tpu.memory_space<vmem>>, vector<1x8x1xf32>
    %1692 = vector.shape_cast %1691 : vector<1x8x1xf32> to vector<8x1xf32>
    %1693 = vector.broadcast %1692 : vector<8x1xf32> to vector<8x256xf32>
    %1694 = vector.broadcast %0 : vector<1x256xf32> to vector<8x256xf32>
    %1695 = arith.mulf %1693, %1694 : vector<8x256xf32>
    %c0_792 = arith.constant 0 : index
    %c0_793 = arith.constant 0 : index
    %c0_794 = arith.constant 0 : index
    %1696 = vector.load %arg4[%c0_792, %c0_793, %c0_794] : memref<5x1x256xf32, #tpu.memory_space<vmem>>, vector<1x1x256xf32>
    %1697 = vector.shape_cast %1696 : vector<1x1x256xf32> to vector<1x256xf32>
    %1698 = vector.broadcast %1697 : vector<1x256xf32> to vector<8x256xf32>
    %1699 = arith.addf %1695, %1698 : vector<8x256xf32>
    %c0_795 = arith.constant 0 : index
    %c0_796 = arith.constant 0 : index
    %c0_797 = arith.constant 0 : index
    %1700 = vector.load %arg3[%c0_795, %c0_796, %c0_797] : memref<5x64x256xf32, #tpu.memory_space<vmem>>, vector<1x64x256xf32>
    %1701 = vector.shape_cast %1700 : vector<1x64x256xf32> to vector<64x256xf32>
    %cst_798 = arith.constant dense<0.000000e+00> : vector<8x256xf32>
    %1702 = tpu.matmul %1540, %1701, %cst_798 {dimension_numbers = #tpu.dot_dimension_numbers<[1], [0], [0], [1], [0, 0, 1, 1], [], []>} : vector<8x64xf32>, vector<64x256xf32>, vector<8x256xf32> -> vector<8x256xf32>
    %c0_799 = arith.constant 0 : index
    %c0_800 = arith.constant 0 : index
    %c0_801 = arith.constant 0 : index
    %1703 = vector.load %arg5[%c0_799, %c0_800, %c0_801] : memref<5x1x64xf32, #tpu.memory_space<vmem>>, vector<1x1x64xf32>
    %1704 = vector.shape_cast %1703 : vector<1x1x64xf32> to vector<1x64xf32>
    %1705 = vector.extract_strided_slice %1699 {offsets = [0, 0], sizes = [8, 128], strides = [1, 1]} : vector<8x256xf32> to vector<8x128xf32>
    %1706 = vector.extract_strided_slice %1702 {offsets = [0, 0], sizes = [8, 128], strides = [1, 1]} : vector<8x256xf32> to vector<8x128xf32>
    %1707 = arith.addf %1705, %1706 : vector<8x128xf32>
    %1708 = arith.negf %1707 : vector<8x128xf32>
    %1709 = math.exp %1708 : vector<8x128xf32>
    %cst_802 = arith.constant 1.000000e+00 : f32
    %1710 = vector.broadcast %cst_802 : f32 to vector<8x128xf32>
    %1711 = arith.addf %1710, %1709 : vector<8x128xf32>
    %1712 = arith.divf %1710, %1711 : vector<8x128xf32>
    %1713 = vector.extract_strided_slice %1712 {offsets = [0, 0], sizes = [8, 64], strides = [1, 1]} : vector<8x128xf32> to vector<8x64xf32>
    %c64_i32_803 = arith.constant 64 : i32
    %1714 = tpu.dynamic_rotate %1712 by %c64_i32_803 dim 1 : vector<8x128xf32>, i32 -> vector<8x128xf32>
    %1715 = vector.extract_strided_slice %1714 {offsets = [0, 0], sizes = [8, 64], strides = [1, 1]} : vector<8x128xf32> to vector<8x64xf32>
    %1716 = vector.extract_strided_slice %1702 {offsets = [0, 128], sizes = [8, 64], strides = [1, 1]} : vector<8x256xf32> to vector<8x64xf32>
    %1717 = vector.broadcast %1704 : vector<1x64xf32> to vector<8x64xf32>
    %1718 = arith.addf %1716, %1717 : vector<8x64xf32>
    %1719 = vector.extract_strided_slice %1699 {offsets = [0, 128], sizes = [8, 64], strides = [1, 1]} : vector<8x256xf32> to vector<8x64xf32>
    %1720 = arith.mulf %1713, %1718 : vector<8x64xf32>
    %1721 = arith.addf %1719, %1720 : vector<8x64xf32>
    %1722 = math.tanh %1721 : vector<8x64xf32>
    %1723 = arith.subf %1540, %1722 : vector<8x64xf32>
    %1724 = arith.mulf %1715, %1723 : vector<8x64xf32>
    %1725 = arith.addf %1722, %1724 : vector<8x64xf32>
    %c8_i32_804 = arith.constant 8 : i32
    %1726 = arith.cmpi slt, %c9_i32_788, %c8_i32_804 : i32
    %1727 = arith.select %1726, %1725, %1540 : vector<8x64xf32>
    %c0_805 = arith.constant 0 : index
    %c0_806 = arith.constant 0 : index
    %c0_807 = arith.constant 0 : index
    %1728 = vector.load %arg2[%c0_805, %c0_806, %c0_807] : memref<4x64x256xf32, #tpu.memory_space<vmem>>, vector<1x64x256xf32>
    %1729 = vector.shape_cast %1728 : vector<1x64x256xf32> to vector<64x256xf32>
    %cst_808 = arith.constant dense<0.000000e+00> : vector<8x256xf32>
    %1730 = tpu.matmul %1540, %1729, %cst_808 {dimension_numbers = #tpu.dot_dimension_numbers<[1], [0], [0], [1], [0, 0, 1, 1], [], []>} : vector<8x64xf32>, vector<64x256xf32>, vector<8x256xf32> -> vector<8x256xf32>
    %c1_809 = arith.constant 1 : index
    %c0_810 = arith.constant 0 : index
    %c0_811 = arith.constant 0 : index
    %1731 = vector.load %arg4[%c1_809, %c0_810, %c0_811] : memref<5x1x256xf32, #tpu.memory_space<vmem>>, vector<1x1x256xf32>
    %1732 = vector.shape_cast %1731 : vector<1x1x256xf32> to vector<1x256xf32>
    %1733 = vector.broadcast %1732 : vector<1x256xf32> to vector<8x256xf32>
    %1734 = arith.addf %1730, %1733 : vector<8x256xf32>
    %c1_812 = arith.constant 1 : index
    %c0_813 = arith.constant 0 : index
    %c0_814 = arith.constant 0 : index
    %1735 = vector.load %arg3[%c1_812, %c0_813, %c0_814] : memref<5x64x256xf32, #tpu.memory_space<vmem>>, vector<1x64x256xf32>
    %1736 = vector.shape_cast %1735 : vector<1x64x256xf32> to vector<64x256xf32>
    %cst_815 = arith.constant dense<0.000000e+00> : vector<8x256xf32>
    %1737 = tpu.matmul %1577, %1736, %cst_815 {dimension_numbers = #tpu.dot_dimension_numbers<[1], [0], [0], [1], [0, 0, 1, 1], [], []>} : vector<8x64xf32>, vector<64x256xf32>, vector<8x256xf32> -> vector<8x256xf32>
    %c1_816 = arith.constant 1 : index
    %c0_817 = arith.constant 0 : index
    %c0_818 = arith.constant 0 : index
    %1738 = vector.load %arg5[%c1_816, %c0_817, %c0_818] : memref<5x1x64xf32, #tpu.memory_space<vmem>>, vector<1x1x64xf32>
    %1739 = vector.shape_cast %1738 : vector<1x1x64xf32> to vector<1x64xf32>
    %1740 = vector.extract_strided_slice %1734 {offsets = [0, 0], sizes = [8, 128], strides = [1, 1]} : vector<8x256xf32> to vector<8x128xf32>
    %1741 = vector.extract_strided_slice %1737 {offsets = [0, 0], sizes = [8, 128], strides = [1, 1]} : vector<8x256xf32> to vector<8x128xf32>
    %1742 = arith.addf %1740, %1741 : vector<8x128xf32>
    %1743 = arith.negf %1742 : vector<8x128xf32>
    %1744 = math.exp %1743 : vector<8x128xf32>
    %cst_819 = arith.constant 1.000000e+00 : f32
    %1745 = vector.broadcast %cst_819 : f32 to vector<8x128xf32>
    %1746 = arith.addf %1745, %1744 : vector<8x128xf32>
    %1747 = arith.divf %1745, %1746 : vector<8x128xf32>
    %1748 = vector.extract_strided_slice %1747 {offsets = [0, 0], sizes = [8, 64], strides = [1, 1]} : vector<8x128xf32> to vector<8x64xf32>
    %c64_i32_820 = arith.constant 64 : i32
    %1749 = tpu.dynamic_rotate %1747 by %c64_i32_820 dim 1 : vector<8x128xf32>, i32 -> vector<8x128xf32>
    %1750 = vector.extract_strided_slice %1749 {offsets = [0, 0], sizes = [8, 64], strides = [1, 1]} : vector<8x128xf32> to vector<8x64xf32>
    %1751 = vector.extract_strided_slice %1737 {offsets = [0, 128], sizes = [8, 64], strides = [1, 1]} : vector<8x256xf32> to vector<8x64xf32>
    %1752 = vector.broadcast %1739 : vector<1x64xf32> to vector<8x64xf32>
    %1753 = arith.addf %1751, %1752 : vector<8x64xf32>
    %1754 = vector.extract_strided_slice %1734 {offsets = [0, 128], sizes = [8, 64], strides = [1, 1]} : vector<8x256xf32> to vector<8x64xf32>
    %1755 = arith.mulf %1748, %1753 : vector<8x64xf32>
    %1756 = arith.addf %1754, %1755 : vector<8x64xf32>
    %1757 = math.tanh %1756 : vector<8x64xf32>
    %1758 = arith.subf %1577, %1757 : vector<8x64xf32>
    %1759 = arith.mulf %1750, %1758 : vector<8x64xf32>
    %1760 = arith.addf %1757, %1759 : vector<8x64xf32>
    %c1_i32_821 = arith.constant 1 : i32
    %1761 = arith.cmpi sge, %c9_i32_788, %c1_i32_821 : i32
    %c9_i32_822 = arith.constant 9 : i32
    %1762 = arith.cmpi slt, %c9_i32_788, %c9_i32_822 : i32
    %1763 = arith.andi %1761, %1762 : i1
    %1764 = arith.select %1763, %1760, %1577 : vector<8x64xf32>
    %c1_823 = arith.constant 1 : index
    %c0_824 = arith.constant 0 : index
    %c0_825 = arith.constant 0 : index
    %1765 = vector.load %arg2[%c1_823, %c0_824, %c0_825] : memref<4x64x256xf32, #tpu.memory_space<vmem>>, vector<1x64x256xf32>
    %1766 = vector.shape_cast %1765 : vector<1x64x256xf32> to vector<64x256xf32>
    %cst_826 = arith.constant dense<0.000000e+00> : vector<8x256xf32>
    %1767 = tpu.matmul %1577, %1766, %cst_826 {dimension_numbers = #tpu.dot_dimension_numbers<[1], [0], [0], [1], [0, 0, 1, 1], [], []>} : vector<8x64xf32>, vector<64x256xf32>, vector<8x256xf32> -> vector<8x256xf32>
    %c2_827 = arith.constant 2 : index
    %c0_828 = arith.constant 0 : index
    %c0_829 = arith.constant 0 : index
    %1768 = vector.load %arg4[%c2_827, %c0_828, %c0_829] : memref<5x1x256xf32, #tpu.memory_space<vmem>>, vector<1x1x256xf32>
    %1769 = vector.shape_cast %1768 : vector<1x1x256xf32> to vector<1x256xf32>
    %1770 = vector.broadcast %1769 : vector<1x256xf32> to vector<8x256xf32>
    %1771 = arith.addf %1767, %1770 : vector<8x256xf32>
    %c2_830 = arith.constant 2 : index
    %c0_831 = arith.constant 0 : index
    %c0_832 = arith.constant 0 : index
    %1772 = vector.load %arg3[%c2_830, %c0_831, %c0_832] : memref<5x64x256xf32, #tpu.memory_space<vmem>>, vector<1x64x256xf32>
    %1773 = vector.shape_cast %1772 : vector<1x64x256xf32> to vector<64x256xf32>
    %cst_833 = arith.constant dense<0.000000e+00> : vector<8x256xf32>
    %1774 = tpu.matmul %1614, %1773, %cst_833 {dimension_numbers = #tpu.dot_dimension_numbers<[1], [0], [0], [1], [0, 0, 1, 1], [], []>} : vector<8x64xf32>, vector<64x256xf32>, vector<8x256xf32> -> vector<8x256xf32>
    %c2_834 = arith.constant 2 : index
    %c0_835 = arith.constant 0 : index
    %c0_836 = arith.constant 0 : index
    %1775 = vector.load %arg5[%c2_834, %c0_835, %c0_836] : memref<5x1x64xf32, #tpu.memory_space<vmem>>, vector<1x1x64xf32>
    %1776 = vector.shape_cast %1775 : vector<1x1x64xf32> to vector<1x64xf32>
    %1777 = vector.extract_strided_slice %1771 {offsets = [0, 0], sizes = [8, 128], strides = [1, 1]} : vector<8x256xf32> to vector<8x128xf32>
    %1778 = vector.extract_strided_slice %1774 {offsets = [0, 0], sizes = [8, 128], strides = [1, 1]} : vector<8x256xf32> to vector<8x128xf32>
    %1779 = arith.addf %1777, %1778 : vector<8x128xf32>
    %1780 = arith.negf %1779 : vector<8x128xf32>
    %1781 = math.exp %1780 : vector<8x128xf32>
    %cst_837 = arith.constant 1.000000e+00 : f32
    %1782 = vector.broadcast %cst_837 : f32 to vector<8x128xf32>
    %1783 = arith.addf %1782, %1781 : vector<8x128xf32>
    %1784 = arith.divf %1782, %1783 : vector<8x128xf32>
    %1785 = vector.extract_strided_slice %1784 {offsets = [0, 0], sizes = [8, 64], strides = [1, 1]} : vector<8x128xf32> to vector<8x64xf32>
    %c64_i32_838 = arith.constant 64 : i32
    %1786 = tpu.dynamic_rotate %1784 by %c64_i32_838 dim 1 : vector<8x128xf32>, i32 -> vector<8x128xf32>
    %1787 = vector.extract_strided_slice %1786 {offsets = [0, 0], sizes = [8, 64], strides = [1, 1]} : vector<8x128xf32> to vector<8x64xf32>
    %1788 = vector.extract_strided_slice %1774 {offsets = [0, 128], sizes = [8, 64], strides = [1, 1]} : vector<8x256xf32> to vector<8x64xf32>
    %1789 = vector.broadcast %1776 : vector<1x64xf32> to vector<8x64xf32>
    %1790 = arith.addf %1788, %1789 : vector<8x64xf32>
    %1791 = vector.extract_strided_slice %1771 {offsets = [0, 128], sizes = [8, 64], strides = [1, 1]} : vector<8x256xf32> to vector<8x64xf32>
    %1792 = arith.mulf %1785, %1790 : vector<8x64xf32>
    %1793 = arith.addf %1791, %1792 : vector<8x64xf32>
    %1794 = math.tanh %1793 : vector<8x64xf32>
    %1795 = arith.subf %1614, %1794 : vector<8x64xf32>
    %1796 = arith.mulf %1787, %1795 : vector<8x64xf32>
    %1797 = arith.addf %1794, %1796 : vector<8x64xf32>
    %c2_i32_839 = arith.constant 2 : i32
    %1798 = arith.cmpi sge, %c9_i32_788, %c2_i32_839 : i32
    %c10_i32_840 = arith.constant 10 : i32
    %1799 = arith.cmpi slt, %c9_i32_788, %c10_i32_840 : i32
    %1800 = arith.andi %1798, %1799 : i1
    %1801 = arith.select %1800, %1797, %1614 : vector<8x64xf32>
    %c2_841 = arith.constant 2 : index
    %c0_842 = arith.constant 0 : index
    %c0_843 = arith.constant 0 : index
    %1802 = vector.load %arg2[%c2_841, %c0_842, %c0_843] : memref<4x64x256xf32, #tpu.memory_space<vmem>>, vector<1x64x256xf32>
    %1803 = vector.shape_cast %1802 : vector<1x64x256xf32> to vector<64x256xf32>
    %cst_844 = arith.constant dense<0.000000e+00> : vector<8x256xf32>
    %1804 = tpu.matmul %1614, %1803, %cst_844 {dimension_numbers = #tpu.dot_dimension_numbers<[1], [0], [0], [1], [0, 0, 1, 1], [], []>} : vector<8x64xf32>, vector<64x256xf32>, vector<8x256xf32> -> vector<8x256xf32>
    %c3_845 = arith.constant 3 : index
    %c0_846 = arith.constant 0 : index
    %c0_847 = arith.constant 0 : index
    %1805 = vector.load %arg4[%c3_845, %c0_846, %c0_847] : memref<5x1x256xf32, #tpu.memory_space<vmem>>, vector<1x1x256xf32>
    %1806 = vector.shape_cast %1805 : vector<1x1x256xf32> to vector<1x256xf32>
    %1807 = vector.broadcast %1806 : vector<1x256xf32> to vector<8x256xf32>
    %1808 = arith.addf %1804, %1807 : vector<8x256xf32>
    %c3_848 = arith.constant 3 : index
    %c0_849 = arith.constant 0 : index
    %c0_850 = arith.constant 0 : index
    %1809 = vector.load %arg3[%c3_848, %c0_849, %c0_850] : memref<5x64x256xf32, #tpu.memory_space<vmem>>, vector<1x64x256xf32>
    %1810 = vector.shape_cast %1809 : vector<1x64x256xf32> to vector<64x256xf32>
    %cst_851 = arith.constant dense<0.000000e+00> : vector<8x256xf32>
    %1811 = tpu.matmul %1651, %1810, %cst_851 {dimension_numbers = #tpu.dot_dimension_numbers<[1], [0], [0], [1], [0, 0, 1, 1], [], []>} : vector<8x64xf32>, vector<64x256xf32>, vector<8x256xf32> -> vector<8x256xf32>
    %c3_852 = arith.constant 3 : index
    %c0_853 = arith.constant 0 : index
    %c0_854 = arith.constant 0 : index
    %1812 = vector.load %arg5[%c3_852, %c0_853, %c0_854] : memref<5x1x64xf32, #tpu.memory_space<vmem>>, vector<1x1x64xf32>
    %1813 = vector.shape_cast %1812 : vector<1x1x64xf32> to vector<1x64xf32>
    %1814 = vector.extract_strided_slice %1808 {offsets = [0, 0], sizes = [8, 128], strides = [1, 1]} : vector<8x256xf32> to vector<8x128xf32>
    %1815 = vector.extract_strided_slice %1811 {offsets = [0, 0], sizes = [8, 128], strides = [1, 1]} : vector<8x256xf32> to vector<8x128xf32>
    %1816 = arith.addf %1814, %1815 : vector<8x128xf32>
    %1817 = arith.negf %1816 : vector<8x128xf32>
    %1818 = math.exp %1817 : vector<8x128xf32>
    %cst_855 = arith.constant 1.000000e+00 : f32
    %1819 = vector.broadcast %cst_855 : f32 to vector<8x128xf32>
    %1820 = arith.addf %1819, %1818 : vector<8x128xf32>
    %1821 = arith.divf %1819, %1820 : vector<8x128xf32>
    %1822 = vector.extract_strided_slice %1821 {offsets = [0, 0], sizes = [8, 64], strides = [1, 1]} : vector<8x128xf32> to vector<8x64xf32>
    %c64_i32_856 = arith.constant 64 : i32
    %1823 = tpu.dynamic_rotate %1821 by %c64_i32_856 dim 1 : vector<8x128xf32>, i32 -> vector<8x128xf32>
    %1824 = vector.extract_strided_slice %1823 {offsets = [0, 0], sizes = [8, 64], strides = [1, 1]} : vector<8x128xf32> to vector<8x64xf32>
    %1825 = vector.extract_strided_slice %1811 {offsets = [0, 128], sizes = [8, 64], strides = [1, 1]} : vector<8x256xf32> to vector<8x64xf32>
    %1826 = vector.broadcast %1813 : vector<1x64xf32> to vector<8x64xf32>
    %1827 = arith.addf %1825, %1826 : vector<8x64xf32>
    %1828 = vector.extract_strided_slice %1808 {offsets = [0, 128], sizes = [8, 64], strides = [1, 1]} : vector<8x256xf32> to vector<8x64xf32>
    %1829 = arith.mulf %1822, %1827 : vector<8x64xf32>
    %1830 = arith.addf %1828, %1829 : vector<8x64xf32>
    %1831 = math.tanh %1830 : vector<8x64xf32>
    %1832 = arith.subf %1651, %1831 : vector<8x64xf32>
    %1833 = arith.mulf %1824, %1832 : vector<8x64xf32>
    %1834 = arith.addf %1831, %1833 : vector<8x64xf32>
    %c3_i32_857 = arith.constant 3 : i32
    %1835 = arith.cmpi sge, %c9_i32_788, %c3_i32_857 : i32
    %c11_i32_858 = arith.constant 11 : i32
    %1836 = arith.cmpi slt, %c9_i32_788, %c11_i32_858 : i32
    %1837 = arith.andi %1835, %1836 : i1
    %1838 = arith.select %1837, %1834, %1651 : vector<8x64xf32>
    %c3_859 = arith.constant 3 : index
    %c0_860 = arith.constant 0 : index
    %c0_861 = arith.constant 0 : index
    %1839 = vector.load %arg2[%c3_859, %c0_860, %c0_861] : memref<4x64x256xf32, #tpu.memory_space<vmem>>, vector<1x64x256xf32>
    %1840 = vector.shape_cast %1839 : vector<1x64x256xf32> to vector<64x256xf32>
    %cst_862 = arith.constant dense<0.000000e+00> : vector<8x256xf32>
    %1841 = tpu.matmul %1651, %1840, %cst_862 {dimension_numbers = #tpu.dot_dimension_numbers<[1], [0], [0], [1], [0, 0, 1, 1], [], []>} : vector<8x64xf32>, vector<64x256xf32>, vector<8x256xf32> -> vector<8x256xf32>
    %c4_863 = arith.constant 4 : index
    %c0_864 = arith.constant 0 : index
    %c0_865 = arith.constant 0 : index
    %1842 = vector.load %arg4[%c4_863, %c0_864, %c0_865] : memref<5x1x256xf32, #tpu.memory_space<vmem>>, vector<1x1x256xf32>
    %1843 = vector.shape_cast %1842 : vector<1x1x256xf32> to vector<1x256xf32>
    %1844 = vector.broadcast %1843 : vector<1x256xf32> to vector<8x256xf32>
    %1845 = arith.addf %1841, %1844 : vector<8x256xf32>
    %c4_866 = arith.constant 4 : index
    %c0_867 = arith.constant 0 : index
    %c0_868 = arith.constant 0 : index
    %1846 = vector.load %arg3[%c4_866, %c0_867, %c0_868] : memref<5x64x256xf32, #tpu.memory_space<vmem>>, vector<1x64x256xf32>
    %1847 = vector.shape_cast %1846 : vector<1x64x256xf32> to vector<64x256xf32>
    %cst_869 = arith.constant dense<0.000000e+00> : vector<8x256xf32>
    %1848 = tpu.matmul %1688, %1847, %cst_869 {dimension_numbers = #tpu.dot_dimension_numbers<[1], [0], [0], [1], [0, 0, 1, 1], [], []>} : vector<8x64xf32>, vector<64x256xf32>, vector<8x256xf32> -> vector<8x256xf32>
    %c4_870 = arith.constant 4 : index
    %c0_871 = arith.constant 0 : index
    %c0_872 = arith.constant 0 : index
    %1849 = vector.load %arg5[%c4_870, %c0_871, %c0_872] : memref<5x1x64xf32, #tpu.memory_space<vmem>>, vector<1x1x64xf32>
    %1850 = vector.shape_cast %1849 : vector<1x1x64xf32> to vector<1x64xf32>
    %1851 = vector.extract_strided_slice %1845 {offsets = [0, 0], sizes = [8, 128], strides = [1, 1]} : vector<8x256xf32> to vector<8x128xf32>
    %1852 = vector.extract_strided_slice %1848 {offsets = [0, 0], sizes = [8, 128], strides = [1, 1]} : vector<8x256xf32> to vector<8x128xf32>
    %1853 = arith.addf %1851, %1852 : vector<8x128xf32>
    %1854 = arith.negf %1853 : vector<8x128xf32>
    %1855 = math.exp %1854 : vector<8x128xf32>
    %cst_873 = arith.constant 1.000000e+00 : f32
    %1856 = vector.broadcast %cst_873 : f32 to vector<8x128xf32>
    %1857 = arith.addf %1856, %1855 : vector<8x128xf32>
    %1858 = arith.divf %1856, %1857 : vector<8x128xf32>
    %1859 = vector.extract_strided_slice %1858 {offsets = [0, 0], sizes = [8, 64], strides = [1, 1]} : vector<8x128xf32> to vector<8x64xf32>
    %c64_i32_874 = arith.constant 64 : i32
    %1860 = tpu.dynamic_rotate %1858 by %c64_i32_874 dim 1 : vector<8x128xf32>, i32 -> vector<8x128xf32>
    %1861 = vector.extract_strided_slice %1860 {offsets = [0, 0], sizes = [8, 64], strides = [1, 1]} : vector<8x128xf32> to vector<8x64xf32>
    %1862 = vector.extract_strided_slice %1848 {offsets = [0, 128], sizes = [8, 64], strides = [1, 1]} : vector<8x256xf32> to vector<8x64xf32>
    %1863 = vector.broadcast %1850 : vector<1x64xf32> to vector<8x64xf32>
    %1864 = arith.addf %1862, %1863 : vector<8x64xf32>
    %1865 = vector.extract_strided_slice %1845 {offsets = [0, 128], sizes = [8, 64], strides = [1, 1]} : vector<8x256xf32> to vector<8x64xf32>
    %1866 = arith.mulf %1859, %1864 : vector<8x64xf32>
    %1867 = arith.addf %1865, %1866 : vector<8x64xf32>
    %1868 = math.tanh %1867 : vector<8x64xf32>
    %1869 = arith.subf %1688, %1868 : vector<8x64xf32>
    %1870 = arith.mulf %1861, %1869 : vector<8x64xf32>
    %1871 = arith.addf %1868, %1870 : vector<8x64xf32>
    %c4_i32_875 = arith.constant 4 : i32
    %1872 = arith.cmpi sge, %c9_i32_788, %c4_i32_875 : i32
    %c12_i32_876 = arith.constant 12 : i32
    %1873 = arith.cmpi slt, %c9_i32_788, %c12_i32_876 : i32
    %1874 = arith.andi %1872, %1873 : i1
    %1875 = arith.select %1874, %1871, %1688 : vector<8x64xf32>
    %c10_i32_877 = arith.constant 10 : i32
    %c7_i32_878 = arith.constant 7 : i32
    %1876 = arith.minsi %c10_i32_877, %c7_i32_878 : i32
    %1877 = arith.index_cast %1876 : i32 to index
    %c0_879 = arith.constant 0 : index
    %c0_880 = arith.constant 0 : index
    %1878 = vector.load %arg0[%1877, %c0_879, %c0_880] : memref<8x8x1xf32, #tpu.memory_space<vmem>>, vector<1x8x1xf32>
    %1879 = vector.shape_cast %1878 : vector<1x8x1xf32> to vector<8x1xf32>
    %1880 = vector.broadcast %1879 : vector<8x1xf32> to vector<8x256xf32>
    %1881 = vector.broadcast %0 : vector<1x256xf32> to vector<8x256xf32>
    %1882 = arith.mulf %1880, %1881 : vector<8x256xf32>
    %c0_881 = arith.constant 0 : index
    %c0_882 = arith.constant 0 : index
    %c0_883 = arith.constant 0 : index
    %1883 = vector.load %arg4[%c0_881, %c0_882, %c0_883] : memref<5x1x256xf32, #tpu.memory_space<vmem>>, vector<1x1x256xf32>
    %1884 = vector.shape_cast %1883 : vector<1x1x256xf32> to vector<1x256xf32>
    %1885 = vector.broadcast %1884 : vector<1x256xf32> to vector<8x256xf32>
    %1886 = arith.addf %1882, %1885 : vector<8x256xf32>
    %c0_884 = arith.constant 0 : index
    %c0_885 = arith.constant 0 : index
    %c0_886 = arith.constant 0 : index
    %1887 = vector.load %arg3[%c0_884, %c0_885, %c0_886] : memref<5x64x256xf32, #tpu.memory_space<vmem>>, vector<1x64x256xf32>
    %1888 = vector.shape_cast %1887 : vector<1x64x256xf32> to vector<64x256xf32>
    %cst_887 = arith.constant dense<0.000000e+00> : vector<8x256xf32>
    %1889 = tpu.matmul %1727, %1888, %cst_887 {dimension_numbers = #tpu.dot_dimension_numbers<[1], [0], [0], [1], [0, 0, 1, 1], [], []>} : vector<8x64xf32>, vector<64x256xf32>, vector<8x256xf32> -> vector<8x256xf32>
    %c0_888 = arith.constant 0 : index
    %c0_889 = arith.constant 0 : index
    %c0_890 = arith.constant 0 : index
    %1890 = vector.load %arg5[%c0_888, %c0_889, %c0_890] : memref<5x1x64xf32, #tpu.memory_space<vmem>>, vector<1x1x64xf32>
    %1891 = vector.shape_cast %1890 : vector<1x1x64xf32> to vector<1x64xf32>
    %1892 = vector.extract_strided_slice %1886 {offsets = [0, 0], sizes = [8, 128], strides = [1, 1]} : vector<8x256xf32> to vector<8x128xf32>
    %1893 = vector.extract_strided_slice %1889 {offsets = [0, 0], sizes = [8, 128], strides = [1, 1]} : vector<8x256xf32> to vector<8x128xf32>
    %1894 = arith.addf %1892, %1893 : vector<8x128xf32>
    %1895 = arith.negf %1894 : vector<8x128xf32>
    %1896 = math.exp %1895 : vector<8x128xf32>
    %cst_891 = arith.constant 1.000000e+00 : f32
    %1897 = vector.broadcast %cst_891 : f32 to vector<8x128xf32>
    %1898 = arith.addf %1897, %1896 : vector<8x128xf32>
    %1899 = arith.divf %1897, %1898 : vector<8x128xf32>
    %1900 = vector.extract_strided_slice %1899 {offsets = [0, 0], sizes = [8, 64], strides = [1, 1]} : vector<8x128xf32> to vector<8x64xf32>
    %c64_i32_892 = arith.constant 64 : i32
    %1901 = tpu.dynamic_rotate %1899 by %c64_i32_892 dim 1 : vector<8x128xf32>, i32 -> vector<8x128xf32>
    %1902 = vector.extract_strided_slice %1901 {offsets = [0, 0], sizes = [8, 64], strides = [1, 1]} : vector<8x128xf32> to vector<8x64xf32>
    %1903 = vector.extract_strided_slice %1889 {offsets = [0, 128], sizes = [8, 64], strides = [1, 1]} : vector<8x256xf32> to vector<8x64xf32>
    %1904 = vector.broadcast %1891 : vector<1x64xf32> to vector<8x64xf32>
    %1905 = arith.addf %1903, %1904 : vector<8x64xf32>
    %1906 = vector.extract_strided_slice %1886 {offsets = [0, 128], sizes = [8, 64], strides = [1, 1]} : vector<8x256xf32> to vector<8x64xf32>
    %1907 = arith.mulf %1900, %1905 : vector<8x64xf32>
    %1908 = arith.addf %1906, %1907 : vector<8x64xf32>
    %1909 = math.tanh %1908 : vector<8x64xf32>
    %1910 = arith.subf %1727, %1909 : vector<8x64xf32>
    %1911 = arith.mulf %1902, %1910 : vector<8x64xf32>
    %1912 = arith.addf %1909, %1911 : vector<8x64xf32>
    %c8_i32_893 = arith.constant 8 : i32
    %1913 = arith.cmpi slt, %c10_i32_877, %c8_i32_893 : i32
    %1914 = arith.select %1913, %1912, %1727 : vector<8x64xf32>
    %c0_894 = arith.constant 0 : index
    %c0_895 = arith.constant 0 : index
    %c0_896 = arith.constant 0 : index
    %1915 = vector.load %arg2[%c0_894, %c0_895, %c0_896] : memref<4x64x256xf32, #tpu.memory_space<vmem>>, vector<1x64x256xf32>
    %1916 = vector.shape_cast %1915 : vector<1x64x256xf32> to vector<64x256xf32>
    %cst_897 = arith.constant dense<0.000000e+00> : vector<8x256xf32>
    %1917 = tpu.matmul %1727, %1916, %cst_897 {dimension_numbers = #tpu.dot_dimension_numbers<[1], [0], [0], [1], [0, 0, 1, 1], [], []>} : vector<8x64xf32>, vector<64x256xf32>, vector<8x256xf32> -> vector<8x256xf32>
    %c1_898 = arith.constant 1 : index
    %c0_899 = arith.constant 0 : index
    %c0_900 = arith.constant 0 : index
    %1918 = vector.load %arg4[%c1_898, %c0_899, %c0_900] : memref<5x1x256xf32, #tpu.memory_space<vmem>>, vector<1x1x256xf32>
    %1919 = vector.shape_cast %1918 : vector<1x1x256xf32> to vector<1x256xf32>
    %1920 = vector.broadcast %1919 : vector<1x256xf32> to vector<8x256xf32>
    %1921 = arith.addf %1917, %1920 : vector<8x256xf32>
    %c1_901 = arith.constant 1 : index
    %c0_902 = arith.constant 0 : index
    %c0_903 = arith.constant 0 : index
    %1922 = vector.load %arg3[%c1_901, %c0_902, %c0_903] : memref<5x64x256xf32, #tpu.memory_space<vmem>>, vector<1x64x256xf32>
    %1923 = vector.shape_cast %1922 : vector<1x64x256xf32> to vector<64x256xf32>
    %cst_904 = arith.constant dense<0.000000e+00> : vector<8x256xf32>
    %1924 = tpu.matmul %1764, %1923, %cst_904 {dimension_numbers = #tpu.dot_dimension_numbers<[1], [0], [0], [1], [0, 0, 1, 1], [], []>} : vector<8x64xf32>, vector<64x256xf32>, vector<8x256xf32> -> vector<8x256xf32>
    %c1_905 = arith.constant 1 : index
    %c0_906 = arith.constant 0 : index
    %c0_907 = arith.constant 0 : index
    %1925 = vector.load %arg5[%c1_905, %c0_906, %c0_907] : memref<5x1x64xf32, #tpu.memory_space<vmem>>, vector<1x1x64xf32>
    %1926 = vector.shape_cast %1925 : vector<1x1x64xf32> to vector<1x64xf32>
    %1927 = vector.extract_strided_slice %1921 {offsets = [0, 0], sizes = [8, 128], strides = [1, 1]} : vector<8x256xf32> to vector<8x128xf32>
    %1928 = vector.extract_strided_slice %1924 {offsets = [0, 0], sizes = [8, 128], strides = [1, 1]} : vector<8x256xf32> to vector<8x128xf32>
    %1929 = arith.addf %1927, %1928 : vector<8x128xf32>
    %1930 = arith.negf %1929 : vector<8x128xf32>
    %1931 = math.exp %1930 : vector<8x128xf32>
    %cst_908 = arith.constant 1.000000e+00 : f32
    %1932 = vector.broadcast %cst_908 : f32 to vector<8x128xf32>
    %1933 = arith.addf %1932, %1931 : vector<8x128xf32>
    %1934 = arith.divf %1932, %1933 : vector<8x128xf32>
    %1935 = vector.extract_strided_slice %1934 {offsets = [0, 0], sizes = [8, 64], strides = [1, 1]} : vector<8x128xf32> to vector<8x64xf32>
    %c64_i32_909 = arith.constant 64 : i32
    %1936 = tpu.dynamic_rotate %1934 by %c64_i32_909 dim 1 : vector<8x128xf32>, i32 -> vector<8x128xf32>
    %1937 = vector.extract_strided_slice %1936 {offsets = [0, 0], sizes = [8, 64], strides = [1, 1]} : vector<8x128xf32> to vector<8x64xf32>
    %1938 = vector.extract_strided_slice %1924 {offsets = [0, 128], sizes = [8, 64], strides = [1, 1]} : vector<8x256xf32> to vector<8x64xf32>
    %1939 = vector.broadcast %1926 : vector<1x64xf32> to vector<8x64xf32>
    %1940 = arith.addf %1938, %1939 : vector<8x64xf32>
    %1941 = vector.extract_strided_slice %1921 {offsets = [0, 128], sizes = [8, 64], strides = [1, 1]} : vector<8x256xf32> to vector<8x64xf32>
    %1942 = arith.mulf %1935, %1940 : vector<8x64xf32>
    %1943 = arith.addf %1941, %1942 : vector<8x64xf32>
    %1944 = math.tanh %1943 : vector<8x64xf32>
    %1945 = arith.subf %1764, %1944 : vector<8x64xf32>
    %1946 = arith.mulf %1937, %1945 : vector<8x64xf32>
    %1947 = arith.addf %1944, %1946 : vector<8x64xf32>
    %c1_i32_910 = arith.constant 1 : i32
    %1948 = arith.cmpi sge, %c10_i32_877, %c1_i32_910 : i32
    %c9_i32_911 = arith.constant 9 : i32
    %1949 = arith.cmpi slt, %c10_i32_877, %c9_i32_911 : i32
    %1950 = arith.andi %1948, %1949 : i1
    %1951 = arith.select %1950, %1947, %1764 : vector<8x64xf32>
    %c1_912 = arith.constant 1 : index
    %c0_913 = arith.constant 0 : index
    %c0_914 = arith.constant 0 : index
    %1952 = vector.load %arg2[%c1_912, %c0_913, %c0_914] : memref<4x64x256xf32, #tpu.memory_space<vmem>>, vector<1x64x256xf32>
    %1953 = vector.shape_cast %1952 : vector<1x64x256xf32> to vector<64x256xf32>
    %cst_915 = arith.constant dense<0.000000e+00> : vector<8x256xf32>
    %1954 = tpu.matmul %1764, %1953, %cst_915 {dimension_numbers = #tpu.dot_dimension_numbers<[1], [0], [0], [1], [0, 0, 1, 1], [], []>} : vector<8x64xf32>, vector<64x256xf32>, vector<8x256xf32> -> vector<8x256xf32>
    %c2_916 = arith.constant 2 : index
    %c0_917 = arith.constant 0 : index
    %c0_918 = arith.constant 0 : index
    %1955 = vector.load %arg4[%c2_916, %c0_917, %c0_918] : memref<5x1x256xf32, #tpu.memory_space<vmem>>, vector<1x1x256xf32>
    %1956 = vector.shape_cast %1955 : vector<1x1x256xf32> to vector<1x256xf32>
    %1957 = vector.broadcast %1956 : vector<1x256xf32> to vector<8x256xf32>
    %1958 = arith.addf %1954, %1957 : vector<8x256xf32>
    %c2_919 = arith.constant 2 : index
    %c0_920 = arith.constant 0 : index
    %c0_921 = arith.constant 0 : index
    %1959 = vector.load %arg3[%c2_919, %c0_920, %c0_921] : memref<5x64x256xf32, #tpu.memory_space<vmem>>, vector<1x64x256xf32>
    %1960 = vector.shape_cast %1959 : vector<1x64x256xf32> to vector<64x256xf32>
    %cst_922 = arith.constant dense<0.000000e+00> : vector<8x256xf32>
    %1961 = tpu.matmul %1801, %1960, %cst_922 {dimension_numbers = #tpu.dot_dimension_numbers<[1], [0], [0], [1], [0, 0, 1, 1], [], []>} : vector<8x64xf32>, vector<64x256xf32>, vector<8x256xf32> -> vector<8x256xf32>
    %c2_923 = arith.constant 2 : index
    %c0_924 = arith.constant 0 : index
    %c0_925 = arith.constant 0 : index
    %1962 = vector.load %arg5[%c2_923, %c0_924, %c0_925] : memref<5x1x64xf32, #tpu.memory_space<vmem>>, vector<1x1x64xf32>
    %1963 = vector.shape_cast %1962 : vector<1x1x64xf32> to vector<1x64xf32>
    %1964 = vector.extract_strided_slice %1958 {offsets = [0, 0], sizes = [8, 128], strides = [1, 1]} : vector<8x256xf32> to vector<8x128xf32>
    %1965 = vector.extract_strided_slice %1961 {offsets = [0, 0], sizes = [8, 128], strides = [1, 1]} : vector<8x256xf32> to vector<8x128xf32>
    %1966 = arith.addf %1964, %1965 : vector<8x128xf32>
    %1967 = arith.negf %1966 : vector<8x128xf32>
    %1968 = math.exp %1967 : vector<8x128xf32>
    %cst_926 = arith.constant 1.000000e+00 : f32
    %1969 = vector.broadcast %cst_926 : f32 to vector<8x128xf32>
    %1970 = arith.addf %1969, %1968 : vector<8x128xf32>
    %1971 = arith.divf %1969, %1970 : vector<8x128xf32>
    %1972 = vector.extract_strided_slice %1971 {offsets = [0, 0], sizes = [8, 64], strides = [1, 1]} : vector<8x128xf32> to vector<8x64xf32>
    %c64_i32_927 = arith.constant 64 : i32
    %1973 = tpu.dynamic_rotate %1971 by %c64_i32_927 dim 1 : vector<8x128xf32>, i32 -> vector<8x128xf32>
    %1974 = vector.extract_strided_slice %1973 {offsets = [0, 0], sizes = [8, 64], strides = [1, 1]} : vector<8x128xf32> to vector<8x64xf32>
    %1975 = vector.extract_strided_slice %1961 {offsets = [0, 128], sizes = [8, 64], strides = [1, 1]} : vector<8x256xf32> to vector<8x64xf32>
    %1976 = vector.broadcast %1963 : vector<1x64xf32> to vector<8x64xf32>
    %1977 = arith.addf %1975, %1976 : vector<8x64xf32>
    %1978 = vector.extract_strided_slice %1958 {offsets = [0, 128], sizes = [8, 64], strides = [1, 1]} : vector<8x256xf32> to vector<8x64xf32>
    %1979 = arith.mulf %1972, %1977 : vector<8x64xf32>
    %1980 = arith.addf %1978, %1979 : vector<8x64xf32>
    %1981 = math.tanh %1980 : vector<8x64xf32>
    %1982 = arith.subf %1801, %1981 : vector<8x64xf32>
    %1983 = arith.mulf %1974, %1982 : vector<8x64xf32>
    %1984 = arith.addf %1981, %1983 : vector<8x64xf32>
    %c2_i32_928 = arith.constant 2 : i32
    %1985 = arith.cmpi sge, %c10_i32_877, %c2_i32_928 : i32
    %c10_i32_929 = arith.constant 10 : i32
    %1986 = arith.cmpi slt, %c10_i32_877, %c10_i32_929 : i32
    %1987 = arith.andi %1985, %1986 : i1
    %1988 = arith.select %1987, %1984, %1801 : vector<8x64xf32>
    %c2_930 = arith.constant 2 : index
    %c0_931 = arith.constant 0 : index
    %c0_932 = arith.constant 0 : index
    %1989 = vector.load %arg2[%c2_930, %c0_931, %c0_932] : memref<4x64x256xf32, #tpu.memory_space<vmem>>, vector<1x64x256xf32>
    %1990 = vector.shape_cast %1989 : vector<1x64x256xf32> to vector<64x256xf32>
    %cst_933 = arith.constant dense<0.000000e+00> : vector<8x256xf32>
    %1991 = tpu.matmul %1801, %1990, %cst_933 {dimension_numbers = #tpu.dot_dimension_numbers<[1], [0], [0], [1], [0, 0, 1, 1], [], []>} : vector<8x64xf32>, vector<64x256xf32>, vector<8x256xf32> -> vector<8x256xf32>
    %c3_934 = arith.constant 3 : index
    %c0_935 = arith.constant 0 : index
    %c0_936 = arith.constant 0 : index
    %1992 = vector.load %arg4[%c3_934, %c0_935, %c0_936] : memref<5x1x256xf32, #tpu.memory_space<vmem>>, vector<1x1x256xf32>
    %1993 = vector.shape_cast %1992 : vector<1x1x256xf32> to vector<1x256xf32>
    %1994 = vector.broadcast %1993 : vector<1x256xf32> to vector<8x256xf32>
    %1995 = arith.addf %1991, %1994 : vector<8x256xf32>
    %c3_937 = arith.constant 3 : index
    %c0_938 = arith.constant 0 : index
    %c0_939 = arith.constant 0 : index
    %1996 = vector.load %arg3[%c3_937, %c0_938, %c0_939] : memref<5x64x256xf32, #tpu.memory_space<vmem>>, vector<1x64x256xf32>
    %1997 = vector.shape_cast %1996 : vector<1x64x256xf32> to vector<64x256xf32>
    %cst_940 = arith.constant dense<0.000000e+00> : vector<8x256xf32>
    %1998 = tpu.matmul %1838, %1997, %cst_940 {dimension_numbers = #tpu.dot_dimension_numbers<[1], [0], [0], [1], [0, 0, 1, 1], [], []>} : vector<8x64xf32>, vector<64x256xf32>, vector<8x256xf32> -> vector<8x256xf32>
    %c3_941 = arith.constant 3 : index
    %c0_942 = arith.constant 0 : index
    %c0_943 = arith.constant 0 : index
    %1999 = vector.load %arg5[%c3_941, %c0_942, %c0_943] : memref<5x1x64xf32, #tpu.memory_space<vmem>>, vector<1x1x64xf32>
    %2000 = vector.shape_cast %1999 : vector<1x1x64xf32> to vector<1x64xf32>
    %2001 = vector.extract_strided_slice %1995 {offsets = [0, 0], sizes = [8, 128], strides = [1, 1]} : vector<8x256xf32> to vector<8x128xf32>
    %2002 = vector.extract_strided_slice %1998 {offsets = [0, 0], sizes = [8, 128], strides = [1, 1]} : vector<8x256xf32> to vector<8x128xf32>
    %2003 = arith.addf %2001, %2002 : vector<8x128xf32>
    %2004 = arith.negf %2003 : vector<8x128xf32>
    %2005 = math.exp %2004 : vector<8x128xf32>
    %cst_944 = arith.constant 1.000000e+00 : f32
    %2006 = vector.broadcast %cst_944 : f32 to vector<8x128xf32>
    %2007 = arith.addf %2006, %2005 : vector<8x128xf32>
    %2008 = arith.divf %2006, %2007 : vector<8x128xf32>
    %2009 = vector.extract_strided_slice %2008 {offsets = [0, 0], sizes = [8, 64], strides = [1, 1]} : vector<8x128xf32> to vector<8x64xf32>
    %c64_i32_945 = arith.constant 64 : i32
    %2010 = tpu.dynamic_rotate %2008 by %c64_i32_945 dim 1 : vector<8x128xf32>, i32 -> vector<8x128xf32>
    %2011 = vector.extract_strided_slice %2010 {offsets = [0, 0], sizes = [8, 64], strides = [1, 1]} : vector<8x128xf32> to vector<8x64xf32>
    %2012 = vector.extract_strided_slice %1998 {offsets = [0, 128], sizes = [8, 64], strides = [1, 1]} : vector<8x256xf32> to vector<8x64xf32>
    %2013 = vector.broadcast %2000 : vector<1x64xf32> to vector<8x64xf32>
    %2014 = arith.addf %2012, %2013 : vector<8x64xf32>
    %2015 = vector.extract_strided_slice %1995 {offsets = [0, 128], sizes = [8, 64], strides = [1, 1]} : vector<8x256xf32> to vector<8x64xf32>
    %2016 = arith.mulf %2009, %2014 : vector<8x64xf32>
    %2017 = arith.addf %2015, %2016 : vector<8x64xf32>
    %2018 = math.tanh %2017 : vector<8x64xf32>
    %2019 = arith.subf %1838, %2018 : vector<8x64xf32>
    %2020 = arith.mulf %2011, %2019 : vector<8x64xf32>
    %2021 = arith.addf %2018, %2020 : vector<8x64xf32>
    %c3_i32_946 = arith.constant 3 : i32
    %2022 = arith.cmpi sge, %c10_i32_877, %c3_i32_946 : i32
    %c11_i32_947 = arith.constant 11 : i32
    %2023 = arith.cmpi slt, %c10_i32_877, %c11_i32_947 : i32
    %2024 = arith.andi %2022, %2023 : i1
    %2025 = arith.select %2024, %2021, %1838 : vector<8x64xf32>
    %c3_948 = arith.constant 3 : index
    %c0_949 = arith.constant 0 : index
    %c0_950 = arith.constant 0 : index
    %2026 = vector.load %arg2[%c3_948, %c0_949, %c0_950] : memref<4x64x256xf32, #tpu.memory_space<vmem>>, vector<1x64x256xf32>
    %2027 = vector.shape_cast %2026 : vector<1x64x256xf32> to vector<64x256xf32>
    %cst_951 = arith.constant dense<0.000000e+00> : vector<8x256xf32>
    %2028 = tpu.matmul %1838, %2027, %cst_951 {dimension_numbers = #tpu.dot_dimension_numbers<[1], [0], [0], [1], [0, 0, 1, 1], [], []>} : vector<8x64xf32>, vector<64x256xf32>, vector<8x256xf32> -> vector<8x256xf32>
    %c4_952 = arith.constant 4 : index
    %c0_953 = arith.constant 0 : index
    %c0_954 = arith.constant 0 : index
    %2029 = vector.load %arg4[%c4_952, %c0_953, %c0_954] : memref<5x1x256xf32, #tpu.memory_space<vmem>>, vector<1x1x256xf32>
    %2030 = vector.shape_cast %2029 : vector<1x1x256xf32> to vector<1x256xf32>
    %2031 = vector.broadcast %2030 : vector<1x256xf32> to vector<8x256xf32>
    %2032 = arith.addf %2028, %2031 : vector<8x256xf32>
    %c4_955 = arith.constant 4 : index
    %c0_956 = arith.constant 0 : index
    %c0_957 = arith.constant 0 : index
    %2033 = vector.load %arg3[%c4_955, %c0_956, %c0_957] : memref<5x64x256xf32, #tpu.memory_space<vmem>>, vector<1x64x256xf32>
    %2034 = vector.shape_cast %2033 : vector<1x64x256xf32> to vector<64x256xf32>
    %cst_958 = arith.constant dense<0.000000e+00> : vector<8x256xf32>
    %2035 = tpu.matmul %1875, %2034, %cst_958 {dimension_numbers = #tpu.dot_dimension_numbers<[1], [0], [0], [1], [0, 0, 1, 1], [], []>} : vector<8x64xf32>, vector<64x256xf32>, vector<8x256xf32> -> vector<8x256xf32>
    %c4_959 = arith.constant 4 : index
    %c0_960 = arith.constant 0 : index
    %c0_961 = arith.constant 0 : index
    %2036 = vector.load %arg5[%c4_959, %c0_960, %c0_961] : memref<5x1x64xf32, #tpu.memory_space<vmem>>, vector<1x1x64xf32>
    %2037 = vector.shape_cast %2036 : vector<1x1x64xf32> to vector<1x64xf32>
    %2038 = vector.extract_strided_slice %2032 {offsets = [0, 0], sizes = [8, 128], strides = [1, 1]} : vector<8x256xf32> to vector<8x128xf32>
    %2039 = vector.extract_strided_slice %2035 {offsets = [0, 0], sizes = [8, 128], strides = [1, 1]} : vector<8x256xf32> to vector<8x128xf32>
    %2040 = arith.addf %2038, %2039 : vector<8x128xf32>
    %2041 = arith.negf %2040 : vector<8x128xf32>
    %2042 = math.exp %2041 : vector<8x128xf32>
    %cst_962 = arith.constant 1.000000e+00 : f32
    %2043 = vector.broadcast %cst_962 : f32 to vector<8x128xf32>
    %2044 = arith.addf %2043, %2042 : vector<8x128xf32>
    %2045 = arith.divf %2043, %2044 : vector<8x128xf32>
    %2046 = vector.extract_strided_slice %2045 {offsets = [0, 0], sizes = [8, 64], strides = [1, 1]} : vector<8x128xf32> to vector<8x64xf32>
    %c64_i32_963 = arith.constant 64 : i32
    %2047 = tpu.dynamic_rotate %2045 by %c64_i32_963 dim 1 : vector<8x128xf32>, i32 -> vector<8x128xf32>
    %2048 = vector.extract_strided_slice %2047 {offsets = [0, 0], sizes = [8, 64], strides = [1, 1]} : vector<8x128xf32> to vector<8x64xf32>
    %2049 = vector.extract_strided_slice %2035 {offsets = [0, 128], sizes = [8, 64], strides = [1, 1]} : vector<8x256xf32> to vector<8x64xf32>
    %2050 = vector.broadcast %2037 : vector<1x64xf32> to vector<8x64xf32>
    %2051 = arith.addf %2049, %2050 : vector<8x64xf32>
    %2052 = vector.extract_strided_slice %2032 {offsets = [0, 128], sizes = [8, 64], strides = [1, 1]} : vector<8x256xf32> to vector<8x64xf32>
    %2053 = arith.mulf %2046, %2051 : vector<8x64xf32>
    %2054 = arith.addf %2052, %2053 : vector<8x64xf32>
    %2055 = math.tanh %2054 : vector<8x64xf32>
    %2056 = arith.subf %1875, %2055 : vector<8x64xf32>
    %2057 = arith.mulf %2048, %2056 : vector<8x64xf32>
    %2058 = arith.addf %2055, %2057 : vector<8x64xf32>
    %c4_i32_964 = arith.constant 4 : i32
    %2059 = arith.cmpi sge, %c10_i32_877, %c4_i32_964 : i32
    %c12_i32_965 = arith.constant 12 : i32
    %2060 = arith.cmpi slt, %c10_i32_877, %c12_i32_965 : i32
    %2061 = arith.andi %2059, %2060 : i1
    %2062 = arith.select %2061, %2058, %1875 : vector<8x64xf32>
    %c11_i32_966 = arith.constant 11 : i32
    %c7_i32_967 = arith.constant 7 : i32
    %2063 = arith.minsi %c11_i32_966, %c7_i32_967 : i32
    %2064 = arith.index_cast %2063 : i32 to index
    %c0_968 = arith.constant 0 : index
    %c0_969 = arith.constant 0 : index
    %2065 = vector.load %arg0[%2064, %c0_968, %c0_969] : memref<8x8x1xf32, #tpu.memory_space<vmem>>, vector<1x8x1xf32>
    %2066 = vector.shape_cast %2065 : vector<1x8x1xf32> to vector<8x1xf32>
    %2067 = vector.broadcast %2066 : vector<8x1xf32> to vector<8x256xf32>
    %2068 = vector.broadcast %0 : vector<1x256xf32> to vector<8x256xf32>
    %2069 = arith.mulf %2067, %2068 : vector<8x256xf32>
    %c0_970 = arith.constant 0 : index
    %c0_971 = arith.constant 0 : index
    %c0_972 = arith.constant 0 : index
    %2070 = vector.load %arg4[%c0_970, %c0_971, %c0_972] : memref<5x1x256xf32, #tpu.memory_space<vmem>>, vector<1x1x256xf32>
    %2071 = vector.shape_cast %2070 : vector<1x1x256xf32> to vector<1x256xf32>
    %2072 = vector.broadcast %2071 : vector<1x256xf32> to vector<8x256xf32>
    %2073 = arith.addf %2069, %2072 : vector<8x256xf32>
    %c0_973 = arith.constant 0 : index
    %c0_974 = arith.constant 0 : index
    %c0_975 = arith.constant 0 : index
    %2074 = vector.load %arg3[%c0_973, %c0_974, %c0_975] : memref<5x64x256xf32, #tpu.memory_space<vmem>>, vector<1x64x256xf32>
    %2075 = vector.shape_cast %2074 : vector<1x64x256xf32> to vector<64x256xf32>
    %cst_976 = arith.constant dense<0.000000e+00> : vector<8x256xf32>
    %2076 = tpu.matmul %1914, %2075, %cst_976 {dimension_numbers = #tpu.dot_dimension_numbers<[1], [0], [0], [1], [0, 0, 1, 1], [], []>} : vector<8x64xf32>, vector<64x256xf32>, vector<8x256xf32> -> vector<8x256xf32>
    %c0_977 = arith.constant 0 : index
    %c0_978 = arith.constant 0 : index
    %c0_979 = arith.constant 0 : index
    %2077 = vector.load %arg5[%c0_977, %c0_978, %c0_979] : memref<5x1x64xf32, #tpu.memory_space<vmem>>, vector<1x1x64xf32>
    %2078 = vector.shape_cast %2077 : vector<1x1x64xf32> to vector<1x64xf32>
    %2079 = vector.extract_strided_slice %2073 {offsets = [0, 0], sizes = [8, 128], strides = [1, 1]} : vector<8x256xf32> to vector<8x128xf32>
    %2080 = vector.extract_strided_slice %2076 {offsets = [0, 0], sizes = [8, 128], strides = [1, 1]} : vector<8x256xf32> to vector<8x128xf32>
    %2081 = arith.addf %2079, %2080 : vector<8x128xf32>
    %2082 = arith.negf %2081 : vector<8x128xf32>
    %2083 = math.exp %2082 : vector<8x128xf32>
    %cst_980 = arith.constant 1.000000e+00 : f32
    %2084 = vector.broadcast %cst_980 : f32 to vector<8x128xf32>
    %2085 = arith.addf %2084, %2083 : vector<8x128xf32>
    %2086 = arith.divf %2084, %2085 : vector<8x128xf32>
    %2087 = vector.extract_strided_slice %2086 {offsets = [0, 0], sizes = [8, 64], strides = [1, 1]} : vector<8x128xf32> to vector<8x64xf32>
    %c64_i32_981 = arith.constant 64 : i32
    %2088 = tpu.dynamic_rotate %2086 by %c64_i32_981 dim 1 : vector<8x128xf32>, i32 -> vector<8x128xf32>
    %2089 = vector.extract_strided_slice %2088 {offsets = [0, 0], sizes = [8, 64], strides = [1, 1]} : vector<8x128xf32> to vector<8x64xf32>
    %2090 = vector.extract_strided_slice %2076 {offsets = [0, 128], sizes = [8, 64], strides = [1, 1]} : vector<8x256xf32> to vector<8x64xf32>
    %2091 = vector.broadcast %2078 : vector<1x64xf32> to vector<8x64xf32>
    %2092 = arith.addf %2090, %2091 : vector<8x64xf32>
    %2093 = vector.extract_strided_slice %2073 {offsets = [0, 128], sizes = [8, 64], strides = [1, 1]} : vector<8x256xf32> to vector<8x64xf32>
    %2094 = arith.mulf %2087, %2092 : vector<8x64xf32>
    %2095 = arith.addf %2093, %2094 : vector<8x64xf32>
    %2096 = math.tanh %2095 : vector<8x64xf32>
    %2097 = arith.subf %1914, %2096 : vector<8x64xf32>
    %2098 = arith.mulf %2089, %2097 : vector<8x64xf32>
    %2099 = arith.addf %2096, %2098 : vector<8x64xf32>
    %c8_i32_982 = arith.constant 8 : i32
    %2100 = arith.cmpi slt, %c11_i32_966, %c8_i32_982 : i32
    %2101 = arith.select %2100, %2099, %1914 : vector<8x64xf32>
    %c0_983 = arith.constant 0 : index
    %c0_984 = arith.constant 0 : index
    %c0_985 = arith.constant 0 : index
    %2102 = vector.load %arg2[%c0_983, %c0_984, %c0_985] : memref<4x64x256xf32, #tpu.memory_space<vmem>>, vector<1x64x256xf32>
    %2103 = vector.shape_cast %2102 : vector<1x64x256xf32> to vector<64x256xf32>
    %cst_986 = arith.constant dense<0.000000e+00> : vector<8x256xf32>
    %2104 = tpu.matmul %1914, %2103, %cst_986 {dimension_numbers = #tpu.dot_dimension_numbers<[1], [0], [0], [1], [0, 0, 1, 1], [], []>} : vector<8x64xf32>, vector<64x256xf32>, vector<8x256xf32> -> vector<8x256xf32>
    %c1_987 = arith.constant 1 : index
    %c0_988 = arith.constant 0 : index
    %c0_989 = arith.constant 0 : index
    %2105 = vector.load %arg4[%c1_987, %c0_988, %c0_989] : memref<5x1x256xf32, #tpu.memory_space<vmem>>, vector<1x1x256xf32>
    %2106 = vector.shape_cast %2105 : vector<1x1x256xf32> to vector<1x256xf32>
    %2107 = vector.broadcast %2106 : vector<1x256xf32> to vector<8x256xf32>
    %2108 = arith.addf %2104, %2107 : vector<8x256xf32>
    %c1_990 = arith.constant 1 : index
    %c0_991 = arith.constant 0 : index
    %c0_992 = arith.constant 0 : index
    %2109 = vector.load %arg3[%c1_990, %c0_991, %c0_992] : memref<5x64x256xf32, #tpu.memory_space<vmem>>, vector<1x64x256xf32>
    %2110 = vector.shape_cast %2109 : vector<1x64x256xf32> to vector<64x256xf32>
    %cst_993 = arith.constant dense<0.000000e+00> : vector<8x256xf32>
    %2111 = tpu.matmul %1951, %2110, %cst_993 {dimension_numbers = #tpu.dot_dimension_numbers<[1], [0], [0], [1], [0, 0, 1, 1], [], []>} : vector<8x64xf32>, vector<64x256xf32>, vector<8x256xf32> -> vector<8x256xf32>
    %c1_994 = arith.constant 1 : index
    %c0_995 = arith.constant 0 : index
    %c0_996 = arith.constant 0 : index
    %2112 = vector.load %arg5[%c1_994, %c0_995, %c0_996] : memref<5x1x64xf32, #tpu.memory_space<vmem>>, vector<1x1x64xf32>
    %2113 = vector.shape_cast %2112 : vector<1x1x64xf32> to vector<1x64xf32>
    %2114 = vector.extract_strided_slice %2108 {offsets = [0, 0], sizes = [8, 128], strides = [1, 1]} : vector<8x256xf32> to vector<8x128xf32>
    %2115 = vector.extract_strided_slice %2111 {offsets = [0, 0], sizes = [8, 128], strides = [1, 1]} : vector<8x256xf32> to vector<8x128xf32>
    %2116 = arith.addf %2114, %2115 : vector<8x128xf32>
    %2117 = arith.negf %2116 : vector<8x128xf32>
    %2118 = math.exp %2117 : vector<8x128xf32>
    %cst_997 = arith.constant 1.000000e+00 : f32
    %2119 = vector.broadcast %cst_997 : f32 to vector<8x128xf32>
    %2120 = arith.addf %2119, %2118 : vector<8x128xf32>
    %2121 = arith.divf %2119, %2120 : vector<8x128xf32>
    %2122 = vector.extract_strided_slice %2121 {offsets = [0, 0], sizes = [8, 64], strides = [1, 1]} : vector<8x128xf32> to vector<8x64xf32>
    %c64_i32_998 = arith.constant 64 : i32
    %2123 = tpu.dynamic_rotate %2121 by %c64_i32_998 dim 1 : vector<8x128xf32>, i32 -> vector<8x128xf32>
    %2124 = vector.extract_strided_slice %2123 {offsets = [0, 0], sizes = [8, 64], strides = [1, 1]} : vector<8x128xf32> to vector<8x64xf32>
    %2125 = vector.extract_strided_slice %2111 {offsets = [0, 128], sizes = [8, 64], strides = [1, 1]} : vector<8x256xf32> to vector<8x64xf32>
    %2126 = vector.broadcast %2113 : vector<1x64xf32> to vector<8x64xf32>
    %2127 = arith.addf %2125, %2126 : vector<8x64xf32>
    %2128 = vector.extract_strided_slice %2108 {offsets = [0, 128], sizes = [8, 64], strides = [1, 1]} : vector<8x256xf32> to vector<8x64xf32>
    %2129 = arith.mulf %2122, %2127 : vector<8x64xf32>
    %2130 = arith.addf %2128, %2129 : vector<8x64xf32>
    %2131 = math.tanh %2130 : vector<8x64xf32>
    %2132 = arith.subf %1951, %2131 : vector<8x64xf32>
    %2133 = arith.mulf %2124, %2132 : vector<8x64xf32>
    %2134 = arith.addf %2131, %2133 : vector<8x64xf32>
    %c1_i32_999 = arith.constant 1 : i32
    %2135 = arith.cmpi sge, %c11_i32_966, %c1_i32_999 : i32
    %c9_i32_1000 = arith.constant 9 : i32
    %2136 = arith.cmpi slt, %c11_i32_966, %c9_i32_1000 : i32
    %2137 = arith.andi %2135, %2136 : i1
    %2138 = arith.select %2137, %2134, %1951 : vector<8x64xf32>
    %c1_1001 = arith.constant 1 : index
    %c0_1002 = arith.constant 0 : index
    %c0_1003 = arith.constant 0 : index
    %2139 = vector.load %arg2[%c1_1001, %c0_1002, %c0_1003] : memref<4x64x256xf32, #tpu.memory_space<vmem>>, vector<1x64x256xf32>
    %2140 = vector.shape_cast %2139 : vector<1x64x256xf32> to vector<64x256xf32>
    %cst_1004 = arith.constant dense<0.000000e+00> : vector<8x256xf32>
    %2141 = tpu.matmul %1951, %2140, %cst_1004 {dimension_numbers = #tpu.dot_dimension_numbers<[1], [0], [0], [1], [0, 0, 1, 1], [], []>} : vector<8x64xf32>, vector<64x256xf32>, vector<8x256xf32> -> vector<8x256xf32>
    %c2_1005 = arith.constant 2 : index
    %c0_1006 = arith.constant 0 : index
    %c0_1007 = arith.constant 0 : index
    %2142 = vector.load %arg4[%c2_1005, %c0_1006, %c0_1007] : memref<5x1x256xf32, #tpu.memory_space<vmem>>, vector<1x1x256xf32>
    %2143 = vector.shape_cast %2142 : vector<1x1x256xf32> to vector<1x256xf32>
    %2144 = vector.broadcast %2143 : vector<1x256xf32> to vector<8x256xf32>
    %2145 = arith.addf %2141, %2144 : vector<8x256xf32>
    %c2_1008 = arith.constant 2 : index
    %c0_1009 = arith.constant 0 : index
    %c0_1010 = arith.constant 0 : index
    %2146 = vector.load %arg3[%c2_1008, %c0_1009, %c0_1010] : memref<5x64x256xf32, #tpu.memory_space<vmem>>, vector<1x64x256xf32>
    %2147 = vector.shape_cast %2146 : vector<1x64x256xf32> to vector<64x256xf32>
    %cst_1011 = arith.constant dense<0.000000e+00> : vector<8x256xf32>
    %2148 = tpu.matmul %1988, %2147, %cst_1011 {dimension_numbers = #tpu.dot_dimension_numbers<[1], [0], [0], [1], [0, 0, 1, 1], [], []>} : vector<8x64xf32>, vector<64x256xf32>, vector<8x256xf32> -> vector<8x256xf32>
    %c2_1012 = arith.constant 2 : index
    %c0_1013 = arith.constant 0 : index
    %c0_1014 = arith.constant 0 : index
    %2149 = vector.load %arg5[%c2_1012, %c0_1013, %c0_1014] : memref<5x1x64xf32, #tpu.memory_space<vmem>>, vector<1x1x64xf32>
    %2150 = vector.shape_cast %2149 : vector<1x1x64xf32> to vector<1x64xf32>
    %2151 = vector.extract_strided_slice %2145 {offsets = [0, 0], sizes = [8, 128], strides = [1, 1]} : vector<8x256xf32> to vector<8x128xf32>
    %2152 = vector.extract_strided_slice %2148 {offsets = [0, 0], sizes = [8, 128], strides = [1, 1]} : vector<8x256xf32> to vector<8x128xf32>
    %2153 = arith.addf %2151, %2152 : vector<8x128xf32>
    %2154 = arith.negf %2153 : vector<8x128xf32>
    %2155 = math.exp %2154 : vector<8x128xf32>
    %cst_1015 = arith.constant 1.000000e+00 : f32
    %2156 = vector.broadcast %cst_1015 : f32 to vector<8x128xf32>
    %2157 = arith.addf %2156, %2155 : vector<8x128xf32>
    %2158 = arith.divf %2156, %2157 : vector<8x128xf32>
    %2159 = vector.extract_strided_slice %2158 {offsets = [0, 0], sizes = [8, 64], strides = [1, 1]} : vector<8x128xf32> to vector<8x64xf32>
    %c64_i32_1016 = arith.constant 64 : i32
    %2160 = tpu.dynamic_rotate %2158 by %c64_i32_1016 dim 1 : vector<8x128xf32>, i32 -> vector<8x128xf32>
    %2161 = vector.extract_strided_slice %2160 {offsets = [0, 0], sizes = [8, 64], strides = [1, 1]} : vector<8x128xf32> to vector<8x64xf32>
    %2162 = vector.extract_strided_slice %2148 {offsets = [0, 128], sizes = [8, 64], strides = [1, 1]} : vector<8x256xf32> to vector<8x64xf32>
    %2163 = vector.broadcast %2150 : vector<1x64xf32> to vector<8x64xf32>
    %2164 = arith.addf %2162, %2163 : vector<8x64xf32>
    %2165 = vector.extract_strided_slice %2145 {offsets = [0, 128], sizes = [8, 64], strides = [1, 1]} : vector<8x256xf32> to vector<8x64xf32>
    %2166 = arith.mulf %2159, %2164 : vector<8x64xf32>
    %2167 = arith.addf %2165, %2166 : vector<8x64xf32>
    %2168 = math.tanh %2167 : vector<8x64xf32>
    %2169 = arith.subf %1988, %2168 : vector<8x64xf32>
    %2170 = arith.mulf %2161, %2169 : vector<8x64xf32>
    %2171 = arith.addf %2168, %2170 : vector<8x64xf32>
    %c2_i32_1017 = arith.constant 2 : i32
    %2172 = arith.cmpi sge, %c11_i32_966, %c2_i32_1017 : i32
    %c10_i32_1018 = arith.constant 10 : i32
    %2173 = arith.cmpi slt, %c11_i32_966, %c10_i32_1018 : i32
    %2174 = arith.andi %2172, %2173 : i1
    %2175 = arith.select %2174, %2171, %1988 : vector<8x64xf32>
    %c2_1019 = arith.constant 2 : index
    %c0_1020 = arith.constant 0 : index
    %c0_1021 = arith.constant 0 : index
    %2176 = vector.load %arg2[%c2_1019, %c0_1020, %c0_1021] : memref<4x64x256xf32, #tpu.memory_space<vmem>>, vector<1x64x256xf32>
    %2177 = vector.shape_cast %2176 : vector<1x64x256xf32> to vector<64x256xf32>
    %cst_1022 = arith.constant dense<0.000000e+00> : vector<8x256xf32>
    %2178 = tpu.matmul %1988, %2177, %cst_1022 {dimension_numbers = #tpu.dot_dimension_numbers<[1], [0], [0], [1], [0, 0, 1, 1], [], []>} : vector<8x64xf32>, vector<64x256xf32>, vector<8x256xf32> -> vector<8x256xf32>
    %c3_1023 = arith.constant 3 : index
    %c0_1024 = arith.constant 0 : index
    %c0_1025 = arith.constant 0 : index
    %2179 = vector.load %arg4[%c3_1023, %c0_1024, %c0_1025] : memref<5x1x256xf32, #tpu.memory_space<vmem>>, vector<1x1x256xf32>
    %2180 = vector.shape_cast %2179 : vector<1x1x256xf32> to vector<1x256xf32>
    %2181 = vector.broadcast %2180 : vector<1x256xf32> to vector<8x256xf32>
    %2182 = arith.addf %2178, %2181 : vector<8x256xf32>
    %c3_1026 = arith.constant 3 : index
    %c0_1027 = arith.constant 0 : index
    %c0_1028 = arith.constant 0 : index
    %2183 = vector.load %arg3[%c3_1026, %c0_1027, %c0_1028] : memref<5x64x256xf32, #tpu.memory_space<vmem>>, vector<1x64x256xf32>
    %2184 = vector.shape_cast %2183 : vector<1x64x256xf32> to vector<64x256xf32>
    %cst_1029 = arith.constant dense<0.000000e+00> : vector<8x256xf32>
    %2185 = tpu.matmul %2025, %2184, %cst_1029 {dimension_numbers = #tpu.dot_dimension_numbers<[1], [0], [0], [1], [0, 0, 1, 1], [], []>} : vector<8x64xf32>, vector<64x256xf32>, vector<8x256xf32> -> vector<8x256xf32>
    %c3_1030 = arith.constant 3 : index
    %c0_1031 = arith.constant 0 : index
    %c0_1032 = arith.constant 0 : index
    %2186 = vector.load %arg5[%c3_1030, %c0_1031, %c0_1032] : memref<5x1x64xf32, #tpu.memory_space<vmem>>, vector<1x1x64xf32>
    %2187 = vector.shape_cast %2186 : vector<1x1x64xf32> to vector<1x64xf32>
    %2188 = vector.extract_strided_slice %2182 {offsets = [0, 0], sizes = [8, 128], strides = [1, 1]} : vector<8x256xf32> to vector<8x128xf32>
    %2189 = vector.extract_strided_slice %2185 {offsets = [0, 0], sizes = [8, 128], strides = [1, 1]} : vector<8x256xf32> to vector<8x128xf32>
    %2190 = arith.addf %2188, %2189 : vector<8x128xf32>
    %2191 = arith.negf %2190 : vector<8x128xf32>
    %2192 = math.exp %2191 : vector<8x128xf32>
    %cst_1033 = arith.constant 1.000000e+00 : f32
    %2193 = vector.broadcast %cst_1033 : f32 to vector<8x128xf32>
    %2194 = arith.addf %2193, %2192 : vector<8x128xf32>
    %2195 = arith.divf %2193, %2194 : vector<8x128xf32>
    %2196 = vector.extract_strided_slice %2195 {offsets = [0, 0], sizes = [8, 64], strides = [1, 1]} : vector<8x128xf32> to vector<8x64xf32>
    %c64_i32_1034 = arith.constant 64 : i32
    %2197 = tpu.dynamic_rotate %2195 by %c64_i32_1034 dim 1 : vector<8x128xf32>, i32 -> vector<8x128xf32>
    %2198 = vector.extract_strided_slice %2197 {offsets = [0, 0], sizes = [8, 64], strides = [1, 1]} : vector<8x128xf32> to vector<8x64xf32>
    %2199 = vector.extract_strided_slice %2185 {offsets = [0, 128], sizes = [8, 64], strides = [1, 1]} : vector<8x256xf32> to vector<8x64xf32>
    %2200 = vector.broadcast %2187 : vector<1x64xf32> to vector<8x64xf32>
    %2201 = arith.addf %2199, %2200 : vector<8x64xf32>
    %2202 = vector.extract_strided_slice %2182 {offsets = [0, 128], sizes = [8, 64], strides = [1, 1]} : vector<8x256xf32> to vector<8x64xf32>
    %2203 = arith.mulf %2196, %2201 : vector<8x64xf32>
    %2204 = arith.addf %2202, %2203 : vector<8x64xf32>
    %2205 = math.tanh %2204 : vector<8x64xf32>
    %2206 = arith.subf %2025, %2205 : vector<8x64xf32>
    %2207 = arith.mulf %2198, %2206 : vector<8x64xf32>
    %2208 = arith.addf %2205, %2207 : vector<8x64xf32>
    %c3_i32_1035 = arith.constant 3 : i32
    %2209 = arith.cmpi sge, %c11_i32_966, %c3_i32_1035 : i32
    %c11_i32_1036 = arith.constant 11 : i32
    %2210 = arith.cmpi slt, %c11_i32_966, %c11_i32_1036 : i32
    %2211 = arith.andi %2209, %2210 : i1
    %2212 = arith.select %2211, %2208, %2025 : vector<8x64xf32>
    %c3_1037 = arith.constant 3 : index
    %c0_1038 = arith.constant 0 : index
    %c0_1039 = arith.constant 0 : index
    %2213 = vector.load %arg2[%c3_1037, %c0_1038, %c0_1039] : memref<4x64x256xf32, #tpu.memory_space<vmem>>, vector<1x64x256xf32>
    %2214 = vector.shape_cast %2213 : vector<1x64x256xf32> to vector<64x256xf32>
    %cst_1040 = arith.constant dense<0.000000e+00> : vector<8x256xf32>
    %2215 = tpu.matmul %2025, %2214, %cst_1040 {dimension_numbers = #tpu.dot_dimension_numbers<[1], [0], [0], [1], [0, 0, 1, 1], [], []>} : vector<8x64xf32>, vector<64x256xf32>, vector<8x256xf32> -> vector<8x256xf32>
    %c4_1041 = arith.constant 4 : index
    %c0_1042 = arith.constant 0 : index
    %c0_1043 = arith.constant 0 : index
    %2216 = vector.load %arg4[%c4_1041, %c0_1042, %c0_1043] : memref<5x1x256xf32, #tpu.memory_space<vmem>>, vector<1x1x256xf32>
    %2217 = vector.shape_cast %2216 : vector<1x1x256xf32> to vector<1x256xf32>
    %2218 = vector.broadcast %2217 : vector<1x256xf32> to vector<8x256xf32>
    %2219 = arith.addf %2215, %2218 : vector<8x256xf32>
    %c4_1044 = arith.constant 4 : index
    %c0_1045 = arith.constant 0 : index
    %c0_1046 = arith.constant 0 : index
    %2220 = vector.load %arg3[%c4_1044, %c0_1045, %c0_1046] : memref<5x64x256xf32, #tpu.memory_space<vmem>>, vector<1x64x256xf32>
    %2221 = vector.shape_cast %2220 : vector<1x64x256xf32> to vector<64x256xf32>
    %cst_1047 = arith.constant dense<0.000000e+00> : vector<8x256xf32>
    %2222 = tpu.matmul %2062, %2221, %cst_1047 {dimension_numbers = #tpu.dot_dimension_numbers<[1], [0], [0], [1], [0, 0, 1, 1], [], []>} : vector<8x64xf32>, vector<64x256xf32>, vector<8x256xf32> -> vector<8x256xf32>
    %c4_1048 = arith.constant 4 : index
    %c0_1049 = arith.constant 0 : index
    %c0_1050 = arith.constant 0 : index
    %2223 = vector.load %arg5[%c4_1048, %c0_1049, %c0_1050] : memref<5x1x64xf32, #tpu.memory_space<vmem>>, vector<1x1x64xf32>
    %2224 = vector.shape_cast %2223 : vector<1x1x64xf32> to vector<1x64xf32>
    %2225 = vector.extract_strided_slice %2219 {offsets = [0, 0], sizes = [8, 128], strides = [1, 1]} : vector<8x256xf32> to vector<8x128xf32>
    %2226 = vector.extract_strided_slice %2222 {offsets = [0, 0], sizes = [8, 128], strides = [1, 1]} : vector<8x256xf32> to vector<8x128xf32>
    %2227 = arith.addf %2225, %2226 : vector<8x128xf32>
    %2228 = arith.negf %2227 : vector<8x128xf32>
    %2229 = math.exp %2228 : vector<8x128xf32>
    %cst_1051 = arith.constant 1.000000e+00 : f32
    %2230 = vector.broadcast %cst_1051 : f32 to vector<8x128xf32>
    %2231 = arith.addf %2230, %2229 : vector<8x128xf32>
    %2232 = arith.divf %2230, %2231 : vector<8x128xf32>
    %2233 = vector.extract_strided_slice %2232 {offsets = [0, 0], sizes = [8, 64], strides = [1, 1]} : vector<8x128xf32> to vector<8x64xf32>
    %c64_i32_1052 = arith.constant 64 : i32
    %2234 = tpu.dynamic_rotate %2232 by %c64_i32_1052 dim 1 : vector<8x128xf32>, i32 -> vector<8x128xf32>
    %2235 = vector.extract_strided_slice %2234 {offsets = [0, 0], sizes = [8, 64], strides = [1, 1]} : vector<8x128xf32> to vector<8x64xf32>
    %2236 = vector.extract_strided_slice %2222 {offsets = [0, 128], sizes = [8, 64], strides = [1, 1]} : vector<8x256xf32> to vector<8x64xf32>
    %2237 = vector.broadcast %2224 : vector<1x64xf32> to vector<8x64xf32>
    %2238 = arith.addf %2236, %2237 : vector<8x64xf32>
    %2239 = vector.extract_strided_slice %2219 {offsets = [0, 128], sizes = [8, 64], strides = [1, 1]} : vector<8x256xf32> to vector<8x64xf32>
    %2240 = arith.mulf %2233, %2238 : vector<8x64xf32>
    %2241 = arith.addf %2239, %2240 : vector<8x64xf32>
    %2242 = math.tanh %2241 : vector<8x64xf32>
    %2243 = arith.subf %2062, %2242 : vector<8x64xf32>
    %2244 = arith.mulf %2235, %2243 : vector<8x64xf32>
    %2245 = arith.addf %2242, %2244 : vector<8x64xf32>
    %c4_i32_1053 = arith.constant 4 : i32
    %2246 = arith.cmpi sge, %c11_i32_966, %c4_i32_1053 : i32
    %c12_i32_1054 = arith.constant 12 : i32
    %2247 = arith.cmpi slt, %c11_i32_966, %c12_i32_1054 : i32
    %2248 = arith.andi %2246, %2247 : i1
    %2249 = arith.select %2248, %2245, %2062 : vector<8x64xf32>
    %c12_i32_1055 = arith.constant 12 : i32
    %cst_1056 = arith.constant 0.000000e+00 : f32
    %2250 = vector.broadcast %cst_1056 : f32 to vector<8x64xf32>
    %2251 = arith.maximumf %2249, %2250 : vector<8x64xf32>
    %c0_1057 = arith.constant 0 : index
    %c0_1058 = arith.constant 0 : index
    %2252 = vector.load %arg6[%c0_1057, %c0_1058] : memref<64x128xf32, #tpu.memory_space<vmem>>, vector<64x128xf32>
    %cst_1059 = arith.constant dense<0.000000e+00> : vector<8x128xf32>
    %2253 = tpu.matmul %2251, %2252, %cst_1059 {dimension_numbers = #tpu.dot_dimension_numbers<[1], [0], [0], [1], [0, 0, 1, 1], [], []>} : vector<8x64xf32>, vector<64x128xf32>, vector<8x128xf32> -> vector<8x128xf32>
    %c0_1060 = arith.constant 0 : index
    %c0_1061 = arith.constant 0 : index
    %2254 = vector.load %arg7[%c0_1060, %c0_1061] : memref<1x128xf32, #tpu.memory_space<vmem>>, vector<1x128xf32>
    %2255 = vector.broadcast %2254 : vector<1x128xf32> to vector<8x128xf32>
    %2256 = arith.addf %2253, %2255 : vector<8x128xf32>
    %c0_1062 = arith.constant 0 : index
    %c0_1063 = arith.constant 0 : index
    %2257 = vector.load %arg8[%c0_1062, %c0_1063] : memref<8x128xf32, #tpu.memory_space<vmem>>, vector<8x128xf32>
    tpu.vector_store %arg8[%c0_1062, %c0_1063], %2256 {strides = array<i32>} : memref<8x128xf32, #tpu.memory_space<vmem>>, vector<8x128xf32>,
    return
  }
}

</mosaic_0001>

<llo_original>
// kernel: tpu_custom_call.1
$region0: #{tpu_custom_call.1}
  #allocation0 [shape = 'u32[]', space=smem, size = 0x4, offset = 0x4, fixed_abs, tag = 'smem constant byte address 0x4 - core index']
  #allocation1 [shape = 'u32[72,128]{1,0:T(1,128)}', space=vmem, size = 0x9000, scoped, tag = 'internal scratch']
  %s0 = inlined_call_operand.vmem [shape: f32[8,8,1], index: 0, kind: input, shape index: {}]
  %s1 = inlined_call_operand.vmem [shape: f32[1,256], index: 1, kind: input, shape index: {}]
  %s2 = inlined_call_operand.hbm [shape: f32[4,64,256], index: 2, kind: input, shape index: {}]
  %s3 = inlined_call_operand.hbm [shape: f32[5,64,256], index: 3, kind: input, shape index: {}]
  %s4 = inlined_call_operand.vmem [shape: f32[5,1,256], index: 4, kind: input, shape index: {}]
  %s5 = inlined_call_operand.hbm [shape: f32[5,1,64], index: 5, kind: input, shape index: {}]
  %s6 = inlined_call_operand.vmem [shape: f32[64,128], index: 6, kind: input, shape index: {}]
  %s7 = inlined_call_operand.vmem [shape: f32[1,128], index: 7, kind: input, shape index: {}]
  %s8 = inlined_call_operand.hbm [shape: f32[8,128], index: 8, kind: output, shape index: {}]
  %s9 = sld [smem:[#allocation0]]
  $region54: #{tpu_custom_call.1} parent=0
    _
  %s11 = ssub.s32 1, %s9
  %s12 = scalar_select 0, %s11, %s9
  $region1: #{tpu_custom_call.1} parent=0
    #allocation2 [shape = 'u8[262144]{0}', space=vmem, size = 0x40000, scoped, tag = 'input window, operand 2, single buffered']
    #allocation3 [shape = 's32[1]{0}', space=sflag, size = 0x4, scoped, tag = 'scoped memory for tpu_custom_call.1']
    #allocation4 [shape = 's32[1]{0}', space=sflag, size = 0x4, scoped, tag = 'scoped memory for tpu_custom_call.1']
    #allocation5 [shape = 'u8[327680]{0}', space=vmem, size = 0x50000, scoped, tag = 'input window, operand 3, single buffered']
    #allocation6 [shape = 's32[1]{0}', space=sflag, size = 0x4, scoped, tag = 'scoped memory for tpu_custom_call.1']
    #allocation7 [shape = 'u8[2560]{0}', space=vmem, size = 0xc00, scoped, tag = 'input window, operand 5, single buffered']
    #allocation8 [shape = 'u8[4096]{0}', space=vmem, size = 0x1000, scoped, tag = 'output window, operand 0, single buffered']
    %13 = vsyncpa [#allocation3], 0
    %14 = vsyncpa [#allocation6], 0
    %15 = vsyncpa [#allocation4], 0
    // Predicated region
    $region2: #{tpu_custom_call.1} parent=1 // pred_check
      _
    $region3: #{tpu_custom_call.1} parent=1 // pred_check_branch
      %17 = sbr.rel (0) target = $region5
    $region4: #{tpu_custom_call.1} parent=1 // pred_region
      _
    $region5: #{tpu_custom_call.1} parent=1 // pred_fallthru
      _
    // Predicated region
    $region6: #{tpu_custom_call.1} parent=1 // pred_check
      _
    $region7: #{tpu_custom_call.1} parent=1 // pred_check_branch
      %19 = sbr.rel (0) target = $region9
    $region8: #{tpu_custom_call.1} parent=1 // pred_region
      _
    $region9: #{tpu_custom_call.1} parent=1 // pred_fallthru
      _
    // Predicated region
    $region10: #{tpu_custom_call.1} parent=1 // pred_check
      _
    $region11: #{tpu_custom_call.1} parent=1 // pred_check_branch
      %21 = sbr.rel (0) target = $region13
    $region12: #{tpu_custom_call.1} parent=1 // pred_region
      %23 = vsyncadd [#allocation3], 0
      %s24 = sshll.u32 %s2, 4
      %s25 = int_to_ptr.hbm [resolvable:$true] %s24
      %s26 = sshll.u32 [#allocation2], 4
      %s27 = int_to_ptr.vmem [resolvable:$true] %s26
      %32 = dma.hbm_to_vmem [thread:$0]  %s25, 8192, %s27, [#allocation3], 256, 256, 16
    $region13: #{tpu_custom_call.1} parent=1 // pred_fallthru
      _
    // Predicated region
    $region14: #{tpu_custom_call.1} parent=1 // pred_check
      _
    $region15: #{tpu_custom_call.1} parent=1 // pred_check_branch
      %34 = sbr.rel (0) target = $region17
    $region16: #{tpu_custom_call.1} parent=1 // pred_region
      %36 = vsyncadd [#allocation6], 0
      %s37 = sshll.u32 %s3, 4
      %s38 = int_to_ptr.hbm [resolvable:$true] %s37
      %s39 = sshll.u32 [#allocation5], 4
      %s40 = int_to_ptr.vmem [resolvable:$true] %s39
      %45 = dma.hbm_to_vmem [thread:$0]  %s38, 10240, %s40, [#allocation6], 256, 256, 16
    $region17: #{tpu_custom_call.1} parent=1 // pred_fallthru
      _
    // Predicated region
    $region18: #{tpu_custom_call.1} parent=1 // pred_check
      _
    $region19: #{tpu_custom_call.1} parent=1 // pred_check_branch
      %47 = sbr.rel (0) target = $region21
    $region20: #{tpu_custom_call.1} parent=1 // pred_region
      _
    $region21: #{tpu_custom_call.1} parent=1 // pred_fallthru
      _
    // Predicated region
    $region22: #{tpu_custom_call.1} parent=1 // pred_check
      _
    $region23: #{tpu_custom_call.1} parent=1 // pred_check_branch
      %49 = sbr.rel (0) target = $region25
    $region24: #{tpu_custom_call.1} parent=1 // pred_region
      %51 = vsyncadd [#allocation6], 0
      %s52 = sshll.u32 %s5, 4
      %s53 = int_to_ptr.hbm [resolvable:$true] %s52
      %s54 = sshll.u32 [#allocation7], 4
      %s55 = int_to_ptr.vmem [resolvable:$true] %s54
      %60 = dma.hbm_to_vmem [thread:$0]  %s53, 80, %s55, [#allocation6], 16, 16, 1
    $region25: #{tpu_custom_call.1} parent=1 // pred_fallthru
      _
    // Predicated region
    $region26: #{tpu_custom_call.1} parent=1 // pred_check
      _
    $region27: #{tpu_custom_call.1} parent=1 // pred_check_branch
      %62 = sbr.rel (0) target = $region29
    $region28: #{tpu_custom_call.1} parent=1 // pred_region
      _
    $region29: #{tpu_custom_call.1} parent=1 // pred_fallthru
      _
    // Predicated region
    $region30: #{tpu_custom_call.1} parent=1 // pred_check
      _
    $region31: #{tpu_custom_call.1} parent=1 // pred_check_branch
      %64 = sbr.rel (0) target = $region33
    $region32: #{tpu_custom_call.1} parent=1 // pred_region
      _
    $region33: #{tpu_custom_call.1} parent=1 // pred_fallthru
      _
    // Predicated region
    $region34: #{tpu_custom_call.1} parent=1 // pred_check
      _
    $region35: #{tpu_custom_call.1} parent=1 // pred_check_branch
      %66 = sbr.rel (0) target = $region37
    $region36: #{tpu_custom_call.1} parent=1 // pred_region
      %68 = dma.done [#allocation3], 8192
    $region37: #{tpu_custom_call.1} parent=1 // pred_fallthru
      _
    // Predicated region
    $region38: #{tpu_custom_call.1} parent=1 // pred_check
      _
    $region39: #{tpu_custom_call.1} parent=1 // pred_check_branch
      %70 = sbr.rel (0) target = $region41
    $region40: #{tpu_custom_call.1} parent=1 // pred_region
      %72 = dma.done [#allocation6], 10240
    $region41: #{tpu_custom_call.1} parent=1 // pred_fallthru
      _
    // Predicated region
    $region42: #{tpu_custom_call.1} parent=1 // pred_check
      _
    $region43: #{tpu_custom_call.1} parent=1 // pred_check_branch
      %74 = sbr.rel (0) target = $region45
    $region44: #{tpu_custom_call.1} parent=1 // pred_region
      %76 = dma.done [#allocation6], 80
    $region45: #{tpu_custom_call.1} parent=1 // pred_fallthru
      _
    %v77 = vld [vmem:[%s1] sm:$0x3]
    %v78 = vld [vmem:[%s0] sm:$0xff]
    %80 = vset.pattern.permute.xlu0 0
    %81 = vperm.xlu0 %80, %v78
    %v82 = vpop.permute.xlu0 %81
    %v85 = vperm.slane %v77, 0
    %v86 = vperm.slane %v77, 1
    %v89 = vmul.f32 %v82, %v85
    %v90 = vmul.f32 %v82, %v86
    %v91 = vld [vmem:[%s4] sm:$0x3]
    %v93 = vperm.slane %v91, 0
    %v94 = vperm.slane %v91, 1
    %v97 = vadd.f32 %v89, %v93
    %v98 = vadd.f32 %v90, %v94
    %v99 = vld [vmem:[#allocation5] sm:$0xff]
    %v100 = vld [vmem:[#allocation5 + $0x8] sm:$0xff]
    %v101 = vld [vmem:[#allocation5 + $0x10] sm:$0xff]
    %v102 = vld [vmem:[#allocation5 + $0x18] sm:$0xff]
    %v103 = vld [vmem:[#allocation5 + $0x20] sm:$0xff]
    %v104 = vld [vmem:[#allocation5 + $0x28] sm:$0xff]
    %v105 = vld [vmem:[#allocation5 + $0x30] sm:$0xff]
    %v106 = vld [vmem:[#allocation5 + $0x38] sm:$0xff]
    %v107 = vld [vmem:[#allocation5 + $0x40] sm:$0xff]
    %v108 = vld [vmem:[#allocation5 + $0x48] sm:$0xff]
    %v109 = vld [vmem:[#allocation5 + $0x50] sm:$0xff]
    %v110 = vld [vmem:[#allocation5 + $0x58] sm:$0xff]
    %v111 = vld [vmem:[#allocation5 + $0x60] sm:$0xff]
    %v112 = vld [vmem:[#allocation5 + $0x68] sm:$0xff]
    %v113 = vld [vmem:[#allocation5 + $0x70] sm:$0xff]
    %v114 = vld [vmem:[#allocation5 + $0x78] sm:$0xff]
    %vm115 = vcmask 523264
    %v117 = vsel %vm115, 0.0, 0
    %119 = vmatpush.msra.mxu0 0.0
    %120 = vmatpush.msra.mxu0 0.0
    %121 = vmatpush.msra.mxu0 0.0
    %122 = vmatpush.msra.mxu0 0.0
    %123 = vmatpush.msra.mxu0 0.0
    %124 = vmatpush.msra.mxu0 0.0
    %125 = vmatpush.msra.mxu0 0.0
    %126 = vmatpush.msra.mxu0 0.0
    %127 = vmatpush.msra.mxu0 %v113
    %128 = vmatpush.msra.mxu0 %v111
    %129 = vmatpush.msra.mxu0 %v109
    %130 = vmatpush.msra.mxu0 %v107
    %131 = vmatpush.msra.mxu0 %v105
    %132 = vmatpush.msra.mxu0 %v103
    %133 = vmatpush.msra.mxu0 %v101
    %134 = vmatpush.msra.mxu0 %v99
    %135 = vmatmul.f32.gmra.mxu0 %v117
    %v136 = vpop.f32.mrf.mxu0
    %v137 = vadd.f32 0.0, %v136
    %138 = vdwg.mxu0
    %139 = vmatpush.msra.mxu0 0.0
    %140 = vmatpush.msra.mxu0 0.0
    %141 = vmatpush.msra.mxu0 0.0
    %142 = vmatpush.msra.mxu0 0.0
    %143 = vmatpush.msra.mxu0 0.0
    %144 = vmatpush.msra.mxu0 0.0
    %145 = vmatpush.msra.mxu0 0.0
    %146 = vmatpush.msra.mxu0 0.0
    %147 = vmatpush.msra.mxu0 %v114
    %148 = vmatpush.msra.mxu0 %v112
    %149 = vmatpush.msra.mxu0 %v110
    %150 = vmatpush.msra.mxu0 %v108
    %151 = vmatpush.msra.mxu0 %v106
    %152 = vmatpush.msra.mxu0 %v104
    %153 = vmatpush.msra.mxu0 %v102
    %154 = vmatpush.msra.mxu0 %v100
    %155 = vmatmul.f32.gmra.mxu0 %v117
    %v156 = vpop.f32.mrf.mxu0
    %v157 = vadd.f32 0.0, %v156
    %158 = vdwg.mxu0
    %v159 = vld [vmem:[#allocation7] sm:$0x1]
    %v160 = vadd.f32 %v97, %v137
    %v161 = vxor.u32 %v160, 2147483648
    %v162 = vmul.f32 %v161, 1.442695
    %v163 = vpow.pop %v162
    %v164 = vadd.f32 %v163, 1.0
    %v165 = vrcp.pop %v164
    %v166 = vmul.f32 %v164, %v165
    %v167 = vsub.f32 1.0, %v166
    %v168 = vmul.f32 %v165, %v167
    %v169 = vadd.f32 %v165, %v168
    %vm170 = vweird.f32 %v164
    %vm171 = vweird.f32 %v165
    %vm172 = vmor %vm170, %vm171
    %v173 = vsel %vm172, %v165, %v169
    %v174 = vand.u32 2147483647, %v164
    %vm175 = vcmp.eq.f32.partialorder %v174, 8.507059e+37
    %v176 = vand.u32 %v164, 2147483648
    %v177 = vor.u32 1.1754944e-38, %v176
    %v178 = vsel %vm175, %v177, %v173
    %v179 = vmul.f32 1.0, %v178
    %180 = vrot.lane.b32.xlu0 %v179, 64
    %v181 = vpop.permute.xlu0 %180
    %v183 = vperm.slane %v159, 0
    %v185 = vadd.f32 %v157, %v183
    %v186 = vmul.f32 %v179, %v185
    %v187 = vadd.f32 %v98, %v186
    %v188 = vtanh.pop %v187
    %v189 = vsub.f32 0.0, %v188
    %v190 = vmul.f32 %v181, %v189
    %v191 = vadd.f32 %v188, %v190
    %s192 = scalar_lea.vmem %s0, 8
    %v193 = vld [vmem:[%s192] sm:$0xff]
    %195 = vset.pattern.permute.xlu0 0
    %196 = vperm.xlu0 %195, %v193
    %v197 = vpop.permute.xlu0 %196
    %v199 = vmul.f32 %v197, %v85
    %v200 = vmul.f32 %v197, %v86
    %v201 = vadd.f32 %v199, %v93
    %v202 = vadd.f32 %v200, %v94
    %v204 = vsel %vm115, %v191, 0
    %206 = vmatpush.msra.mxu0 0.0
    %207 = vmatpush.msra.mxu0 0.0
    %208 = vmatpush.msra.mxu0 0.0
    %209 = vmatpush.msra.mxu0 0.0
    %210 = vmatpush.msra.mxu0 0.0
    %211 = vmatpush.msra.mxu0 0.0
    %212 = vmatpush.msra.mxu0 0.0
    %213 = vmatpush.msra.mxu0 0.0
    %214 = vmatpush.msra.mxu0 %v113
    %215 = vmatpush.msra.mxu0 %v111
    %216 = vmatpush.msra.mxu0 %v109
    %217 = vmatpush.msra.mxu0 %v107
    %218 = vmatpush.msra.mxu0 %v105
    %219 = vmatpush.msra.mxu0 %v103
    %220 = vmatpush.msra.mxu0 %v101
    %221 = vmatpush.msra.mxu0 %v99
    %222 = vmatmul.f32.gmra.mxu0 %v204
    %v223 = vpop.f32.mrf.mxu0
    %v224 = vadd.f32 0.0, %v223
    %225 = vdwg.mxu0
    %226 = vmatpush.msra.mxu0 0.0
    %227 = vmatpush.msra.mxu0 0.0
    %228 = vmatpush.msra.mxu0 0.0
    %229 = vmatpush.msra.mxu0 0.0
    %230 = vmatpush.msra.mxu0 0.0
    %231 = vmatpush.msra.mxu0 0.0
    %232 = vmatpush.msra.mxu0 0.0
    %233 = vmatpush.msra.mxu0 0.0
    %234 = vmatpush.msra.mxu0 %v114
    %235 = vmatpush.msra.mxu0 %v112
    %236 = vmatpush.msra.mxu0 %v110
    %237 = vmatpush.msra.mxu0 %v108
    %238 = vmatpush.msra.mxu0 %v106
    %239 = vmatpush.msra.mxu0 %v104
    %240 = vmatpush.msra.mxu0 %v102
    %241 = vmatpush.msra.mxu0 %v100
    %242 = vmatmul.f32.gmra.mxu0 %v204
    %v243 = vpop.f32.mrf.mxu0
    %v244 = vadd.f32 0.0, %v243
    %245 = vdwg.mxu0
    %v246 = vadd.f32 %v201, %v224
    %v247 = vxor.u32 %v246, 2147483648
    %v248 = vmul.f32 %v247, 1.442695
    %v249 = vpow.pop %v248
    %v250 = vadd.f32 %v249, 1.0
    %v251 = vrcp.pop %v250
    %v252 = vmul.f32 %v250, %v251
    %v253 = vsub.f32 1.0, %v252
    %v254 = vmul.f32 %v251, %v253
    %v255 = vadd.f32 %v251, %v254
    %vm256 = vweird.f32 %v250
    %vm257 = vweird.f32 %v251
    %vm258 = vmor %vm256, %vm257
    %v259 = vsel %vm258, %v251, %v255
    %v260 = vand.u32 2147483647, %v250
    %vm261 = vcmp.eq.f32.partialorder %v260, 8.507059e+37
    %v262 = vand.u32 %v250, 2147483648
    %v263 = vor.u32 1.1754944e-38, %v262
    %v264 = vsel %vm261, %v263, %v259
    %v265 = vmul.f32 1.0, %v264
    %266 = vrot.lane.b32.xlu0 %v265, 64
    %v267 = vpop.permute.xlu0 %266
    %v268 = vadd.f32 %v244, %v183
    %v269 = vmul.f32 %v265, %v268
    %v270 = vadd.f32 %v202, %v269
    %v271 = vtanh.pop %v270
    %v272 = vsub.f32 %v191, %v271
    %v273 = vmul.f32 %v267, %v272
    %v274 = vadd.f32 %v271, %v273
    %v275 = vld [vmem:[#allocation2] sm:$0xff]
    %v276 = vld [vmem:[#allocation2 + $0x8] sm:$0xff]
    %v277 = vld [vmem:[#allocation2 + $0x10] sm:$0xff]
    %v278 = vld [vmem:[#allocation2 + $0x18] sm:$0xff]
    %v279 = vld [vmem:[#allocation2 + $0x20] sm:$0xff]
    %v280 = vld [vmem:[#allocation2 + $0x28] sm:$0xff]
    %v281 = vld [vmem:[#allocation2 + $0x30] sm:$0xff]
    %v282 = vld [vmem:[#allocation2 + $0x38] sm:$0xff]
    %v283 = vld [vmem:[#allocation2 + $0x40] sm:$0xff]
    %v284 = vld [vmem:[#allocation2 + $0x48] sm:$0xff]
    %v285 = vld [vmem:[#allocation2 + $0x50] sm:$0xff]
    %v286 = vld [vmem:[#allocation2 + $0x58] sm:$0xff]
    %v287 = vld [vmem:[#allocation2 + $0x60] sm:$0xff]
    %v288 = vld [vmem:[#allocation2 + $0x68] sm:$0xff]
    %v289 = vld [vmem:[#allocation2 + $0x70] sm:$0xff]
    %v290 = vld [vmem:[#allocation2 + $0x78] sm:$0xff]
    %s291 = scalar_lea.vmem %s4, 2
    %v292 = vld [vmem:[%s291] sm:$0x3]
    %v294 = vperm.slane %v292, 0
    %v295 = vperm.slane %v292, 1
    %298 = vmatpush.msra.mxu0 0.0
    %299 = vmatpush.msra.mxu0 0.0
    %300 = vmatpush.msra.mxu0 0.0
    %301 = vmatpush.msra.mxu0 0.0
    %302 = vmatpush.msra.mxu0 0.0
    %303 = vmatpush.msra.mxu0 0.0
    %304 = vmatpush.msra.mxu0 0.0
    %305 = vmatpush.msra.mxu0 0.0
    %306 = vmatpush.msra.mxu0 %v289
    %307 = vmatpush.msra.mxu0 %v287
    %308 = vmatpush.msra.mxu0 %v285
    %309 = vmatpush.msra.mxu0 %v283
    %310 = vmatpush.msra.mxu0 %v281
    %311 = vmatpush.msra.mxu0 %v279
    %312 = vmatpush.msra.mxu0 %v277
    %313 = vmatpush.msra.mxu0 %v275
    %314 = vmatmul.f32.gmra.mxu0 %v204
    %v315 = vpop.f32.mrf.mxu0
    %v316 = vadd.f32 %v294, %v315
    %317 = vdwg.mxu0
    %318 = vmatpush.msra.mxu0 0.0
    %319 = vmatpush.msra.mxu0 0.0
    %320 = vmatpush.msra.mxu0 0.0
    %321 = vmatpush.msra.mxu0 0.0
    %322 = vmatpush.msra.mxu0 0.0
    %323 = vmatpush.msra.mxu0 0.0
    %324 = vmatpush.msra.mxu0 0.0
    %325 = vmatpush.msra.mxu0 0.0
    %326 = vmatpush.msra.mxu0 %v290
    %327 = vmatpush.msra.mxu0 %v288
    %328 = vmatpush.msra.mxu0 %v286
    %329 = vmatpush.msra.mxu0 %v284
    %330 = vmatpush.msra.mxu0 %v282
    %331 = vmatpush.msra.mxu0 %v280
    %332 = vmatpush.msra.mxu0 %v278
    %333 = vmatpush.msra.mxu0 %v276
    %334 = vmatmul.f32.gmra.mxu0 %v204
    %v335 = vpop.f32.mrf.mxu0
    %v336 = vadd.f32 %v295, %v335
    %337 = vdwg.mxu0
    %s338 = scalar_lea.vmem [#allocation5], 128
    %v339 = vld [vmem:[%s338] sm:$0xff]
    %v340 = vld [vmem:[%s338 + $0x8] sm:$0xff]
    %v341 = vld [vmem:[%s338 + $0x10] sm:$0xff]
    %v342 = vld [vmem:[%s338 + $0x18] sm:$0xff]
    %v343 = vld [vmem:[%s338 + $0x20] sm:$0xff]
    %v344 = vld [vmem:[%s338 + $0x28] sm:$0xff]
    %v345 = vld [vmem:[%s338 + $0x30] sm:$0xff]
    %v346 = vld [vmem:[%s338 + $0x38] sm:$0xff]
    %v347 = vld [vmem:[%s338 + $0x40] sm:$0xff]
    %v348 = vld [vmem:[%s338 + $0x48] sm:$0xff]
    %v349 = vld [vmem:[%s338 + $0x50] sm:$0xff]
    %v350 = vld [vmem:[%s338 + $0x58] sm:$0xff]
    %v351 = vld [vmem:[%s338 + $0x60] sm:$0xff]
    %v352 = vld [vmem:[%s338 + $0x68] sm:$0xff]
    %v353 = vld [vmem:[%s338 + $0x70] sm:$0xff]
    %v354 = vld [vmem:[%s338 + $0x78] sm:$0xff]
    %355 = vmatpush.msra.mxu0 0.0
    %356 = vmatpush.msra.mxu0 0.0
    %357 = vmatpush.msra.mxu0 0.0
    %358 = vmatpush.msra.mxu0 0.0
    %359 = vmatpush.msra.mxu0 0.0
    %360 = vmatpush.msra.mxu0 0.0
    %361 = vmatpush.msra.mxu0 0.0
    %362 = vmatpush.msra.mxu0 0.0
    %363 = vmatpush.msra.mxu0 %v353
    %364 = vmatpush.msra.mxu0 %v351
    %365 = vmatpush.msra.mxu0 %v349
    %366 = vmatpush.msra.mxu0 %v347
    %367 = vmatpush.msra.mxu0 %v345
    %368 = vmatpush.msra.mxu0 %v343
    %369 = vmatpush.msra.mxu0 %v341
    %370 = vmatpush.msra.mxu0 %v339
    %371 = vmatmul.f32.gmra.mxu0 %v117
    %v372 = vpop.f32.mrf.mxu0
    %v373 = vadd.f32 0.0, %v372
    %374 = vdwg.mxu0
    %375 = vmatpush.msra.mxu0 0.0
    %376 = vmatpush.msra.mxu0 0.0
    %377 = vmatpush.msra.mxu0 0.0
    %378 = vmatpush.msra.mxu0 0.0
    %379 = vmatpush.msra.mxu0 0.0
    %380 = vmatpush.msra.mxu0 0.0
    %381 = vmatpush.msra.mxu0 0.0
    %382 = vmatpush.msra.mxu0 0.0
    %383 = vmatpush.msra.mxu0 %v354
    %384 = vmatpush.msra.mxu0 %v352
    %385 = vmatpush.msra.mxu0 %v350
    %386 = vmatpush.msra.mxu0 %v348
    %387 = vmatpush.msra.mxu0 %v346
    %388 = vmatpush.msra.mxu0 %v344
    %389 = vmatpush.msra.mxu0 %v342
    %390 = vmatpush.msra.mxu0 %v340
    %391 = vmatmul.f32.gmra.mxu0 %v117
    %v392 = vpop.f32.mrf.mxu0
    %v393 = vadd.f32 0.0, %v392
    %394 = vdwg.mxu0
    %s395 = scalar_lea.vmem [#allocation7], 1
    %v396 = vld [vmem:[%s395] sm:$0x1]
    %v397 = vadd.f32 %v316, %v373
    %v398 = vxor.u32 %v397, 2147483648
    %v399 = vmul.f32 %v398, 1.442695
    %v400 = vpow.pop %v399
    %v401 = vadd.f32 %v400, 1.0
    %v402 = vrcp.pop %v401
    %v403 = vmul.f32 %v401, %v402
    %v404 = vsub.f32 1.0, %v403
    %v405 = vmul.f32 %v402, %v404
    %v406 = vadd.f32 %v402, %v405
    %vm407 = vweird.f32 %v401
    %vm408 = vweird.f32 %v402
    %vm409 = vmor %vm407, %vm408
    %v410 = vsel %vm409, %v402, %v406
    %v411 = vand.u32 2147483647, %v401
    %vm412 = vcmp.eq.f32.partialorder %v411, 8.507059e+37
    %v413 = vand.u32 %v401, 2147483648
    %v414 = vor.u32 1.1754944e-38, %v413
    %v415 = vsel %vm412, %v414, %v410
    %v416 = vmul.f32 1.0, %v415
    %417 = vrot.lane.b32.xlu0 %v416, 64
    %v418 = vpop.permute.xlu0 %417
    %v420 = vperm.slane %v396, 0
    %v422 = vadd.f32 %v393, %v420
    %v423 = vmul.f32 %v416, %v422
    %v424 = vadd.f32 %v336, %v423
    %v425 = vtanh.pop %v424
    %v426 = vsub.f32 0.0, %v425
    %v427 = vmul.f32 %v418, %v426
    %v428 = vadd.f32 %v425, %v427
    %s429 = scalar_lea.vmem %s0, 16
    %v430 = vld [vmem:[%s429] sm:$0xff]
    %432 = vset.pattern.permute.xlu0 0
    %433 = vperm.xlu0 %432, %v430
    %v434 = vpop.permute.xlu0 %433
    %v436 = vmul.f32 %v434, %v85
    %v437 = vmul.f32 %v434, %v86
    %v438 = vadd.f32 %v436, %v93
    %v439 = vadd.f32 %v437, %v94
    %v441 = vsel %vm115, %v274, 0
    %443 = vmatpush.msra.mxu0 0.0
    %444 = vmatpush.msra.mxu0 0.0
    %445 = vmatpush.msra.mxu0 0.0
    %446 = vmatpush.msra.mxu0 0.0
    %447 = vmatpush.msra.mxu0 0.0
    %448 = vmatpush.msra.mxu0 0.0
    %449 = vmatpush.msra.mxu0 0.0
    %450 = vmatpush.msra.mxu0 0.0
    %451 = vmatpush.msra.mxu0 %v113
    %452 = vmatpush.msra.mxu0 %v111
    %453 = vmatpush.msra.mxu0 %v109
    %454 = vmatpush.msra.mxu0 %v107
    %455 = vmatpush.msra.mxu0 %v105
    %456 = vmatpush.msra.mxu0 %v103
    %457 = vmatpush.msra.mxu0 %v101
    %458 = vmatpush.msra.mxu0 %v99
    %459 = vmatmul.f32.gmra.mxu0 %v441
    %v460 = vpop.f32.mrf.mxu0
    %v461 = vadd.f32 0.0, %v460
    %462 = vdwg.mxu0
    %463 = vmatpush.msra.mxu0 0.0
    %464 = vmatpush.msra.mxu0 0.0
    %465 = vmatpush.msra.mxu0 0.0
    %466 = vmatpush.msra.mxu0 0.0
    %467 = vmatpush.msra.mxu0 0.0
    %468 = vmatpush.msra.mxu0 0.0
    %469 = vmatpush.msra.mxu0 0.0
    %470 = vmatpush.msra.mxu0 0.0
    %471 = vmatpush.msra.mxu0 %v114
    %472 = vmatpush.msra.mxu0 %v112
    %473 = vmatpush.msra.mxu0 %v110
    %474 = vmatpush.msra.mxu0 %v108
    %475 = vmatpush.msra.mxu0 %v106
    %476 = vmatpush.msra.mxu0 %v104
    %477 = vmatpush.msra.mxu0 %v102
    %478 = vmatpush.msra.mxu0 %v100
    %479 = vmatmul.f32.gmra.mxu0 %v441
    %v480 = vpop.f32.mrf.mxu0
    %v481 = vadd.f32 0.0, %v480
    %482 = vdwg.mxu0
    %v483 = vadd.f32 %v438, %v461
    %v484 = vxor.u32 %v483, 2147483648
    %v485 = vmul.f32 %v484, 1.442695
    %v486 = vpow.pop %v485
    %v487 = vadd.f32 %v486, 1.0
    %v488 = vrcp.pop %v487
    %v489 = vmul.f32 %v487, %v488
    %v490 = vsub.f32 1.0, %v489
    %v491 = vmul.f32 %v488, %v490
    %v492 = vadd.f32 %v488, %v491
    %vm493 = vweird.f32 %v487
    %vm494 = vweird.f32 %v488
    %vm495 = vmor %vm493, %vm494
    %v496 = vsel %vm495, %v488, %v492
    %v497 = vand.u32 2147483647, %v487
    %vm498 = vcmp.eq.f32.partialorder %v497, 8.507059e+37
    %v499 = vand.u32 %v487, 2147483648
    %v500 = vor.u32 1.1754944e-38, %v499
    %v501 = vsel %vm498, %v500, %v496
    %v502 = vmul.f32 1.0, %v501
    %503 = vrot.lane.b32.xlu0 %v502, 64
    %v504 = vpop.permute.xlu0 %503
    %v505 = vadd.f32 %v481, %v183
    %v506 = vmul.f32 %v502, %v505
    %v507 = vadd.f32 %v439, %v506
    %v508 = vtanh.pop %v507
    %v509 = vsub.f32 %v274, %v508
    %v510 = vmul.f32 %v504, %v509
    %v511 = vadd.f32 %v508, %v510
    %512 = vmatpush.msra.mxu0 0.0
    %513 = vmatpush.msra.mxu0 0.0
    %514 = vmatpush.msra.mxu0 0.0
    %515 = vmatpush.msra.mxu0 0.0
    %516 = vmatpush.msra.mxu0 0.0
    %517 = vmatpush.msra.mxu0 0.0
    %518 = vmatpush.msra.mxu0 0.0
    %519 = vmatpush.msra.mxu0 0.0
    %520 = vmatpush.msra.mxu0 %v289
    %521 = vmatpush.msra.mxu0 %v287
    %522 = vmatpush.msra.mxu0 %v285
    %523 = vmatpush.msra.mxu0 %v283
    %524 = vmatpush.msra.mxu0 %v281
    %525 = vmatpush.msra.mxu0 %v279
    %526 = vmatpush.msra.mxu0 %v277
    %527 = vmatpush.msra.mxu0 %v275
    %528 = vmatmul.f32.gmra.mxu0 %v441
    %v529 = vpop.f32.mrf.mxu0
    %v530 = vadd.f32 %v294, %v529
    %531 = vdwg.mxu0
    %532 = vmatpush.msra.mxu0 0.0
    %533 = vmatpush.msra.mxu0 0.0
    %534 = vmatpush.msra.mxu0 0.0
    %535 = vmatpush.msra.mxu0 0.0
    %536 = vmatpush.msra.mxu0 0.0
    %537 = vmatpush.msra.mxu0 0.0
    %538 = vmatpush.msra.mxu0 0.0
    %539 = vmatpush.msra.mxu0 0.0
    %540 = vmatpush.msra.mxu0 %v290
    %541 = vmatpush.msra.mxu0 %v288
    %542 = vmatpush.msra.mxu0 %v286
    %543 = vmatpush.msra.mxu0 %v284
    %544 = vmatpush.msra.mxu0 %v282
    %545 = vmatpush.msra.mxu0 %v280
    %546 = vmatpush.msra.mxu0 %v278
    %547 = vmatpush.msra.mxu0 %v276
    %548 = vmatmul.f32.gmra.mxu0 %v441
    %v549 = vpop.f32.mrf.mxu0
    %v550 = vadd.f32 %v295, %v549
    %551 = vdwg.mxu0
    %v553 = vsel %vm115, %v428, 0
    %555 = vmatpush.msra.mxu0 0.0
    %556 = vmatpush.msra.mxu0 0.0
    %557 = vmatpush.msra.mxu0 0.0
    %558 = vmatpush.msra.mxu0 0.0
    %559 = vmatpush.msra.mxu0 0.0
    %560 = vmatpush.msra.mxu0 0.0
    %561 = vmatpush.msra.mxu0 0.0
    %562 = vmatpush.msra.mxu0 0.0
    %563 = vmatpush.msra.mxu0 %v353
    %564 = vmatpush.msra.mxu0 %v351
    %565 = vmatpush.msra.mxu0 %v349
    %566 = vmatpush.msra.mxu0 %v347
    %567 = vmatpush.msra.mxu0 %v345
    %568 = vmatpush.msra.mxu0 %v343
    %569 = vmatpush.msra.mxu0 %v341
    %570 = vmatpush.msra.mxu0 %v339
    %571 = vmatmul.f32.gmra.mxu0 %v553
    %v572 = vpop.f32.mrf.mxu0
    %v573 = vadd.f32 0.0, %v572
    %574 = vdwg.mxu0
    %575 = vmatpush.msra.mxu0 0.0
    %576 = vmatpush.msra.mxu0 0.0
    %577 = vmatpush.msra.mxu0 0.0
    %578 = vmatpush.msra.mxu0 0.0
    %579 = vmatpush.msra.mxu0 0.0
    %580 = vmatpush.msra.mxu0 0.0
    %581 = vmatpush.msra.mxu0 0.0
    %582 = vmatpush.msra.mxu0 0.0
    %583 = vmatpush.msra.mxu0 %v354
    %584 = vmatpush.msra.mxu0 %v352
    %585 = vmatpush.msra.mxu0 %v350
    %586 = vmatpush.msra.mxu0 %v348
    %587 = vmatpush.msra.mxu0 %v346
    %588 = vmatpush.msra.mxu0 %v344
    %589 = vmatpush.msra.mxu0 %v342
    %590 = vmatpush.msra.mxu0 %v340
    %591 = vmatmul.f32.gmra.mxu0 %v553
    %v592 = vpop.f32.mrf.mxu0
    %v593 = vadd.f32 0.0, %v592
    %594 = vdwg.mxu0
    %v595 = vadd.f32 %v530, %v573
    %v596 = vxor.u32 %v595, 2147483648
    %v597 = vmul.f32 %v596, 1.442695
    %v598 = vpow.pop %v597
    %v599 = vadd.f32 %v598, 1.0
    %v600 = vrcp.pop %v599
    %v601 = vmul.f32 %v599, %v600
    %v602 = vsub.f32 1.0, %v601
    %v603 = vmul.f32 %v600, %v602
    %v604 = vadd.f32 %v600, %v603
    %vm605 = vweird.f32 %v599
    %vm606 = vweird.f32 %v600
    %vm607 = vmor %vm605, %vm606
    %v608 = vsel %vm607, %v600, %v604
    %v609 = vand.u32 2147483647, %v599
    %vm610 = vcmp.eq.f32.partialorder %v609, 8.507059e+37
    %v611 = vand.u32 %v599, 2147483648
    %v612 = vor.u32 1.1754944e-38, %v611
    %v613 = vsel %vm610, %v612, %v608
    %v614 = vmul.f32 1.0, %v613
    %615 = vrot.lane.b32.xlu0 %v614, 64
    %v616 = vpop.permute.xlu0 %615
    %v617 = vadd.f32 %v593, %v420
    %v618 = vmul.f32 %v614, %v617
    %v619 = vadd.f32 %v550, %v618
    %v620 = vtanh.pop %v619
    %v621 = vsub.f32 %v428, %v620
    %v622 = vmul.f32 %v616, %v621
    %v623 = vadd.f32 %v620, %v622
    %s624 = scalar_lea.vmem [#allocation2], 128
    %v625 = vld [vmem:[%s624] sm:$0xff]
    %v626 = vld [vmem:[%s624 + $0x8] sm:$0xff]
    %v627 = vld [vmem:[%s624 + $0x10] sm:$0xff]
    %v628 = vld [vmem:[%s624 + $0x18] sm:$0xff]
    %v629 = vld [vmem:[%s624 + $0x20] sm:$0xff]
    %v630 = vld [vmem:[%s624 + $0x28] sm:$0xff]
    %v631 = vld [vmem:[%s624 + $0x30] sm:$0xff]
    %v632 = vld [vmem:[%s624 + $0x38] sm:$0xff]
    %v633 = vld [vmem:[%s624 + $0x40] sm:$0xff]
    %v634 = vld [vmem:[%s624 + $0x48] sm:$0xff]
    %v635 = vld [vmem:[%s624 + $0x50] sm:$0xff]
    %v636 = vld [vmem:[%s624 + $0x58] sm:$0xff]
    %v637 = vld [vmem:[%s624 + $0x60] sm:$0xff]
    %v638 = vld [vmem:[%s624 + $0x68] sm:$0xff]
    %v639 = vld [vmem:[%s624 + $0x70] sm:$0xff]
    %v640 = vld [vmem:[%s624 + $0x78] sm:$0xff]
    %s641 = scalar_lea.vmem %s4, 4
    %v642 = vld [vmem:[%s641] sm:$0x3]
    %v644 = vperm.slane %v642, 0
    %v645 = vperm.slane %v642, 1
    %648 = vmatpush.msra.mxu0 0.0
    %649 = vmatpush.msra.mxu0 0.0
    %650 = vmatpush.msra.mxu0 0.0
    %651 = vmatpush.msra.mxu0 0.0
    %652 = vmatpush.msra.mxu0 0.0
    %653 = vmatpush.msra.mxu0 0.0
    %654 = vmatpush.msra.mxu0 0.0
    %655 = vmatpush.msra.mxu0 0.0
    %656 = vmatpush.msra.mxu0 %v639
    %657 = vmatpush.msra.mxu0 %v637
    %658 = vmatpush.msra.mxu0 %v635
    %659 = vmatpush.msra.mxu0 %v633
    %660 = vmatpush.msra.mxu0 %v631
    %661 = vmatpush.msra.mxu0 %v629
    %662 = vmatpush.msra.mxu0 %v627
    %663 = vmatpush.msra.mxu0 %v625
    %664 = vmatmul.f32.gmra.mxu0 %v553
    %v665 = vpop.f32.mrf.mxu0
    %v666 = vadd.f32 %v644, %v665
    %667 = vdwg.mxu0
    %668 = vmatpush.msra.mxu0 0.0
    %669 = vmatpush.msra.mxu0 0.0
    %670 = vmatpush.msra.mxu0 0.0
    %671 = vmatpush.msra.mxu0 0.0
    %672 = vmatpush.msra.mxu0 0.0
    %673 = vmatpush.msra.mxu0 0.0
    %674 = vmatpush.msra.mxu0 0.0
    %675 = vmatpush.msra.mxu0 0.0
    %676 = vmatpush.msra.mxu0 %v640
    %677 = vmatpush.msra.mxu0 %v638
    %678 = vmatpush.msra.mxu0 %v636
    %679 = vmatpush.msra.mxu0 %v634
    %680 = vmatpush.msra.mxu0 %v632
    %681 = vmatpush.msra.mxu0 %v630
    %682 = vmatpush.msra.mxu0 %v628
    %683 = vmatpush.msra.mxu0 %v626
    %684 = vmatmul.f32.gmra.mxu0 %v553
    %v685 = vpop.f32.mrf.mxu0
    %v686 = vadd.f32 %v645, %v685
    %687 = vdwg.mxu0
    %s688 = scalar_lea.vmem [#allocation5], 256
    %v689 = vld [vmem:[%s688] sm:$0xff]
    %v690 = vld [vmem:[%s688 + $0x8] sm:$0xff]
    %v691 = vld [vmem:[%s688 + $0x10] sm:$0xff]
    %v692 = vld [vmem:[%s688 + $0x18] sm:$0xff]
    %v693 = vld [vmem:[%s688 + $0x20] sm:$0xff]
    %v694 = vld [vmem:[%s688 + $0x28] sm:$0xff]
    %v695 = vld [vmem:[%s688 + $0x30] sm:$0xff]
    %v696 = vld [vmem:[%s688 + $0x38] sm:$0xff]
    %v697 = vld [vmem:[%s688 + $0x40] sm:$0xff]
    %v698 = vld [vmem:[%s688 + $0x48] sm:$0xff]
    %v699 = vld [vmem:[%s688 + $0x50] sm:$0xff]
    %v700 = vld [vmem:[%s688 + $0x58] sm:$0xff]
    %v701 = vld [vmem:[%s688 + $0x60] sm:$0xff]
    %v702 = vld [vmem:[%s688 + $0x68] sm:$0xff]
    %v703 = vld [vmem:[%s688 + $0x70] sm:$0xff]
    %v704 = vld [vmem:[%s688 + $0x78] sm:$0xff]
    %705 = vmatpush.msra.mxu0 0.0
    %706 = vmatpush.msra.mxu0 0.0
    %707 = vmatpush.msra.mxu0 0.0
    %708 = vmatpush.msra.mxu0 0.0
    %709 = vmatpush.msra.mxu0 0.0
    %710 = vmatpush.msra.mxu0 0.0
    %711 = vmatpush.msra.mxu0 0.0
    %712 = vmatpush.msra.mxu0 0.0
    %713 = vmatpush.msra.mxu0 %v703
    %714 = vmatpush.msra.mxu0 %v701
    %715 = vmatpush.msra.mxu0 %v699
    %716 = vmatpush.msra.mxu0 %v697
    %717 = vmatpush.msra.mxu0 %v695
    %718 = vmatpush.msra.mxu0 %v693
    %719 = vmatpush.msra.mxu0 %v691
    %720 = vmatpush.msra.mxu0 %v689
    %721 = vmatmul.f32.gmra.mxu0 %v117
    %v722 = vpop.f32.mrf.mxu0
    %v723 = vadd.f32 0.0, %v722
    %724 = vdwg.mxu0
    %725 = vmatpush.msra.mxu0 0.0
    %726 = vmatpush.msra.mxu0 0.0
    %727 = vmatpush.msra.mxu0 0.0
    %728 = vmatpush.msra.mxu0 0.0
    %729 = vmatpush.msra.mxu0 0.0
    %730 = vmatpush.msra.mxu0 0.0
    %731 = vmatpush.msra.mxu0 0.0
    %732 = vmatpush.msra.mxu0 0.0
    %733 = vmatpush.msra.mxu0 %v704
    %734 = vmatpush.msra.mxu0 %v702
    %735 = vmatpush.msra.mxu0 %v700
    %736 = vmatpush.msra.mxu0 %v698
    %737 = vmatpush.msra.mxu0 %v696
    %738 = vmatpush.msra.mxu0 %v694
    %739 = vmatpush.msra.mxu0 %v692
    %740 = vmatpush.msra.mxu0 %v690
    %741 = vmatmul.f32.gmra.mxu0 %v117
    %v742 = vpop.f32.mrf.mxu0
    %v743 = vadd.f32 0.0, %v742
    %744 = vdwg.mxu0
    %s745 = scalar_lea.vmem [#allocation7], 2
    %v746 = vld [vmem:[%s745] sm:$0x1]
    %v747 = vadd.f32 %v666, %v723
    %v748 = vxor.u32 %v747, 2147483648
    %v749 = vmul.f32 %v748, 1.442695
    %v750 = vpow.pop %v749
    %v751 = vadd.f32 %v750, 1.0
    %v752 = vrcp.pop %v751
    %v753 = vmul.f32 %v751, %v752
    %v754 = vsub.f32 1.0, %v753
    %v755 = vmul.f32 %v752, %v754
    %v756 = vadd.f32 %v752, %v755
    %vm757 = vweird.f32 %v751
    %vm758 = vweird.f32 %v752
    %vm759 = vmor %vm757, %vm758
    %v760 = vsel %vm759, %v752, %v756
    %v761 = vand.u32 2147483647, %v751
    %vm762 = vcmp.eq.f32.partialorder %v761, 8.507059e+37
    %v763 = vand.u32 %v751, 2147483648
    %v764 = vor.u32 1.1754944e-38, %v763
    %v765 = vsel %vm762, %v764, %v760
    %v766 = vmul.f32 1.0, %v765
    %767 = vrot.lane.b32.xlu0 %v766, 64
    %v768 = vpop.permute.xlu0 %767
    %v770 = vperm.slane %v746, 0
    %v772 = vadd.f32 %v743, %v770
    %v773 = vmul.f32 %v766, %v772
    %v774 = vadd.f32 %v686, %v773
    %v775 = vtanh.pop %v774
    %v776 = vsub.f32 0.0, %v775
    %v777 = vmul.f32 %v768, %v776
    %v778 = vadd.f32 %v775, %v777
    %s779 = scalar_lea.vmem %s0, 24
    %v780 = vld [vmem:[%s779] sm:$0xff]
    %782 = vset.pattern.permute.xlu0 0
    %783 = vperm.xlu0 %782, %v780
    %v784 = vpop.permute.xlu0 %783
    %v786 = vmul.f32 %v784, %v85
    %v787 = vmul.f32 %v784, %v86
    %v788 = vadd.f32 %v786, %v93
    %v789 = vadd.f32 %v787, %v94
    %v791 = vsel %vm115, %v511, 0
    %793 = vmatpush.msra.mxu0 0.0
    %794 = vmatpush.msra.mxu0 0.0
    %795 = vmatpush.msra.mxu0 0.0
    %796 = vmatpush.msra.mxu0 0.0
    %797 = vmatpush.msra.mxu0 0.0
    %798 = vmatpush.msra.mxu0 0.0
    %799 = vmatpush.msra.mxu0 0.0
    %800 = vmatpush.msra.mxu0 0.0
    %801 = vmatpush.msra.mxu0 %v113
    %802 = vmatpush.msra.mxu0 %v111
    %803 = vmatpush.msra.mxu0 %v109
    %804 = vmatpush.msra.mxu0 %v107
    %805 = vmatpush.msra.mxu0 %v105
    %806 = vmatpush.msra.mxu0 %v103
    %807 = vmatpush.msra.mxu0 %v101
    %808 = vmatpush.msra.mxu0 %v99
    %809 = vmatmul.f32.gmra.mxu0 %v791
    %v810 = vpop.f32.mrf.mxu0
    %v811 = vadd.f32 0.0, %v810
    %812 = vdwg.mxu0
    %813 = vmatpush.msra.mxu0 0.0
    %814 = vmatpush.msra.mxu0 0.0
    %815 = vmatpush.msra.mxu0 0.0
    %816 = vmatpush.msra.mxu0 0.0
    %817 = vmatpush.msra.mxu0 0.0
    %818 = vmatpush.msra.mxu0 0.0
    %819 = vmatpush.msra.mxu0 0.0
    %820 = vmatpush.msra.mxu0 0.0
    %821 = vmatpush.msra.mxu0 %v114
    %822 = vmatpush.msra.mxu0 %v112
    %823 = vmatpush.msra.mxu0 %v110
    %824 = vmatpush.msra.mxu0 %v108
    %825 = vmatpush.msra.mxu0 %v106
    %826 = vmatpush.msra.mxu0 %v104
    %827 = vmatpush.msra.mxu0 %v102
    %828 = vmatpush.msra.mxu0 %v100
    %829 = vmatmul.f32.gmra.mxu0 %v791
    %v830 = vpop.f32.mrf.mxu0
    %v831 = vadd.f32 0.0, %v830
    %832 = vdwg.mxu0
    %v833 = vadd.f32 %v788, %v811
    %v834 = vxor.u32 %v833, 2147483648
    %v835 = vmul.f32 %v834, 1.442695
    %v836 = vpow.pop %v835
    %v837 = vadd.f32 %v836, 1.0
    %v838 = vrcp.pop %v837
    %v839 = vmul.f32 %v837, %v838
    %v840 = vsub.f32 1.0, %v839
    %v841 = vmul.f32 %v838, %v840
    %v842 = vadd.f32 %v838, %v841
    %vm843 = vweird.f32 %v837
    %vm844 = vweird.f32 %v838
    %vm845 = vmor %vm843, %vm844
    %v846 = vsel %vm845, %v838, %v842
    %v847 = vand.u32 2147483647, %v837
    %vm848 = vcmp.eq.f32.partialorder %v847, 8.507059e+37
    %v849 = vand.u32 %v837, 2147483648
    %v850 = vor.u32 1.1754944e-38, %v849
    %v851 = vsel %vm848, %v850, %v846
    %v852 = vmul.f32 1.0, %v851
    %853 = vrot.lane.b32.xlu0 %v852, 64
    %v854 = vpop.permute.xlu0 %853
    %v855 = vadd.f32 %v831, %v183
    %v856 = vmul.f32 %v852, %v855
    %v857 = vadd.f32 %v789, %v856
    %v858 = vtanh.pop %v857
    %v859 = vsub.f32 %v511, %v858
    %v860 = vmul.f32 %v854, %v859
    %v861 = vadd.f32 %v858, %v860
    %862 = vmatpush.msra.mxu0 0.0
    %863 = vmatpush.msra.mxu0 0.0
    %864 = vmatpush.msra.mxu0 0.0
    %865 = vmatpush.msra.mxu0 0.0
    %866 = vmatpush.msra.mxu0 0.0
    %867 = vmatpush.msra.mxu0 0.0
    %868 = vmatpush.msra.mxu0 0.0
    %869 = vmatpush.msra.mxu0 0.0
    %870 = vmatpush.msra.mxu0 %v289
    %871 = vmatpush.msra.mxu0 %v287
    %872 = vmatpush.msra.mxu0 %v285
    %873 = vmatpush.msra.mxu0 %v283
    %874 = vmatpush.msra.mxu0 %v281
    %875 = vmatpush.msra.mxu0 %v279
    %876 = vmatpush.msra.mxu0 %v277
    %877 = vmatpush.msra.mxu0 %v275
    %878 = vmatmul.f32.gmra.mxu0 %v791
    %v879 = vpop.f32.mrf.mxu0
    %v880 = vadd.f32 %v294, %v879
    %881 = vdwg.mxu0
    %882 = vmatpush.msra.mxu0 0.0
    %883 = vmatpush.msra.mxu0 0.0
    %884 = vmatpush.msra.mxu0 0.0
    %885 = vmatpush.msra.mxu0 0.0
    %886 = vmatpush.msra.mxu0 0.0
    %887 = vmatpush.msra.mxu0 0.0
    %888 = vmatpush.msra.mxu0 0.0
    %889 = vmatpush.msra.mxu0 0.0
    %890 = vmatpush.msra.mxu0 %v290
    %891 = vmatpush.msra.mxu0 %v288
    %892 = vmatpush.msra.mxu0 %v286
    %893 = vmatpush.msra.mxu0 %v284
    %894 = vmatpush.msra.mxu0 %v282
    %895 = vmatpush.msra.mxu0 %v280
    %896 = vmatpush.msra.mxu0 %v278
    %897 = vmatpush.msra.mxu0 %v276
    %898 = vmatmul.f32.gmra.mxu0 %v791
    %v899 = vpop.f32.mrf.mxu0
    %v900 = vadd.f32 %v295, %v899
    %901 = vdwg.mxu0
    %v903 = vsel %vm115, %v623, 0
    %905 = vmatpush.msra.mxu0 0.0
    %906 = vmatpush.msra.mxu0 0.0
    %907 = vmatpush.msra.mxu0 0.0
    %908 = vmatpush.msra.mxu0 0.0
    %909 = vmatpush.msra.mxu0 0.0
    %910 = vmatpush.msra.mxu0 0.0
    %911 = vmatpush.msra.mxu0 0.0
    %912 = vmatpush.msra.mxu0 0.0
    %913 = vmatpush.msra.mxu0 %v353
    %914 = vmatpush.msra.mxu0 %v351
    %915 = vmatpush.msra.mxu0 %v349
    %916 = vmatpush.msra.mxu0 %v347
    %917 = vmatpush.msra.mxu0 %v345
    %918 = vmatpush.msra.mxu0 %v343
    %919 = vmatpush.msra.mxu0 %v341
    %920 = vmatpush.msra.mxu0 %v339
    %921 = vmatmul.f32.gmra.mxu0 %v903
    %v922 = vpop.f32.mrf.mxu0
    %v923 = vadd.f32 0.0, %v922
    %924 = vdwg.mxu0
    %925 = vmatpush.msra.mxu0 0.0
    %926 = vmatpush.msra.mxu0 0.0
    %927 = vmatpush.msra.mxu0 0.0
    %928 = vmatpush.msra.mxu0 0.0
    %929 = vmatpush.msra.mxu0 0.0
    %930 = vmatpush.msra.mxu0 0.0
    %931 = vmatpush.msra.mxu0 0.0
    %932 = vmatpush.msra.mxu0 0.0
    %933 = vmatpush.msra.mxu0 %v354
    %934 = vmatpush.msra.mxu0 %v352
    %935 = vmatpush.msra.mxu0 %v350
    %936 = vmatpush.msra.mxu0 %v348
    %937 = vmatpush.msra.mxu0 %v346
    %938 = vmatpush.msra.mxu0 %v344
    %939 = vmatpush.msra.mxu0 %v342
    %940 = vmatpush.msra.mxu0 %v340
    %941 = vmatmul.f32.gmra.mxu0 %v903
    %v942 = vpop.f32.mrf.mxu0
    %v943 = vadd.f32 0.0, %v942
    %944 = vdwg.mxu0
    %v945 = vadd.f32 %v880, %v923
    %v946 = vxor.u32 %v945, 2147483648
    %v947 = vmul.f32 %v946, 1.442695
    %v948 = vpow.pop %v947
    %v949 = vadd.f32 %v948, 1.0
    %v950 = vrcp.pop %v949
    %v951 = vmul.f32 %v949, %v950
    %v952 = vsub.f32 1.0, %v951
    %v953 = vmul.f32 %v950, %v952
    %v954 = vadd.f32 %v950, %v953
    %vm955 = vweird.f32 %v949
    %vm956 = vweird.f32 %v950
    %vm957 = vmor %vm955, %vm956
    %v958 = vsel %vm957, %v950, %v954
    %v959 = vand.u32 2147483647, %v949
    %vm960 = vcmp.eq.f32.partialorder %v959, 8.507059e+37
    %v961 = vand.u32 %v949, 2147483648
    %v962 = vor.u32 1.1754944e-38, %v961
    %v963 = vsel %vm960, %v962, %v958
    %v964 = vmul.f32 1.0, %v963
    %965 = vrot.lane.b32.xlu0 %v964, 64
    %v966 = vpop.permute.xlu0 %965
    %v967 = vadd.f32 %v943, %v420
    %v968 = vmul.f32 %v964, %v967
    %v969 = vadd.f32 %v900, %v968
    %v970 = vtanh.pop %v969
    %v971 = vsub.f32 %v623, %v970
    %v972 = vmul.f32 %v966, %v971
    %v973 = vadd.f32 %v970, %v972
    %974 = vmatpush.msra.mxu0 0.0
    %975 = vmatpush.msra.mxu0 0.0
    %976 = vmatpush.msra.mxu0 0.0
    %977 = vmatpush.msra.mxu0 0.0
    %978 = vmatpush.msra.mxu0 0.0
    %979 = vmatpush.msra.mxu0 0.0
    %980 = vmatpush.msra.mxu0 0.0
    %981 = vmatpush.msra.mxu0 0.0
    %982 = vmatpush.msra.mxu0 %v639
    %983 = vmatpush.msra.mxu0 %v637
    %984 = vmatpush.msra.mxu0 %v635
    %985 = vmatpush.msra.mxu0 %v633
    %986 = vmatpush.msra.mxu0 %v631
    %987 = vmatpush.msra.mxu0 %v629
    %988 = vmatpush.msra.mxu0 %v627
    %989 = vmatpush.msra.mxu0 %v625
    %990 = vmatmul.f32.gmra.mxu0 %v903
    %v991 = vpop.f32.mrf.mxu0
    %v992 = vadd.f32 %v644, %v991
    %993 = vdwg.mxu0
    %994 = vmatpush.msra.mxu0 0.0
    %995 = vmatpush.msra.mxu0 0.0
    %996 = vmatpush.msra.mxu0 0.0
    %997 = vmatpush.msra.mxu0 0.0
    %998 = vmatpush.msra.mxu0 0.0
    %999 = vmatpush.msra.mxu0 0.0
    %1000 = vmatpush.msra.mxu0 0.0
    %1001 = vmatpush.msra.mxu0 0.0
    %1002 = vmatpush.msra.mxu0 %v640
    %1003 = vmatpush.msra.mxu0 %v638
    %1004 = vmatpush.msra.mxu0 %v636
    %1005 = vmatpush.msra.mxu0 %v634
    %1006 = vmatpush.msra.mxu0 %v632
    %1007 = vmatpush.msra.mxu0 %v630
    %1008 = vmatpush.msra.mxu0 %v628
    %1009 = vmatpush.msra.mxu0 %v626
    %1010 = vmatmul.f32.gmra.mxu0 %v903
    %v1011 = vpop.f32.mrf.mxu0
    %v1012 = vadd.f32 %v645, %v1011
    %1013 = vdwg.mxu0
    %v1015 = vsel %vm115, %v778, 0
    %1017 = vmatpush.msra.mxu0 0.0
    %1018 = vmatpush.msra.mxu0 0.0
    %1019 = vmatpush.msra.mxu0 0.0
    %1020 = vmatpush.msra.mxu0 0.0
    %1021 = vmatpush.msra.mxu0 0.0
    %1022 = vmatpush.msra.mxu0 0.0
    %1023 = vmatpush.msra.mxu0 0.0
    %1024 = vmatpush.msra.mxu0 0.0
    %1025 = vmatpush.msra.mxu0 %v703
    %1026 = vmatpush.msra.mxu0 %v701
    %1027 = vmatpush.msra.mxu0 %v699
    %1028 = vmatpush.msra.mxu0 %v697
    %1029 = vmatpush.msra.mxu0 %v695
    %1030 = vmatpush.msra.mxu0 %v693
    %1031 = vmatpush.msra.mxu0 %v691
    %1032 = vmatpush.msra.mxu0 %v689
    %1033 = vmatmul.f32.gmra.mxu0 %v1015
    %v1034 = vpop.f32.mrf.mxu0
    %v1035 = vadd.f32 0.0, %v1034
    %1036 = vdwg.mxu0
    %1037 = vmatpush.msra.mxu0 0.0
    %1038 = vmatpush.msra.mxu0 0.0
    %1039 = vmatpush.msra.mxu0 0.0
    %1040 = vmatpush.msra.mxu0 0.0
    %1041 = vmatpush.msra.mxu0 0.0
    %1042 = vmatpush.msra.mxu0 0.0
    %1043 = vmatpush.msra.mxu0 0.0
    %1044 = vmatpush.msra.mxu0 0.0
    %1045 = vmatpush.msra.mxu0 %v704
    %1046 = vmatpush.msra.mxu0 %v702
    %1047 = vmatpush.msra.mxu0 %v700
    %1048 = vmatpush.msra.mxu0 %v698
    %1049 = vmatpush.msra.mxu0 %v696
    %1050 = vmatpush.msra.mxu0 %v694
    %1051 = vmatpush.msra.mxu0 %v692
    %1052 = vmatpush.msra.mxu0 %v690
    %1053 = vmatmul.f32.gmra.mxu0 %v1015
    %v1054 = vpop.f32.mrf.mxu0
    %v1055 = vadd.f32 0.0, %v1054
    %1056 = vdwg.mxu0
    %v1057 = vadd.f32 %v992, %v1035
    %v1058 = vxor.u32 %v1057, 2147483648
    %v1059 = vmul.f32 %v1058, 1.442695
    %v1060 = vpow.pop %v1059
    %v1061 = vadd.f32 %v1060, 1.0
    %v1062 = vrcp.pop %v1061
    %v1063 = vmul.f32 %v1061, %v1062
    %v1064 = vsub.f32 1.0, %v1063
    %v1065 = vmul.f32 %v1062, %v1064
    %v1066 = vadd.f32 %v1062, %v1065
    %vm1067 = vweird.f32 %v1061
    %vm1068 = vweird.f32 %v1062
    %vm1069 = vmor %vm1067, %vm1068
    %v1070 = vsel %vm1069, %v1062, %v1066
    %v1071 = vand.u32 2147483647, %v1061
    %vm1072 = vcmp.eq.f32.partialorder %v1071, 8.507059e+37
    %v1073 = vand.u32 %v1061, 2147483648
    %v1074 = vor.u32 1.1754944e-38, %v1073
    %v1075 = vsel %vm1072, %v1074, %v1070
    %v1076 = vmul.f32 1.0, %v1075
    %1077 = vrot.lane.b32.xlu0 %v1076, 64
    %v1078 = vpop.permute.xlu0 %1077
    %v1079 = vadd.f32 %v1055, %v770
    %v1080 = vmul.f32 %v1076, %v1079
    %v1081 = vadd.f32 %v1012, %v1080
    %v1082 = vtanh.pop %v1081
    %v1083 = vsub.f32 %v778, %v1082
    %v1084 = vmul.f32 %v1078, %v1083
    %v1085 = vadd.f32 %v1082, %v1084
    %s1086 = scalar_lea.vmem [#allocation2], 256
    %v1087 = vld [vmem:[%s1086] sm:$0xff]
    %v1088 = vld [vmem:[%s1086 + $0x8] sm:$0xff]
    %v1089 = vld [vmem:[%s1086 + $0x10] sm:$0xff]
    %v1090 = vld [vmem:[%s1086 + $0x18] sm:$0xff]
    %v1091 = vld [vmem:[%s1086 + $0x20] sm:$0xff]
    %v1092 = vld [vmem:[%s1086 + $0x28] sm:$0xff]
    %v1093 = vld [vmem:[%s1086 + $0x30] sm:$0xff]
    %v1094 = vld [vmem:[%s1086 + $0x38] sm:$0xff]
    %v1095 = vld [vmem:[%s1086 + $0x40] sm:$0xff]
    %v1096 = vld [vmem:[%s1086 + $0x48] sm:$0xff]
    %v1097 = vld [vmem:[%s1086 + $0x50] sm:$0xff]
    %v1098 = vld [vmem:[%s1086 + $0x58] sm:$0xff]
    %v1099 = vld [vmem:[%s1086 + $0x60] sm:$0xff]
    %v1100 = vld [vmem:[%s1086 + $0x68] sm:$0xff]
    %v1101 = vld [vmem:[%s1086 + $0x70] sm:$0xff]
    %v1102 = vld [vmem:[%s1086 + $0x78] sm:$0xff]
    %s1103 = scalar_lea.vmem %s4, 6
    %v1104 = vld [vmem:[%s1103] sm:$0x3]
    %v1106 = vperm.slane %v1104, 0
    %v1107 = vperm.slane %v1104, 1
    %1110 = vmatpush.msra.mxu0 0.0
    %1111 = vmatpush.msra.mxu0 0.0
    %1112 = vmatpush.msra.mxu0 0.0
    %1113 = vmatpush.msra.mxu0 0.0
    %1114 = vmatpush.msra.mxu0 0.0
    %1115 = vmatpush.msra.mxu0 0.0
    %1116 = vmatpush.msra.mxu0 0.0
    %1117 = vmatpush.msra.mxu0 0.0
    %1118 = vmatpush.msra.mxu0 %v1101
    %1119 = vmatpush.msra.mxu0 %v1099
    %1120 = vmatpush.msra.mxu0 %v1097
    %1121 = vmatpush.msra.mxu0 %v1095
    %1122 = vmatpush.msra.mxu0 %v1093
    %1123 = vmatpush.msra.mxu0 %v1091
    %1124 = vmatpush.msra.mxu0 %v1089
    %1125 = vmatpush.msra.mxu0 %v1087
    %1126 = vmatmul.f32.gmra.mxu0 %v1015
    %v1127 = vpop.f32.mrf.mxu0
    %v1128 = vadd.f32 %v1106, %v1127
    %1129 = vdwg.mxu0
    %1130 = vmatpush.msra.mxu0 0.0
    %1131 = vmatpush.msra.mxu0 0.0
    %1132 = vmatpush.msra.mxu0 0.0
    %1133 = vmatpush.msra.mxu0 0.0
    %1134 = vmatpush.msra.mxu0 0.0
    %1135 = vmatpush.msra.mxu0 0.0
    %1136 = vmatpush.msra.mxu0 0.0
    %1137 = vmatpush.msra.mxu0 0.0
    %1138 = vmatpush.msra.mxu0 %v1102
    %1139 = vmatpush.msra.mxu0 %v1100
    %1140 = vmatpush.msra.mxu0 %v1098
    %1141 = vmatpush.msra.mxu0 %v1096
    %1142 = vmatpush.msra.mxu0 %v1094
    %1143 = vmatpush.msra.mxu0 %v1092
    %1144 = vmatpush.msra.mxu0 %v1090
    %1145 = vmatpush.msra.mxu0 %v1088
    %1146 = vmatmul.f32.gmra.mxu0 %v1015
    %v1147 = vpop.f32.mrf.mxu0
    %v1148 = vadd.f32 %v1107, %v1147
    %1149 = vdwg.mxu0
    %s1150 = scalar_lea.vmem [#allocation5], 384
    %v1151 = vld [vmem:[%s1150] sm:$0xff]
    %v1152 = vld [vmem:[%s1150 + $0x8] sm:$0xff]
    %v1153 = vld [vmem:[%s1150 + $0x10] sm:$0xff]
    %v1154 = vld [vmem:[%s1150 + $0x18] sm:$0xff]
    %v1155 = vld [vmem:[%s1150 + $0x20] sm:$0xff]
    %v1156 = vld [vmem:[%s1150 + $0x28] sm:$0xff]
    %v1157 = vld [vmem:[%s1150 + $0x30] sm:$0xff]
    %v1158 = vld [vmem:[%s1150 + $0x38] sm:$0xff]
    %v1159 = vld [vmem:[%s1150 + $0x40] sm:$0xff]
    %v1160 = vld [vmem:[%s1150 + $0x48] sm:$0xff]
    %v1161 = vld [vmem:[%s1150 + $0x50] sm:$0xff]
    %v1162 = vld [vmem:[%s1150 + $0x58] sm:$0xff]
    %v1163 = vld [vmem:[%s1150 + $0x60] sm:$0xff]
    %v1164 = vld [vmem:[%s1150 + $0x68] sm:$0xff]
    %v1165 = vld [vmem:[%s1150 + $0x70] sm:$0xff]
    %v1166 = vld [vmem:[%s1150 + $0x78] sm:$0xff]
    %1167 = vmatpush.msra.mxu0 0.0
    %1168 = vmatpush.msra.mxu0 0.0
    %1169 = vmatpush.msra.mxu0 0.0
    %1170 = vmatpush.msra.mxu0 0.0
    %1171 = vmatpush.msra.mxu0 0.0
    %1172 = vmatpush.msra.mxu0 0.0
    %1173 = vmatpush.msra.mxu0 0.0
    %1174 = vmatpush.msra.mxu0 0.0
    %1175 = vmatpush.msra.mxu0 %v1165
    %1176 = vmatpush.msra.mxu0 %v1163
    %1177 = vmatpush.msra.mxu0 %v1161
    %1178 = vmatpush.msra.mxu0 %v1159
    %1179 = vmatpush.msra.mxu0 %v1157
    %1180 = vmatpush.msra.mxu0 %v1155
    %1181 = vmatpush.msra.mxu0 %v1153
    %1182 = vmatpush.msra.mxu0 %v1151
    %1183 = vmatmul.f32.gmra.mxu0 %v117
    %v1184 = vpop.f32.mrf.mxu0
    %v1185 = vadd.f32 0.0, %v1184
    %1186 = vdwg.mxu0
    %1187 = vmatpush.msra.mxu0 0.0
    %1188 = vmatpush.msra.mxu0 0.0
    %1189 = vmatpush.msra.mxu0 0.0
    %1190 = vmatpush.msra.mxu0 0.0
    %1191 = vmatpush.msra.mxu0 0.0
    %1192 = vmatpush.msra.mxu0 0.0
    %1193 = vmatpush.msra.mxu0 0.0
    %1194 = vmatpush.msra.mxu0 0.0
    %1195 = vmatpush.msra.mxu0 %v1166
    %1196 = vmatpush.msra.mxu0 %v1164
    %1197 = vmatpush.msra.mxu0 %v1162
    %1198 = vmatpush.msra.mxu0 %v1160
    %1199 = vmatpush.msra.mxu0 %v1158
    %1200 = vmatpush.msra.mxu0 %v1156
    %1201 = vmatpush.msra.mxu0 %v1154
    %1202 = vmatpush.msra.mxu0 %v1152
    %1203 = vmatmul.f32.gmra.mxu0 %v117
    %v1204 = vpop.f32.mrf.mxu0
    %v1205 = vadd.f32 0.0, %v1204
    %1206 = vdwg.mxu0
    %s1207 = scalar_lea.vmem [#allocation7], 3
    %v1208 = vld [vmem:[%s1207] sm:$0x1]
    %v1209 = vadd.f32 %v1128, %v1185
    %v1210 = vxor.u32 %v1209, 2147483648
    %v1211 = vmul.f32 %v1210, 1.442695
    %v1212 = vpow.pop %v1211
    %v1213 = vadd.f32 %v1212, 1.0
    %v1214 = vrcp.pop %v1213
    %v1215 = vmul.f32 %v1213, %v1214
    %v1216 = vsub.f32 1.0, %v1215
    %v1217 = vmul.f32 %v1214, %v1216
    %v1218 = vadd.f32 %v1214, %v1217
    %vm1219 = vweird.f32 %v1213
    %vm1220 = vweird.f32 %v1214
    %vm1221 = vmor %vm1219, %vm1220
    %v1222 = vsel %vm1221, %v1214, %v1218
    %v1223 = vand.u32 2147483647, %v1213
    %vm1224 = vcmp.eq.f32.partialorder %v1223, 8.507059e+37
    %v1225 = vand.u32 %v1213, 2147483648
    %v1226 = vor.u32 1.1754944e-38, %v1225
    %v1227 = vsel %vm1224, %v1226, %v1222
    %v1228 = vmul.f32 1.0, %v1227
    %1229 = vrot.lane.b32.xlu0 %v1228, 64
    %v1230 = vpop.permute.xlu0 %1229
    %v1232 = vperm.slane %v1208, 0
    %v1234 = vadd.f32 %v1205, %v1232
    %v1235 = vmul.f32 %v1228, %v1234
    %v1236 = vadd.f32 %v1148, %v1235
    %v1237 = vtanh.pop %v1236
    %v1238 = vsub.f32 0.0, %v1237
    %v1239 = vmul.f32 %v1230, %v1238
    %v1240 = vadd.f32 %v1237, %v1239
    %s1241 = scalar_lea.vmem %s0, 32
    %v1242 = vld [vmem:[%s1241] sm:$0xff]
    %1244 = vset.pattern.permute.xlu0 0
    %1245 = vperm.xlu0 %1244, %v1242
    %v1246 = vpop.permute.xlu0 %1245
    %v1248 = vmul.f32 %v1246, %v85
    %v1249 = vmul.f32 %v1246, %v86
    %v1250 = vadd.f32 %v1248, %v93
    %v1251 = vadd.f32 %v1249, %v94
    %v1253 = vsel %vm115, %v861, 0
    %1255 = vmatpush.msra.mxu0 0.0
    %1256 = vmatpush.msra.mxu0 0.0
    %1257 = vmatpush.msra.mxu0 0.0
    %1258 = vmatpush.msra.mxu0 0.0
    %1259 = vmatpush.msra.mxu0 0.0
    %1260 = vmatpush.msra.mxu0 0.0
    %1261 = vmatpush.msra.mxu0 0.0
    %1262 = vmatpush.msra.mxu0 0.0
    %1263 = vmatpush.msra.mxu0 %v113
    %1264 = vmatpush.msra.mxu0 %v111
    %1265 = vmatpush.msra.mxu0 %v109
    %1266 = vmatpush.msra.mxu0 %v107
    %1267 = vmatpush.msra.mxu0 %v105
    %1268 = vmatpush.msra.mxu0 %v103
    %1269 = vmatpush.msra.mxu0 %v101
    %1270 = vmatpush.msra.mxu0 %v99
    %1271 = vmatmul.f32.gmra.mxu0 %v1253
    %v1272 = vpop.f32.mrf.mxu0
    %v1273 = vadd.f32 0.0, %v1272
    %1274 = vdwg.mxu0
    %1275 = vmatpush.msra.mxu0 0.0
    %1276 = vmatpush.msra.mxu0 0.0
    %1277 = vmatpush.msra.mxu0 0.0
    %1278 = vmatpush.msra.mxu0 0.0
    %1279 = vmatpush.msra.mxu0 0.0
    %1280 = vmatpush.msra.mxu0 0.0
    %1281 = vmatpush.msra.mxu0 0.0
    %1282 = vmatpush.msra.mxu0 0.0
    %1283 = vmatpush.msra.mxu0 %v114
    %1284 = vmatpush.msra.mxu0 %v112
    %1285 = vmatpush.msra.mxu0 %v110
    %1286 = vmatpush.msra.mxu0 %v108
    %1287 = vmatpush.msra.mxu0 %v106
    %1288 = vmatpush.msra.mxu0 %v104
    %1289 = vmatpush.msra.mxu0 %v102
    %1290 = vmatpush.msra.mxu0 %v100
    %1291 = vmatmul.f32.gmra.mxu0 %v1253
    %v1292 = vpop.f32.mrf.mxu0
    %v1293 = vadd.f32 0.0, %v1292
    %1294 = vdwg.mxu0
    %v1295 = vadd.f32 %v1250, %v1273
    %v1296 = vxor.u32 %v1295, 2147483648
    %v1297 = vmul.f32 %v1296, 1.442695
    %v1298 = vpow.pop %v1297
    %v1299 = vadd.f32 %v1298, 1.0
    %v1300 = vrcp.pop %v1299
    %v1301 = vmul.f32 %v1299, %v1300
    %v1302 = vsub.f32 1.0, %v1301
    %v1303 = vmul.f32 %v1300, %v1302
    %v1304 = vadd.f32 %v1300, %v1303
    %vm1305 = vweird.f32 %v1299
    %vm1306 = vweird.f32 %v1300
    %vm1307 = vmor %vm1305, %vm1306
    %v1308 = vsel %vm1307, %v1300, %v1304
    %v1309 = vand.u32 2147483647, %v1299
    %vm1310 = vcmp.eq.f32.partialorder %v1309, 8.507059e+37
    %v1311 = vand.u32 %v1299, 2147483648
    %v1312 = vor.u32 1.1754944e-38, %v1311
    %v1313 = vsel %vm1310, %v1312, %v1308
    %v1314 = vmul.f32 1.0, %v1313
    %1315 = vrot.lane.b32.xlu0 %v1314, 64
    %v1316 = vpop.permute.xlu0 %1315
    %v1317 = vadd.f32 %v1293, %v183
    %v1318 = vmul.f32 %v1314, %v1317
    %v1319 = vadd.f32 %v1251, %v1318
    %v1320 = vtanh.pop %v1319
    %v1321 = vsub.f32 %v861, %v1320
    %v1322 = vmul.f32 %v1316, %v1321
    %v1323 = vadd.f32 %v1320, %v1322
    %1324 = vmatpush.msra.mxu0 0.0
    %1325 = vmatpush.msra.mxu0 0.0
    %1326 = vmatpush.msra.mxu0 0.0
    %1327 = vmatpush.msra.mxu0 0.0
    %1328 = vmatpush.msra.mxu0 0.0
    %1329 = vmatpush.msra.mxu0 0.0
    %1330 = vmatpush.msra.mxu0 0.0
    %1331 = vmatpush.msra.mxu0 0.0
    %1332 = vmatpush.msra.mxu0 %v289
    %1333 = vmatpush.msra.mxu0 %v287
    %1334 = vmatpush.msra.mxu0 %v285
    %1335 = vmatpush.msra.mxu0 %v283
    %1336 = vmatpush.msra.mxu0 %v281
    %1337 = vmatpush.msra.mxu0 %v279
    %1338 = vmatpush.msra.mxu0 %v277
    %1339 = vmatpush.msra.mxu0 %v275
    %1340 = vmatmul.f32.gmra.mxu0 %v1253
    %v1341 = vpop.f32.mrf.mxu0
    %v1342 = vadd.f32 %v294, %v1341
    %1343 = vdwg.mxu0
    %1344 = vmatpush.msra.mxu0 0.0
    %1345 = vmatpush.msra.mxu0 0.0
    %1346 = vmatpush.msra.mxu0 0.0
    %1347 = vmatpush.msra.mxu0 0.0
    %1348 = vmatpush.msra.mxu0 0.0
    %1349 = vmatpush.msra.mxu0 0.0
    %1350 = vmatpush.msra.mxu0 0.0
    %1351 = vmatpush.msra.mxu0 0.0
    %1352 = vmatpush.msra.mxu0 %v290
    %1353 = vmatpush.msra.mxu0 %v288
    %1354 = vmatpush.msra.mxu0 %v286
    %1355 = vmatpush.msra.mxu0 %v284
    %1356 = vmatpush.msra.mxu0 %v282
    %1357 = vmatpush.msra.mxu0 %v280
    %1358 = vmatpush.msra.mxu0 %v278
    %1359 = vmatpush.msra.mxu0 %v276
    %1360 = vmatmul.f32.gmra.mxu0 %v1253
    %v1361 = vpop.f32.mrf.mxu0
    %v1362 = vadd.f32 %v295, %v1361
    %1363 = vdwg.mxu0
    %v1365 = vsel %vm115, %v973, 0
    %1367 = vmatpush.msra.mxu0 0.0
    %1368 = vmatpush.msra.mxu0 0.0
    %1369 = vmatpush.msra.mxu0 0.0
    %1370 = vmatpush.msra.mxu0 0.0
    %1371 = vmatpush.msra.mxu0 0.0
    %1372 = vmatpush.msra.mxu0 0.0
    %1373 = vmatpush.msra.mxu0 0.0
    %1374 = vmatpush.msra.mxu0 0.0
    %1375 = vmatpush.msra.mxu0 %v353
    %1376 = vmatpush.msra.mxu0 %v351
    %1377 = vmatpush.msra.mxu0 %v349
    %1378 = vmatpush.msra.mxu0 %v347
    %1379 = vmatpush.msra.mxu0 %v345
    %1380 = vmatpush.msra.mxu0 %v343
    %1381 = vmatpush.msra.mxu0 %v341
    %1382 = vmatpush.msra.mxu0 %v339
    %1383 = vmatmul.f32.gmra.mxu0 %v1365
    %v1384 = vpop.f32.mrf.mxu0
    %v1385 = vadd.f32 0.0, %v1384
    %1386 = vdwg.mxu0
    %1387 = vmatpush.msra.mxu0 0.0
    %1388 = vmatpush.msra.mxu0 0.0
    %1389 = vmatpush.msra.mxu0 0.0
    %1390 = vmatpush.msra.mxu0 0.0
    %1391 = vmatpush.msra.mxu0 0.0
    %1392 = vmatpush.msra.mxu0 0.0
    %1393 = vmatpush.msra.mxu0 0.0
    %1394 = vmatpush.msra.mxu0 0.0
    %1395 = vmatpush.msra.mxu0 %v354
    %1396 = vmatpush.msra.mxu0 %v352
    %1397 = vmatpush.msra.mxu0 %v350
    %1398 = vmatpush.msra.mxu0 %v348
    %1399 = vmatpush.msra.mxu0 %v346
    %1400 = vmatpush.msra.mxu0 %v344
    %1401 = vmatpush.msra.mxu0 %v342
    %1402 = vmatpush.msra.mxu0 %v340
    %1403 = vmatmul.f32.gmra.mxu0 %v1365
    %v1404 = vpop.f32.mrf.mxu0
    %v1405 = vadd.f32 0.0, %v1404
    %1406 = vdwg.mxu0
    %v1407 = vadd.f32 %v1342, %v1385
    %v1408 = vxor.u32 %v1407, 2147483648
    %v1409 = vmul.f32 %v1408, 1.442695
    %v1410 = vpow.pop %v1409
    %v1411 = vadd.f32 %v1410, 1.0
    %v1412 = vrcp.pop %v1411
    %v1413 = vmul.f32 %v1411, %v1412
    %v1414 = vsub.f32 1.0, %v1413
    %v1415 = vmul.f32 %v1412, %v1414
    %v1416 = vadd.f32 %v1412, %v1415
    %vm1417 = vweird.f32 %v1411
    %vm1418 = vweird.f32 %v1412
    %vm1419 = vmor %vm1417, %vm1418
    %v1420 = vsel %vm1419, %v1412, %v1416
    %v1421 = vand.u32 2147483647, %v1411
    %vm1422 = vcmp.eq.f32.partialorder %v1421, 8.507059e+37
    %v1423 = vand.u32 %v1411, 2147483648
    %v1424 = vor.u32 1.1754944e-38, %v1423
    %v1425 = vsel %vm1422, %v1424, %v1420
    %v1426 = vmul.f32 1.0, %v1425
    %1427 = vrot.lane.b32.xlu0 %v1426, 64
    %v1428 = vpop.permute.xlu0 %1427
    %v1429 = vadd.f32 %v1405, %v420
    %v1430 = vmul.f32 %v1426, %v1429
    %v1431 = vadd.f32 %v1362, %v1430
    %v1432 = vtanh.pop %v1431
    %v1433 = vsub.f32 %v973, %v1432
    %v1434 = vmul.f32 %v1428, %v1433
    %v1435 = vadd.f32 %v1432, %v1434
    %1436 = vmatpush.msra.mxu0 0.0
    %1437 = vmatpush.msra.mxu0 0.0
    %1438 = vmatpush.msra.mxu0 0.0
    %1439 = vmatpush.msra.mxu0 0.0
    %1440 = vmatpush.msra.mxu0 0.0
    %1441 = vmatpush.msra.mxu0 0.0
    %1442 = vmatpush.msra.mxu0 0.0
    %1443 = vmatpush.msra.mxu0 0.0
    %1444 = vmatpush.msra.mxu0 %v639
    %1445 = vmatpush.msra.mxu0 %v637
    %1446 = vmatpush.msra.mxu0 %v635
    %1447 = vmatpush.msra.mxu0 %v633
    %1448 = vmatpush.msra.mxu0 %v631
    %1449 = vmatpush.msra.mxu0 %v629
    %1450 = vmatpush.msra.mxu0 %v627
    %1451 = vmatpush.msra.mxu0 %v625
    %1452 = vmatmul.f32.gmra.mxu0 %v1365
    %v1453 = vpop.f32.mrf.mxu0
    %v1454 = vadd.f32 %v644, %v1453
    %1455 = vdwg.mxu0
    %1456 = vmatpush.msra.mxu0 0.0
    %1457 = vmatpush.msra.mxu0 0.0
    %1458 = vmatpush.msra.mxu0 0.0
    %1459 = vmatpush.msra.mxu0 0.0
    %1460 = vmatpush.msra.mxu0 0.0
    %1461 = vmatpush.msra.mxu0 0.0
    %1462 = vmatpush.msra.mxu0 0.0
    %1463 = vmatpush.msra.mxu0 0.0
    %1464 = vmatpush.msra.mxu0 %v640
    %1465 = vmatpush.msra.mxu0 %v638
    %1466 = vmatpush.msra.mxu0 %v636
    %1467 = vmatpush.msra.mxu0 %v634
    %1468 = vmatpush.msra.mxu0 %v632
    %1469 = vmatpush.msra.mxu0 %v630
    %1470 = vmatpush.msra.mxu0 %v628
    %1471 = vmatpush.msra.mxu0 %v626
    %1472 = vmatmul.f32.gmra.mxu0 %v1365
    %v1473 = vpop.f32.mrf.mxu0
    %v1474 = vadd.f32 %v645, %v1473
    %1475 = vdwg.mxu0
    %v1477 = vsel %vm115, %v1085, 0
    %1479 = vmatpush.msra.mxu0 0.0
    %1480 = vmatpush.msra.mxu0 0.0
    %1481 = vmatpush.msra.mxu0 0.0
    %1482 = vmatpush.msra.mxu0 0.0
    %1483 = vmatpush.msra.mxu0 0.0
    %1484 = vmatpush.msra.mxu0 0.0
    %1485 = vmatpush.msra.mxu0 0.0
    %1486 = vmatpush.msra.mxu0 0.0
    %1487 = vmatpush.msra.mxu0 %v703
    %1488 = vmatpush.msra.mxu0 %v701
    %1489 = vmatpush.msra.mxu0 %v699
    %1490 = vmatpush.msra.mxu0 %v697
    %1491 = vmatpush.msra.mxu0 %v695
    %1492 = vmatpush.msra.mxu0 %v693
    %1493 = vmatpush.msra.mxu0 %v691
    %1494 = vmatpush.msra.mxu0 %v689
    %1495 = vmatmul.f32.gmra.mxu0 %v1477
    %v1496 = vpop.f32.mrf.mxu0
    %v1497 = vadd.f32 0.0, %v1496
    %1498 = vdwg.mxu0
    %1499 = vmatpush.msra.mxu0 0.0
    %1500 = vmatpush.msra.mxu0 0.0
    %1501 = vmatpush.msra.mxu0 0.0
    %1502 = vmatpush.msra.mxu0 0.0
    %1503 = vmatpush.msra.mxu0 0.0
    %1504 = vmatpush.msra.mxu0 0.0
    %1505 = vmatpush.msra.mxu0 0.0
    %1506 = vmatpush.msra.mxu0 0.0
    %1507 = vmatpush.msra.mxu0 %v704
    %1508 = vmatpush.msra.mxu0 %v702
    %1509 = vmatpush.msra.mxu0 %v700
    %1510 = vmatpush.msra.mxu0 %v698
    %1511 = vmatpush.msra.mxu0 %v696
    %1512 = vmatpush.msra.mxu0 %v694
    %1513 = vmatpush.msra.mxu0 %v692
    %1514 = vmatpush.msra.mxu0 %v690
    %1515 = vmatmul.f32.gmra.mxu0 %v1477
    %v1516 = vpop.f32.mrf.mxu0
    %v1517 = vadd.f32 0.0, %v1516
    %1518 = vdwg.mxu0
    %v1519 = vadd.f32 %v1454, %v1497
    %v1520 = vxor.u32 %v1519, 2147483648
    %v1521 = vmul.f32 %v1520, 1.442695
    %v1522 = vpow.pop %v1521
    %v1523 = vadd.f32 %v1522, 1.0
    %v1524 = vrcp.pop %v1523
    %v1525 = vmul.f32 %v1523, %v1524
    %v1526 = vsub.f32 1.0, %v1525
    %v1527 = vmul.f32 %v1524, %v1526
    %v1528 = vadd.f32 %v1524, %v1527
    %vm1529 = vweird.f32 %v1523
    %vm1530 = vweird.f32 %v1524
    %vm1531 = vmor %vm1529, %vm1530
    %v1532 = vsel %vm1531, %v1524, %v1528
    %v1533 = vand.u32 2147483647, %v1523
    %vm1534 = vcmp.eq.f32.partialorder %v1533, 8.507059e+37
    %v1535 = vand.u32 %v1523, 2147483648
    %v1536 = vor.u32 1.1754944e-38, %v1535
    %v1537 = vsel %vm1534, %v1536, %v1532
    %v1538 = vmul.f32 1.0, %v1537
    %1539 = vrot.lane.b32.xlu0 %v1538, 64
    %v1540 = vpop.permute.xlu0 %1539
    %v1541 = vadd.f32 %v1517, %v770
    %v1542 = vmul.f32 %v1538, %v1541
    %v1543 = vadd.f32 %v1474, %v1542
    %v1544 = vtanh.pop %v1543
    %v1545 = vsub.f32 %v1085, %v1544
    %v1546 = vmul.f32 %v1540, %v1545
    %v1547 = vadd.f32 %v1544, %v1546
    %1548 = vmatpush.msra.mxu0 0.0
    %1549 = vmatpush.msra.mxu0 0.0
    %1550 = vmatpush.msra.mxu0 0.0
    %1551 = vmatpush.msra.mxu0 0.0
    %1552 = vmatpush.msra.mxu0 0.0
    %1553 = vmatpush.msra.mxu0 0.0
    %1554 = vmatpush.msra.mxu0 0.0
    %1555 = vmatpush.msra.mxu0 0.0
    %1556 = vmatpush.msra.mxu0 %v1101
    %1557 = vmatpush.msra.mxu0 %v1099
    %1558 = vmatpush.msra.mxu0 %v1097
    %1559 = vmatpush.msra.mxu0 %v1095
    %1560 = vmatpush.msra.mxu0 %v1093
    %1561 = vmatpush.msra.mxu0 %v1091
    %1562 = vmatpush.msra.mxu0 %v1089
    %1563 = vmatpush.msra.mxu0 %v1087
    %1564 = vmatmul.f32.gmra.mxu0 %v1477
    %v1565 = vpop.f32.mrf.mxu0
    %v1566 = vadd.f32 %v1106, %v1565
    %1567 = vdwg.mxu0
    %1568 = vmatpush.msra.mxu0 0.0
    %1569 = vmatpush.msra.mxu0 0.0
    %1570 = vmatpush.msra.mxu0 0.0
    %1571 = vmatpush.msra.mxu0 0.0
    %1572 = vmatpush.msra.mxu0 0.0
    %1573 = vmatpush.msra.mxu0 0.0
    %1574 = vmatpush.msra.mxu0 0.0
    %1575 = vmatpush.msra.mxu0 0.0
    %1576 = vmatpush.msra.mxu0 %v1102
    %1577 = vmatpush.msra.mxu0 %v1100
    %1578 = vmatpush.msra.mxu0 %v1098
    %1579 = vmatpush.msra.mxu0 %v1096
    %1580 = vmatpush.msra.mxu0 %v1094
    %1581 = vmatpush.msra.mxu0 %v1092
    %1582 = vmatpush.msra.mxu0 %v1090
    %1583 = vmatpush.msra.mxu0 %v1088
    %1584 = vmatmul.f32.gmra.mxu0 %v1477
    %v1585 = vpop.f32.mrf.mxu0
    %v1586 = vadd.f32 %v1107, %v1585
    %1587 = vdwg.mxu0
    %v1589 = vsel %vm115, %v1240, 0
    %1591 = vmatpush.msra.mxu0 0.0
    %1592 = vmatpush.msra.mxu0 0.0
    %1593 = vmatpush.msra.mxu0 0.0
    %1594 = vmatpush.msra.mxu0 0.0
    %1595 = vmatpush.msra.mxu0 0.0
    %1596 = vmatpush.msra.mxu0 0.0
    %1597 = vmatpush.msra.mxu0 0.0
    %1598 = vmatpush.msra.mxu0 0.0
    %1599 = vmatpush.msra.mxu0 %v1165
    %1600 = vmatpush.msra.mxu0 %v1163
    %1601 = vmatpush.msra.mxu0 %v1161
    %1602 = vmatpush.msra.mxu0 %v1159
    %1603 = vmatpush.msra.mxu0 %v1157
    %1604 = vmatpush.msra.mxu0 %v1155
    %1605 = vmatpush.msra.mxu0 %v1153
    %1606 = vmatpush.msra.mxu0 %v1151
    %1607 = vmatmul.f32.gmra.mxu0 %v1589
    %v1608 = vpop.f32.mrf.mxu0
    %v1609 = vadd.f32 0.0, %v1608
    %1610 = vdwg.mxu0
    %1611 = vmatpush.msra.mxu0 0.0
    %1612 = vmatpush.msra.mxu0 0.0
    %1613 = vmatpush.msra.mxu0 0.0
    %1614 = vmatpush.msra.mxu0 0.0
    %1615 = vmatpush.msra.mxu0 0.0
    %1616 = vmatpush.msra.mxu0 0.0
    %1617 = vmatpush.msra.mxu0 0.0
    %1618 = vmatpush.msra.mxu0 0.0
    %1619 = vmatpush.msra.mxu0 %v1166
    %1620 = vmatpush.msra.mxu0 %v1164
    %1621 = vmatpush.msra.mxu0 %v1162
    %1622 = vmatpush.msra.mxu0 %v1160
    %1623 = vmatpush.msra.mxu0 %v1158
    %1624 = vmatpush.msra.mxu0 %v1156
    %1625 = vmatpush.msra.mxu0 %v1154
    %1626 = vmatpush.msra.mxu0 %v1152
    %1627 = vmatmul.f32.gmra.mxu0 %v1589
    %v1628 = vpop.f32.mrf.mxu0
    %v1629 = vadd.f32 0.0, %v1628
    %1630 = vdwg.mxu0
    %v1631 = vadd.f32 %v1566, %v1609
    %v1632 = vxor.u32 %v1631, 2147483648
    %v1633 = vmul.f32 %v1632, 1.442695
    %v1634 = vpow.pop %v1633
    %v1635 = vadd.f32 %v1634, 1.0
    %v1636 = vrcp.pop %v1635
    %v1637 = vmul.f32 %v1635, %v1636
    %v1638 = vsub.f32 1.0, %v1637
    %v1639 = vmul.f32 %v1636, %v1638
    %v1640 = vadd.f32 %v1636, %v1639
    %vm1641 = vweird.f32 %v1635
    %vm1642 = vweird.f32 %v1636
    %vm1643 = vmor %vm1641, %vm1642
    %v1644 = vsel %vm1643, %v1636, %v1640
    %v1645 = vand.u32 2147483647, %v1635
    %vm1646 = vcmp.eq.f32.partialorder %v1645, 8.507059e+37
    %v1647 = vand.u32 %v1635, 2147483648
    %v1648 = vor.u32 1.1754944e-38, %v1647
    %v1649 = vsel %vm1646, %v1648, %v1644
    %v1650 = vmul.f32 1.0, %v1649
    %1651 = vrot.lane.b32.xlu0 %v1650, 64
    %v1652 = vpop.permute.xlu0 %1651
    %v1653 = vadd.f32 %v1629, %v1232
    %v1654 = vmul.f32 %v1650, %v1653
    %v1655 = vadd.f32 %v1586, %v1654
    %v1656 = vtanh.pop %v1655
    %v1657 = vsub.f32 %v1240, %v1656
    %v1658 = vmul.f32 %v1652, %v1657
    %v1659 = vadd.f32 %v1656, %v1658
    %s1660 = scalar_lea.vmem [#allocation2], 384
    %v1661 = vld [vmem:[%s1660] sm:$0xff]
    %v1662 = vld [vmem:[%s1660 + $0x8] sm:$0xff]
    %v1663 = vld [vmem:[%s1660 + $0x10] sm:$0xff]
    %v1664 = vld [vmem:[%s1660 + $0x18] sm:$0xff]
    %v1665 = vld [vmem:[%s1660 + $0x20] sm:$0xff]
    %v1666 = vld [vmem:[%s1660 + $0x28] sm:$0xff]
    %v1667 = vld [vmem:[%s1660 + $0x30] sm:$0xff]
    %v1668 = vld [vmem:[%s1660 + $0x38] sm:$0xff]
    %v1669 = vld [vmem:[%s1660 + $0x40] sm:$0xff]
    %v1670 = vld [vmem:[%s1660 + $0x48] sm:$0xff]
    %v1671 = vld [vmem:[%s1660 + $0x50] sm:$0xff]
    %v1672 = vld [vmem:[%s1660 + $0x58] sm:$0xff]
    %v1673 = vld [vmem:[%s1660 + $0x60] sm:$0xff]
    %v1674 = vld [vmem:[%s1660 + $0x68] sm:$0xff]
    %v1675 = vld [vmem:[%s1660 + $0x70] sm:$0xff]
    %v1676 = vld [vmem:[%s1660 + $0x78] sm:$0xff]
    %s1677 = scalar_lea.vmem %s4, 8
    %v1678 = vld [vmem:[%s1677] sm:$0x3]
    %v1680 = vperm.slane %v1678, 0
    %v1681 = vperm.slane %v1678, 1
    %1684 = vmatpush.msra.mxu0 0.0
    %1685 = vmatpush.msra.mxu0 0.0
    %1686 = vmatpush.msra.mxu0 0.0
    %1687 = vmatpush.msra.mxu0 0.0
    %1688 = vmatpush.msra.mxu0 0.0
    %1689 = vmatpush.msra.mxu0 0.0
    %1690 = vmatpush.msra.mxu0 0.0
    %1691 = vmatpush.msra.mxu0 0.0
    %1692 = vmatpush.msra.mxu0 %v1675
    %1693 = vmatpush.msra.mxu0 %v1673
    %1694 = vmatpush.msra.mxu0 %v1671
    %1695 = vmatpush.msra.mxu0 %v1669
    %1696 = vmatpush.msra.mxu0 %v1667
    %1697 = vmatpush.msra.mxu0 %v1665
    %1698 = vmatpush.msra.mxu0 %v1663
    %1699 = vmatpush.msra.mxu0 %v1661
    %1700 = vmatmul.f32.gmra.mxu0 %v1589
    %v1701 = vpop.f32.mrf.mxu0
    %v1702 = vadd.f32 %v1680, %v1701
    %1703 = vdwg.mxu0
    %1704 = vmatpush.msra.mxu0 0.0
    %1705 = vmatpush.msra.mxu0 0.0
    %1706 = vmatpush.msra.mxu0 0.0
    %1707 = vmatpush.msra.mxu0 0.0
    %1708 = vmatpush.msra.mxu0 0.0
    %1709 = vmatpush.msra.mxu0 0.0
    %1710 = vmatpush.msra.mxu0 0.0
    %1711 = vmatpush.msra.mxu0 0.0
    %1712 = vmatpush.msra.mxu0 %v1676
    %1713 = vmatpush.msra.mxu0 %v1674
    %1714 = vmatpush.msra.mxu0 %v1672
    %1715 = vmatpush.msra.mxu0 %v1670
    %1716 = vmatpush.msra.mxu0 %v1668
    %1717 = vmatpush.msra.mxu0 %v1666
    %1718 = vmatpush.msra.mxu0 %v1664
    %1719 = vmatpush.msra.mxu0 %v1662
    %1720 = vmatmul.f32.gmra.mxu0 %v1589
    %v1721 = vpop.f32.mrf.mxu0
    %v1722 = vadd.f32 %v1681, %v1721
    %1723 = vdwg.mxu0
    %s1724 = scalar_lea.vmem [#allocation5], 512
    %v1725 = vld [vmem:[%s1724] sm:$0xff]
    %v1726 = vld [vmem:[%s1724 + $0x8] sm:$0xff]
    %v1727 = vld [vmem:[%s1724 + $0x10] sm:$0xff]
    %v1728 = vld [vmem:[%s1724 + $0x18] sm:$0xff]
    %v1729 = vld [vmem:[%s1724 + $0x20] sm:$0xff]
    %v1730 = vld [vmem:[%s1724 + $0x28] sm:$0xff]
    %v1731 = vld [vmem:[%s1724 + $0x30] sm:$0xff]
    %v1732 = vld [vmem:[%s1724 + $0x38] sm:$0xff]
    %v1733 = vld [vmem:[%s1724 + $0x40] sm:$0xff]
    %v1734 = vld [vmem:[%s1724 + $0x48] sm:$0xff]
    %v1735 = vld [vmem:[%s1724 + $0x50] sm:$0xff]
    %v1736 = vld [vmem:[%s1724 + $0x58] sm:$0xff]
    %v1737 = vld [vmem:[%s1724 + $0x60] sm:$0xff]
    %v1738 = vld [vmem:[%s1724 + $0x68] sm:$0xff]
    %v1739 = vld [vmem:[%s1724 + $0x70] sm:$0xff]
    %v1740 = vld [vmem:[%s1724 + $0x78] sm:$0xff]
    %1741 = vmatpush.msra.mxu0 0.0
    %1742 = vmatpush.msra.mxu0 0.0
    %1743 = vmatpush.msra.mxu0 0.0
    %1744 = vmatpush.msra.mxu0 0.0
    %1745 = vmatpush.msra.mxu0 0.0
    %1746 = vmatpush.msra.mxu0 0.0
    %1747 = vmatpush.msra.mxu0 0.0
    %1748 = vmatpush.msra.mxu0 0.0
    %1749 = vmatpush.msra.mxu0 %v1739
    %1750 = vmatpush.msra.mxu0 %v1737
    %1751 = vmatpush.msra.mxu0 %v1735
    %1752 = vmatpush.msra.mxu0 %v1733
    %1753 = vmatpush.msra.mxu0 %v1731
    %1754 = vmatpush.msra.mxu0 %v1729
    %1755 = vmatpush.msra.mxu0 %v1727
    %1756 = vmatpush.msra.mxu0 %v1725
    %1757 = vmatmul.f32.gmra.mxu0 %v117
    %v1758 = vpop.f32.mrf.mxu0
    %v1759 = vadd.f32 0.0, %v1758
    %1760 = vdwg.mxu0
    %1761 = vmatpush.msra.mxu0 0.0
    %1762 = vmatpush.msra.mxu0 0.0
    %1763 = vmatpush.msra.mxu0 0.0
    %1764 = vmatpush.msra.mxu0 0.0
    %1765 = vmatpush.msra.mxu0 0.0
    %1766 = vmatpush.msra.mxu0 0.0
    %1767 = vmatpush.msra.mxu0 0.0
    %1768 = vmatpush.msra.mxu0 0.0
    %1769 = vmatpush.msra.mxu0 %v1740
    %1770 = vmatpush.msra.mxu0 %v1738
    %1771 = vmatpush.msra.mxu0 %v1736
    %1772 = vmatpush.msra.mxu0 %v1734
    %1773 = vmatpush.msra.mxu0 %v1732
    %1774 = vmatpush.msra.mxu0 %v1730
    %1775 = vmatpush.msra.mxu0 %v1728
    %1776 = vmatpush.msra.mxu0 %v1726
    %1777 = vmatmul.f32.gmra.mxu0 %v117
    %v1778 = vpop.f32.mrf.mxu0
    %v1779 = vadd.f32 0.0, %v1778
    %1780 = vdwg.mxu0
    %s1781 = scalar_lea.vmem [#allocation7], 4
    %v1782 = vld [vmem:[%s1781] sm:$0x1]
    %v1783 = vadd.f32 %v1702, %v1759
    %v1784 = vxor.u32 %v1783, 2147483648
    %v1785 = vmul.f32 %v1784, 1.442695
    %v1786 = vpow.pop %v1785
    %v1787 = vadd.f32 %v1786, 1.0
    %v1788 = vrcp.pop %v1787
    %v1789 = vmul.f32 %v1787, %v1788
    %v1790 = vsub.f32 1.0, %v1789
    %v1791 = vmul.f32 %v1788, %v1790
    %v1792 = vadd.f32 %v1788, %v1791
    %vm1793 = vweird.f32 %v1787
    %vm1794 = vweird.f32 %v1788
    %vm1795 = vmor %vm1793, %vm1794
    %v1796 = vsel %vm1795, %v1788, %v1792
    %v1797 = vand.u32 2147483647, %v1787
    %vm1798 = vcmp.eq.f32.partialorder %v1797, 8.507059e+37
    %v1799 = vand.u32 %v1787, 2147483648
    %v1800 = vor.u32 1.1754944e-38, %v1799
    %v1801 = vsel %vm1798, %v1800, %v1796
    %v1802 = vmul.f32 1.0, %v1801
    %1803 = vrot.lane.b32.xlu0 %v1802, 64
    %v1804 = vpop.permute.xlu0 %1803
    %v1806 = vperm.slane %v1782, 0
    %v1808 = vadd.f32 %v1779, %v1806
    %v1809 = vmul.f32 %v1802, %v1808
    %v1810 = vadd.f32 %v1722, %v1809
    %v1811 = vtanh.pop %v1810
    %v1812 = vsub.f32 0.0, %v1811
    %v1813 = vmul.f32 %v1804, %v1812
    %v1814 = vadd.f32 %v1811, %v1813
    %s1815 = scalar_lea.vmem %s0, 40
    %v1816 = vld [vmem:[%s1815] sm:$0xff]
    %1818 = vset.pattern.permute.xlu0 0
    %1819 = vperm.xlu0 %1818, %v1816
    %v1820 = vpop.permute.xlu0 %1819
    %v1822 = vmul.f32 %v1820, %v85
    %v1823 = vmul.f32 %v1820, %v86
    %v1824 = vadd.f32 %v1822, %v93
    %v1825 = vadd.f32 %v1823, %v94
    %v1827 = vsel %vm115, %v1323, 0
    %1829 = vmatpush.msra.mxu0 0.0
    %1830 = vmatpush.msra.mxu0 0.0
    %1831 = vmatpush.msra.mxu0 0.0
    %1832 = vmatpush.msra.mxu0 0.0
    %1833 = vmatpush.msra.mxu0 0.0
    %1834 = vmatpush.msra.mxu0 0.0
    %1835 = vmatpush.msra.mxu0 0.0
    %1836 = vmatpush.msra.mxu0 0.0
    %1837 = vmatpush.msra.mxu0 %v113
    %1838 = vmatpush.msra.mxu0 %v111
    %1839 = vmatpush.msra.mxu0 %v109
    %1840 = vmatpush.msra.mxu0 %v107
    %1841 = vmatpush.msra.mxu0 %v105
    %1842 = vmatpush.msra.mxu0 %v103
    %1843 = vmatpush.msra.mxu0 %v101
    %1844 = vmatpush.msra.mxu0 %v99
    %1845 = vmatmul.f32.gmra.mxu0 %v1827
    %v1846 = vpop.f32.mrf.mxu0
    %v1847 = vadd.f32 0.0, %v1846
    %1848 = vdwg.mxu0
    %1849 = vmatpush.msra.mxu0 0.0
    %1850 = vmatpush.msra.mxu0 0.0
    %1851 = vmatpush.msra.mxu0 0.0
    %1852 = vmatpush.msra.mxu0 0.0
    %1853 = vmatpush.msra.mxu0 0.0
    %1854 = vmatpush.msra.mxu0 0.0
    %1855 = vmatpush.msra.mxu0 0.0
    %1856 = vmatpush.msra.mxu0 0.0
    %1857 = vmatpush.msra.mxu0 %v114
    %1858 = vmatpush.msra.mxu0 %v112
    %1859 = vmatpush.msra.mxu0 %v110
    %1860 = vmatpush.msra.mxu0 %v108
    %1861 = vmatpush.msra.mxu0 %v106
    %1862 = vmatpush.msra.mxu0 %v104
    %1863 = vmatpush.msra.mxu0 %v102
    %1864 = vmatpush.msra.mxu0 %v100
    %1865 = vmatmul.f32.gmra.mxu0 %v1827
    %v1866 = vpop.f32.mrf.mxu0
    %v1867 = vadd.f32 0.0, %v1866
    %1868 = vdwg.mxu0
    %v1869 = vadd.f32 %v1824, %v1847
    %v1870 = vxor.u32 %v1869, 2147483648
    %v1871 = vmul.f32 %v1870, 1.442695
    %v1872 = vpow.pop %v1871
    %v1873 = vadd.f32 %v1872, 1.0
    %v1874 = vrcp.pop %v1873
    %v1875 = vmul.f32 %v1873, %v1874
    %v1876 = vsub.f32 1.0, %v1875
    %v1877 = vmul.f32 %v1874, %v1876
    %v1878 = vadd.f32 %v1874, %v1877
    %vm1879 = vweird.f32 %v1873
    %vm1880 = vweird.f32 %v1874
    %vm1881 = vmor %vm1879, %vm1880
    %v1882 = vsel %vm1881, %v1874, %v1878
    %v1883 = vand.u32 2147483647, %v1873
    %vm1884 = vcmp.eq.f32.partialorder %v1883, 8.507059e+37
    %v1885 = vand.u32 %v1873, 2147483648
    %v1886 = vor.u32 1.1754944e-38, %v1885
    %v1887 = vsel %vm1884, %v1886, %v1882
    %v1888 = vmul.f32 1.0, %v1887
    %1889 = vrot.lane.b32.xlu0 %v1888, 64
    %v1890 = vpop.permute.xlu0 %1889
    %v1891 = vadd.f32 %v1867, %v183
    %v1892 = vmul.f32 %v1888, %v1891
    %v1893 = vadd.f32 %v1825, %v1892
    %v1894 = vtanh.pop %v1893
    %v1895 = vsub.f32 %v1323, %v1894
    %v1896 = vmul.f32 %v1890, %v1895
    %v1897 = vadd.f32 %v1894, %v1896
    %1898 = vmatpush.msra.mxu0 0.0
    %1899 = vmatpush.msra.mxu0 0.0
    %1900 = vmatpush.msra.mxu0 0.0
    %1901 = vmatpush.msra.mxu0 0.0
    %1902 = vmatpush.msra.mxu0 0.0
    %1903 = vmatpush.msra.mxu0 0.0
    %1904 = vmatpush.msra.mxu0 0.0
    %1905 = vmatpush.msra.mxu0 0.0
    %1906 = vmatpush.msra.mxu0 %v289
    %1907 = vmatpush.msra.mxu0 %v287
    %1908 = vmatpush.msra.mxu0 %v285
    %1909 = vmatpush.msra.mxu0 %v283
    %1910 = vmatpush.msra.mxu0 %v281
    %1911 = vmatpush.msra.mxu0 %v279
    %1912 = vmatpush.msra.mxu0 %v277
    %1913 = vmatpush.msra.mxu0 %v275
    %1914 = vmatmul.f32.gmra.mxu0 %v1827
    %v1915 = vpop.f32.mrf.mxu0
    %v1916 = vadd.f32 %v294, %v1915
    %1917 = vdwg.mxu0
    %1918 = vmatpush.msra.mxu0 0.0
    %1919 = vmatpush.msra.mxu0 0.0
    %1920 = vmatpush.msra.mxu0 0.0
    %1921 = vmatpush.msra.mxu0 0.0
    %1922 = vmatpush.msra.mxu0 0.0
    %1923 = vmatpush.msra.mxu0 0.0
    %1924 = vmatpush.msra.mxu0 0.0
    %1925 = vmatpush.msra.mxu0 0.0
    %1926 = vmatpush.msra.mxu0 %v290
    %1927 = vmatpush.msra.mxu0 %v288
    %1928 = vmatpush.msra.mxu0 %v286
    %1929 = vmatpush.msra.mxu0 %v284
    %1930 = vmatpush.msra.mxu0 %v282
    %1931 = vmatpush.msra.mxu0 %v280
    %1932 = vmatpush.msra.mxu0 %v278
    %1933 = vmatpush.msra.mxu0 %v276
    %1934 = vmatmul.f32.gmra.mxu0 %v1827
    %v1935 = vpop.f32.mrf.mxu0
    %v1936 = vadd.f32 %v295, %v1935
    %1937 = vdwg.mxu0
    %v1939 = vsel %vm115, %v1435, 0
    %1941 = vmatpush.msra.mxu0 0.0
    %1942 = vmatpush.msra.mxu0 0.0
    %1943 = vmatpush.msra.mxu0 0.0
    %1944 = vmatpush.msra.mxu0 0.0
    %1945 = vmatpush.msra.mxu0 0.0
    %1946 = vmatpush.msra.mxu0 0.0
    %1947 = vmatpush.msra.mxu0 0.0
    %1948 = vmatpush.msra.mxu0 0.0
    %1949 = vmatpush.msra.mxu0 %v353
    %1950 = vmatpush.msra.mxu0 %v351
    %1951 = vmatpush.msra.mxu0 %v349
    %1952 = vmatpush.msra.mxu0 %v347
    %1953 = vmatpush.msra.mxu0 %v345
    %1954 = vmatpush.msra.mxu0 %v343
    %1955 = vmatpush.msra.mxu0 %v341
    %1956 = vmatpush.msra.mxu0 %v339
    %1957 = vmatmul.f32.gmra.mxu0 %v1939
    %v1958 = vpop.f32.mrf.mxu0
    %v1959 = vadd.f32 0.0, %v1958
    %1960 = vdwg.mxu0
    %1961 = vmatpush.msra.mxu0 0.0
    %1962 = vmatpush.msra.mxu0 0.0
    %1963 = vmatpush.msra.mxu0 0.0
    %1964 = vmatpush.msra.mxu0 0.0
    %1965 = vmatpush.msra.mxu0 0.0
    %1966 = vmatpush.msra.mxu0 0.0
    %1967 = vmatpush.msra.mxu0 0.0
    %1968 = vmatpush.msra.mxu0 0.0
    %1969 = vmatpush.msra.mxu0 %v354
    %1970 = vmatpush.msra.mxu0 %v352
    %1971 = vmatpush.msra.mxu0 %v350
    %1972 = vmatpush.msra.mxu0 %v348
    %1973 = vmatpush.msra.mxu0 %v346
    %1974 = vmatpush.msra.mxu0 %v344
    %1975 = vmatpush.msra.mxu0 %v342
    %1976 = vmatpush.msra.mxu0 %v340
    %1977 = vmatmul.f32.gmra.mxu0 %v1939
    %v1978 = vpop.f32.mrf.mxu0
    %v1979 = vadd.f32 0.0, %v1978
    %1980 = vdwg.mxu0
    %v1981 = vadd.f32 %v1916, %v1959
    %v1982 = vxor.u32 %v1981, 2147483648
    %v1983 = vmul.f32 %v1982, 1.442695
    %v1984 = vpow.pop %v1983
    %v1985 = vadd.f32 %v1984, 1.0
    %v1986 = vrcp.pop %v1985
    %v1987 = vmul.f32 %v1985, %v1986
    %v1988 = vsub.f32 1.0, %v1987
    %v1989 = vmul.f32 %v1986, %v1988
    %v1990 = vadd.f32 %v1986, %v1989
    %vm1991 = vweird.f32 %v1985
    %vm1992 = vweird.f32 %v1986
    %vm1993 = vmor %vm1991, %vm1992
    %v1994 = vsel %vm1993, %v1986, %v1990
    %v1995 = vand.u32 2147483647, %v1985
    %vm1996 = vcmp.eq.f32.partialorder %v1995, 8.507059e+37
    %v1997 = vand.u32 %v1985, 2147483648
    %v1998 = vor.u32 1.1754944e-38, %v1997
    %v1999 = vsel %vm1996, %v1998, %v1994
    %v2000 = vmul.f32 1.0, %v1999
    %2001 = vrot.lane.b32.xlu0 %v2000, 64
    %v2002 = vpop.permute.xlu0 %2001
    %v2003 = vadd.f32 %v1979, %v420
    %v2004 = vmul.f32 %v2000, %v2003
    %v2005 = vadd.f32 %v1936, %v2004
    %v2006 = vtanh.pop %v2005
    %v2007 = vsub.f32 %v1435, %v2006
    %v2008 = vmul.f32 %v2002, %v2007
    %v2009 = vadd.f32 %v2006, %v2008
    %2010 = vmatpush.msra.mxu0 0.0
    %2011 = vmatpush.msra.mxu0 0.0
    %2012 = vmatpush.msra.mxu0 0.0
    %2013 = vmatpush.msra.mxu0 0.0
    %2014 = vmatpush.msra.mxu0 0.0
    %2015 = vmatpush.msra.mxu0 0.0
    %2016 = vmatpush.msra.mxu0 0.0
    %2017 = vmatpush.msra.mxu0 0.0
    %2018 = vmatpush.msra.mxu0 %v639
    %2019 = vmatpush.msra.mxu0 %v637
    %2020 = vmatpush.msra.mxu0 %v635
    %2021 = vmatpush.msra.mxu0 %v633
    %2022 = vmatpush.msra.mxu0 %v631
    %2023 = vmatpush.msra.mxu0 %v629
    %2024 = vmatpush.msra.mxu0 %v627
    %2025 = vmatpush.msra.mxu0 %v625
    %2026 = vmatmul.f32.gmra.mxu0 %v1939
    %v2027 = vpop.f32.mrf.mxu0
    %v2028 = vadd.f32 %v644, %v2027
    %2029 = vdwg.mxu0
    %2030 = vmatpush.msra.mxu0 0.0
    %2031 = vmatpush.msra.mxu0 0.0
    %2032 = vmatpush.msra.mxu0 0.0
    %2033 = vmatpush.msra.mxu0 0.0
    %2034 = vmatpush.msra.mxu0 0.0
    %2035 = vmatpush.msra.mxu0 0.0
    %2036 = vmatpush.msra.mxu0 0.0
    %2037 = vmatpush.msra.mxu0 0.0
    %2038 = vmatpush.msra.mxu0 %v640
    %2039 = vmatpush.msra.mxu0 %v638
    %2040 = vmatpush.msra.mxu0 %v636
    %2041 = vmatpush.msra.mxu0 %v634
    %2042 = vmatpush.msra.mxu0 %v632
    %2043 = vmatpush.msra.mxu0 %v630
    %2044 = vmatpush.msra.mxu0 %v628
    %2045 = vmatpush.msra.mxu0 %v626
    %2046 = vmatmul.f32.gmra.mxu0 %v1939
    %v2047 = vpop.f32.mrf.mxu0
    %v2048 = vadd.f32 %v645, %v2047
    %2049 = vdwg.mxu0
    %v2051 = vsel %vm115, %v1547, 0
    %2053 = vmatpush.msra.mxu0 0.0
    %2054 = vmatpush.msra.mxu0 0.0
    %2055 = vmatpush.msra.mxu0 0.0
    %2056 = vmatpush.msra.mxu0 0.0
    %2057 = vmatpush.msra.mxu0 0.0
    %2058 = vmatpush.msra.mxu0 0.0
    %2059 = vmatpush.msra.mxu0 0.0
    %2060 = vmatpush.msra.mxu0 0.0
    %2061 = vmatpush.msra.mxu0 %v703
    %2062 = vmatpush.msra.mxu0 %v701
    %2063 = vmatpush.msra.mxu0 %v699
    %2064 = vmatpush.msra.mxu0 %v697
    %2065 = vmatpush.msra.mxu0 %v695
    %2066 = vmatpush.msra.mxu0 %v693
    %2067 = vmatpush.msra.mxu0 %v691
    %2068 = vmatpush.msra.mxu0 %v689
    %2069 = vmatmul.f32.gmra.mxu0 %v2051
    %v2070 = vpop.f32.mrf.mxu0
    %v2071 = vadd.f32 0.0, %v2070
    %2072 = vdwg.mxu0
    %2073 = vmatpush.msra.mxu0 0.0
    %2074 = vmatpush.msra.mxu0 0.0
    %2075 = vmatpush.msra.mxu0 0.0
    %2076 = vmatpush.msra.mxu0 0.0
    %2077 = vmatpush.msra.mxu0 0.0
    %2078 = vmatpush.msra.mxu0 0.0
    %2079 = vmatpush.msra.mxu0 0.0
    %2080 = vmatpush.msra.mxu0 0.0
    %2081 = vmatpush.msra.mxu0 %v704
    %2082 = vmatpush.msra.mxu0 %v702
    %2083 = vmatpush.msra.mxu0 %v700
    %2084 = vmatpush.msra.mxu0 %v698
    %2085 = vmatpush.msra.mxu0 %v696
    %2086 = vmatpush.msra.mxu0 %v694
    %2087 = vmatpush.msra.mxu0 %v692
    %2088 = vmatpush.msra.mxu0 %v690
    %2089 = vmatmul.f32.gmra.mxu0 %v2051
    %v2090 = vpop.f32.mrf.mxu0
    %v2091 = vadd.f32 0.0, %v2090
    %2092 = vdwg.mxu0
    %v2093 = vadd.f32 %v2028, %v2071
    %v2094 = vxor.u32 %v2093, 2147483648
    %v2095 = vmul.f32 %v2094, 1.442695
    %v2096 = vpow.pop %v2095
    %v2097 = vadd.f32 %v2096, 1.0
    %v2098 = vrcp.pop %v2097
    %v2099 = vmul.f32 %v2097, %v2098
    %v2100 = vsub.f32 1.0, %v2099
    %v2101 = vmul.f32 %v2098, %v2100
    %v2102 = vadd.f32 %v2098, %v2101
    %vm2103 = vweird.f32 %v2097
    %vm2104 = vweird.f32 %v2098
    %vm2105 = vmor %vm2103, %vm2104
    %v2106 = vsel %vm2105, %v2098, %v2102
    %v2107 = vand.u32 2147483647, %v2097
    %vm2108 = vcmp.eq.f32.partialorder %v2107, 8.507059e+37
    %v2109 = vand.u32 %v2097, 2147483648
    %v2110 = vor.u32 1.1754944e-38, %v2109
    %v2111 = vsel %vm2108, %v2110, %v2106
    %v2112 = vmul.f32 1.0, %v2111
    %2113 = vrot.lane.b32.xlu0 %v2112, 64
    %v2114 = vpop.permute.xlu0 %2113
    %v2115 = vadd.f32 %v2091, %v770
    %v2116 = vmul.f32 %v2112, %v2115
    %v2117 = vadd.f32 %v2048, %v2116
    %v2118 = vtanh.pop %v2117
    %v2119 = vsub.f32 %v1547, %v2118
    %v2120 = vmul.f32 %v2114, %v2119
    %v2121 = vadd.f32 %v2118, %v2120
    %2122 = vmatpush.msra.mxu0 0.0
    %2123 = vmatpush.msra.mxu0 0.0
    %2124 = vmatpush.msra.mxu0 0.0
    %2125 = vmatpush.msra.mxu0 0.0
    %2126 = vmatpush.msra.mxu0 0.0
    %2127 = vmatpush.msra.mxu0 0.0
    %2128 = vmatpush.msra.mxu0 0.0
    %2129 = vmatpush.msra.mxu0 0.0
    %2130 = vmatpush.msra.mxu0 %v1101
    %2131 = vmatpush.msra.mxu0 %v1099
    %2132 = vmatpush.msra.mxu0 %v1097
    %2133 = vmatpush.msra.mxu0 %v1095
    %2134 = vmatpush.msra.mxu0 %v1093
    %2135 = vmatpush.msra.mxu0 %v1091
    %2136 = vmatpush.msra.mxu0 %v1089
    %2137 = vmatpush.msra.mxu0 %v1087
    %2138 = vmatmul.f32.gmra.mxu0 %v2051
    %v2139 = vpop.f32.mrf.mxu0
    %v2140 = vadd.f32 %v1106, %v2139
    %2141 = vdwg.mxu0
    %2142 = vmatpush.msra.mxu0 0.0
    %2143 = vmatpush.msra.mxu0 0.0
    %2144 = vmatpush.msra.mxu0 0.0
    %2145 = vmatpush.msra.mxu0 0.0
    %2146 = vmatpush.msra.mxu0 0.0
    %2147 = vmatpush.msra.mxu0 0.0
    %2148 = vmatpush.msra.mxu0 0.0
    %2149 = vmatpush.msra.mxu0 0.0
    %2150 = vmatpush.msra.mxu0 %v1102
    %2151 = vmatpush.msra.mxu0 %v1100
    %2152 = vmatpush.msra.mxu0 %v1098
    %2153 = vmatpush.msra.mxu0 %v1096
    %2154 = vmatpush.msra.mxu0 %v1094
    %2155 = vmatpush.msra.mxu0 %v1092
    %2156 = vmatpush.msra.mxu0 %v1090
    %2157 = vmatpush.msra.mxu0 %v1088
    %2158 = vmatmul.f32.gmra.mxu0 %v2051
    %v2159 = vpop.f32.mrf.mxu0
    %v2160 = vadd.f32 %v1107, %v2159
    %2161 = vdwg.mxu0
    %v2163 = vsel %vm115, %v1659, 0
    %2165 = vmatpush.msra.mxu0 0.0
    %2166 = vmatpush.msra.mxu0 0.0
    %2167 = vmatpush.msra.mxu0 0.0
    %2168 = vmatpush.msra.mxu0 0.0
    %2169 = vmatpush.msra.mxu0 0.0
    %2170 = vmatpush.msra.mxu0 0.0
    %2171 = vmatpush.msra.mxu0 0.0
    %2172 = vmatpush.msra.mxu0 0.0
    %2173 = vmatpush.msra.mxu0 %v1165
    %2174 = vmatpush.msra.mxu0 %v1163
    %2175 = vmatpush.msra.mxu0 %v1161
    %2176 = vmatpush.msra.mxu0 %v1159
    %2177 = vmatpush.msra.mxu0 %v1157
    %2178 = vmatpush.msra.mxu0 %v1155
    %2179 = vmatpush.msra.mxu0 %v1153
    %2180 = vmatpush.msra.mxu0 %v1151
    %2181 = vmatmul.f32.gmra.mxu0 %v2163
    %v2182 = vpop.f32.mrf.mxu0
    %v2183 = vadd.f32 0.0, %v2182
    %2184 = vdwg.mxu0
    %2185 = vmatpush.msra.mxu0 0.0
    %2186 = vmatpush.msra.mxu0 0.0
    %2187 = vmatpush.msra.mxu0 0.0
    %2188 = vmatpush.msra.mxu0 0.0
    %2189 = vmatpush.msra.mxu0 0.0
    %2190 = vmatpush.msra.mxu0 0.0
    %2191 = vmatpush.msra.mxu0 0.0
    %2192 = vmatpush.msra.mxu0 0.0
    %2193 = vmatpush.msra.mxu0 %v1166
    %2194 = vmatpush.msra.mxu0 %v1164
    %2195 = vmatpush.msra.mxu0 %v1162
    %2196 = vmatpush.msra.mxu0 %v1160
    %2197 = vmatpush.msra.mxu0 %v1158
    %2198 = vmatpush.msra.mxu0 %v1156
    %2199 = vmatpush.msra.mxu0 %v1154
    %2200 = vmatpush.msra.mxu0 %v1152
    %2201 = vmatmul.f32.gmra.mxu0 %v2163
    %v2202 = vpop.f32.mrf.mxu0
    %v2203 = vadd.f32 0.0, %v2202
    %2204 = vdwg.mxu0
    %v2205 = vadd.f32 %v2140, %v2183
    %v2206 = vxor.u32 %v2205, 2147483648
    %v2207 = vmul.f32 %v2206, 1.442695
    %v2208 = vpow.pop %v2207
    %v2209 = vadd.f32 %v2208, 1.0
    %v2210 = vrcp.pop %v2209
    %v2211 = vmul.f32 %v2209, %v2210
    %v2212 = vsub.f32 1.0, %v2211
    %v2213 = vmul.f32 %v2210, %v2212
    %v2214 = vadd.f32 %v2210, %v2213
    %vm2215 = vweird.f32 %v2209
    %vm2216 = vweird.f32 %v2210
    %vm2217 = vmor %vm2215, %vm2216
    %v2218 = vsel %vm2217, %v2210, %v2214
    %v2219 = vand.u32 2147483647, %v2209
    %vm2220 = vcmp.eq.f32.partialorder %v2219, 8.507059e+37
    %v2221 = vand.u32 %v2209, 2147483648
    %v2222 = vor.u32 1.1754944e-38, %v2221
    %v2223 = vsel %vm2220, %v2222, %v2218
    %v2224 = vmul.f32 1.0, %v2223
    %2225 = vrot.lane.b32.xlu0 %v2224, 64
    %v2226 = vpop.permute.xlu0 %2225
    %v2227 = vadd.f32 %v2203, %v1232
    %v2228 = vmul.f32 %v2224, %v2227
    %v2229 = vadd.f32 %v2160, %v2228
    %v2230 = vtanh.pop %v2229
    %v2231 = vsub.f32 %v1659, %v2230
    %v2232 = vmul.f32 %v2226, %v2231
    %v2233 = vadd.f32 %v2230, %v2232
    %2234 = vmatpush.msra.mxu0 0.0
    %2235 = vmatpush.msra.mxu0 0.0
    %2236 = vmatpush.msra.mxu0 0.0
    %2237 = vmatpush.msra.mxu0 0.0
    %2238 = vmatpush.msra.mxu0 0.0
    %2239 = vmatpush.msra.mxu0 0.0
    %2240 = vmatpush.msra.mxu0 0.0
    %2241 = vmatpush.msra.mxu0 0.0
    %2242 = vmatpush.msra.mxu0 %v1675
    %2243 = vmatpush.msra.mxu0 %v1673
    %2244 = vmatpush.msra.mxu0 %v1671
    %2245 = vmatpush.msra.mxu0 %v1669
    %2246 = vmatpush.msra.mxu0 %v1667
    %2247 = vmatpush.msra.mxu0 %v1665
    %2248 = vmatpush.msra.mxu0 %v1663
    %2249 = vmatpush.msra.mxu0 %v1661
    %2250 = vmatmul.f32.gmra.mxu0 %v2163
    %v2251 = vpop.f32.mrf.mxu0
    %v2252 = vadd.f32 %v1680, %v2251
    %2253 = vdwg.mxu0
    %2254 = vmatpush.msra.mxu0 0.0
    %2255 = vmatpush.msra.mxu0 0.0
    %2256 = vmatpush.msra.mxu0 0.0
    %2257 = vmatpush.msra.mxu0 0.0
    %2258 = vmatpush.msra.mxu0 0.0
    %2259 = vmatpush.msra.mxu0 0.0
    %2260 = vmatpush.msra.mxu0 0.0
    %2261 = vmatpush.msra.mxu0 0.0
    %2262 = vmatpush.msra.mxu0 %v1676
    %2263 = vmatpush.msra.mxu0 %v1674
    %2264 = vmatpush.msra.mxu0 %v1672
    %2265 = vmatpush.msra.mxu0 %v1670
    %2266 = vmatpush.msra.mxu0 %v1668
    %2267 = vmatpush.msra.mxu0 %v1666
    %2268 = vmatpush.msra.mxu0 %v1664
    %2269 = vmatpush.msra.mxu0 %v1662
    %2270 = vmatmul.f32.gmra.mxu0 %v2163
    %v2271 = vpop.f32.mrf.mxu0
    %v2272 = vadd.f32 %v1681, %v2271
    %2273 = vdwg.mxu0
    %v2275 = vsel %vm115, %v1814, 0
    %2277 = vmatpush.msra.mxu0 0.0
    %2278 = vmatpush.msra.mxu0 0.0
    %2279 = vmatpush.msra.mxu0 0.0
    %2280 = vmatpush.msra.mxu0 0.0
    %2281 = vmatpush.msra.mxu0 0.0
    %2282 = vmatpush.msra.mxu0 0.0
    %2283 = vmatpush.msra.mxu0 0.0
    %2284 = vmatpush.msra.mxu0 0.0
    %2285 = vmatpush.msra.mxu0 %v1739
    %2286 = vmatpush.msra.mxu0 %v1737
    %2287 = vmatpush.msra.mxu0 %v1735
    %2288 = vmatpush.msra.mxu0 %v1733
    %2289 = vmatpush.msra.mxu0 %v1731
    %2290 = vmatpush.msra.mxu0 %v1729
    %2291 = vmatpush.msra.mxu0 %v1727
    %2292 = vmatpush.msra.mxu0 %v1725
    %2293 = vmatmul.f32.gmra.mxu0 %v2275
    %v2294 = vpop.f32.mrf.mxu0
    %v2295 = vadd.f32 0.0, %v2294
    %2296 = vdwg.mxu0
    %2297 = vmatpush.msra.mxu0 0.0
    %2298 = vmatpush.msra.mxu0 0.0
    %2299 = vmatpush.msra.mxu0 0.0
    %2300 = vmatpush.msra.mxu0 0.0
    %2301 = vmatpush.msra.mxu0 0.0
    %2302 = vmatpush.msra.mxu0 0.0
    %2303 = vmatpush.msra.mxu0 0.0
    %2304 = vmatpush.msra.mxu0 0.0
    %2305 = vmatpush.msra.mxu0 %v1740
    %2306 = vmatpush.msra.mxu0 %v1738
    %2307 = vmatpush.msra.mxu0 %v1736
    %2308 = vmatpush.msra.mxu0 %v1734
    %2309 = vmatpush.msra.mxu0 %v1732
    %2310 = vmatpush.msra.mxu0 %v1730
    %2311 = vmatpush.msra.mxu0 %v1728
    %2312 = vmatpush.msra.mxu0 %v1726
    %2313 = vmatmul.f32.gmra.mxu0 %v2275
    %v2314 = vpop.f32.mrf.mxu0
    %v2315 = vadd.f32 0.0, %v2314
    %2316 = vdwg.mxu0
    %v2317 = vadd.f32 %v2252, %v2295
    %v2318 = vxor.u32 %v2317, 2147483648
    %v2319 = vmul.f32 %v2318, 1.442695
    %v2320 = vpow.pop %v2319
    %v2321 = vadd.f32 %v2320, 1.0
    %v2322 = vrcp.pop %v2321
    %v2323 = vmul.f32 %v2321, %v2322
    %v2324 = vsub.f32 1.0, %v2323
    %v2325 = vmul.f32 %v2322, %v2324
    %v2326 = vadd.f32 %v2322, %v2325
    %vm2327 = vweird.f32 %v2321
    %vm2328 = vweird.f32 %v2322
    %vm2329 = vmor %vm2327, %vm2328
    %v2330 = vsel %vm2329, %v2322, %v2326
    %v2331 = vand.u32 2147483647, %v2321
    %vm2332 = vcmp.eq.f32.partialorder %v2331, 8.507059e+37
    %v2333 = vand.u32 %v2321, 2147483648
    %v2334 = vor.u32 1.1754944e-38, %v2333
    %v2335 = vsel %vm2332, %v2334, %v2330
    %v2336 = vmul.f32 1.0, %v2335
    %2337 = vrot.lane.b32.xlu0 %v2336, 64
    %v2338 = vpop.permute.xlu0 %2337
    %v2339 = vadd.f32 %v2315, %v1806
    %v2340 = vmul.f32 %v2336, %v2339
    %v2341 = vadd.f32 %v2272, %v2340
    %v2342 = vtanh.pop %v2341
    %v2343 = vsub.f32 %v1814, %v2342
    %v2344 = vmul.f32 %v2338, %v2343
    %v2345 = vadd.f32 %v2342, %v2344
    %s2346 = scalar_lea.vmem %s0, 48
    %v2347 = vld [vmem:[%s2346] sm:$0xff]
    %2349 = vset.pattern.permute.xlu0 0
    %2350 = vperm.xlu0 %2349, %v2347
    %v2351 = vpop.permute.xlu0 %2350
    %v2353 = vmul.f32 %v2351, %v85
    %v2354 = vmul.f32 %v2351, %v86
    %v2355 = vadd.f32 %v2353, %v93
    %v2356 = vadd.f32 %v2354, %v94
    %v2358 = vsel %vm115, %v1897, 0
    %2360 = vmatpush.msra.mxu0 0.0
    %2361 = vmatpush.msra.mxu0 0.0
    %2362 = vmatpush.msra.mxu0 0.0
    %2363 = vmatpush.msra.mxu0 0.0
    %2364 = vmatpush.msra.mxu0 0.0
    %2365 = vmatpush.msra.mxu0 0.0
    %2366 = vmatpush.msra.mxu0 0.0
    %2367 = vmatpush.msra.mxu0 0.0
    %2368 = vmatpush.msra.mxu0 %v113
    %2369 = vmatpush.msra.mxu0 %v111
    %2370 = vmatpush.msra.mxu0 %v109
    %2371 = vmatpush.msra.mxu0 %v107
    %2372 = vmatpush.msra.mxu0 %v105
    %2373 = vmatpush.msra.mxu0 %v103
    %2374 = vmatpush.msra.mxu0 %v101
    %2375 = vmatpush.msra.mxu0 %v99
    %2376 = vmatmul.f32.gmra.mxu0 %v2358
    %v2377 = vpop.f32.mrf.mxu0
    %v2378 = vadd.f32 0.0, %v2377
    %2379 = vdwg.mxu0
    %2380 = vmatpush.msra.mxu0 0.0
    %2381 = vmatpush.msra.mxu0 0.0
    %2382 = vmatpush.msra.mxu0 0.0
    %2383 = vmatpush.msra.mxu0 0.0
    %2384 = vmatpush.msra.mxu0 0.0
    %2385 = vmatpush.msra.mxu0 0.0
    %2386 = vmatpush.msra.mxu0 0.0
    %2387 = vmatpush.msra.mxu0 0.0
    %2388 = vmatpush.msra.mxu0 %v114
    %2389 = vmatpush.msra.mxu0 %v112
    %2390 = vmatpush.msra.mxu0 %v110
    %2391 = vmatpush.msra.mxu0 %v108
    %2392 = vmatpush.msra.mxu0 %v106
    %2393 = vmatpush.msra.mxu0 %v104
    %2394 = vmatpush.msra.mxu0 %v102
    %2395 = vmatpush.msra.mxu0 %v100
    %2396 = vmatmul.f32.gmra.mxu0 %v2358
    %v2397 = vpop.f32.mrf.mxu0
    %v2398 = vadd.f32 0.0, %v2397
    %2399 = vdwg.mxu0
    %v2400 = vadd.f32 %v2355, %v2378
    %v2401 = vxor.u32 %v2400, 2147483648
    %v2402 = vmul.f32 %v2401, 1.442695
    %v2403 = vpow.pop %v2402
    %v2404 = vadd.f32 %v2403, 1.0
    %v2405 = vrcp.pop %v2404
    %v2406 = vmul.f32 %v2404, %v2405
    %v2407 = vsub.f32 1.0, %v2406
    %v2408 = vmul.f32 %v2405, %v2407
    %v2409 = vadd.f32 %v2405, %v2408
    %vm2410 = vweird.f32 %v2404
    %vm2411 = vweird.f32 %v2405
    %vm2412 = vmor %vm2410, %vm2411
    %v2413 = vsel %vm2412, %v2405, %v2409
    %v2414 = vand.u32 2147483647, %v2404
    %vm2415 = vcmp.eq.f32.partialorder %v2414, 8.507059e+37
    %v2416 = vand.u32 %v2404, 2147483648
    %v2417 = vor.u32 1.1754944e-38, %v2416
    %v2418 = vsel %vm2415, %v2417, %v2413
    %v2419 = vmul.f32 1.0, %v2418
    %2420 = vrot.lane.b32.xlu0 %v2419, 64
    %v2421 = vpop.permute.xlu0 %2420
    %v2422 = vadd.f32 %v2398, %v183
    %v2423 = vmul.f32 %v2419, %v2422
    %v2424 = vadd.f32 %v2356, %v2423
    %v2425 = vtanh.pop %v2424
    %v2426 = vsub.f32 %v1897, %v2425
    %v2427 = vmul.f32 %v2421, %v2426
    %v2428 = vadd.f32 %v2425, %v2427
    %2429 = vmatpush.msra.mxu0 0.0
    %2430 = vmatpush.msra.mxu0 0.0
    %2431 = vmatpush.msra.mxu0 0.0
    %2432 = vmatpush.msra.mxu0 0.0
    %2433 = vmatpush.msra.mxu0 0.0
    %2434 = vmatpush.msra.mxu0 0.0
    %2435 = vmatpush.msra.mxu0 0.0
    %2436 = vmatpush.msra.mxu0 0.0
    %2437 = vmatpush.msra.mxu0 %v289
    %2438 = vmatpush.msra.mxu0 %v287
    %2439 = vmatpush.msra.mxu0 %v285
    %2440 = vmatpush.msra.mxu0 %v283
    %2441 = vmatpush.msra.mxu0 %v281
    %2442 = vmatpush.msra.mxu0 %v279
    %2443 = vmatpush.msra.mxu0 %v277
    %2444 = vmatpush.msra.mxu0 %v275
    %2445 = vmatmul.f32.gmra.mxu0 %v2358
    %v2446 = vpop.f32.mrf.mxu0
    %v2447 = vadd.f32 %v294, %v2446
    %2448 = vdwg.mxu0
    %2449 = vmatpush.msra.mxu0 0.0
    %2450 = vmatpush.msra.mxu0 0.0
    %2451 = vmatpush.msra.mxu0 0.0
    %2452 = vmatpush.msra.mxu0 0.0
    %2453 = vmatpush.msra.mxu0 0.0
    %2454 = vmatpush.msra.mxu0 0.0
    %2455 = vmatpush.msra.mxu0 0.0
    %2456 = vmatpush.msra.mxu0 0.0
    %2457 = vmatpush.msra.mxu0 %v290
    %2458 = vmatpush.msra.mxu0 %v288
    %2459 = vmatpush.msra.mxu0 %v286
    %2460 = vmatpush.msra.mxu0 %v284
    %2461 = vmatpush.msra.mxu0 %v282
    %2462 = vmatpush.msra.mxu0 %v280
    %2463 = vmatpush.msra.mxu0 %v278
    %2464 = vmatpush.msra.mxu0 %v276
    %2465 = vmatmul.f32.gmra.mxu0 %v2358
    %v2466 = vpop.f32.mrf.mxu0
    %v2467 = vadd.f32 %v295, %v2466
    %2468 = vdwg.mxu0
    %v2470 = vsel %vm115, %v2009, 0
    %2472 = vmatpush.msra.mxu0 0.0
    %2473 = vmatpush.msra.mxu0 0.0
    %2474 = vmatpush.msra.mxu0 0.0
    %2475 = vmatpush.msra.mxu0 0.0
    %2476 = vmatpush.msra.mxu0 0.0
    %2477 = vmatpush.msra.mxu0 0.0
    %2478 = vmatpush.msra.mxu0 0.0
    %2479 = vmatpush.msra.mxu0 0.0
    %2480 = vmatpush.msra.mxu0 %v353
    %2481 = vmatpush.msra.mxu0 %v351
    %2482 = vmatpush.msra.mxu0 %v349
    %2483 = vmatpush.msra.mxu0 %v347
    %2484 = vmatpush.msra.mxu0 %v345
    %2485 = vmatpush.msra.mxu0 %v343
    %2486 = vmatpush.msra.mxu0 %v341
    %2487 = vmatpush.msra.mxu0 %v339
    %2488 = vmatmul.f32.gmra.mxu0 %v2470
    %v2489 = vpop.f32.mrf.mxu0
    %v2490 = vadd.f32 0.0, %v2489
    %2491 = vdwg.mxu0
    %2492 = vmatpush.msra.mxu0 0.0
    %2493 = vmatpush.msra.mxu0 0.0
    %2494 = vmatpush.msra.mxu0 0.0
    %2495 = vmatpush.msra.mxu0 0.0
    %2496 = vmatpush.msra.mxu0 0.0
    %2497 = vmatpush.msra.mxu0 0.0
    %2498 = vmatpush.msra.mxu0 0.0
    %2499 = vmatpush.msra.mxu0 0.0
    %2500 = vmatpush.msra.mxu0 %v354
    %2501 = vmatpush.msra.mxu0 %v352
    %2502 = vmatpush.msra.mxu0 %v350
    %2503 = vmatpush.msra.mxu0 %v348
    %2504 = vmatpush.msra.mxu0 %v346
    %2505 = vmatpush.msra.mxu0 %v344
    %2506 = vmatpush.msra.mxu0 %v342
    %2507 = vmatpush.msra.mxu0 %v340
    %2508 = vmatmul.f32.gmra.mxu0 %v2470
    %v2509 = vpop.f32.mrf.mxu0
    %v2510 = vadd.f32 0.0, %v2509
    %2511 = vdwg.mxu0
    %v2512 = vadd.f32 %v2447, %v2490
    %v2513 = vxor.u32 %v2512, 2147483648
    %v2514 = vmul.f32 %v2513, 1.442695
    %v2515 = vpow.pop %v2514
    %v2516 = vadd.f32 %v2515, 1.0
    %v2517 = vrcp.pop %v2516
    %v2518 = vmul.f32 %v2516, %v2517
    %v2519 = vsub.f32 1.0, %v2518
    %v2520 = vmul.f32 %v2517, %v2519
    %v2521 = vadd.f32 %v2517, %v2520
    %vm2522 = vweird.f32 %v2516
    %vm2523 = vweird.f32 %v2517
    %vm2524 = vmor %vm2522, %vm2523
    %v2525 = vsel %vm2524, %v2517, %v2521
    %v2526 = vand.u32 2147483647, %v2516
    %vm2527 = vcmp.eq.f32.partialorder %v2526, 8.507059e+37
    %v2528 = vand.u32 %v2516, 2147483648
    %v2529 = vor.u32 1.1754944e-38, %v2528
    %v2530 = vsel %vm2527, %v2529, %v2525
    %v2531 = vmul.f32 1.0, %v2530
    %2532 = vrot.lane.b32.xlu0 %v2531, 64
    %v2533 = vpop.permute.xlu0 %2532
    %v2534 = vadd.f32 %v2510, %v420
    %v2535 = vmul.f32 %v2531, %v2534
    %v2536 = vadd.f32 %v2467, %v2535
    %v2537 = vtanh.pop %v2536
    %v2538 = vsub.f32 %v2009, %v2537
    %v2539 = vmul.f32 %v2533, %v2538
    %v2540 = vadd.f32 %v2537, %v2539
    %2541 = vmatpush.msra.mxu0 0.0
    %2542 = vmatpush.msra.mxu0 0.0
    %2543 = vmatpush.msra.mxu0 0.0
    %2544 = vmatpush.msra.mxu0 0.0
    %2545 = vmatpush.msra.mxu0 0.0
    %2546 = vmatpush.msra.mxu0 0.0
    %2547 = vmatpush.msra.mxu0 0.0
    %2548 = vmatpush.msra.mxu0 0.0
    %2549 = vmatpush.msra.mxu0 %v639
    %2550 = vmatpush.msra.mxu0 %v637
    %2551 = vmatpush.msra.mxu0 %v635
    %2552 = vmatpush.msra.mxu0 %v633
    %2553 = vmatpush.msra.mxu0 %v631
    %2554 = vmatpush.msra.mxu0 %v629
    %2555 = vmatpush.msra.mxu0 %v627
    %2556 = vmatpush.msra.mxu0 %v625
    %2557 = vmatmul.f32.gmra.mxu0 %v2470
    %v2558 = vpop.f32.mrf.mxu0
    %v2559 = vadd.f32 %v644, %v2558
    %2560 = vdwg.mxu0
    %2561 = vmatpush.msra.mxu0 0.0
    %2562 = vmatpush.msra.mxu0 0.0
    %2563 = vmatpush.msra.mxu0 0.0
    %2564 = vmatpush.msra.mxu0 0.0
    %2565 = vmatpush.msra.mxu0 0.0
    %2566 = vmatpush.msra.mxu0 0.0
    %2567 = vmatpush.msra.mxu0 0.0
    %2568 = vmatpush.msra.mxu0 0.0
    %2569 = vmatpush.msra.mxu0 %v640
    %2570 = vmatpush.msra.mxu0 %v638
    %2571 = vmatpush.msra.mxu0 %v636
    %2572 = vmatpush.msra.mxu0 %v634
    %2573 = vmatpush.msra.mxu0 %v632
    %2574 = vmatpush.msra.mxu0 %v630
    %2575 = vmatpush.msra.mxu0 %v628
    %2576 = vmatpush.msra.mxu0 %v626
    %2577 = vmatmul.f32.gmra.mxu0 %v2470
    %v2578 = vpop.f32.mrf.mxu0
    %v2579 = vadd.f32 %v645, %v2578
    %2580 = vdwg.mxu0
    %v2582 = vsel %vm115, %v2121, 0
    %2584 = vmatpush.msra.mxu0 0.0
    %2585 = vmatpush.msra.mxu0 0.0
    %2586 = vmatpush.msra.mxu0 0.0
    %2587 = vmatpush.msra.mxu0 0.0
    %2588 = vmatpush.msra.mxu0 0.0
    %2589 = vmatpush.msra.mxu0 0.0
    %2590 = vmatpush.msra.mxu0 0.0
    %2591 = vmatpush.msra.mxu0 0.0
    %2592 = vmatpush.msra.mxu0 %v703
    %2593 = vmatpush.msra.mxu0 %v701
    %2594 = vmatpush.msra.mxu0 %v699
    %2595 = vmatpush.msra.mxu0 %v697
    %2596 = vmatpush.msra.mxu0 %v695
    %2597 = vmatpush.msra.mxu0 %v693
    %2598 = vmatpush.msra.mxu0 %v691
    %2599 = vmatpush.msra.mxu0 %v689
    %2600 = vmatmul.f32.gmra.mxu0 %v2582
    %v2601 = vpop.f32.mrf.mxu0
    %v2602 = vadd.f32 0.0, %v2601
    %2603 = vdwg.mxu0
    %2604 = vmatpush.msra.mxu0 0.0
    %2605 = vmatpush.msra.mxu0 0.0
    %2606 = vmatpush.msra.mxu0 0.0
    %2607 = vmatpush.msra.mxu0 0.0
    %2608 = vmatpush.msra.mxu0 0.0
    %2609 = vmatpush.msra.mxu0 0.0
    %2610 = vmatpush.msra.mxu0 0.0
    %2611 = vmatpush.msra.mxu0 0.0
    %2612 = vmatpush.msra.mxu0 %v704
    %2613 = vmatpush.msra.mxu0 %v702
    %2614 = vmatpush.msra.mxu0 %v700
    %2615 = vmatpush.msra.mxu0 %v698
    %2616 = vmatpush.msra.mxu0 %v696
    %2617 = vmatpush.msra.mxu0 %v694
    %2618 = vmatpush.msra.mxu0 %v692
    %2619 = vmatpush.msra.mxu0 %v690
    %2620 = vmatmul.f32.gmra.mxu0 %v2582
    %v2621 = vpop.f32.mrf.mxu0
    %v2622 = vadd.f32 0.0, %v2621
    %2623 = vdwg.mxu0
    %v2624 = vadd.f32 %v2559, %v2602
    %v2625 = vxor.u32 %v2624, 2147483648
    %v2626 = vmul.f32 %v2625, 1.442695
    %v2627 = vpow.pop %v2626
    %v2628 = vadd.f32 %v2627, 1.0
    %v2629 = vrcp.pop %v2628
    %v2630 = vmul.f32 %v2628, %v2629
    %v2631 = vsub.f32 1.0, %v2630
    %v2632 = vmul.f32 %v2629, %v2631
    %v2633 = vadd.f32 %v2629, %v2632
    %vm2634 = vweird.f32 %v2628
    %vm2635 = vweird.f32 %v2629
    %vm2636 = vmor %vm2634, %vm2635
    %v2637 = vsel %vm2636, %v2629, %v2633
    %v2638 = vand.u32 2147483647, %v2628
    %vm2639 = vcmp.eq.f32.partialorder %v2638, 8.507059e+37
    %v2640 = vand.u32 %v2628, 2147483648
    %v2641 = vor.u32 1.1754944e-38, %v2640
    %v2642 = vsel %vm2639, %v2641, %v2637
    %v2643 = vmul.f32 1.0, %v2642
    %2644 = vrot.lane.b32.xlu0 %v2643, 64
    %v2645 = vpop.permute.xlu0 %2644
    %v2646 = vadd.f32 %v2622, %v770
    %v2647 = vmul.f32 %v2643, %v2646
    %v2648 = vadd.f32 %v2579, %v2647
    %v2649 = vtanh.pop %v2648
    %v2650 = vsub.f32 %v2121, %v2649
    %v2651 = vmul.f32 %v2645, %v2650
    %v2652 = vadd.f32 %v2649, %v2651
    %2653 = vmatpush.msra.mxu0 0.0
    %2654 = vmatpush.msra.mxu0 0.0
    %2655 = vmatpush.msra.mxu0 0.0
    %2656 = vmatpush.msra.mxu0 0.0
    %2657 = vmatpush.msra.mxu0 0.0
    %2658 = vmatpush.msra.mxu0 0.0
    %2659 = vmatpush.msra.mxu0 0.0
    %2660 = vmatpush.msra.mxu0 0.0
    %2661 = vmatpush.msra.mxu0 %v1101
    %2662 = vmatpush.msra.mxu0 %v1099
    %2663 = vmatpush.msra.mxu0 %v1097
    %2664 = vmatpush.msra.mxu0 %v1095
    %2665 = vmatpush.msra.mxu0 %v1093
    %2666 = vmatpush.msra.mxu0 %v1091
    %2667 = vmatpush.msra.mxu0 %v1089
    %2668 = vmatpush.msra.mxu0 %v1087
    %2669 = vmatmul.f32.gmra.mxu0 %v2582
    %v2670 = vpop.f32.mrf.mxu0
    %v2671 = vadd.f32 %v1106, %v2670
    %2672 = vdwg.mxu0
    %2673 = vmatpush.msra.mxu0 0.0
    %2674 = vmatpush.msra.mxu0 0.0
    %2675 = vmatpush.msra.mxu0 0.0
    %2676 = vmatpush.msra.mxu0 0.0
    %2677 = vmatpush.msra.mxu0 0.0
    %2678 = vmatpush.msra.mxu0 0.0
    %2679 = vmatpush.msra.mxu0 0.0
    %2680 = vmatpush.msra.mxu0 0.0
    %2681 = vmatpush.msra.mxu0 %v1102
    %2682 = vmatpush.msra.mxu0 %v1100
    %2683 = vmatpush.msra.mxu0 %v1098
    %2684 = vmatpush.msra.mxu0 %v1096
    %2685 = vmatpush.msra.mxu0 %v1094
    %2686 = vmatpush.msra.mxu0 %v1092
    %2687 = vmatpush.msra.mxu0 %v1090
    %2688 = vmatpush.msra.mxu0 %v1088
    %2689 = vmatmul.f32.gmra.mxu0 %v2582
    %v2690 = vpop.f32.mrf.mxu0
    %v2691 = vadd.f32 %v1107, %v2690
    %2692 = vdwg.mxu0
    %v2694 = vsel %vm115, %v2233, 0
    %2696 = vmatpush.msra.mxu0 0.0
    %2697 = vmatpush.msra.mxu0 0.0
    %2698 = vmatpush.msra.mxu0 0.0
    %2699 = vmatpush.msra.mxu0 0.0
    %2700 = vmatpush.msra.mxu0 0.0
    %2701 = vmatpush.msra.mxu0 0.0
    %2702 = vmatpush.msra.mxu0 0.0
    %2703 = vmatpush.msra.mxu0 0.0
    %2704 = vmatpush.msra.mxu0 %v1165
    %2705 = vmatpush.msra.mxu0 %v1163
    %2706 = vmatpush.msra.mxu0 %v1161
    %2707 = vmatpush.msra.mxu0 %v1159
    %2708 = vmatpush.msra.mxu0 %v1157
    %2709 = vmatpush.msra.mxu0 %v1155
    %2710 = vmatpush.msra.mxu0 %v1153
    %2711 = vmatpush.msra.mxu0 %v1151
    %2712 = vmatmul.f32.gmra.mxu0 %v2694
    %v2713 = vpop.f32.mrf.mxu0
    %v2714 = vadd.f32 0.0, %v2713
    %2715 = vdwg.mxu0
    %2716 = vmatpush.msra.mxu0 0.0
    %2717 = vmatpush.msra.mxu0 0.0
    %2718 = vmatpush.msra.mxu0 0.0
    %2719 = vmatpush.msra.mxu0 0.0
    %2720 = vmatpush.msra.mxu0 0.0
    %2721 = vmatpush.msra.mxu0 0.0
    %2722 = vmatpush.msra.mxu0 0.0
    %2723 = vmatpush.msra.mxu0 0.0
    %2724 = vmatpush.msra.mxu0 %v1166
    %2725 = vmatpush.msra.mxu0 %v1164
    %2726 = vmatpush.msra.mxu0 %v1162
    %2727 = vmatpush.msra.mxu0 %v1160
    %2728 = vmatpush.msra.mxu0 %v1158
    %2729 = vmatpush.msra.mxu0 %v1156
    %2730 = vmatpush.msra.mxu0 %v1154
    %2731 = vmatpush.msra.mxu0 %v1152
    %2732 = vmatmul.f32.gmra.mxu0 %v2694
    %v2733 = vpop.f32.mrf.mxu0
    %v2734 = vadd.f32 0.0, %v2733
    %2735 = vdwg.mxu0
    %v2736 = vadd.f32 %v2671, %v2714
    %v2737 = vxor.u32 %v2736, 2147483648
    %v2738 = vmul.f32 %v2737, 1.442695
    %v2739 = vpow.pop %v2738
    %v2740 = vadd.f32 %v2739, 1.0
    %v2741 = vrcp.pop %v2740
    %v2742 = vmul.f32 %v2740, %v2741
    %v2743 = vsub.f32 1.0, %v2742
    %v2744 = vmul.f32 %v2741, %v2743
    %v2745 = vadd.f32 %v2741, %v2744
    %vm2746 = vweird.f32 %v2740
    %vm2747 = vweird.f32 %v2741
    %vm2748 = vmor %vm2746, %vm2747
    %v2749 = vsel %vm2748, %v2741, %v2745
    %v2750 = vand.u32 2147483647, %v2740
    %vm2751 = vcmp.eq.f32.partialorder %v2750, 8.507059e+37
    %v2752 = vand.u32 %v2740, 2147483648
    %v2753 = vor.u32 1.1754944e-38, %v2752
    %v2754 = vsel %vm2751, %v2753, %v2749
    %v2755 = vmul.f32 1.0, %v2754
    %2756 = vrot.lane.b32.xlu0 %v2755, 64
    %v2757 = vpop.permute.xlu0 %2756
    %v2758 = vadd.f32 %v2734, %v1232
    %v2759 = vmul.f32 %v2755, %v2758
    %v2760 = vadd.f32 %v2691, %v2759
    %v2761 = vtanh.pop %v2760
    %v2762 = vsub.f32 %v2233, %v2761
    %v2763 = vmul.f32 %v2757, %v2762
    %v2764 = vadd.f32 %v2761, %v2763
    %2765 = vmatpush.msra.mxu0 0.0
    %2766 = vmatpush.msra.mxu0 0.0
    %2767 = vmatpush.msra.mxu0 0.0
    %2768 = vmatpush.msra.mxu0 0.0
    %2769 = vmatpush.msra.mxu0 0.0
    %2770 = vmatpush.msra.mxu0 0.0
    %2771 = vmatpush.msra.mxu0 0.0
    %2772 = vmatpush.msra.mxu0 0.0
    %2773 = vmatpush.msra.mxu0 %v1675
    %2774 = vmatpush.msra.mxu0 %v1673
    %2775 = vmatpush.msra.mxu0 %v1671
    %2776 = vmatpush.msra.mxu0 %v1669
    %2777 = vmatpush.msra.mxu0 %v1667
    %2778 = vmatpush.msra.mxu0 %v1665
    %2779 = vmatpush.msra.mxu0 %v1663
    %2780 = vmatpush.msra.mxu0 %v1661
    %2781 = vmatmul.f32.gmra.mxu0 %v2694
    %v2782 = vpop.f32.mrf.mxu0
    %v2783 = vadd.f32 %v1680, %v2782
    %2784 = vdwg.mxu0
    %2785 = vmatpush.msra.mxu0 0.0
    %2786 = vmatpush.msra.mxu0 0.0
    %2787 = vmatpush.msra.mxu0 0.0
    %2788 = vmatpush.msra.mxu0 0.0
    %2789 = vmatpush.msra.mxu0 0.0
    %2790 = vmatpush.msra.mxu0 0.0
    %2791 = vmatpush.msra.mxu0 0.0
    %2792 = vmatpush.msra.mxu0 0.0
    %2793 = vmatpush.msra.mxu0 %v1676
    %2794 = vmatpush.msra.mxu0 %v1674
    %2795 = vmatpush.msra.mxu0 %v1672
    %2796 = vmatpush.msra.mxu0 %v1670
    %2797 = vmatpush.msra.mxu0 %v1668
    %2798 = vmatpush.msra.mxu0 %v1666
    %2799 = vmatpush.msra.mxu0 %v1664
    %2800 = vmatpush.msra.mxu0 %v1662
    %2801 = vmatmul.f32.gmra.mxu0 %v2694
    %v2802 = vpop.f32.mrf.mxu0
    %v2803 = vadd.f32 %v1681, %v2802
    %2804 = vdwg.mxu0
    %v2806 = vsel %vm115, %v2345, 0
    %2808 = vmatpush.msra.mxu0 0.0
    %2809 = vmatpush.msra.mxu0 0.0
    %2810 = vmatpush.msra.mxu0 0.0
    %2811 = vmatpush.msra.mxu0 0.0
    %2812 = vmatpush.msra.mxu0 0.0
    %2813 = vmatpush.msra.mxu0 0.0
    %2814 = vmatpush.msra.mxu0 0.0
    %2815 = vmatpush.msra.mxu0 0.0
    %2816 = vmatpush.msra.mxu0 %v1739
    %2817 = vmatpush.msra.mxu0 %v1737
    %2818 = vmatpush.msra.mxu0 %v1735
    %2819 = vmatpush.msra.mxu0 %v1733
    %2820 = vmatpush.msra.mxu0 %v1731
    %2821 = vmatpush.msra.mxu0 %v1729
    %2822 = vmatpush.msra.mxu0 %v1727
    %2823 = vmatpush.msra.mxu0 %v1725
    %2824 = vmatmul.f32.gmra.mxu0 %v2806
    %v2825 = vpop.f32.mrf.mxu0
    %v2826 = vadd.f32 0.0, %v2825
    %2827 = vdwg.mxu0
    %2828 = vmatpush.msra.mxu0 0.0
    %2829 = vmatpush.msra.mxu0 0.0
    %2830 = vmatpush.msra.mxu0 0.0
    %2831 = vmatpush.msra.mxu0 0.0
    %2832 = vmatpush.msra.mxu0 0.0
    %2833 = vmatpush.msra.mxu0 0.0
    %2834 = vmatpush.msra.mxu0 0.0
    %2835 = vmatpush.msra.mxu0 0.0
    %2836 = vmatpush.msra.mxu0 %v1740
    %2837 = vmatpush.msra.mxu0 %v1738
    %2838 = vmatpush.msra.mxu0 %v1736
    %2839 = vmatpush.msra.mxu0 %v1734
    %2840 = vmatpush.msra.mxu0 %v1732
    %2841 = vmatpush.msra.mxu0 %v1730
    %2842 = vmatpush.msra.mxu0 %v1728
    %2843 = vmatpush.msra.mxu0 %v1726
    %2844 = vmatmul.f32.gmra.mxu0 %v2806
    %v2845 = vpop.f32.mrf.mxu0
    %v2846 = vadd.f32 0.0, %v2845
    %2847 = vdwg.mxu0
    %v2848 = vadd.f32 %v2783, %v2826
    %v2849 = vxor.u32 %v2848, 2147483648
    %v2850 = vmul.f32 %v2849, 1.442695
    %v2851 = vpow.pop %v2850
    %v2852 = vadd.f32 %v2851, 1.0
    %v2853 = vrcp.pop %v2852
    %v2854 = vmul.f32 %v2852, %v2853
    %v2855 = vsub.f32 1.0, %v2854
    %v2856 = vmul.f32 %v2853, %v2855
    %v2857 = vadd.f32 %v2853, %v2856
    %vm2858 = vweird.f32 %v2852
    %vm2859 = vweird.f32 %v2853
    %vm2860 = vmor %vm2858, %vm2859
    %v2861 = vsel %vm2860, %v2853, %v2857
    %v2862 = vand.u32 2147483647, %v2852
    %vm2863 = vcmp.eq.f32.partialorder %v2862, 8.507059e+37
    %v2864 = vand.u32 %v2852, 2147483648
    %v2865 = vor.u32 1.1754944e-38, %v2864
    %v2866 = vsel %vm2863, %v2865, %v2861
    %v2867 = vmul.f32 1.0, %v2866
    %2868 = vrot.lane.b32.xlu0 %v2867, 64
    %v2869 = vpop.permute.xlu0 %2868
    %v2870 = vadd.f32 %v2846, %v1806
    %v2871 = vmul.f32 %v2867, %v2870
    %v2872 = vadd.f32 %v2803, %v2871
    %v2873 = vtanh.pop %v2872
    %v2874 = vsub.f32 %v2345, %v2873
    %v2875 = vmul.f32 %v2869, %v2874
    %v2876 = vadd.f32 %v2873, %v2875
    %s2877 = scalar_lea.vmem %s0, 56
    %v2878 = vld [vmem:[%s2877] sm:$0xff]
    %2880 = vset.pattern.permute.xlu0 0
    %2881 = vperm.xlu0 %2880, %v2878
    %v2882 = vpop.permute.xlu0 %2881
    %v2884 = vmul.f32 %v2882, %v85
    %v2885 = vmul.f32 %v2882, %v86
    %v2886 = vadd.f32 %v2884, %v93
    %v2887 = vadd.f32 %v2885, %v94
    %v2889 = vsel %vm115, %v2428, 0
    %2891 = vmatpush.msra.mxu0 0.0
    %2892 = vmatpush.msra.mxu0 0.0
    %2893 = vmatpush.msra.mxu0 0.0
    %2894 = vmatpush.msra.mxu0 0.0
    %2895 = vmatpush.msra.mxu0 0.0
    %2896 = vmatpush.msra.mxu0 0.0
    %2897 = vmatpush.msra.mxu0 0.0
    %2898 = vmatpush.msra.mxu0 0.0
    %2899 = vmatpush.msra.mxu0 %v113
    %2900 = vmatpush.msra.mxu0 %v111
    %2901 = vmatpush.msra.mxu0 %v109
    %2902 = vmatpush.msra.mxu0 %v107
    %2903 = vmatpush.msra.mxu0 %v105
    %2904 = vmatpush.msra.mxu0 %v103
    %2905 = vmatpush.msra.mxu0 %v101
    %2906 = vmatpush.msra.mxu0 %v99
    %2907 = vmatmul.f32.gmra.mxu0 %v2889
    %v2908 = vpop.f32.mrf.mxu0
    %v2909 = vadd.f32 0.0, %v2908
    %2910 = vdwg.mxu0
    %2911 = vmatpush.msra.mxu0 0.0
    %2912 = vmatpush.msra.mxu0 0.0
    %2913 = vmatpush.msra.mxu0 0.0
    %2914 = vmatpush.msra.mxu0 0.0
    %2915 = vmatpush.msra.mxu0 0.0
    %2916 = vmatpush.msra.mxu0 0.0
    %2917 = vmatpush.msra.mxu0 0.0
    %2918 = vmatpush.msra.mxu0 0.0
    %2919 = vmatpush.msra.mxu0 %v114
    %2920 = vmatpush.msra.mxu0 %v112
    %2921 = vmatpush.msra.mxu0 %v110
    %2922 = vmatpush.msra.mxu0 %v108
    %2923 = vmatpush.msra.mxu0 %v106
    %2924 = vmatpush.msra.mxu0 %v104
    %2925 = vmatpush.msra.mxu0 %v102
    %2926 = vmatpush.msra.mxu0 %v100
    %2927 = vmatmul.f32.gmra.mxu0 %v2889
    %v2928 = vpop.f32.mrf.mxu0
    %v2929 = vadd.f32 0.0, %v2928
    %2930 = vdwg.mxu0
    %v2931 = vadd.f32 %v2886, %v2909
    %v2932 = vxor.u32 %v2931, 2147483648
    %v2933 = vmul.f32 %v2932, 1.442695
    %v2934 = vpow.pop %v2933
    %v2935 = vadd.f32 %v2934, 1.0
    %v2936 = vrcp.pop %v2935
    %v2937 = vmul.f32 %v2935, %v2936
    %v2938 = vsub.f32 1.0, %v2937
    %v2939 = vmul.f32 %v2936, %v2938
    %v2940 = vadd.f32 %v2936, %v2939
    %vm2941 = vweird.f32 %v2935
    %vm2942 = vweird.f32 %v2936
    %vm2943 = vmor %vm2941, %vm2942
    %v2944 = vsel %vm2943, %v2936, %v2940
    %v2945 = vand.u32 2147483647, %v2935
    %vm2946 = vcmp.eq.f32.partialorder %v2945, 8.507059e+37
    %v2947 = vand.u32 %v2935, 2147483648
    %v2948 = vor.u32 1.1754944e-38, %v2947
    %v2949 = vsel %vm2946, %v2948, %v2944
    %v2950 = vmul.f32 1.0, %v2949
    %2951 = vrot.lane.b32.xlu0 %v2950, 64
    %v2952 = vpop.permute.xlu0 %2951
    %v2953 = vadd.f32 %v2929, %v183
    %v2954 = vmul.f32 %v2950, %v2953
    %v2955 = vadd.f32 %v2887, %v2954
    %v2956 = vtanh.pop %v2955
    %v2957 = vsub.f32 %v2428, %v2956
    %v2958 = vmul.f32 %v2952, %v2957
    %v2959 = vadd.f32 %v2956, %v2958
    %2960 = vmatpush.msra.mxu0 0.0
    %2961 = vmatpush.msra.mxu0 0.0
    %2962 = vmatpush.msra.mxu0 0.0
    %2963 = vmatpush.msra.mxu0 0.0
    %2964 = vmatpush.msra.mxu0 0.0
    %2965 = vmatpush.msra.mxu0 0.0
    %2966 = vmatpush.msra.mxu0 0.0
    %2967 = vmatpush.msra.mxu0 0.0
    %2968 = vmatpush.msra.mxu0 %v289
    %2969 = vmatpush.msra.mxu0 %v287
    %2970 = vmatpush.msra.mxu0 %v285
    %2971 = vmatpush.msra.mxu0 %v283
    %2972 = vmatpush.msra.mxu0 %v281
    %2973 = vmatpush.msra.mxu0 %v279
    %2974 = vmatpush.msra.mxu0 %v277
    %2975 = vmatpush.msra.mxu0 %v275
    %2976 = vmatmul.f32.gmra.mxu0 %v2889
    %v2977 = vpop.f32.mrf.mxu0
    %v2978 = vadd.f32 %v294, %v2977
    %2979 = vdwg.mxu0
    %2980 = vmatpush.msra.mxu0 0.0
    %2981 = vmatpush.msra.mxu0 0.0
    %2982 = vmatpush.msra.mxu0 0.0
    %2983 = vmatpush.msra.mxu0 0.0
    %2984 = vmatpush.msra.mxu0 0.0
    %2985 = vmatpush.msra.mxu0 0.0
    %2986 = vmatpush.msra.mxu0 0.0
    %2987 = vmatpush.msra.mxu0 0.0
    %2988 = vmatpush.msra.mxu0 %v290
    %2989 = vmatpush.msra.mxu0 %v288
    %2990 = vmatpush.msra.mxu0 %v286
    %2991 = vmatpush.msra.mxu0 %v284
    %2992 = vmatpush.msra.mxu0 %v282
    %2993 = vmatpush.msra.mxu0 %v280
    %2994 = vmatpush.msra.mxu0 %v278
    %2995 = vmatpush.msra.mxu0 %v276
    %2996 = vmatmul.f32.gmra.mxu0 %v2889
    %v2997 = vpop.f32.mrf.mxu0
    %v2998 = vadd.f32 %v295, %v2997
    %2999 = vdwg.mxu0
    %v3001 = vsel %vm115, %v2540, 0
    %3003 = vmatpush.msra.mxu0 0.0
    %3004 = vmatpush.msra.mxu0 0.0
    %3005 = vmatpush.msra.mxu0 0.0
    %3006 = vmatpush.msra.mxu0 0.0
    %3007 = vmatpush.msra.mxu0 0.0
    %3008 = vmatpush.msra.mxu0 0.0
    %3009 = vmatpush.msra.mxu0 0.0
    %3010 = vmatpush.msra.mxu0 0.0
    %3011 = vmatpush.msra.mxu0 %v353
    %3012 = vmatpush.msra.mxu0 %v351
    %3013 = vmatpush.msra.mxu0 %v349
    %3014 = vmatpush.msra.mxu0 %v347
    %3015 = vmatpush.msra.mxu0 %v345
    %3016 = vmatpush.msra.mxu0 %v343
    %3017 = vmatpush.msra.mxu0 %v341
    %3018 = vmatpush.msra.mxu0 %v339
    %3019 = vmatmul.f32.gmra.mxu0 %v3001
    %v3020 = vpop.f32.mrf.mxu0
    %v3021 = vadd.f32 0.0, %v3020
    %3022 = vdwg.mxu0
    %3023 = vmatpush.msra.mxu0 0.0
    %3024 = vmatpush.msra.mxu0 0.0
    %3025 = vmatpush.msra.mxu0 0.0
    %3026 = vmatpush.msra.mxu0 0.0
    %3027 = vmatpush.msra.mxu0 0.0
    %3028 = vmatpush.msra.mxu0 0.0
    %3029 = vmatpush.msra.mxu0 0.0
    %3030 = vmatpush.msra.mxu0 0.0
    %3031 = vmatpush.msra.mxu0 %v354
    %3032 = vmatpush.msra.mxu0 %v352
    %3033 = vmatpush.msra.mxu0 %v350
    %3034 = vmatpush.msra.mxu0 %v348
    %3035 = vmatpush.msra.mxu0 %v346
    %3036 = vmatpush.msra.mxu0 %v344
    %3037 = vmatpush.msra.mxu0 %v342
    %3038 = vmatpush.msra.mxu0 %v340
    %3039 = vmatmul.f32.gmra.mxu0 %v3001
    %v3040 = vpop.f32.mrf.mxu0
    %v3041 = vadd.f32 0.0, %v3040
    %3042 = vdwg.mxu0
    %v3043 = vadd.f32 %v2978, %v3021
    %v3044 = vxor.u32 %v3043, 2147483648
    %v3045 = vmul.f32 %v3044, 1.442695
    %v3046 = vpow.pop %v3045
    %v3047 = vadd.f32 %v3046, 1.0
    %v3048 = vrcp.pop %v3047
    %v3049 = vmul.f32 %v3047, %v3048
    %v3050 = vsub.f32 1.0, %v3049
    %v3051 = vmul.f32 %v3048, %v3050
    %v3052 = vadd.f32 %v3048, %v3051
    %vm3053 = vweird.f32 %v3047
    %vm3054 = vweird.f32 %v3048
    %vm3055 = vmor %vm3053, %vm3054
    %v3056 = vsel %vm3055, %v3048, %v3052
    %v3057 = vand.u32 2147483647, %v3047
    %vm3058 = vcmp.eq.f32.partialorder %v3057, 8.507059e+37
    %v3059 = vand.u32 %v3047, 2147483648
    %v3060 = vor.u32 1.1754944e-38, %v3059
    %v3061 = vsel %vm3058, %v3060, %v3056
    %v3062 = vmul.f32 1.0, %v3061
    %3063 = vrot.lane.b32.xlu0 %v3062, 64
    %v3064 = vpop.permute.xlu0 %3063
    %v3065 = vadd.f32 %v3041, %v420
    %v3066 = vmul.f32 %v3062, %v3065
    %v3067 = vadd.f32 %v2998, %v3066
    %v3068 = vtanh.pop %v3067
    %v3069 = vsub.f32 %v2540, %v3068
    %v3070 = vmul.f32 %v3064, %v3069
    %v3071 = vadd.f32 %v3068, %v3070
    %3072 = vmatpush.msra.mxu0 0.0
    %3073 = vmatpush.msra.mxu0 0.0
    %3074 = vmatpush.msra.mxu0 0.0
    %3075 = vmatpush.msra.mxu0 0.0
    %3076 = vmatpush.msra.mxu0 0.0
    %3077 = vmatpush.msra.mxu0 0.0
    %3078 = vmatpush.msra.mxu0 0.0
    %3079 = vmatpush.msra.mxu0 0.0
    %3080 = vmatpush.msra.mxu0 %v639
    %3081 = vmatpush.msra.mxu0 %v637
    %3082 = vmatpush.msra.mxu0 %v635
    %3083 = vmatpush.msra.mxu0 %v633
    %3084 = vmatpush.msra.mxu0 %v631
    %3085 = vmatpush.msra.mxu0 %v629
    %3086 = vmatpush.msra.mxu0 %v627
    %3087 = vmatpush.msra.mxu0 %v625
    %3088 = vmatmul.f32.gmra.mxu0 %v3001
    %v3089 = vpop.f32.mrf.mxu0
    %v3090 = vadd.f32 %v644, %v3089
    %3091 = vdwg.mxu0
    %3092 = vmatpush.msra.mxu0 0.0
    %3093 = vmatpush.msra.mxu0 0.0
    %3094 = vmatpush.msra.mxu0 0.0
    %3095 = vmatpush.msra.mxu0 0.0
    %3096 = vmatpush.msra.mxu0 0.0
    %3097 = vmatpush.msra.mxu0 0.0
    %3098 = vmatpush.msra.mxu0 0.0
    %3099 = vmatpush.msra.mxu0 0.0
    %3100 = vmatpush.msra.mxu0 %v640
    %3101 = vmatpush.msra.mxu0 %v638
    %3102 = vmatpush.msra.mxu0 %v636
    %3103 = vmatpush.msra.mxu0 %v634
    %3104 = vmatpush.msra.mxu0 %v632
    %3105 = vmatpush.msra.mxu0 %v630
    %3106 = vmatpush.msra.mxu0 %v628
    %3107 = vmatpush.msra.mxu0 %v626
    %3108 = vmatmul.f32.gmra.mxu0 %v3001
    %v3109 = vpop.f32.mrf.mxu0
    %v3110 = vadd.f32 %v645, %v3109
    %3111 = vdwg.mxu0
    %v3113 = vsel %vm115, %v2652, 0
    %3115 = vmatpush.msra.mxu0 0.0
    %3116 = vmatpush.msra.mxu0 0.0
    %3117 = vmatpush.msra.mxu0 0.0
    %3118 = vmatpush.msra.mxu0 0.0
    %3119 = vmatpush.msra.mxu0 0.0
    %3120 = vmatpush.msra.mxu0 0.0
    %3121 = vmatpush.msra.mxu0 0.0
    %3122 = vmatpush.msra.mxu0 0.0
    %3123 = vmatpush.msra.mxu0 %v703
    %3124 = vmatpush.msra.mxu0 %v701
    %3125 = vmatpush.msra.mxu0 %v699
    %3126 = vmatpush.msra.mxu0 %v697
    %3127 = vmatpush.msra.mxu0 %v695
    %3128 = vmatpush.msra.mxu0 %v693
    %3129 = vmatpush.msra.mxu0 %v691
    %3130 = vmatpush.msra.mxu0 %v689
    %3131 = vmatmul.f32.gmra.mxu0 %v3113
    %v3132 = vpop.f32.mrf.mxu0
    %v3133 = vadd.f32 0.0, %v3132
    %3134 = vdwg.mxu0
    %3135 = vmatpush.msra.mxu0 0.0
    %3136 = vmatpush.msra.mxu0 0.0
    %3137 = vmatpush.msra.mxu0 0.0
    %3138 = vmatpush.msra.mxu0 0.0
    %3139 = vmatpush.msra.mxu0 0.0
    %3140 = vmatpush.msra.mxu0 0.0
    %3141 = vmatpush.msra.mxu0 0.0
    %3142 = vmatpush.msra.mxu0 0.0
    %3143 = vmatpush.msra.mxu0 %v704
    %3144 = vmatpush.msra.mxu0 %v702
    %3145 = vmatpush.msra.mxu0 %v700
    %3146 = vmatpush.msra.mxu0 %v698
    %3147 = vmatpush.msra.mxu0 %v696
    %3148 = vmatpush.msra.mxu0 %v694
    %3149 = vmatpush.msra.mxu0 %v692
    %3150 = vmatpush.msra.mxu0 %v690
    %3151 = vmatmul.f32.gmra.mxu0 %v3113
    %v3152 = vpop.f32.mrf.mxu0
    %v3153 = vadd.f32 0.0, %v3152
    %3154 = vdwg.mxu0
    %v3155 = vadd.f32 %v3090, %v3133
    %v3156 = vxor.u32 %v3155, 2147483648
    %v3157 = vmul.f32 %v3156, 1.442695
    %v3158 = vpow.pop %v3157
    %v3159 = vadd.f32 %v3158, 1.0
    %v3160 = vrcp.pop %v3159
    %v3161 = vmul.f32 %v3159, %v3160
    %v3162 = vsub.f32 1.0, %v3161
    %v3163 = vmul.f32 %v3160, %v3162
    %v3164 = vadd.f32 %v3160, %v3163
    %vm3165 = vweird.f32 %v3159
    %vm3166 = vweird.f32 %v3160
    %vm3167 = vmor %vm3165, %vm3166
    %v3168 = vsel %vm3167, %v3160, %v3164
    %v3169 = vand.u32 2147483647, %v3159
    %vm3170 = vcmp.eq.f32.partialorder %v3169, 8.507059e+37
    %v3171 = vand.u32 %v3159, 2147483648
    %v3172 = vor.u32 1.1754944e-38, %v3171
    %v3173 = vsel %vm3170, %v3172, %v3168
    %v3174 = vmul.f32 1.0, %v3173
    %3175 = vrot.lane.b32.xlu0 %v3174, 64
    %v3176 = vpop.permute.xlu0 %3175
    %v3177 = vadd.f32 %v3153, %v770
    %v3178 = vmul.f32 %v3174, %v3177
    %v3179 = vadd.f32 %v3110, %v3178
    %v3180 = vtanh.pop %v3179
    %v3181 = vsub.f32 %v2652, %v3180
    %v3182 = vmul.f32 %v3176, %v3181
    %v3183 = vadd.f32 %v3180, %v3182
    %3184 = vmatpush.msra.mxu0 0.0
    %3185 = vmatpush.msra.mxu0 0.0
    %3186 = vmatpush.msra.mxu0 0.0
    %3187 = vmatpush.msra.mxu0 0.0
    %3188 = vmatpush.msra.mxu0 0.0
    %3189 = vmatpush.msra.mxu0 0.0
    %3190 = vmatpush.msra.mxu0 0.0
    %3191 = vmatpush.msra.mxu0 0.0
    %3192 = vmatpush.msra.mxu0 %v1101
    %3193 = vmatpush.msra.mxu0 %v1099
    %3194 = vmatpush.msra.mxu0 %v1097
    %3195 = vmatpush.msra.mxu0 %v1095
    %3196 = vmatpush.msra.mxu0 %v1093
    %3197 = vmatpush.msra.mxu0 %v1091
    %3198 = vmatpush.msra.mxu0 %v1089
    %3199 = vmatpush.msra.mxu0 %v1087
    %3200 = vmatmul.f32.gmra.mxu0 %v3113
    %v3201 = vpop.f32.mrf.mxu0
    %v3202 = vadd.f32 %v1106, %v3201
    %3203 = vdwg.mxu0
    %3204 = vmatpush.msra.mxu0 0.0
    %3205 = vmatpush.msra.mxu0 0.0
    %3206 = vmatpush.msra.mxu0 0.0
    %3207 = vmatpush.msra.mxu0 0.0
    %3208 = vmatpush.msra.mxu0 0.0
    %3209 = vmatpush.msra.mxu0 0.0
    %3210 = vmatpush.msra.mxu0 0.0
    %3211 = vmatpush.msra.mxu0 0.0
    %3212 = vmatpush.msra.mxu0 %v1102
    %3213 = vmatpush.msra.mxu0 %v1100
    %3214 = vmatpush.msra.mxu0 %v1098
    %3215 = vmatpush.msra.mxu0 %v1096
    %3216 = vmatpush.msra.mxu0 %v1094
    %3217 = vmatpush.msra.mxu0 %v1092
    %3218 = vmatpush.msra.mxu0 %v1090
    %3219 = vmatpush.msra.mxu0 %v1088
    %3220 = vmatmul.f32.gmra.mxu0 %v3113
    %v3221 = vpop.f32.mrf.mxu0
    %v3222 = vadd.f32 %v1107, %v3221
    %3223 = vdwg.mxu0
    %v3225 = vsel %vm115, %v2764, 0
    %3227 = vmatpush.msra.mxu0 0.0
    %3228 = vmatpush.msra.mxu0 0.0
    %3229 = vmatpush.msra.mxu0 0.0
    %3230 = vmatpush.msra.mxu0 0.0
    %3231 = vmatpush.msra.mxu0 0.0
    %3232 = vmatpush.msra.mxu0 0.0
    %3233 = vmatpush.msra.mxu0 0.0
    %3234 = vmatpush.msra.mxu0 0.0
    %3235 = vmatpush.msra.mxu0 %v1165
    %3236 = vmatpush.msra.mxu0 %v1163
    %3237 = vmatpush.msra.mxu0 %v1161
    %3238 = vmatpush.msra.mxu0 %v1159
    %3239 = vmatpush.msra.mxu0 %v1157
    %3240 = vmatpush.msra.mxu0 %v1155
    %3241 = vmatpush.msra.mxu0 %v1153
    %3242 = vmatpush.msra.mxu0 %v1151
    %3243 = vmatmul.f32.gmra.mxu0 %v3225
    %v3244 = vpop.f32.mrf.mxu0
    %v3245 = vadd.f32 0.0, %v3244
    %3246 = vdwg.mxu0
    %3247 = vmatpush.msra.mxu0 0.0
    %3248 = vmatpush.msra.mxu0 0.0
    %3249 = vmatpush.msra.mxu0 0.0
    %3250 = vmatpush.msra.mxu0 0.0
    %3251 = vmatpush.msra.mxu0 0.0
    %3252 = vmatpush.msra.mxu0 0.0
    %3253 = vmatpush.msra.mxu0 0.0
    %3254 = vmatpush.msra.mxu0 0.0
    %3255 = vmatpush.msra.mxu0 %v1166
    %3256 = vmatpush.msra.mxu0 %v1164
    %3257 = vmatpush.msra.mxu0 %v1162
    %3258 = vmatpush.msra.mxu0 %v1160
    %3259 = vmatpush.msra.mxu0 %v1158
    %3260 = vmatpush.msra.mxu0 %v1156
    %3261 = vmatpush.msra.mxu0 %v1154
    %3262 = vmatpush.msra.mxu0 %v1152
    %3263 = vmatmul.f32.gmra.mxu0 %v3225
    %v3264 = vpop.f32.mrf.mxu0
    %v3265 = vadd.f32 0.0, %v3264
    %3266 = vdwg.mxu0
    %v3267 = vadd.f32 %v3202, %v3245
    %v3268 = vxor.u32 %v3267, 2147483648
    %v3269 = vmul.f32 %v3268, 1.442695
    %v3270 = vpow.pop %v3269
    %v3271 = vadd.f32 %v3270, 1.0
    %v3272 = vrcp.pop %v3271
    %v3273 = vmul.f32 %v3271, %v3272
    %v3274 = vsub.f32 1.0, %v3273
    %v3275 = vmul.f32 %v3272, %v3274
    %v3276 = vadd.f32 %v3272, %v3275
    %vm3277 = vweird.f32 %v3271
    %vm3278 = vweird.f32 %v3272
    %vm3279 = vmor %vm3277, %vm3278
    %v3280 = vsel %vm3279, %v3272, %v3276
    %v3281 = vand.u32 2147483647, %v3271
    %vm3282 = vcmp.eq.f32.partialorder %v3281, 8.507059e+37
    %v3283 = vand.u32 %v3271, 2147483648
    %v3284 = vor.u32 1.1754944e-38, %v3283
    %v3285 = vsel %vm3282, %v3284, %v3280
    %v3286 = vmul.f32 1.0, %v3285
    %3287 = vrot.lane.b32.xlu0 %v3286, 64
    %v3288 = vpop.permute.xlu0 %3287
    %v3289 = vadd.f32 %v3265, %v1232
    %v3290 = vmul.f32 %v3286, %v3289
    %v3291 = vadd.f32 %v3222, %v3290
    %v3292 = vtanh.pop %v3291
    %v3293 = vsub.f32 %v2764, %v3292
    %v3294 = vmul.f32 %v3288, %v3293
    %v3295 = vadd.f32 %v3292, %v3294
    %3296 = vmatpush.msra.mxu0 0.0
    %3297 = vmatpush.msra.mxu0 0.0
    %3298 = vmatpush.msra.mxu0 0.0
    %3299 = vmatpush.msra.mxu0 0.0
    %3300 = vmatpush.msra.mxu0 0.0
    %3301 = vmatpush.msra.mxu0 0.0
    %3302 = vmatpush.msra.mxu0 0.0
    %3303 = vmatpush.msra.mxu0 0.0
    %3304 = vmatpush.msra.mxu0 %v1675
    %3305 = vmatpush.msra.mxu0 %v1673
    %3306 = vmatpush.msra.mxu0 %v1671
    %3307 = vmatpush.msra.mxu0 %v1669
    %3308 = vmatpush.msra.mxu0 %v1667
    %3309 = vmatpush.msra.mxu0 %v1665
    %3310 = vmatpush.msra.mxu0 %v1663
    %3311 = vmatpush.msra.mxu0 %v1661
    %3312 = vmatmul.f32.gmra.mxu0 %v3225
    %v3313 = vpop.f32.mrf.mxu0
    %v3314 = vadd.f32 %v1680, %v3313
    %3315 = vdwg.mxu0
    %3316 = vmatpush.msra.mxu0 0.0
    %3317 = vmatpush.msra.mxu0 0.0
    %3318 = vmatpush.msra.mxu0 0.0
    %3319 = vmatpush.msra.mxu0 0.0
    %3320 = vmatpush.msra.mxu0 0.0
    %3321 = vmatpush.msra.mxu0 0.0
    %3322 = vmatpush.msra.mxu0 0.0
    %3323 = vmatpush.msra.mxu0 0.0
    %3324 = vmatpush.msra.mxu0 %v1676
    %3325 = vmatpush.msra.mxu0 %v1674
    %3326 = vmatpush.msra.mxu0 %v1672
    %3327 = vmatpush.msra.mxu0 %v1670
    %3328 = vmatpush.msra.mxu0 %v1668
    %3329 = vmatpush.msra.mxu0 %v1666
    %3330 = vmatpush.msra.mxu0 %v1664
    %3331 = vmatpush.msra.mxu0 %v1662
    %3332 = vmatmul.f32.gmra.mxu0 %v3225
    %v3333 = vpop.f32.mrf.mxu0
    %v3334 = vadd.f32 %v1681, %v3333
    %3335 = vdwg.mxu0
    %v3337 = vsel %vm115, %v2876, 0
    %3339 = vmatpush.msra.mxu0 0.0
    %3340 = vmatpush.msra.mxu0 0.0
    %3341 = vmatpush.msra.mxu0 0.0
    %3342 = vmatpush.msra.mxu0 0.0
    %3343 = vmatpush.msra.mxu0 0.0
    %3344 = vmatpush.msra.mxu0 0.0
    %3345 = vmatpush.msra.mxu0 0.0
    %3346 = vmatpush.msra.mxu0 0.0
    %3347 = vmatpush.msra.mxu0 %v1739
    %3348 = vmatpush.msra.mxu0 %v1737
    %3349 = vmatpush.msra.mxu0 %v1735
    %3350 = vmatpush.msra.mxu0 %v1733
    %3351 = vmatpush.msra.mxu0 %v1731
    %3352 = vmatpush.msra.mxu0 %v1729
    %3353 = vmatpush.msra.mxu0 %v1727
    %3354 = vmatpush.msra.mxu0 %v1725
    %3355 = vmatmul.f32.gmra.mxu0 %v3337
    %v3356 = vpop.f32.mrf.mxu0
    %v3357 = vadd.f32 0.0, %v3356
    %3358 = vdwg.mxu0
    %3359 = vmatpush.msra.mxu0 0.0
    %3360 = vmatpush.msra.mxu0 0.0
    %3361 = vmatpush.msra.mxu0 0.0
    %3362 = vmatpush.msra.mxu0 0.0
    %3363 = vmatpush.msra.mxu0 0.0
    %3364 = vmatpush.msra.mxu0 0.0
    %3365 = vmatpush.msra.mxu0 0.0
    %3366 = vmatpush.msra.mxu0 0.0
    %3367 = vmatpush.msra.mxu0 %v1740
    %3368 = vmatpush.msra.mxu0 %v1738
    %3369 = vmatpush.msra.mxu0 %v1736
    %3370 = vmatpush.msra.mxu0 %v1734
    %3371 = vmatpush.msra.mxu0 %v1732
    %3372 = vmatpush.msra.mxu0 %v1730
    %3373 = vmatpush.msra.mxu0 %v1728
    %3374 = vmatpush.msra.mxu0 %v1726
    %3375 = vmatmul.f32.gmra.mxu0 %v3337
    %v3376 = vpop.f32.mrf.mxu0
    %v3377 = vadd.f32 0.0, %v3376
    %3378 = vdwg.mxu0
    %v3379 = vadd.f32 %v3314, %v3357
    %v3380 = vxor.u32 %v3379, 2147483648
    %v3381 = vmul.f32 %v3380, 1.442695
    %v3382 = vpow.pop %v3381
    %v3383 = vadd.f32 %v3382, 1.0
    %v3384 = vrcp.pop %v3383
    %v3385 = vmul.f32 %v3383, %v3384
    %v3386 = vsub.f32 1.0, %v3385
    %v3387 = vmul.f32 %v3384, %v3386
    %v3388 = vadd.f32 %v3384, %v3387
    %vm3389 = vweird.f32 %v3383
    %vm3390 = vweird.f32 %v3384
    %vm3391 = vmor %vm3389, %vm3390
    %v3392 = vsel %vm3391, %v3384, %v3388
    %v3393 = vand.u32 2147483647, %v3383
    %vm3394 = vcmp.eq.f32.partialorder %v3393, 8.507059e+37
    %v3395 = vand.u32 %v3383, 2147483648
    %v3396 = vor.u32 1.1754944e-38, %v3395
    %v3397 = vsel %vm3394, %v3396, %v3392
    %v3398 = vmul.f32 1.0, %v3397
    %3399 = vrot.lane.b32.xlu0 %v3398, 64
    %v3400 = vpop.permute.xlu0 %3399
    %v3401 = vadd.f32 %v3377, %v1806
    %v3402 = vmul.f32 %v3398, %v3401
    %v3403 = vadd.f32 %v3334, %v3402
    %v3404 = vtanh.pop %v3403
    %v3405 = vsub.f32 %v2876, %v3404
    %v3406 = vmul.f32 %v3400, %v3405
    %v3407 = vadd.f32 %v3404, %v3406
    %v3409 = vsel %vm115, %v2959, 0
    %3411 = vmatpush.msra.mxu0 0.0
    %3412 = vmatpush.msra.mxu0 0.0
    %3413 = vmatpush.msra.mxu0 0.0
    %3414 = vmatpush.msra.mxu0 0.0
    %3415 = vmatpush.msra.mxu0 0.0
    %3416 = vmatpush.msra.mxu0 0.0
    %3417 = vmatpush.msra.mxu0 0.0
    %3418 = vmatpush.msra.mxu0 0.0
    %3419 = vmatpush.msra.mxu0 %v289
    %3420 = vmatpush.msra.mxu0 %v287
    %3421 = vmatpush.msra.mxu0 %v285
    %3422 = vmatpush.msra.mxu0 %v283
    %3423 = vmatpush.msra.mxu0 %v281
    %3424 = vmatpush.msra.mxu0 %v279
    %3425 = vmatpush.msra.mxu0 %v277
    %3426 = vmatpush.msra.mxu0 %v275
    %3427 = vmatmul.f32.gmra.mxu0 %v3409
    %v3428 = vpop.f32.mrf.mxu0
    %v3429 = vadd.f32 %v294, %v3428
    %3430 = vdwg.mxu0
    %3431 = vmatpush.msra.mxu0 0.0
    %3432 = vmatpush.msra.mxu0 0.0
    %3433 = vmatpush.msra.mxu0 0.0
    %3434 = vmatpush.msra.mxu0 0.0
    %3435 = vmatpush.msra.mxu0 0.0
    %3436 = vmatpush.msra.mxu0 0.0
    %3437 = vmatpush.msra.mxu0 0.0
    %3438 = vmatpush.msra.mxu0 0.0
    %3439 = vmatpush.msra.mxu0 %v290
    %3440 = vmatpush.msra.mxu0 %v288
    %3441 = vmatpush.msra.mxu0 %v286
    %3442 = vmatpush.msra.mxu0 %v284
    %3443 = vmatpush.msra.mxu0 %v282
    %3444 = vmatpush.msra.mxu0 %v280
    %3445 = vmatpush.msra.mxu0 %v278
    %3446 = vmatpush.msra.mxu0 %v276
    %3447 = vmatmul.f32.gmra.mxu0 %v3409
    %v3448 = vpop.f32.mrf.mxu0
    %v3449 = vadd.f32 %v295, %v3448
    %3450 = vdwg.mxu0
    %v3452 = vsel %vm115, %v3071, 0
    %3454 = vmatpush.msra.mxu0 0.0
    %3455 = vmatpush.msra.mxu0 0.0
    %3456 = vmatpush.msra.mxu0 0.0
    %3457 = vmatpush.msra.mxu0 0.0
    %3458 = vmatpush.msra.mxu0 0.0
    %3459 = vmatpush.msra.mxu0 0.0
    %3460 = vmatpush.msra.mxu0 0.0
    %3461 = vmatpush.msra.mxu0 0.0
    %3462 = vmatpush.msra.mxu0 %v353
    %3463 = vmatpush.msra.mxu0 %v351
    %3464 = vmatpush.msra.mxu0 %v349
    %3465 = vmatpush.msra.mxu0 %v347
    %3466 = vmatpush.msra.mxu0 %v345
    %3467 = vmatpush.msra.mxu0 %v343
    %3468 = vmatpush.msra.mxu0 %v341
    %3469 = vmatpush.msra.mxu0 %v339
    %3470 = vmatmul.f32.gmra.mxu0 %v3452
    %v3471 = vpop.f32.mrf.mxu0
    %v3472 = vadd.f32 0.0, %v3471
    %3473 = vdwg.mxu0
    %3474 = vmatpush.msra.mxu0 0.0
    %3475 = vmatpush.msra.mxu0 0.0
    %3476 = vmatpush.msra.mxu0 0.0
    %3477 = vmatpush.msra.mxu0 0.0
    %3478 = vmatpush.msra.mxu0 0.0
    %3479 = vmatpush.msra.mxu0 0.0
    %3480 = vmatpush.msra.mxu0 0.0
    %3481 = vmatpush.msra.mxu0 0.0
    %3482 = vmatpush.msra.mxu0 %v354
    %3483 = vmatpush.msra.mxu0 %v352
    %3484 = vmatpush.msra.mxu0 %v350
    %3485 = vmatpush.msra.mxu0 %v348
    %3486 = vmatpush.msra.mxu0 %v346
    %3487 = vmatpush.msra.mxu0 %v344
    %3488 = vmatpush.msra.mxu0 %v342
    %3489 = vmatpush.msra.mxu0 %v340
    %3490 = vmatmul.f32.gmra.mxu0 %v3452
    %v3491 = vpop.f32.mrf.mxu0
    %v3492 = vadd.f32 0.0, %v3491
    %3493 = vdwg.mxu0
    %v3494 = vadd.f32 %v3429, %v3472
    %v3495 = vxor.u32 %v3494, 2147483648
    %v3496 = vmul.f32 %v3495, 1.442695
    %v3497 = vpow.pop %v3496
    %v3498 = vadd.f32 %v3497, 1.0
    %v3499 = vrcp.pop %v3498
    %v3500 = vmul.f32 %v3498, %v3499
    %v3501 = vsub.f32 1.0, %v3500
    %v3502 = vmul.f32 %v3499, %v3501
    %v3503 = vadd.f32 %v3499, %v3502
    %vm3504 = vweird.f32 %v3498
    %vm3505 = vweird.f32 %v3499
    %vm3506 = vmor %vm3504, %vm3505
    %v3507 = vsel %vm3506, %v3499, %v3503
    %v3508 = vand.u32 2147483647, %v3498
    %vm3509 = vcmp.eq.f32.partialorder %v3508, 8.507059e+37
    %v3510 = vand.u32 %v3498, 2147483648
    %v3511 = vor.u32 1.1754944e-38, %v3510
    %v3512 = vsel %vm3509, %v3511, %v3507
    %v3513 = vmul.f32 1.0, %v3512
    %3514 = vrot.lane.b32.xlu0 %v3513, 64
    %v3515 = vpop.permute.xlu0 %3514
    %v3516 = vadd.f32 %v3492, %v420
    %v3517 = vmul.f32 %v3513, %v3516
    %v3518 = vadd.f32 %v3449, %v3517
    %v3519 = vtanh.pop %v3518
    %v3520 = vsub.f32 %v3071, %v3519
    %v3521 = vmul.f32 %v3515, %v3520
    %v3522 = vadd.f32 %v3519, %v3521
    %3523 = vmatpush.msra.mxu0 0.0
    %3524 = vmatpush.msra.mxu0 0.0
    %3525 = vmatpush.msra.mxu0 0.0
    %3526 = vmatpush.msra.mxu0 0.0
    %3527 = vmatpush.msra.mxu0 0.0
    %3528 = vmatpush.msra.mxu0 0.0
    %3529 = vmatpush.msra.mxu0 0.0
    %3530 = vmatpush.msra.mxu0 0.0
    %3531 = vmatpush.msra.mxu0 %v639
    %3532 = vmatpush.msra.mxu0 %v637
    %3533 = vmatpush.msra.mxu0 %v635
    %3534 = vmatpush.msra.mxu0 %v633
    %3535 = vmatpush.msra.mxu0 %v631
    %3536 = vmatpush.msra.mxu0 %v629
    %3537 = vmatpush.msra.mxu0 %v627
    %3538 = vmatpush.msra.mxu0 %v625
    %3539 = vmatmul.f32.gmra.mxu0 %v3452
    %v3540 = vpop.f32.mrf.mxu0
    %v3541 = vadd.f32 %v644, %v3540
    %3542 = vdwg.mxu0
    %3543 = vmatpush.msra.mxu0 0.0
    %3544 = vmatpush.msra.mxu0 0.0
    %3545 = vmatpush.msra.mxu0 0.0
    %3546 = vmatpush.msra.mxu0 0.0
    %3547 = vmatpush.msra.mxu0 0.0
    %3548 = vmatpush.msra.mxu0 0.0
    %3549 = vmatpush.msra.mxu0 0.0
    %3550 = vmatpush.msra.mxu0 0.0
    %3551 = vmatpush.msra.mxu0 %v640
    %3552 = vmatpush.msra.mxu0 %v638
    %3553 = vmatpush.msra.mxu0 %v636
    %3554 = vmatpush.msra.mxu0 %v634
    %3555 = vmatpush.msra.mxu0 %v632
    %3556 = vmatpush.msra.mxu0 %v630
    %3557 = vmatpush.msra.mxu0 %v628
    %3558 = vmatpush.msra.mxu0 %v626
    %3559 = vmatmul.f32.gmra.mxu0 %v3452
    %v3560 = vpop.f32.mrf.mxu0
    %v3561 = vadd.f32 %v645, %v3560
    %3562 = vdwg.mxu0
    %v3564 = vsel %vm115, %v3183, 0
    %3566 = vmatpush.msra.mxu0 0.0
    %3567 = vmatpush.msra.mxu0 0.0
    %3568 = vmatpush.msra.mxu0 0.0
    %3569 = vmatpush.msra.mxu0 0.0
    %3570 = vmatpush.msra.mxu0 0.0
    %3571 = vmatpush.msra.mxu0 0.0
    %3572 = vmatpush.msra.mxu0 0.0
    %3573 = vmatpush.msra.mxu0 0.0
    %3574 = vmatpush.msra.mxu0 %v703
    %3575 = vmatpush.msra.mxu0 %v701
    %3576 = vmatpush.msra.mxu0 %v699
    %3577 = vmatpush.msra.mxu0 %v697
    %3578 = vmatpush.msra.mxu0 %v695
    %3579 = vmatpush.msra.mxu0 %v693
    %3580 = vmatpush.msra.mxu0 %v691
    %3581 = vmatpush.msra.mxu0 %v689
    %3582 = vmatmul.f32.gmra.mxu0 %v3564
    %v3583 = vpop.f32.mrf.mxu0
    %v3584 = vadd.f32 0.0, %v3583
    %3585 = vdwg.mxu0
    %3586 = vmatpush.msra.mxu0 0.0
    %3587 = vmatpush.msra.mxu0 0.0
    %3588 = vmatpush.msra.mxu0 0.0
    %3589 = vmatpush.msra.mxu0 0.0
    %3590 = vmatpush.msra.mxu0 0.0
    %3591 = vmatpush.msra.mxu0 0.0
    %3592 = vmatpush.msra.mxu0 0.0
    %3593 = vmatpush.msra.mxu0 0.0
    %3594 = vmatpush.msra.mxu0 %v704
    %3595 = vmatpush.msra.mxu0 %v702
    %3596 = vmatpush.msra.mxu0 %v700
    %3597 = vmatpush.msra.mxu0 %v698
    %3598 = vmatpush.msra.mxu0 %v696
    %3599 = vmatpush.msra.mxu0 %v694
    %3600 = vmatpush.msra.mxu0 %v692
    %3601 = vmatpush.msra.mxu0 %v690
    %3602 = vmatmul.f32.gmra.mxu0 %v3564
    %v3603 = vpop.f32.mrf.mxu0
    %v3604 = vadd.f32 0.0, %v3603
    %3605 = vdwg.mxu0
    %v3606 = vadd.f32 %v3541, %v3584
    %v3607 = vxor.u32 %v3606, 2147483648
    %v3608 = vmul.f32 %v3607, 1.442695
    %v3609 = vpow.pop %v3608
    %v3610 = vadd.f32 %v3609, 1.0
    %v3611 = vrcp.pop %v3610
    %v3612 = vmul.f32 %v3610, %v3611
    %v3613 = vsub.f32 1.0, %v3612
    %v3614 = vmul.f32 %v3611, %v3613
    %v3615 = vadd.f32 %v3611, %v3614
    %vm3616 = vweird.f32 %v3610
    %vm3617 = vweird.f32 %v3611
    %vm3618 = vmor %vm3616, %vm3617
    %v3619 = vsel %vm3618, %v3611, %v3615
    %v3620 = vand.u32 2147483647, %v3610
    %vm3621 = vcmp.eq.f32.partialorder %v3620, 8.507059e+37
    %v3622 = vand.u32 %v3610, 2147483648
    %v3623 = vor.u32 1.1754944e-38, %v3622
    %v3624 = vsel %vm3621, %v3623, %v3619
    %v3625 = vmul.f32 1.0, %v3624
    %3626 = vrot.lane.b32.xlu0 %v3625, 64
    %v3627 = vpop.permute.xlu0 %3626
    %v3628 = vadd.f32 %v3604, %v770
    %v3629 = vmul.f32 %v3625, %v3628
    %v3630 = vadd.f32 %v3561, %v3629
    %v3631 = vtanh.pop %v3630
    %v3632 = vsub.f32 %v3183, %v3631
    %v3633 = vmul.f32 %v3627, %v3632
    %v3634 = vadd.f32 %v3631, %v3633
    %3635 = vmatpush.msra.mxu0 0.0
    %3636 = vmatpush.msra.mxu0 0.0
    %3637 = vmatpush.msra.mxu0 0.0
    %3638 = vmatpush.msra.mxu0 0.0
    %3639 = vmatpush.msra.mxu0 0.0
    %3640 = vmatpush.msra.mxu0 0.0
    %3641 = vmatpush.msra.mxu0 0.0
    %3642 = vmatpush.msra.mxu0 0.0
    %3643 = vmatpush.msra.mxu0 %v1101
    %3644 = vmatpush.msra.mxu0 %v1099
    %3645 = vmatpush.msra.mxu0 %v1097
    %3646 = vmatpush.msra.mxu0 %v1095
    %3647 = vmatpush.msra.mxu0 %v1093
    %3648 = vmatpush.msra.mxu0 %v1091
    %3649 = vmatpush.msra.mxu0 %v1089
    %3650 = vmatpush.msra.mxu0 %v1087
    %3651 = vmatmul.f32.gmra.mxu0 %v3564
    %v3652 = vpop.f32.mrf.mxu0
    %v3653 = vadd.f32 %v1106, %v3652
    %3654 = vdwg.mxu0
    %3655 = vmatpush.msra.mxu0 0.0
    %3656 = vmatpush.msra.mxu0 0.0
    %3657 = vmatpush.msra.mxu0 0.0
    %3658 = vmatpush.msra.mxu0 0.0
    %3659 = vmatpush.msra.mxu0 0.0
    %3660 = vmatpush.msra.mxu0 0.0
    %3661 = vmatpush.msra.mxu0 0.0
    %3662 = vmatpush.msra.mxu0 0.0
    %3663 = vmatpush.msra.mxu0 %v1102
    %3664 = vmatpush.msra.mxu0 %v1100
    %3665 = vmatpush.msra.mxu0 %v1098
    %3666 = vmatpush.msra.mxu0 %v1096
    %3667 = vmatpush.msra.mxu0 %v1094
    %3668 = vmatpush.msra.mxu0 %v1092
    %3669 = vmatpush.msra.mxu0 %v1090
    %3670 = vmatpush.msra.mxu0 %v1088
    %3671 = vmatmul.f32.gmra.mxu0 %v3564
    %v3672 = vpop.f32.mrf.mxu0
    %v3673 = vadd.f32 %v1107, %v3672
    %3674 = vdwg.mxu0
    %v3676 = vsel %vm115, %v3295, 0
    %3678 = vmatpush.msra.mxu0 0.0
    %3679 = vmatpush.msra.mxu0 0.0
    %3680 = vmatpush.msra.mxu0 0.0
    %3681 = vmatpush.msra.mxu0 0.0
    %3682 = vmatpush.msra.mxu0 0.0
    %3683 = vmatpush.msra.mxu0 0.0
    %3684 = vmatpush.msra.mxu0 0.0
    %3685 = vmatpush.msra.mxu0 0.0
    %3686 = vmatpush.msra.mxu0 %v1165
    %3687 = vmatpush.msra.mxu0 %v1163
    %3688 = vmatpush.msra.mxu0 %v1161
    %3689 = vmatpush.msra.mxu0 %v1159
    %3690 = vmatpush.msra.mxu0 %v1157
    %3691 = vmatpush.msra.mxu0 %v1155
    %3692 = vmatpush.msra.mxu0 %v1153
    %3693 = vmatpush.msra.mxu0 %v1151
    %3694 = vmatmul.f32.gmra.mxu0 %v3676
    %v3695 = vpop.f32.mrf.mxu0
    %v3696 = vadd.f32 0.0, %v3695
    %3697 = vdwg.mxu0
    %3698 = vmatpush.msra.mxu0 0.0
    %3699 = vmatpush.msra.mxu0 0.0
    %3700 = vmatpush.msra.mxu0 0.0
    %3701 = vmatpush.msra.mxu0 0.0
    %3702 = vmatpush.msra.mxu0 0.0
    %3703 = vmatpush.msra.mxu0 0.0
    %3704 = vmatpush.msra.mxu0 0.0
    %3705 = vmatpush.msra.mxu0 0.0
    %3706 = vmatpush.msra.mxu0 %v1166
    %3707 = vmatpush.msra.mxu0 %v1164
    %3708 = vmatpush.msra.mxu0 %v1162
    %3709 = vmatpush.msra.mxu0 %v1160
    %3710 = vmatpush.msra.mxu0 %v1158
    %3711 = vmatpush.msra.mxu0 %v1156
    %3712 = vmatpush.msra.mxu0 %v1154
    %3713 = vmatpush.msra.mxu0 %v1152
    %3714 = vmatmul.f32.gmra.mxu0 %v3676
    %v3715 = vpop.f32.mrf.mxu0
    %v3716 = vadd.f32 0.0, %v3715
    %3717 = vdwg.mxu0
    %v3718 = vadd.f32 %v3653, %v3696
    %v3719 = vxor.u32 %v3718, 2147483648
    %v3720 = vmul.f32 %v3719, 1.442695
    %v3721 = vpow.pop %v3720
    %v3722 = vadd.f32 %v3721, 1.0
    %v3723 = vrcp.pop %v3722
    %v3724 = vmul.f32 %v3722, %v3723
    %v3725 = vsub.f32 1.0, %v3724
    %v3726 = vmul.f32 %v3723, %v3725
    %v3727 = vadd.f32 %v3723, %v3726
    %vm3728 = vweird.f32 %v3722
    %vm3729 = vweird.f32 %v3723
    %vm3730 = vmor %vm3728, %vm3729
    %v3731 = vsel %vm3730, %v3723, %v3727
    %v3732 = vand.u32 2147483647, %v3722
    %vm3733 = vcmp.eq.f32.partialorder %v3732, 8.507059e+37
    %v3734 = vand.u32 %v3722, 2147483648
    %v3735 = vor.u32 1.1754944e-38, %v3734
    %v3736 = vsel %vm3733, %v3735, %v3731
    %v3737 = vmul.f32 1.0, %v3736
    %3738 = vrot.lane.b32.xlu0 %v3737, 64
    %v3739 = vpop.permute.xlu0 %3738
    %v3740 = vadd.f32 %v3716, %v1232
    %v3741 = vmul.f32 %v3737, %v3740
    %v3742 = vadd.f32 %v3673, %v3741
    %v3743 = vtanh.pop %v3742
    %v3744 = vsub.f32 %v3295, %v3743
    %v3745 = vmul.f32 %v3739, %v3744
    %v3746 = vadd.f32 %v3743, %v3745
    %3747 = vmatpush.msra.mxu0 0.0
    %3748 = vmatpush.msra.mxu0 0.0
    %3749 = vmatpush.msra.mxu0 0.0
    %3750 = vmatpush.msra.mxu0 0.0
    %3751 = vmatpush.msra.mxu0 0.0
    %3752 = vmatpush.msra.mxu0 0.0
    %3753 = vmatpush.msra.mxu0 0.0
    %3754 = vmatpush.msra.mxu0 0.0
    %3755 = vmatpush.msra.mxu0 %v1675
    %3756 = vmatpush.msra.mxu0 %v1673
    %3757 = vmatpush.msra.mxu0 %v1671
    %3758 = vmatpush.msra.mxu0 %v1669
    %3759 = vmatpush.msra.mxu0 %v1667
    %3760 = vmatpush.msra.mxu0 %v1665
    %3761 = vmatpush.msra.mxu0 %v1663
    %3762 = vmatpush.msra.mxu0 %v1661
    %3763 = vmatmul.f32.gmra.mxu0 %v3676
    %v3764 = vpop.f32.mrf.mxu0
    %v3765 = vadd.f32 %v1680, %v3764
    %3766 = vdwg.mxu0
    %3767 = vmatpush.msra.mxu0 0.0
    %3768 = vmatpush.msra.mxu0 0.0
    %3769 = vmatpush.msra.mxu0 0.0
    %3770 = vmatpush.msra.mxu0 0.0
    %3771 = vmatpush.msra.mxu0 0.0
    %3772 = vmatpush.msra.mxu0 0.0
    %3773 = vmatpush.msra.mxu0 0.0
    %3774 = vmatpush.msra.mxu0 0.0
    %3775 = vmatpush.msra.mxu0 %v1676
    %3776 = vmatpush.msra.mxu0 %v1674
    %3777 = vmatpush.msra.mxu0 %v1672
    %3778 = vmatpush.msra.mxu0 %v1670
    %3779 = vmatpush.msra.mxu0 %v1668
    %3780 = vmatpush.msra.mxu0 %v1666
    %3781 = vmatpush.msra.mxu0 %v1664
    %3782 = vmatpush.msra.mxu0 %v1662
    %3783 = vmatmul.f32.gmra.mxu0 %v3676
    %v3784 = vpop.f32.mrf.mxu0
    %v3785 = vadd.f32 %v1681, %v3784
    %3786 = vdwg.mxu0
    %v3788 = vsel %vm115, %v3407, 0
    %3790 = vmatpush.msra.mxu0 0.0
    %3791 = vmatpush.msra.mxu0 0.0
    %3792 = vmatpush.msra.mxu0 0.0
    %3793 = vmatpush.msra.mxu0 0.0
    %3794 = vmatpush.msra.mxu0 0.0
    %3795 = vmatpush.msra.mxu0 0.0
    %3796 = vmatpush.msra.mxu0 0.0
    %3797 = vmatpush.msra.mxu0 0.0
    %3798 = vmatpush.msra.mxu0 %v1739
    %3799 = vmatpush.msra.mxu0 %v1737
    %3800 = vmatpush.msra.mxu0 %v1735
    %3801 = vmatpush.msra.mxu0 %v1733
    %3802 = vmatpush.msra.mxu0 %v1731
    %3803 = vmatpush.msra.mxu0 %v1729
    %3804 = vmatpush.msra.mxu0 %v1727
    %3805 = vmatpush.msra.mxu0 %v1725
    %3806 = vmatmul.f32.gmra.mxu0 %v3788
    %v3807 = vpop.f32.mrf.mxu0
    %v3808 = vadd.f32 0.0, %v3807
    %3809 = vdwg.mxu0
    %3810 = vmatpush.msra.mxu0 0.0
    %3811 = vmatpush.msra.mxu0 0.0
    %3812 = vmatpush.msra.mxu0 0.0
    %3813 = vmatpush.msra.mxu0 0.0
    %3814 = vmatpush.msra.mxu0 0.0
    %3815 = vmatpush.msra.mxu0 0.0
    %3816 = vmatpush.msra.mxu0 0.0
    %3817 = vmatpush.msra.mxu0 0.0
    %3818 = vmatpush.msra.mxu0 %v1740
    %3819 = vmatpush.msra.mxu0 %v1738
    %3820 = vmatpush.msra.mxu0 %v1736
    %3821 = vmatpush.msra.mxu0 %v1734
    %3822 = vmatpush.msra.mxu0 %v1732
    %3823 = vmatpush.msra.mxu0 %v1730
    %3824 = vmatpush.msra.mxu0 %v1728
    %3825 = vmatpush.msra.mxu0 %v1726
    %3826 = vmatmul.f32.gmra.mxu0 %v3788
    %v3827 = vpop.f32.mrf.mxu0
    %v3828 = vadd.f32 0.0, %v3827
    %3829 = vdwg.mxu0
    %v3830 = vadd.f32 %v3765, %v3808
    %v3831 = vxor.u32 %v3830, 2147483648
    %v3832 = vmul.f32 %v3831, 1.442695
    %v3833 = vpow.pop %v3832
    %v3834 = vadd.f32 %v3833, 1.0
    %v3835 = vrcp.pop %v3834
    %v3836 = vmul.f32 %v3834, %v3835
    %v3837 = vsub.f32 1.0, %v3836
    %v3838 = vmul.f32 %v3835, %v3837
    %v3839 = vadd.f32 %v3835, %v3838
    %vm3840 = vweird.f32 %v3834
    %vm3841 = vweird.f32 %v3835
    %vm3842 = vmor %vm3840, %vm3841
    %v3843 = vsel %vm3842, %v3835, %v3839
    %v3844 = vand.u32 2147483647, %v3834
    %vm3845 = vcmp.eq.f32.partialorder %v3844, 8.507059e+37
    %v3846 = vand.u32 %v3834, 2147483648
    %v3847 = vor.u32 1.1754944e-38, %v3846
    %v3848 = vsel %vm3845, %v3847, %v3843
    %v3849 = vmul.f32 1.0, %v3848
    %3850 = vrot.lane.b32.xlu0 %v3849, 64
    %v3851 = vpop.permute.xlu0 %3850
    %v3852 = vadd.f32 %v3828, %v1806
    %v3853 = vmul.f32 %v3849, %v3852
    %v3854 = vadd.f32 %v3785, %v3853
    %v3855 = vtanh.pop %v3854
    %v3856 = vsub.f32 %v3407, %v3855
    %v3857 = vmul.f32 %v3851, %v3856
    %v3858 = vadd.f32 %v3855, %v3857
    %v3860 = vsel %vm115, %v3522, 0
    %3862 = vmatpush.msra.mxu0 0.0
    %3863 = vmatpush.msra.mxu0 0.0
    %3864 = vmatpush.msra.mxu0 0.0
    %3865 = vmatpush.msra.mxu0 0.0
    %3866 = vmatpush.msra.mxu0 0.0
    %3867 = vmatpush.msra.mxu0 0.0
    %3868 = vmatpush.msra.mxu0 0.0
    %3869 = vmatpush.msra.mxu0 0.0
    %3870 = vmatpush.msra.mxu0 %v639
    %3871 = vmatpush.msra.mxu0 %v637
    %3872 = vmatpush.msra.mxu0 %v635
    %3873 = vmatpush.msra.mxu0 %v633
    %3874 = vmatpush.msra.mxu0 %v631
    %3875 = vmatpush.msra.mxu0 %v629
    %3876 = vmatpush.msra.mxu0 %v627
    %3877 = vmatpush.msra.mxu0 %v625
    %3878 = vmatmul.f32.gmra.mxu0 %v3860
    %v3879 = vpop.f32.mrf.mxu0
    %v3880 = vadd.f32 %v644, %v3879
    %3881 = vdwg.mxu0
    %3882 = vmatpush.msra.mxu0 0.0
    %3883 = vmatpush.msra.mxu0 0.0
    %3884 = vmatpush.msra.mxu0 0.0
    %3885 = vmatpush.msra.mxu0 0.0
    %3886 = vmatpush.msra.mxu0 0.0
    %3887 = vmatpush.msra.mxu0 0.0
    %3888 = vmatpush.msra.mxu0 0.0
    %3889 = vmatpush.msra.mxu0 0.0
    %3890 = vmatpush.msra.mxu0 %v640
    %3891 = vmatpush.msra.mxu0 %v638
    %3892 = vmatpush.msra.mxu0 %v636
    %3893 = vmatpush.msra.mxu0 %v634
    %3894 = vmatpush.msra.mxu0 %v632
    %3895 = vmatpush.msra.mxu0 %v630
    %3896 = vmatpush.msra.mxu0 %v628
    %3897 = vmatpush.msra.mxu0 %v626
    %3898 = vmatmul.f32.gmra.mxu0 %v3860
    %v3899 = vpop.f32.mrf.mxu0
    %v3900 = vadd.f32 %v645, %v3899
    %3901 = vdwg.mxu0
    %v3903 = vsel %vm115, %v3634, 0
    %3905 = vmatpush.msra.mxu0 0.0
    %3906 = vmatpush.msra.mxu0 0.0
    %3907 = vmatpush.msra.mxu0 0.0
    %3908 = vmatpush.msra.mxu0 0.0
    %3909 = vmatpush.msra.mxu0 0.0
    %3910 = vmatpush.msra.mxu0 0.0
    %3911 = vmatpush.msra.mxu0 0.0
    %3912 = vmatpush.msra.mxu0 0.0
    %3913 = vmatpush.msra.mxu0 %v703
    %3914 = vmatpush.msra.mxu0 %v701
    %3915 = vmatpush.msra.mxu0 %v699
    %3916 = vmatpush.msra.mxu0 %v697
    %3917 = vmatpush.msra.mxu0 %v695
    %3918 = vmatpush.msra.mxu0 %v693
    %3919 = vmatpush.msra.mxu0 %v691
    %3920 = vmatpush.msra.mxu0 %v689
    %3921 = vmatmul.f32.gmra.mxu0 %v3903
    %v3922 = vpop.f32.mrf.mxu0
    %v3923 = vadd.f32 0.0, %v3922
    %3924 = vdwg.mxu0
    %3925 = vmatpush.msra.mxu0 0.0
    %3926 = vmatpush.msra.mxu0 0.0
    %3927 = vmatpush.msra.mxu0 0.0
    %3928 = vmatpush.msra.mxu0 0.0
    %3929 = vmatpush.msra.mxu0 0.0
    %3930 = vmatpush.msra.mxu0 0.0
    %3931 = vmatpush.msra.mxu0 0.0
    %3932 = vmatpush.msra.mxu0 0.0
    %3933 = vmatpush.msra.mxu0 %v704
    %3934 = vmatpush.msra.mxu0 %v702
    %3935 = vmatpush.msra.mxu0 %v700
    %3936 = vmatpush.msra.mxu0 %v698
    %3937 = vmatpush.msra.mxu0 %v696
    %3938 = vmatpush.msra.mxu0 %v694
    %3939 = vmatpush.msra.mxu0 %v692
    %3940 = vmatpush.msra.mxu0 %v690
    %3941 = vmatmul.f32.gmra.mxu0 %v3903
    %v3942 = vpop.f32.mrf.mxu0
    %v3943 = vadd.f32 0.0, %v3942
    %3944 = vdwg.mxu0
    %v3945 = vadd.f32 %v3880, %v3923
    %v3946 = vxor.u32 %v3945, 2147483648
    %v3947 = vmul.f32 %v3946, 1.442695
    %v3948 = vpow.pop %v3947
    %v3949 = vadd.f32 %v3948, 1.0
    %v3950 = vrcp.pop %v3949
    %v3951 = vmul.f32 %v3949, %v3950
    %v3952 = vsub.f32 1.0, %v3951
    %v3953 = vmul.f32 %v3950, %v3952
    %v3954 = vadd.f32 %v3950, %v3953
    %vm3955 = vweird.f32 %v3949
    %vm3956 = vweird.f32 %v3950
    %vm3957 = vmor %vm3955, %vm3956
    %v3958 = vsel %vm3957, %v3950, %v3954
    %v3959 = vand.u32 2147483647, %v3949
    %vm3960 = vcmp.eq.f32.partialorder %v3959, 8.507059e+37
    %v3961 = vand.u32 %v3949, 2147483648
    %v3962 = vor.u32 1.1754944e-38, %v3961
    %v3963 = vsel %vm3960, %v3962, %v3958
    %v3964 = vmul.f32 1.0, %v3963
    %3965 = vrot.lane.b32.xlu0 %v3964, 64
    %v3966 = vpop.permute.xlu0 %3965
    %v3967 = vadd.f32 %v3943, %v770
    %v3968 = vmul.f32 %v3964, %v3967
    %v3969 = vadd.f32 %v3900, %v3968
    %v3970 = vtanh.pop %v3969
    %v3971 = vsub.f32 %v3634, %v3970
    %v3972 = vmul.f32 %v3966, %v3971
    %v3973 = vadd.f32 %v3970, %v3972
    %3974 = vmatpush.msra.mxu0 0.0
    %3975 = vmatpush.msra.mxu0 0.0
    %3976 = vmatpush.msra.mxu0 0.0
    %3977 = vmatpush.msra.mxu0 0.0
    %3978 = vmatpush.msra.mxu0 0.0
    %3979 = vmatpush.msra.mxu0 0.0
    %3980 = vmatpush.msra.mxu0 0.0
    %3981 = vmatpush.msra.mxu0 0.0
    %3982 = vmatpush.msra.mxu0 %v1101
    %3983 = vmatpush.msra.mxu0 %v1099
    %3984 = vmatpush.msra.mxu0 %v1097
    %3985 = vmatpush.msra.mxu0 %v1095
    %3986 = vmatpush.msra.mxu0 %v1093
    %3987 = vmatpush.msra.mxu0 %v1091
    %3988 = vmatpush.msra.mxu0 %v1089
    %3989 = vmatpush.msra.mxu0 %v1087
    %3990 = vmatmul.f32.gmra.mxu0 %v3903
    %v3991 = vpop.f32.mrf.mxu0
    %v3992 = vadd.f32 %v1106, %v3991
    %3993 = vdwg.mxu0
    %3994 = vmatpush.msra.mxu0 0.0
    %3995 = vmatpush.msra.mxu0 0.0
    %3996 = vmatpush.msra.mxu0 0.0
    %3997 = vmatpush.msra.mxu0 0.0
    %3998 = vmatpush.msra.mxu0 0.0
    %3999 = vmatpush.msra.mxu0 0.0
    %4000 = vmatpush.msra.mxu0 0.0
    %4001 = vmatpush.msra.mxu0 0.0
    %4002 = vmatpush.msra.mxu0 %v1102
    %4003 = vmatpush.msra.mxu0 %v1100
    %4004 = vmatpush.msra.mxu0 %v1098
    %4005 = vmatpush.msra.mxu0 %v1096
    %4006 = vmatpush.msra.mxu0 %v1094
    %4007 = vmatpush.msra.mxu0 %v1092
    %4008 = vmatpush.msra.mxu0 %v1090
    %4009 = vmatpush.msra.mxu0 %v1088
    %4010 = vmatmul.f32.gmra.mxu0 %v3903
    %v4011 = vpop.f32.mrf.mxu0
    %v4012 = vadd.f32 %v1107, %v4011
    %4013 = vdwg.mxu0
    %v4015 = vsel %vm115, %v3746, 0
    %4017 = vmatpush.msra.mxu0 0.0
    %4018 = vmatpush.msra.mxu0 0.0
    %4019 = vmatpush.msra.mxu0 0.0
    %4020 = vmatpush.msra.mxu0 0.0
    %4021 = vmatpush.msra.mxu0 0.0
    %4022 = vmatpush.msra.mxu0 0.0
    %4023 = vmatpush.msra.mxu0 0.0
    %4024 = vmatpush.msra.mxu0 0.0
    %4025 = vmatpush.msra.mxu0 %v1165
    %4026 = vmatpush.msra.mxu0 %v1163
    %4027 = vmatpush.msra.mxu0 %v1161
    %4028 = vmatpush.msra.mxu0 %v1159
    %4029 = vmatpush.msra.mxu0 %v1157
    %4030 = vmatpush.msra.mxu0 %v1155
    %4031 = vmatpush.msra.mxu0 %v1153
    %4032 = vmatpush.msra.mxu0 %v1151
    %4033 = vmatmul.f32.gmra.mxu0 %v4015
    %v4034 = vpop.f32.mrf.mxu0
    %v4035 = vadd.f32 0.0, %v4034
    %4036 = vdwg.mxu0
    %4037 = vmatpush.msra.mxu0 0.0
    %4038 = vmatpush.msra.mxu0 0.0
    %4039 = vmatpush.msra.mxu0 0.0
    %4040 = vmatpush.msra.mxu0 0.0
    %4041 = vmatpush.msra.mxu0 0.0
    %4042 = vmatpush.msra.mxu0 0.0
    %4043 = vmatpush.msra.mxu0 0.0
    %4044 = vmatpush.msra.mxu0 0.0
    %4045 = vmatpush.msra.mxu0 %v1166
    %4046 = vmatpush.msra.mxu0 %v1164
    %4047 = vmatpush.msra.mxu0 %v1162
    %4048 = vmatpush.msra.mxu0 %v1160
    %4049 = vmatpush.msra.mxu0 %v1158
    %4050 = vmatpush.msra.mxu0 %v1156
    %4051 = vmatpush.msra.mxu0 %v1154
    %4052 = vmatpush.msra.mxu0 %v1152
    %4053 = vmatmul.f32.gmra.mxu0 %v4015
    %v4054 = vpop.f32.mrf.mxu0
    %v4055 = vadd.f32 0.0, %v4054
    %4056 = vdwg.mxu0
    %v4057 = vadd.f32 %v3992, %v4035
    %v4058 = vxor.u32 %v4057, 2147483648
    %v4059 = vmul.f32 %v4058, 1.442695
    %v4060 = vpow.pop %v4059
    %v4061 = vadd.f32 %v4060, 1.0
    %v4062 = vrcp.pop %v4061
    %v4063 = vmul.f32 %v4061, %v4062
    %v4064 = vsub.f32 1.0, %v4063
    %v4065 = vmul.f32 %v4062, %v4064
    %v4066 = vadd.f32 %v4062, %v4065
    %vm4067 = vweird.f32 %v4061
    %vm4068 = vweird.f32 %v4062
    %vm4069 = vmor %vm4067, %vm4068
    %v4070 = vsel %vm4069, %v4062, %v4066
    %v4071 = vand.u32 2147483647, %v4061
    %vm4072 = vcmp.eq.f32.partialorder %v4071, 8.507059e+37
    %v4073 = vand.u32 %v4061, 2147483648
    %v4074 = vor.u32 1.1754944e-38, %v4073
    %v4075 = vsel %vm4072, %v4074, %v4070
    %v4076 = vmul.f32 1.0, %v4075
    %4077 = vrot.lane.b32.xlu0 %v4076, 64
    %v4078 = vpop.permute.xlu0 %4077
    %v4079 = vadd.f32 %v4055, %v1232
    %v4080 = vmul.f32 %v4076, %v4079
    %v4081 = vadd.f32 %v4012, %v4080
    %v4082 = vtanh.pop %v4081
    %v4083 = vsub.f32 %v3746, %v4082
    %v4084 = vmul.f32 %v4078, %v4083
    %v4085 = vadd.f32 %v4082, %v4084
    %4086 = vmatpush.msra.mxu0 0.0
    %4087 = vmatpush.msra.mxu0 0.0
    %4088 = vmatpush.msra.mxu0 0.0
    %4089 = vmatpush.msra.mxu0 0.0
    %4090 = vmatpush.msra.mxu0 0.0
    %4091 = vmatpush.msra.mxu0 0.0
    %4092 = vmatpush.msra.mxu0 0.0
    %4093 = vmatpush.msra.mxu0 0.0
    %4094 = vmatpush.msra.mxu0 %v1675
    %4095 = vmatpush.msra.mxu0 %v1673
    %4096 = vmatpush.msra.mxu0 %v1671
    %4097 = vmatpush.msra.mxu0 %v1669
    %4098 = vmatpush.msra.mxu0 %v1667
    %4099 = vmatpush.msra.mxu0 %v1665
    %4100 = vmatpush.msra.mxu0 %v1663
    %4101 = vmatpush.msra.mxu0 %v1661
    %4102 = vmatmul.f32.gmra.mxu0 %v4015
    %v4103 = vpop.f32.mrf.mxu0
    %v4104 = vadd.f32 %v1680, %v4103
    %4105 = vdwg.mxu0
    %4106 = vmatpush.msra.mxu0 0.0
    %4107 = vmatpush.msra.mxu0 0.0
    %4108 = vmatpush.msra.mxu0 0.0
    %4109 = vmatpush.msra.mxu0 0.0
    %4110 = vmatpush.msra.mxu0 0.0
    %4111 = vmatpush.msra.mxu0 0.0
    %4112 = vmatpush.msra.mxu0 0.0
    %4113 = vmatpush.msra.mxu0 0.0
    %4114 = vmatpush.msra.mxu0 %v1676
    %4115 = vmatpush.msra.mxu0 %v1674
    %4116 = vmatpush.msra.mxu0 %v1672
    %4117 = vmatpush.msra.mxu0 %v1670
    %4118 = vmatpush.msra.mxu0 %v1668
    %4119 = vmatpush.msra.mxu0 %v1666
    %4120 = vmatpush.msra.mxu0 %v1664
    %4121 = vmatpush.msra.mxu0 %v1662
    %4122 = vmatmul.f32.gmra.mxu0 %v4015
    %v4123 = vpop.f32.mrf.mxu0
    %v4124 = vadd.f32 %v1681, %v4123
    %4125 = vdwg.mxu0
    %v4127 = vsel %vm115, %v3858, 0
    %4129 = vmatpush.msra.mxu0 0.0
    %4130 = vmatpush.msra.mxu0 0.0
    %4131 = vmatpush.msra.mxu0 0.0
    %4132 = vmatpush.msra.mxu0 0.0
    %4133 = vmatpush.msra.mxu0 0.0
    %4134 = vmatpush.msra.mxu0 0.0
    %4135 = vmatpush.msra.mxu0 0.0
    %4136 = vmatpush.msra.mxu0 0.0
    %4137 = vmatpush.msra.mxu0 %v1739
    %4138 = vmatpush.msra.mxu0 %v1737
    %4139 = vmatpush.msra.mxu0 %v1735
    %4140 = vmatpush.msra.mxu0 %v1733
    %4141 = vmatpush.msra.mxu0 %v1731
    %4142 = vmatpush.msra.mxu0 %v1729
    %4143 = vmatpush.msra.mxu0 %v1727
    %4144 = vmatpush.msra.mxu0 %v1725
    %4145 = vmatmul.f32.gmra.mxu0 %v4127
    %v4146 = vpop.f32.mrf.mxu0
    %v4147 = vadd.f32 0.0, %v4146
    %4148 = vdwg.mxu0
    %4149 = vmatpush.msra.mxu0 0.0
    %4150 = vmatpush.msra.mxu0 0.0
    %4151 = vmatpush.msra.mxu0 0.0
    %4152 = vmatpush.msra.mxu0 0.0
    %4153 = vmatpush.msra.mxu0 0.0
    %4154 = vmatpush.msra.mxu0 0.0
    %4155 = vmatpush.msra.mxu0 0.0
    %4156 = vmatpush.msra.mxu0 0.0
    %4157 = vmatpush.msra.mxu0 %v1740
    %4158 = vmatpush.msra.mxu0 %v1738
    %4159 = vmatpush.msra.mxu0 %v1736
    %4160 = vmatpush.msra.mxu0 %v1734
    %4161 = vmatpush.msra.mxu0 %v1732
    %4162 = vmatpush.msra.mxu0 %v1730
    %4163 = vmatpush.msra.mxu0 %v1728
    %4164 = vmatpush.msra.mxu0 %v1726
    %4165 = vmatmul.f32.gmra.mxu0 %v4127
    %v4166 = vpop.f32.mrf.mxu0
    %v4167 = vadd.f32 0.0, %v4166
    %4168 = vdwg.mxu0
    %v4169 = vadd.f32 %v4104, %v4147
    %v4170 = vxor.u32 %v4169, 2147483648
    %v4171 = vmul.f32 %v4170, 1.442695
    %v4172 = vpow.pop %v4171
    %v4173 = vadd.f32 %v4172, 1.0
    %v4174 = vrcp.pop %v4173
    %v4175 = vmul.f32 %v4173, %v4174
    %v4176 = vsub.f32 1.0, %v4175
    %v4177 = vmul.f32 %v4174, %v4176
    %v4178 = vadd.f32 %v4174, %v4177
    %vm4179 = vweird.f32 %v4173
    %vm4180 = vweird.f32 %v4174
    %vm4181 = vmor %vm4179, %vm4180
    %v4182 = vsel %vm4181, %v4174, %v4178
    %v4183 = vand.u32 2147483647, %v4173
    %vm4184 = vcmp.eq.f32.partialorder %v4183, 8.507059e+37
    %v4185 = vand.u32 %v4173, 2147483648
    %v4186 = vor.u32 1.1754944e-38, %v4185
    %v4187 = vsel %vm4184, %v4186, %v4182
    %v4188 = vmul.f32 1.0, %v4187
    %4189 = vrot.lane.b32.xlu0 %v4188, 64
    %v4190 = vpop.permute.xlu0 %4189
    %v4191 = vadd.f32 %v4167, %v1806
    %v4192 = vmul.f32 %v4188, %v4191
    %v4193 = vadd.f32 %v4124, %v4192
    %v4194 = vtanh.pop %v4193
    %v4195 = vsub.f32 %v3858, %v4194
    %v4196 = vmul.f32 %v4190, %v4195
    %v4197 = vadd.f32 %v4194, %v4196
    %v4199 = vsel %vm115, %v3973, 0
    %4201 = vmatpush.msra.mxu0 0.0
    %4202 = vmatpush.msra.mxu0 0.0
    %4203 = vmatpush.msra.mxu0 0.0
    %4204 = vmatpush.msra.mxu0 0.0
    %4205 = vmatpush.msra.mxu0 0.0
    %4206 = vmatpush.msra.mxu0 0.0
    %4207 = vmatpush.msra.mxu0 0.0
    %4208 = vmatpush.msra.mxu0 0.0
    %4209 = vmatpush.msra.mxu0 %v1101
    %4210 = vmatpush.msra.mxu0 %v1099
    %4211 = vmatpush.msra.mxu0 %v1097
    %4212 = vmatpush.msra.mxu0 %v1095
    %4213 = vmatpush.msra.mxu0 %v1093
    %4214 = vmatpush.msra.mxu0 %v1091
    %4215 = vmatpush.msra.mxu0 %v1089
    %4216 = vmatpush.msra.mxu0 %v1087
    %4217 = vmatmul.f32.gmra.mxu0 %v4199
    %v4218 = vpop.f32.mrf.mxu0
    %v4219 = vadd.f32 %v1106, %v4218
    %4220 = vdwg.mxu0
    %4221 = vmatpush.msra.mxu0 0.0
    %4222 = vmatpush.msra.mxu0 0.0
    %4223 = vmatpush.msra.mxu0 0.0
    %4224 = vmatpush.msra.mxu0 0.0
    %4225 = vmatpush.msra.mxu0 0.0
    %4226 = vmatpush.msra.mxu0 0.0
    %4227 = vmatpush.msra.mxu0 0.0
    %4228 = vmatpush.msra.mxu0 0.0
    %4229 = vmatpush.msra.mxu0 %v1102
    %4230 = vmatpush.msra.mxu0 %v1100
    %4231 = vmatpush.msra.mxu0 %v1098
    %4232 = vmatpush.msra.mxu0 %v1096
    %4233 = vmatpush.msra.mxu0 %v1094
    %4234 = vmatpush.msra.mxu0 %v1092
    %4235 = vmatpush.msra.mxu0 %v1090
    %4236 = vmatpush.msra.mxu0 %v1088
    %4237 = vmatmul.f32.gmra.mxu0 %v4199
    %v4238 = vpop.f32.mrf.mxu0
    %v4239 = vadd.f32 %v1107, %v4238
    %4240 = vdwg.mxu0
    %v4242 = vsel %vm115, %v4085, 0
    %4244 = vmatpush.msra.mxu0 0.0
    %4245 = vmatpush.msra.mxu0 0.0
    %4246 = vmatpush.msra.mxu0 0.0
    %4247 = vmatpush.msra.mxu0 0.0
    %4248 = vmatpush.msra.mxu0 0.0
    %4249 = vmatpush.msra.mxu0 0.0
    %4250 = vmatpush.msra.mxu0 0.0
    %4251 = vmatpush.msra.mxu0 0.0
    %4252 = vmatpush.msra.mxu0 %v1165
    %4253 = vmatpush.msra.mxu0 %v1163
    %4254 = vmatpush.msra.mxu0 %v1161
    %4255 = vmatpush.msra.mxu0 %v1159
    %4256 = vmatpush.msra.mxu0 %v1157
    %4257 = vmatpush.msra.mxu0 %v1155
    %4258 = vmatpush.msra.mxu0 %v1153
    %4259 = vmatpush.msra.mxu0 %v1151
    %4260 = vmatmul.f32.gmra.mxu0 %v4242
    %v4261 = vpop.f32.mrf.mxu0
    %v4262 = vadd.f32 0.0, %v4261
    %4263 = vdwg.mxu0
    %4264 = vmatpush.msra.mxu0 0.0
    %4265 = vmatpush.msra.mxu0 0.0
    %4266 = vmatpush.msra.mxu0 0.0
    %4267 = vmatpush.msra.mxu0 0.0
    %4268 = vmatpush.msra.mxu0 0.0
    %4269 = vmatpush.msra.mxu0 0.0
    %4270 = vmatpush.msra.mxu0 0.0
    %4271 = vmatpush.msra.mxu0 0.0
    %4272 = vmatpush.msra.mxu0 %v1166
    %4273 = vmatpush.msra.mxu0 %v1164
    %4274 = vmatpush.msra.mxu0 %v1162
    %4275 = vmatpush.msra.mxu0 %v1160
    %4276 = vmatpush.msra.mxu0 %v1158
    %4277 = vmatpush.msra.mxu0 %v1156
    %4278 = vmatpush.msra.mxu0 %v1154
    %4279 = vmatpush.msra.mxu0 %v1152
    %4280 = vmatmul.f32.gmra.mxu0 %v4242
    %v4281 = vpop.f32.mrf.mxu0
    %v4282 = vadd.f32 0.0, %v4281
    %4283 = vdwg.mxu0
    %v4284 = vadd.f32 %v4219, %v4262
    %v4285 = vxor.u32 %v4284, 2147483648
    %v4286 = vmul.f32 %v4285, 1.442695
    %v4287 = vpow.pop %v4286
    %v4288 = vadd.f32 %v4287, 1.0
    %v4289 = vrcp.pop %v4288
    %v4290 = vmul.f32 %v4288, %v4289
    %v4291 = vsub.f32 1.0, %v4290
    %v4292 = vmul.f32 %v4289, %v4291
    %v4293 = vadd.f32 %v4289, %v4292
    %vm4294 = vweird.f32 %v4288
    %vm4295 = vweird.f32 %v4289
    %vm4296 = vmor %vm4294, %vm4295
    %v4297 = vsel %vm4296, %v4289, %v4293
    %v4298 = vand.u32 2147483647, %v4288
    %vm4299 = vcmp.eq.f32.partialorder %v4298, 8.507059e+37
    %v4300 = vand.u32 %v4288, 2147483648
    %v4301 = vor.u32 1.1754944e-38, %v4300
    %v4302 = vsel %vm4299, %v4301, %v4297
    %v4303 = vmul.f32 1.0, %v4302
    %4304 = vrot.lane.b32.xlu0 %v4303, 64
    %v4305 = vpop.permute.xlu0 %4304
    %v4306 = vadd.f32 %v4282, %v1232
    %v4307 = vmul.f32 %v4303, %v4306
    %v4308 = vadd.f32 %v4239, %v4307
    %v4309 = vtanh.pop %v4308
    %v4310 = vsub.f32 %v4085, %v4309
    %v4311 = vmul.f32 %v4305, %v4310
    %v4312 = vadd.f32 %v4309, %v4311
    %4313 = vmatpush.msra.mxu0 0.0
    %4314 = vmatpush.msra.mxu0 0.0
    %4315 = vmatpush.msra.mxu0 0.0
    %4316 = vmatpush.msra.mxu0 0.0
    %4317 = vmatpush.msra.mxu0 0.0
    %4318 = vmatpush.msra.mxu0 0.0
    %4319 = vmatpush.msra.mxu0 0.0
    %4320 = vmatpush.msra.mxu0 0.0
    %4321 = vmatpush.msra.mxu0 %v1675
    %4322 = vmatpush.msra.mxu0 %v1673
    %4323 = vmatpush.msra.mxu0 %v1671
    %4324 = vmatpush.msra.mxu0 %v1669
    %4325 = vmatpush.msra.mxu0 %v1667
    %4326 = vmatpush.msra.mxu0 %v1665
    %4327 = vmatpush.msra.mxu0 %v1663
    %4328 = vmatpush.msra.mxu0 %v1661
    %4329 = vmatmul.f32.gmra.mxu0 %v4242
    %v4330 = vpop.f32.mrf.mxu0
    %v4331 = vadd.f32 %v1680, %v4330
    %4332 = vdwg.mxu0
    %4333 = vmatpush.msra.mxu0 0.0
    %4334 = vmatpush.msra.mxu0 0.0
    %4335 = vmatpush.msra.mxu0 0.0
    %4336 = vmatpush.msra.mxu0 0.0
    %4337 = vmatpush.msra.mxu0 0.0
    %4338 = vmatpush.msra.mxu0 0.0
    %4339 = vmatpush.msra.mxu0 0.0
    %4340 = vmatpush.msra.mxu0 0.0
    %4341 = vmatpush.msra.mxu0 %v1676
    %4342 = vmatpush.msra.mxu0 %v1674
    %4343 = vmatpush.msra.mxu0 %v1672
    %4344 = vmatpush.msra.mxu0 %v1670
    %4345 = vmatpush.msra.mxu0 %v1668
    %4346 = vmatpush.msra.mxu0 %v1666
    %4347 = vmatpush.msra.mxu0 %v1664
    %4348 = vmatpush.msra.mxu0 %v1662
    %4349 = vmatmul.f32.gmra.mxu0 %v4242
    %v4350 = vpop.f32.mrf.mxu0
    %v4351 = vadd.f32 %v1681, %v4350
    %4352 = vdwg.mxu0
    %v4354 = vsel %vm115, %v4197, 0
    %4356 = vmatpush.msra.mxu0 0.0
    %4357 = vmatpush.msra.mxu0 0.0
    %4358 = vmatpush.msra.mxu0 0.0
    %4359 = vmatpush.msra.mxu0 0.0
    %4360 = vmatpush.msra.mxu0 0.0
    %4361 = vmatpush.msra.mxu0 0.0
    %4362 = vmatpush.msra.mxu0 0.0
    %4363 = vmatpush.msra.mxu0 0.0
    %4364 = vmatpush.msra.mxu0 %v1739
    %4365 = vmatpush.msra.mxu0 %v1737
    %4366 = vmatpush.msra.mxu0 %v1735
    %4367 = vmatpush.msra.mxu0 %v1733
    %4368 = vmatpush.msra.mxu0 %v1731
    %4369 = vmatpush.msra.mxu0 %v1729
    %4370 = vmatpush.msra.mxu0 %v1727
    %4371 = vmatpush.msra.mxu0 %v1725
    %4372 = vmatmul.f32.gmra.mxu0 %v4354
    %v4373 = vpop.f32.mrf.mxu0
    %v4374 = vadd.f32 0.0, %v4373
    %4375 = vdwg.mxu0
    %4376 = vmatpush.msra.mxu0 0.0
    %4377 = vmatpush.msra.mxu0 0.0
    %4378 = vmatpush.msra.mxu0 0.0
    %4379 = vmatpush.msra.mxu0 0.0
    %4380 = vmatpush.msra.mxu0 0.0
    %4381 = vmatpush.msra.mxu0 0.0
    %4382 = vmatpush.msra.mxu0 0.0
    %4383 = vmatpush.msra.mxu0 0.0
    %4384 = vmatpush.msra.mxu0 %v1740
    %4385 = vmatpush.msra.mxu0 %v1738
    %4386 = vmatpush.msra.mxu0 %v1736
    %4387 = vmatpush.msra.mxu0 %v1734
    %4388 = vmatpush.msra.mxu0 %v1732
    %4389 = vmatpush.msra.mxu0 %v1730
    %4390 = vmatpush.msra.mxu0 %v1728
    %4391 = vmatpush.msra.mxu0 %v1726
    %4392 = vmatmul.f32.gmra.mxu0 %v4354
    %v4393 = vpop.f32.mrf.mxu0
    %v4394 = vadd.f32 0.0, %v4393
    %4395 = vdwg.mxu0
    %v4396 = vadd.f32 %v4331, %v4374
    %v4397 = vxor.u32 %v4396, 2147483648
    %v4398 = vmul.f32 %v4397, 1.442695
    %v4399 = vpow.pop %v4398
    %v4400 = vadd.f32 %v4399, 1.0
    %v4401 = vrcp.pop %v4400
    %v4402 = vmul.f32 %v4400, %v4401
    %v4403 = vsub.f32 1.0, %v4402
    %v4404 = vmul.f32 %v4401, %v4403
    %v4405 = vadd.f32 %v4401, %v4404
    %vm4406 = vweird.f32 %v4400
    %vm4407 = vweird.f32 %v4401
    %vm4408 = vmor %vm4406, %vm4407
    %v4409 = vsel %vm4408, %v4401, %v4405
    %v4410 = vand.u32 2147483647, %v4400
    %vm4411 = vcmp.eq.f32.partialorder %v4410, 8.507059e+37
    %v4412 = vand.u32 %v4400, 2147483648
    %v4413 = vor.u32 1.1754944e-38, %v4412
    %v4414 = vsel %vm4411, %v4413, %v4409
    %v4415 = vmul.f32 1.0, %v4414
    %4416 = vrot.lane.b32.xlu0 %v4415, 64
    %v4417 = vpop.permute.xlu0 %4416
    %v4418 = vadd.f32 %v4394, %v1806
    %v4419 = vmul.f32 %v4415, %v4418
    %v4420 = vadd.f32 %v4351, %v4419
    %v4421 = vtanh.pop %v4420
    %v4422 = vsub.f32 %v4197, %v4421
    %v4423 = vmul.f32 %v4417, %v4422
    %v4424 = vadd.f32 %v4421, %v4423
    %v4426 = vsel %vm115, %v4312, 0
    %4428 = vmatpush.msra.mxu0 0.0
    %4429 = vmatpush.msra.mxu0 0.0
    %4430 = vmatpush.msra.mxu0 0.0
    %4431 = vmatpush.msra.mxu0 0.0
    %4432 = vmatpush.msra.mxu0 0.0
    %4433 = vmatpush.msra.mxu0 0.0
    %4434 = vmatpush.msra.mxu0 0.0
    %4435 = vmatpush.msra.mxu0 0.0
    %4436 = vmatpush.msra.mxu0 %v1675
    %4437 = vmatpush.msra.mxu0 %v1673
    %4438 = vmatpush.msra.mxu0 %v1671
    %4439 = vmatpush.msra.mxu0 %v1669
    %4440 = vmatpush.msra.mxu0 %v1667
    %4441 = vmatpush.msra.mxu0 %v1665
    %4442 = vmatpush.msra.mxu0 %v1663
    %4443 = vmatpush.msra.mxu0 %v1661
    %4444 = vmatmul.f32.gmra.mxu0 %v4426
    %v4445 = vpop.f32.mrf.mxu0
    %v4446 = vadd.f32 %v1680, %v4445
    %4447 = vdwg.mxu0
    %4448 = vmatpush.msra.mxu0 0.0
    %4449 = vmatpush.msra.mxu0 0.0
    %4450 = vmatpush.msra.mxu0 0.0
    %4451 = vmatpush.msra.mxu0 0.0
    %4452 = vmatpush.msra.mxu0 0.0
    %4453 = vmatpush.msra.mxu0 0.0
    %4454 = vmatpush.msra.mxu0 0.0
    %4455 = vmatpush.msra.mxu0 0.0
    %4456 = vmatpush.msra.mxu0 %v1676
    %4457 = vmatpush.msra.mxu0 %v1674
    %4458 = vmatpush.msra.mxu0 %v1672
    %4459 = vmatpush.msra.mxu0 %v1670
    %4460 = vmatpush.msra.mxu0 %v1668
    %4461 = vmatpush.msra.mxu0 %v1666
    %4462 = vmatpush.msra.mxu0 %v1664
    %4463 = vmatpush.msra.mxu0 %v1662
    %4464 = vmatmul.f32.gmra.mxu0 %v4426
    %v4465 = vpop.f32.mrf.mxu0
    %v4466 = vadd.f32 %v1681, %v4465
    %4467 = vdwg.mxu0
    %v4469 = vsel %vm115, %v4424, 0
    %4471 = vmatpush.msra.mxu0 0.0
    %4472 = vmatpush.msra.mxu0 0.0
    %4473 = vmatpush.msra.mxu0 0.0
    %4474 = vmatpush.msra.mxu0 0.0
    %4475 = vmatpush.msra.mxu0 0.0
    %4476 = vmatpush.msra.mxu0 0.0
    %4477 = vmatpush.msra.mxu0 0.0
    %4478 = vmatpush.msra.mxu0 0.0
    %4479 = vmatpush.msra.mxu0 %v1739
    %4480 = vmatpush.msra.mxu0 %v1737
    %4481 = vmatpush.msra.mxu0 %v1735
    %4482 = vmatpush.msra.mxu0 %v1733
    %4483 = vmatpush.msra.mxu0 %v1731
    %4484 = vmatpush.msra.mxu0 %v1729
    %4485 = vmatpush.msra.mxu0 %v1727
    %4486 = vmatpush.msra.mxu0 %v1725
    %4487 = vmatmul.f32.gmra.mxu0 %v4469
    %v4488 = vpop.f32.mrf.mxu0
    %v4489 = vadd.f32 0.0, %v4488
    %4490 = vdwg.mxu0
    %4491 = vmatpush.msra.mxu0 0.0
    %4492 = vmatpush.msra.mxu0 0.0
    %4493 = vmatpush.msra.mxu0 0.0
    %4494 = vmatpush.msra.mxu0 0.0
    %4495 = vmatpush.msra.mxu0 0.0
    %4496 = vmatpush.msra.mxu0 0.0
    %4497 = vmatpush.msra.mxu0 0.0
    %4498 = vmatpush.msra.mxu0 0.0
    %4499 = vmatpush.msra.mxu0 %v1740
    %4500 = vmatpush.msra.mxu0 %v1738
    %4501 = vmatpush.msra.mxu0 %v1736
    %4502 = vmatpush.msra.mxu0 %v1734
    %4503 = vmatpush.msra.mxu0 %v1732
    %4504 = vmatpush.msra.mxu0 %v1730
    %4505 = vmatpush.msra.mxu0 %v1728
    %4506 = vmatpush.msra.mxu0 %v1726
    %4507 = vmatmul.f32.gmra.mxu0 %v4469
    %v4508 = vpop.f32.mrf.mxu0
    %v4509 = vadd.f32 0.0, %v4508
    %4510 = vdwg.mxu0
    %v4511 = vadd.f32 %v4446, %v4489
    %v4512 = vxor.u32 %v4511, 2147483648
    %v4513 = vmul.f32 %v4512, 1.442695
    %v4514 = vpow.pop %v4513
    %v4515 = vadd.f32 %v4514, 1.0
    %v4516 = vrcp.pop %v4515
    %v4517 = vmul.f32 %v4515, %v4516
    %v4518 = vsub.f32 1.0, %v4517
    %v4519 = vmul.f32 %v4516, %v4518
    %v4520 = vadd.f32 %v4516, %v4519
    %vm4521 = vweird.f32 %v4515
    %vm4522 = vweird.f32 %v4516
    %vm4523 = vmor %vm4521, %vm4522
    %v4524 = vsel %vm4523, %v4516, %v4520
    %v4525 = vand.u32 2147483647, %v4515
    %vm4526 = vcmp.eq.f32.partialorder %v4525, 8.507059e+37
    %v4527 = vand.u32 %v4515, 2147483648
    %v4528 = vor.u32 1.1754944e-38, %v4527
    %v4529 = vsel %vm4526, %v4528, %v4524
    %v4530 = vmul.f32 1.0, %v4529
    %4531 = vrot.lane.b32.xlu0 %v4530, 64
    %v4532 = vpop.permute.xlu0 %4531
    %v4533 = vadd.f32 %v4509, %v1806
    %v4534 = vmul.f32 %v4530, %v4533
    %v4535 = vadd.f32 %v4466, %v4534
    %v4536 = vtanh.pop %v4535
    %v4537 = vsub.f32 %v4424, %v4536
    %v4538 = vmul.f32 %v4532, %v4537
    %v4539 = vadd.f32 %v4536, %v4538
    %v4540 = vmax.f32 %v4539, 0.0
    %v4541 = vld [vmem:[%s6] sm:$0xff]
    %v4542 = vld [vmem:[%s6 + $0x8] sm:$0xff]
    %v4543 = vld [vmem:[%s6 + $0x10] sm:$0xff]
    %v4544 = vld [vmem:[%s6 + $0x18] sm:$0xff]
    %v4545 = vld [vmem:[%s6 + $0x20] sm:$0xff]
    %v4546 = vld [vmem:[%s6 + $0x28] sm:$0xff]
    %v4547 = vld [vmem:[%s6 + $0x30] sm:$0xff]
    %v4548 = vld [vmem:[%s6 + $0x38] sm:$0xff]
    %v4549 = vld [vmem:[%s7] sm:$0x1]
    %v4551 = vperm.slane %v4549, 0
    %v4554 = vsel %vm115, %v4540, 0
    %4556 = vmatpush.msra.mxu0 0.0
    %4557 = vmatpush.msra.mxu0 0.0
    %4558 = vmatpush.msra.mxu0 0.0
    %4559 = vmatpush.msra.mxu0 0.0
    %4560 = vmatpush.msra.mxu0 0.0
    %4561 = vmatpush.msra.mxu0 0.0
    %4562 = vmatpush.msra.mxu0 0.0
    %4563 = vmatpush.msra.mxu0 0.0
    %4564 = vmatpush.msra.mxu0 %v4548
    %4565 = vmatpush.msra.mxu0 %v4547
    %4566 = vmatpush.msra.mxu0 %v4546
    %4567 = vmatpush.msra.mxu0 %v4545
    %4568 = vmatpush.msra.mxu0 %v4544
    %4569 = vmatpush.msra.mxu0 %v4543
    %4570 = vmatpush.msra.mxu0 %v4542
    %4571 = vmatpush.msra.mxu0 %v4541
    %4572 = vmatmul.f32.gmra.mxu0 %v4554
    %v4573 = vpop.f32.mrf.mxu0
    %v4574 = vadd.f32 %v4551, %v4573
    %4575 = vdwg.mxu0
    %4576 = vst [vmem:[#allocation8] sm:$0xff] %v4574
    // Predicated region
    $region46: #{tpu_custom_call.1} parent=1 // pred_check
      _
    $region47: #{tpu_custom_call.1} parent=1 // pred_check_branch
      %4578 = sbr.rel (0) target = $region49
    $region48: #{tpu_custom_call.1} parent=1 // pred_region
      %4580 = vsyncadd [#allocation4], 0
      %s4582 = sshll.u32 [#allocation8], 4
      %s4583 = int_to_ptr.vmem [resolvable:$true] %s4582
      %s4584 = sshll.u32 %s8, 4
      %s4585 = int_to_ptr.hbm [resolvable:$true] %s4584
      %4587 = dma.vmem_to_hbm [thread:$0]  %s4583, 128, %s4585, [#allocation4]
    $region49: #{tpu_custom_call.1} parent=1 // pred_fallthru
      _
    // Predicated region
    $region50: #{tpu_custom_call.1} parent=1 // pred_check
      _
    $region51: #{tpu_custom_call.1} parent=1 // pred_check_branch
      %4589 = sbr.rel (0) target = $region53
    $region52: #{tpu_custom_call.1} parent=1 // pred_region
      %4591 = dma.done [#allocation4], 128
    $region53: #{tpu_custom_call.1} parent=1 // pred_fallthru
      _
    %4592 = vsyncpa [#allocation3], 1
    %4593 = vsyncpa [#allocation6], 1
    %4594 = vsyncpa [#allocation4], 1

</llo_original>
